<compile_context>
chip_gen: v7x
topology: tpu7x:2x2x1
jax: 0.10.0
libtpu: 0.0.40
codegen_flags: <defaults>
</compile_context>

<pallas_src>
import functools
import math

import jax
import jax.numpy as jnp
from jax import lax
from jax.experimental import pallas as pl
from jax.experimental.pallas import tpu as pltpu

C_FEAT = 512                                   # extractor output channels
LEVELS = (2, 2, 1, 1)                          # SPP levels used by SPP_Net.forward
FC_IN = C_FEAT * sum(l * l for l in LEVELS)    # 5120
FC_OUT = 2
N_CHUNKS = 5                                   # 4 level-2 cells + 1 global max
OUT_PAD = 128                                  # lane-dense output width


# ---------------------------------------------------------------------------
# Fused kernel: conv1x1+ReLU (MXU) -> SPP max pool -> folded fc (VPU/XLU).
# One grid step handles TB batch elements.
# ---------------------------------------------------------------------------
def _spp_net_fused_kernel(x_ref, cw_ref, cb_ref, fw_ref, fb_ref, o_ref,
                          pooled_ref, *, H, W):
    # x_ref     : (TB, Cin, H*W)      free reshape of NCHW, H*W on lanes
    # cw_ref    : (Cin, C)            1x1 conv weight (lane-dense)
    # cb_ref    : (1, C)              conv bias
    # fw_ref    : (FC_OUT, 5*C)       folded fc weight, cols = [cell0..cell3|global]
    # fb_ref    : (1, OUT_PAD)        fc bias zero-padded to 128 lanes
    # o_ref     : (TB, OUT_PAD)       lane-dense output (cols >= FC_OUT are 0)
    # pooled_ref: (TB, 5*C)           VMEM scratch for the pooled features
    TB = x_ref.shape[0]
    C = cw_ref.shape[1]
    hk, wk = H // 2, W // 2
    # TODO(synk): the general ceil/zero-pad path of PyramidPooling for H or W
    # not divisible by the level is not implemented; for 16x16 with levels
    # {2, 1} the pad is exactly 0, so semantics match the PyTorch module.

    cw = cw_ref[...]                            # (Cin, C)
    cb = cb_ref[...]                            # (1, C)

    for b in range(TB):
        # --- 1x1 conv + ReLU on the MXU ---------------------------------
        # x arrives channel-major; contract lhs dim 0 ("trans_a" form) so no
        # wrapper transpose is needed: (Cin, HW) x (Cin, C) -> (HW, C).
        feat = lax.dot_general(
            x_ref[b], cw,
            dimension_numbers=(((0,), (0,)), ((), ())),
            preferred_element_type=jnp.float32,
            precision=lax.Precision.HIGHEST)                    # (HW, C)
        feat = jnp.maximum(feat + cb, 0.0)

        # --- level-2 max pool --------------------------------------------
        # For each cell: elementwise VPU max across the hk row slabs first,
        # then ONE sublane (XLU) reduce over wk.  Rows of `feat` are h*W + w.
        cell_maxes = []
        for ph in range(2):
            for pw in range(2):
                m = None
                for i in range(hk):
                    r0 = (ph * hk + i) * W + pw * wk
                    slab = feat[r0:r0 + wk, :]                  # (wk, C)
                    m = slab if m is None else jnp.maximum(m, slab)
                cell_maxes.append(jnp.max(m, axis=0, keepdims=True))  # (1, C)

        # level-1 global max == elementwise max of the four level-2 cell maxes
        gmax = jnp.maximum(jnp.maximum(cell_maxes[0], cell_maxes[1]),
                           jnp.maximum(cell_maxes[2], cell_maxes[3]))  # (1, C)

        # Write the five lane-aligned C-wide chunks into the pooled scratch.
        for ci, cm in enumerate(cell_maxes + [gmax]):
            pooled_ref[pl.ds(b, 1), pl.ds(ci * C, C)] = cm

    # --- folded fc: K = 5*C = 2560, N = FC_OUT = 2, M = TB (tiny) ----------
    # M is far too small to feed the MXU usefully, so each output column is a
    # lane-dense VPU multiply + XLU lane-reduce; results are placed into a
    # 128-lane-wide tile so the final store is unmasked.
    pooled = pooled_ref[...]                                    # (TB, 5*C)
    fw = fw_ref[...]                                            # (FC_OUT, 5*C)
    out_w = o_ref.shape[-1]
    col = lax.broadcasted_iota(jnp.int32, (TB, out_w), 1)
    out = jnp.zeros((TB, out_w), jnp.float32)
    for o in range(FC_OUT):
        val = jnp.sum(pooled * fw[o:o + 1, :], axis=1, keepdims=True)  # (TB, 1)
        out = jnp.where(col == o, val, out)
    o_ref[...] = out + fb_ref[...]                              # lane-dense store


# ---------------------------------------------------------------------------
# Host-side folding of the fc weights (one-time, hoisted out of forward).
#
# spp = concat([p2, p2, p1, p1]) with p2[b, c*4 + (ph*2+pw)] = pool2[b,c,ph,pw]
# and p1[b, c] = pool1[b, c].  Linearity lets us fold the duplication and the
# PyTorch (B,C,l,l).view(B,-1) flatten permutation into the weights.
# ---------------------------------------------------------------------------
def _fold_fc_weights(fc_w):
    C = C_FEAT
    w2 = (fc_w[0:4 * C].reshape(C, 4, FC_OUT)
          + fc_w[4 * C:8 * C].reshape(C, 4, FC_OUT))            # [c, cell, o]
    w2 = jnp.transpose(w2, (1, 0, 2)).reshape(4 * C, FC_OUT)    # row = cell*C + c
    w1 = fc_w[8 * C:9 * C] + fc_w[9 * C:10 * C]                 # (C, FC_OUT)
    return jnp.concatenate([w2, w1], axis=0)                    # (5*C, FC_OUT)


def prepare_params(params):
    """One-time kernel-ready parameter prep (call once, outside the jit)."""
    fw = jnp.transpose(_fold_fc_weights(params["fc_w"])).astype(jnp.float32)  # (2, 2560)
    fb = jnp.zeros((1, OUT_PAD), jnp.float32).at[0, :FC_OUT].set(
        params["fc_b"].astype(jnp.float32))
    return {
        "conv_w": params["conv_w"].astype(jnp.float32),              # (Cin, C)
        "conv_b": params["conv_b"].reshape(1, C_FEAT).astype(jnp.float32),
        "fc_w": fw,                                                  # (FC_OUT, 5*C)
        "fc_b": fb,                                                  # (1, OUT_PAD)
    }


# ---------------------------------------------------------------------------
# Full SPP_Net forward (single fused pallas_call).
# ---------------------------------------------------------------------------
def spp_net_forward(x_nchw, prep, *, max_tb=8):
    B, Cin, H, W = x_nchw.shape
    assert H % 2 == 0 and W % 2 == 0, "non-divisible sizes need the pad path"
    HW = H * W

    tb = B if B <= max_tb else max_tb
    b_pad = -(-B // tb) * tb
    x = x_nchw.reshape(B, Cin, HW).astype(jnp.float32)   # free reshape of NCHW
    if b_pad != B:
        x = jnp.pad(x, ((0, b_pad - B), (0, 0), (0, 0)))
    steps = b_pad // tb

    out = pl.pallas_call(
        functools.partial(_spp_net_fused_kernel, H=H, W=W),
        out_shape=jax.ShapeDtypeStruct((b_pad, OUT_PAD), jnp.float32),
        grid=(steps,),
        in_specs=[
            pl.BlockSpec((tb, Cin, HW), lambda i: (i, 0, 0)),
            pl.BlockSpec((Cin, C_FEAT), lambda i: (0, 0)),
            pl.BlockSpec((1, C_FEAT), lambda i: (0, 0)),
            pl.BlockSpec((FC_OUT, N_CHUNKS * C_FEAT), lambda i: (0, 0)),
            pl.BlockSpec((1, OUT_PAD), lambda i: (0, 0)),
        ],
        out_specs=pl.BlockSpec((tb, OUT_PAD), lambda i: (i, 0)),
        scratch_shapes=[pltpu.VMEM((tb, N_CHUNKS * C_FEAT), jnp.float32)],
        compiler_params=pltpu.CompilerParams(
            dimension_semantics=("parallel",)),   # multi-step grids split over TCs
    )(x, prep["conv_w"], prep["conv_b"], prep["fc_w"], prep["fc_b"])
    return out[:B, :FC_OUT]


# ---------------------------------------------------------------------------
# Pure-JAX reference (mirrors the PyTorch module, unfused / unfolded weights).
# ---------------------------------------------------------------------------
def _spp_net_reference(x_nchw, params):
    x = jnp.transpose(x_nchw, (0, 2, 3, 1)).astype(jnp.float32)      # NHWC
    feat = jnp.maximum(
        jnp.einsum("bhwc,cf->bhwf", x, params["conv_w"],
                   precision=lax.Precision.HIGHEST) + params["conv_b"], 0.0)
    B, H, W, C = feat.shape
    f = feat.reshape(B, 2, H // 2, 2, W // 2, C)
    p2 = jnp.max(f, axis=(2, 4))                                     # (B,2,2,C)
    p2 = jnp.transpose(p2, (0, 3, 1, 2)).reshape(B, C * 4)           # c*4+ph*2+pw
    p1 = jnp.max(feat, axis=(1, 2))                                  # (B,C)
    spp = jnp.concatenate([p2, p2, p1, p1], axis=1)                  # (B,5120)
    return (jnp.dot(spp, params["fc_w"], precision=lax.Precision.HIGHEST)
            + params["fc_b"])


def init_params(key, cin):
    k1, k2, k3, k4 = jax.random.split(key, 4)
    # conv: PyTorch Conv2d(cin, 512, 1) weight (512, cin, 1, 1); stored transposed.
    conv_w = jax.random.normal(k1, (cin, C_FEAT), jnp.float32) * 0.1
    conv_b = jax.random.normal(k2, (C_FEAT,), jnp.float32) * 0.1
    # fc1: PyTorch Linear(5120, 2) weight (2, 5120); stored as its transpose.
    bound = 1.0 / math.sqrt(FC_IN)
    fc_w = jax.random.uniform(k3, (FC_IN, FC_OUT), jnp.float32, -bound, bound)
    fc_b = jax.random.uniform(k4, (FC_OUT,), jnp.float32, -bound, bound)
    return {"conv_w": conv_w, "conv_b": conv_b, "fc_w": fc_w, "fc_b": fc_b}


if __name__ == "__main__":
    key = jax.random.PRNGKey(0)
    kx, kp = jax.random.split(key)

    B, CIN, H, W = 2, 4, 16, 16              # NCHW, as the PyTorch module expects
    x = jax.random.normal(kx, (B, CIN, H, W), jnp.float32)
    params = init_params(kp, CIN)

    prep = prepare_params(params)            # one-time fold / pad, hoisted out of forward
    fwd = jax.jit(spp_net_forward)

    out = jax.block_until_ready(fwd(x, prep))
    assert out.shape == (B, FC_OUT) and out.dtype == jnp.float32
    assert bool(jnp.all(jnp.isfinite(out)))

    ref = _spp_net_reference(x, params)
    assert bool(jnp.allclose(out, ref, rtol=5e-3, atol=5e-3)), (out, ref)
    print("KERNEL_OK")
</pallas_src>

<mosaic_0001>
module attributes {stable_mosaic.version = 11 : i64} {
  func.func @_spp_net_fused_kernel(%arg0: i32, %arg1: memref<2x4x256xf32, #tpu.memory_space<vmem>>, %arg2: memref<4x512xf32, #tpu.memory_space<vmem>>, %arg3: memref<1x512xf32, #tpu.memory_space<vmem>>, %arg4: memref<2x2560xf32, #tpu.memory_space<vmem>>, %arg5: memref<1x128xf32, #tpu.memory_space<vmem>>, %arg6: memref<2x128xf32, #tpu.memory_space<vmem>>, %arg7: memref<2x2560xf32, #tpu.memory_space<vmem>>) attributes {dimension_semantics = [#tpu.dimension_semantics<parallel>], iteration_bounds = array<i64: 1>, scalar_prefetch = 0 : i64, scratch_operands = 1 : i64, tpu.core_type = #tpu.core_type<tc>, window_params = [{transform_indices = @transform_0, window_bounds = array<i64: 2, 4, 256>}, {pipeline_mode = #tpu.pipeline_mode<synchronous>, transform_indices = @transform_1, window_bounds = array<i64: 4, 512>}, {pipeline_mode = #tpu.pipeline_mode<synchronous>, transform_indices = @transform_2, window_bounds = array<i64: 1, 512>}, {pipeline_mode = #tpu.pipeline_mode<synchronous>, transform_indices = @transform_3, window_bounds = array<i64: 2, 2560>}, {pipeline_mode = #tpu.pipeline_mode<synchronous>, transform_indices = @transform_4, window_bounds = array<i64: 1, 128>}, {transform_indices = @transform_5, window_bounds = array<i64: 2, 128>}]} {
    %c0 = arith.constant 0 : index
    %c0_0 = arith.constant 0 : index
    %0 = vector.load %arg2[%c0, %c0_0] : memref<4x512xf32, #tpu.memory_space<vmem>>, vector<4x512xf32>
    %c0_1 = arith.constant 0 : index
    %c0_2 = arith.constant 0 : index
    %1 = vector.load %arg3[%c0_1, %c0_2] : memref<1x512xf32, #tpu.memory_space<vmem>>, vector<1x512xf32>
    %c0_3 = arith.constant 0 : index
    %c0_4 = arith.constant 0 : index
    %c0_5 = arith.constant 0 : index
    %2 = vector.load %arg1[%c0_3, %c0_4, %c0_5] : memref<2x4x256xf32, #tpu.memory_space<vmem>>, vector<1x4x256xf32>
    %3 = vector.shape_cast %2 : vector<1x4x256xf32> to vector<4x256xf32>
    %cst = arith.constant dense<0.000000e+00> : vector<256x512xf32>
    %4 = tpu.matmul %3, %0, %cst {dimension_numbers = #tpu.dot_dimension_numbers<[0], [0], [1], [1], [0, 1, 1, 1], [], []>, precision = #tpu.contract_precision<fp32>} : vector<4x256xf32>, vector<4x512xf32>, vector<256x512xf32> -> vector<256x512xf32>
    %5 = vector.broadcast %1 : vector<1x512xf32> to vector<256x512xf32>
    %6 = arith.addf %4, %5 : vector<256x512xf32>
    %cst_6 = arith.constant 0.000000e+00 : f32
    %7 = vector.broadcast %cst_6 : f32 to vector<256x512xf32>
    %8 = arith.maximumf %6, %7 : vector<256x512xf32>
    %9 = vector.extract_strided_slice %8 {offsets = [0, 0], sizes = [8, 512], strides = [1, 1]} : vector<256x512xf32> to vector<8x512xf32>
    %10 = vector.extract_strided_slice %8 {offsets = [16, 0], sizes = [8, 512], strides = [1, 1]} : vector<256x512xf32> to vector<8x512xf32>
    %11 = arith.maximumf %9, %10 : vector<8x512xf32>
    %12 = vector.extract_strided_slice %8 {offsets = [32, 0], sizes = [8, 512], strides = [1, 1]} : vector<256x512xf32> to vector<8x512xf32>
    %13 = arith.maximumf %11, %12 : vector<8x512xf32>
    %14 = vector.extract_strided_slice %8 {offsets = [48, 0], sizes = [8, 512], strides = [1, 1]} : vector<256x512xf32> to vector<8x512xf32>
    %15 = arith.maximumf %13, %14 : vector<8x512xf32>
    %16 = vector.extract_strided_slice %8 {offsets = [64, 0], sizes = [8, 512], strides = [1, 1]} : vector<256x512xf32> to vector<8x512xf32>
    %17 = arith.maximumf %15, %16 : vector<8x512xf32>
    %18 = vector.extract_strided_slice %8 {offsets = [80, 0], sizes = [8, 512], strides = [1, 1]} : vector<256x512xf32> to vector<8x512xf32>
    %19 = arith.maximumf %17, %18 : vector<8x512xf32>
    %20 = vector.extract_strided_slice %8 {offsets = [96, 0], sizes = [8, 512], strides = [1, 1]} : vector<256x512xf32> to vector<8x512xf32>
    %21 = arith.maximumf %19, %20 : vector<8x512xf32>
    %22 = vector.extract_strided_slice %8 {offsets = [112, 0], sizes = [8, 512], strides = [1, 1]} : vector<256x512xf32> to vector<8x512xf32>
    %23 = arith.maximumf %21, %22 : vector<8x512xf32>
    %cst_7 = arith.constant dense<0xFF800000> : vector<512xf32>
    %24 = vector.multi_reduction <maximumf>, %23, %cst_7 [0] : vector<8x512xf32> to vector<512xf32>
    %25 = vector.shape_cast %24 : vector<512xf32> to vector<1x512xf32>
    %26 = vector.extract_strided_slice %8 {offsets = [8, 0], sizes = [8, 512], strides = [1, 1]} : vector<256x512xf32> to vector<8x512xf32>
    %27 = vector.extract_strided_slice %8 {offsets = [24, 0], sizes = [8, 512], strides = [1, 1]} : vector<256x512xf32> to vector<8x512xf32>
    %28 = arith.maximumf %26, %27 : vector<8x512xf32>
    %29 = vector.extract_strided_slice %8 {offsets = [40, 0], sizes = [8, 512], strides = [1, 1]} : vector<256x512xf32> to vector<8x512xf32>
    %30 = arith.maximumf %28, %29 : vector<8x512xf32>
    %31 = vector.extract_strided_slice %8 {offsets = [56, 0], sizes = [8, 512], strides = [1, 1]} : vector<256x512xf32> to vector<8x512xf32>
    %32 = arith.maximumf %30, %31 : vector<8x512xf32>
    %33 = vector.extract_strided_slice %8 {offsets = [72, 0], sizes = [8, 512], strides = [1, 1]} : vector<256x512xf32> to vector<8x512xf32>
    %34 = arith.maximumf %32, %33 : vector<8x512xf32>
    %35 = vector.extract_strided_slice %8 {offsets = [88, 0], sizes = [8, 512], strides = [1, 1]} : vector<256x512xf32> to vector<8x512xf32>
    %36 = arith.maximumf %34, %35 : vector<8x512xf32>
    %37 = vector.extract_strided_slice %8 {offsets = [104, 0], sizes = [8, 512], strides = [1, 1]} : vector<256x512xf32> to vector<8x512xf32>
    %38 = arith.maximumf %36, %37 : vector<8x512xf32>
    %39 = vector.extract_strided_slice %8 {offsets = [120, 0], sizes = [8, 512], strides = [1, 1]} : vector<256x512xf32> to vector<8x512xf32>
    %40 = arith.maximumf %38, %39 : vector<8x512xf32>
    %cst_8 = arith.constant dense<0xFF800000> : vector<512xf32>
    %41 = vector.multi_reduction <maximumf>, %40, %cst_8 [0] : vector<8x512xf32> to vector<512xf32>
    %42 = vector.shape_cast %41 : vector<512xf32> to vector<1x512xf32>
    %43 = vector.extract_strided_slice %8 {offsets = [128, 0], sizes = [8, 512], strides = [1, 1]} : vector<256x512xf32> to vector<8x512xf32>
    %44 = vector.extract_strided_slice %8 {offsets = [144, 0], sizes = [8, 512], strides = [1, 1]} : vector<256x512xf32> to vector<8x512xf32>
    %45 = arith.maximumf %43, %44 : vector<8x512xf32>
    %46 = vector.extract_strided_slice %8 {offsets = [160, 0], sizes = [8, 512], strides = [1, 1]} : vector<256x512xf32> to vector<8x512xf32>
    %47 = arith.maximumf %45, %46 : vector<8x512xf32>
    %48 = vector.extract_strided_slice %8 {offsets = [176, 0], sizes = [8, 512], strides = [1, 1]} : vector<256x512xf32> to vector<8x512xf32>
    %49 = arith.maximumf %47, %48 : vector<8x512xf32>
    %50 = vector.extract_strided_slice %8 {offsets = [192, 0], sizes = [8, 512], strides = [1, 1]} : vector<256x512xf32> to vector<8x512xf32>
    %51 = arith.maximumf %49, %50 : vector<8x512xf32>
    %52 = vector.extract_strided_slice %8 {offsets = [208, 0], sizes = [8, 512], strides = [1, 1]} : vector<256x512xf32> to vector<8x512xf32>
    %53 = arith.maximumf %51, %52 : vector<8x512xf32>
    %54 = vector.extract_strided_slice %8 {offsets = [224, 0], sizes = [8, 512], strides = [1, 1]} : vector<256x512xf32> to vector<8x512xf32>
    %55 = arith.maximumf %53, %54 : vector<8x512xf32>
    %56 = vector.extract_strided_slice %8 {offsets = [240, 0], sizes = [8, 512], strides = [1, 1]} : vector<256x512xf32> to vector<8x512xf32>
    %57 = arith.maximumf %55, %56 : vector<8x512xf32>
    %cst_9 = arith.constant dense<0xFF800000> : vector<512xf32>
    %58 = vector.multi_reduction <maximumf>, %57, %cst_9 [0] : vector<8x512xf32> to vector<512xf32>
    %59 = vector.shape_cast %58 : vector<512xf32> to vector<1x512xf32>
    %60 = vector.extract_strided_slice %8 {offsets = [136, 0], sizes = [8, 512], strides = [1, 1]} : vector<256x512xf32> to vector<8x512xf32>
    %61 = vector.extract_strided_slice %8 {offsets = [152, 0], sizes = [8, 512], strides = [1, 1]} : vector<256x512xf32> to vector<8x512xf32>
    %62 = arith.maximumf %60, %61 : vector<8x512xf32>
    %63 = vector.extract_strided_slice %8 {offsets = [168, 0], sizes = [8, 512], strides = [1, 1]} : vector<256x512xf32> to vector<8x512xf32>
    %64 = arith.maximumf %62, %63 : vector<8x512xf32>
    %65 = vector.extract_strided_slice %8 {offsets = [184, 0], sizes = [8, 512], strides = [1, 1]} : vector<256x512xf32> to vector<8x512xf32>
    %66 = arith.maximumf %64, %65 : vector<8x512xf32>
    %67 = vector.extract_strided_slice %8 {offsets = [200, 0], sizes = [8, 512], strides = [1, 1]} : vector<256x512xf32> to vector<8x512xf32>
    %68 = arith.maximumf %66, %67 : vector<8x512xf32>
    %69 = vector.extract_strided_slice %8 {offsets = [216, 0], sizes = [8, 512], strides = [1, 1]} : vector<256x512xf32> to vector<8x512xf32>
    %70 = arith.maximumf %68, %69 : vector<8x512xf32>
    %71 = vector.extract_strided_slice %8 {offsets = [232, 0], sizes = [8, 512], strides = [1, 1]} : vector<256x512xf32> to vector<8x512xf32>
    %72 = arith.maximumf %70, %71 : vector<8x512xf32>
    %73 = vector.extract_strided_slice %8 {offsets = [248, 0], sizes = [8, 512], strides = [1, 1]} : vector<256x512xf32> to vector<8x512xf32>
    %74 = arith.maximumf %72, %73 : vector<8x512xf32>
    %cst_10 = arith.constant dense<0xFF800000> : vector<512xf32>
    %75 = vector.multi_reduction <maximumf>, %74, %cst_10 [0] : vector<8x512xf32> to vector<512xf32>
    %76 = vector.shape_cast %75 : vector<512xf32> to vector<1x512xf32>
    %77 = arith.maximumf %25, %42 : vector<1x512xf32>
    %78 = arith.maximumf %59, %76 : vector<1x512xf32>
    %79 = arith.maximumf %77, %78 : vector<1x512xf32>
    %c0_11 = arith.constant 0 : index
    %c0_12 = arith.constant 0 : index
    %80 = vector.load %arg7[%c0_11, %c0_12] : memref<2x2560xf32, #tpu.memory_space<vmem>>, vector<1x512xf32>
    tpu.vector_store %arg7[%c0_11, %c0_12], %25 {strides = array<i32>} : memref<2x2560xf32, #tpu.memory_space<vmem>>, vector<1x512xf32>,
    %c0_13 = arith.constant 0 : index
    %c512 = arith.constant 512 : index
    %81 = vector.load %arg7[%c0_13, %c512] : memref<2x2560xf32, #tpu.memory_space<vmem>>, vector<1x512xf32>
    tpu.vector_store %arg7[%c0_13, %c512], %42 {strides = array<i32>} : memref<2x2560xf32, #tpu.memory_space<vmem>>, vector<1x512xf32>,
    %c0_14 = arith.constant 0 : index
    %c1024 = arith.constant 1024 : index
    %82 = vector.load %arg7[%c0_14, %c1024] : memref<2x2560xf32, #tpu.memory_space<vmem>>, vector<1x512xf32>
    tpu.vector_store %arg7[%c0_14, %c1024], %59 {strides = array<i32>} : memref<2x2560xf32, #tpu.memory_space<vmem>>, vector<1x512xf32>,
    %c0_15 = arith.constant 0 : index
    %c1536 = arith.constant 1536 : index
    %83 = vector.load %arg7[%c0_15, %c1536] : memref<2x2560xf32, #tpu.memory_space<vmem>>, vector<1x512xf32>
    tpu.vector_store %arg7[%c0_15, %c1536], %76 {strides = array<i32>} : memref<2x2560xf32, #tpu.memory_space<vmem>>, vector<1x512xf32>,
    %c0_16 = arith.constant 0 : index
    %c2048 = arith.constant 2048 : index
    %84 = vector.load %arg7[%c0_16, %c2048] : memref<2x2560xf32, #tpu.memory_space<vmem>>, vector<1x512xf32>
    tpu.vector_store %arg7[%c0_16, %c2048], %79 {strides = array<i32>} : memref<2x2560xf32, #tpu.memory_space<vmem>>, vector<1x512xf32>,
    %c1 = arith.constant 1 : index
    %c0_17 = arith.constant 0 : index
    %c0_18 = arith.constant 0 : index
    %85 = vector.load %arg1[%c1, %c0_17, %c0_18] : memref<2x4x256xf32, #tpu.memory_space<vmem>>, vector<1x4x256xf32>
    %86 = vector.shape_cast %85 : vector<1x4x256xf32> to vector<4x256xf32>
    %cst_19 = arith.constant dense<0.000000e+00> : vector<256x512xf32>
    %87 = tpu.matmul %86, %0, %cst_19 {dimension_numbers = #tpu.dot_dimension_numbers<[0], [0], [1], [1], [0, 1, 1, 1], [], []>, precision = #tpu.contract_precision<fp32>} : vector<4x256xf32>, vector<4x512xf32>, vector<256x512xf32> -> vector<256x512xf32>
    %88 = vector.broadcast %1 : vector<1x512xf32> to vector<256x512xf32>
    %89 = arith.addf %87, %88 : vector<256x512xf32>
    %cst_20 = arith.constant 0.000000e+00 : f32
    %90 = vector.broadcast %cst_20 : f32 to vector<256x512xf32>
    %91 = arith.maximumf %89, %90 : vector<256x512xf32>
    %92 = vector.extract_strided_slice %91 {offsets = [0, 0], sizes = [8, 512], strides = [1, 1]} : vector<256x512xf32> to vector<8x512xf32>
    %93 = vector.extract_strided_slice %91 {offsets = [16, 0], sizes = [8, 512], strides = [1, 1]} : vector<256x512xf32> to vector<8x512xf32>
    %94 = arith.maximumf %92, %93 : vector<8x512xf32>
    %95 = vector.extract_strided_slice %91 {offsets = [32, 0], sizes = [8, 512], strides = [1, 1]} : vector<256x512xf32> to vector<8x512xf32>
    %96 = arith.maximumf %94, %95 : vector<8x512xf32>
    %97 = vector.extract_strided_slice %91 {offsets = [48, 0], sizes = [8, 512], strides = [1, 1]} : vector<256x512xf32> to vector<8x512xf32>
    %98 = arith.maximumf %96, %97 : vector<8x512xf32>
    %99 = vector.extract_strided_slice %91 {offsets = [64, 0], sizes = [8, 512], strides = [1, 1]} : vector<256x512xf32> to vector<8x512xf32>
    %100 = arith.maximumf %98, %99 : vector<8x512xf32>
    %101 = vector.extract_strided_slice %91 {offsets = [80, 0], sizes = [8, 512], strides = [1, 1]} : vector<256x512xf32> to vector<8x512xf32>
    %102 = arith.maximumf %100, %101 : vector<8x512xf32>
    %103 = vector.extract_strided_slice %91 {offsets = [96, 0], sizes = [8, 512], strides = [1, 1]} : vector<256x512xf32> to vector<8x512xf32>
    %104 = arith.maximumf %102, %103 : vector<8x512xf32>
    %105 = vector.extract_strided_slice %91 {offsets = [112, 0], sizes = [8, 512], strides = [1, 1]} : vector<256x512xf32> to vector<8x512xf32>
    %106 = arith.maximumf %104, %105 : vector<8x512xf32>
    %cst_21 = arith.constant dense<0xFF800000> : vector<512xf32>
    %107 = vector.multi_reduction <maximumf>, %106, %cst_21 [0] : vector<8x512xf32> to vector<512xf32>
    %108 = vector.shape_cast %107 : vector<512xf32> to vector<1x512xf32>
    %109 = vector.extract_strided_slice %91 {offsets = [8, 0], sizes = [8, 512], strides = [1, 1]} : vector<256x512xf32> to vector<8x512xf32>
    %110 = vector.extract_strided_slice %91 {offsets = [24, 0], sizes = [8, 512], strides = [1, 1]} : vector<256x512xf32> to vector<8x512xf32>
    %111 = arith.maximumf %109, %110 : vector<8x512xf32>
    %112 = vector.extract_strided_slice %91 {offsets = [40, 0], sizes = [8, 512], strides = [1, 1]} : vector<256x512xf32> to vector<8x512xf32>
    %113 = arith.maximumf %111, %112 : vector<8x512xf32>
    %114 = vector.extract_strided_slice %91 {offsets = [56, 0], sizes = [8, 512], strides = [1, 1]} : vector<256x512xf32> to vector<8x512xf32>
    %115 = arith.maximumf %113, %114 : vector<8x512xf32>
    %116 = vector.extract_strided_slice %91 {offsets = [72, 0], sizes = [8, 512], strides = [1, 1]} : vector<256x512xf32> to vector<8x512xf32>
    %117 = arith.maximumf %115, %116 : vector<8x512xf32>
    %118 = vector.extract_strided_slice %91 {offsets = [88, 0], sizes = [8, 512], strides = [1, 1]} : vector<256x512xf32> to vector<8x512xf32>
    %119 = arith.maximumf %117, %118 : vector<8x512xf32>
    %120 = vector.extract_strided_slice %91 {offsets = [104, 0], sizes = [8, 512], strides = [1, 1]} : vector<256x512xf32> to vector<8x512xf32>
    %121 = arith.maximumf %119, %120 : vector<8x512xf32>
    %122 = vector.extract_strided_slice %91 {offsets = [120, 0], sizes = [8, 512], strides = [1, 1]} : vector<256x512xf32> to vector<8x512xf32>
    %123 = arith.maximumf %121, %122 : vector<8x512xf32>
    %cst_22 = arith.constant dense<0xFF800000> : vector<512xf32>
    %124 = vector.multi_reduction <maximumf>, %123, %cst_22 [0] : vector<8x512xf32> to vector<512xf32>
    %125 = vector.shape_cast %124 : vector<512xf32> to vector<1x512xf32>
    %126 = vector.extract_strided_slice %91 {offsets = [128, 0], sizes = [8, 512], strides = [1, 1]} : vector<256x512xf32> to vector<8x512xf32>
    %127 = vector.extract_strided_slice %91 {offsets = [144, 0], sizes = [8, 512], strides = [1, 1]} : vector<256x512xf32> to vector<8x512xf32>
    %128 = arith.maximumf %126, %127 : vector<8x512xf32>
    %129 = vector.extract_strided_slice %91 {offsets = [160, 0], sizes = [8, 512], strides = [1, 1]} : vector<256x512xf32> to vector<8x512xf32>
    %130 = arith.maximumf %128, %129 : vector<8x512xf32>
    %131 = vector.extract_strided_slice %91 {offsets = [176, 0], sizes = [8, 512], strides = [1, 1]} : vector<256x512xf32> to vector<8x512xf32>
    %132 = arith.maximumf %130, %131 : vector<8x512xf32>
    %133 = vector.extract_strided_slice %91 {offsets = [192, 0], sizes = [8, 512], strides = [1, 1]} : vector<256x512xf32> to vector<8x512xf32>
    %134 = arith.maximumf %132, %133 : vector<8x512xf32>
    %135 = vector.extract_strided_slice %91 {offsets = [208, 0], sizes = [8, 512], strides = [1, 1]} : vector<256x512xf32> to vector<8x512xf32>
    %136 = arith.maximumf %134, %135 : vector<8x512xf32>
    %137 = vector.extract_strided_slice %91 {offsets = [224, 0], sizes = [8, 512], strides = [1, 1]} : vector<256x512xf32> to vector<8x512xf32>
    %138 = arith.maximumf %136, %137 : vector<8x512xf32>
    %139 = vector.extract_strided_slice %91 {offsets = [240, 0], sizes = [8, 512], strides = [1, 1]} : vector<256x512xf32> to vector<8x512xf32>
    %140 = arith.maximumf %138, %139 : vector<8x512xf32>
    %cst_23 = arith.constant dense<0xFF800000> : vector<512xf32>
    %141 = vector.multi_reduction <maximumf>, %140, %cst_23 [0] : vector<8x512xf32> to vector<512xf32>
    %142 = vector.shape_cast %141 : vector<512xf32> to vector<1x512xf32>
    %143 = vector.extract_strided_slice %91 {offsets = [136, 0], sizes = [8, 512], strides = [1, 1]} : vector<256x512xf32> to vector<8x512xf32>
    %144 = vector.extract_strided_slice %91 {offsets = [152, 0], sizes = [8, 512], strides = [1, 1]} : vector<256x512xf32> to vector<8x512xf32>
    %145 = arith.maximumf %143, %144 : vector<8x512xf32>
    %146 = vector.extract_strided_slice %91 {offsets = [168, 0], sizes = [8, 512], strides = [1, 1]} : vector<256x512xf32> to vector<8x512xf32>
    %147 = arith.maximumf %145, %146 : vector<8x512xf32>
    %148 = vector.extract_strided_slice %91 {offsets = [184, 0], sizes = [8, 512], strides = [1, 1]} : vector<256x512xf32> to vector<8x512xf32>
    %149 = arith.maximumf %147, %148 : vector<8x512xf32>
    %150 = vector.extract_strided_slice %91 {offsets = [200, 0], sizes = [8, 512], strides = [1, 1]} : vector<256x512xf32> to vector<8x512xf32>
    %151 = arith.maximumf %149, %150 : vector<8x512xf32>
    %152 = vector.extract_strided_slice %91 {offsets = [216, 0], sizes = [8, 512], strides = [1, 1]} : vector<256x512xf32> to vector<8x512xf32>
    %153 = arith.maximumf %151, %152 : vector<8x512xf32>
    %154 = vector.extract_strided_slice %91 {offsets = [232, 0], sizes = [8, 512], strides = [1, 1]} : vector<256x512xf32> to vector<8x512xf32>
    %155 = arith.maximumf %153, %154 : vector<8x512xf32>
    %156 = vector.extract_strided_slice %91 {offsets = [248, 0], sizes = [8, 512], strides = [1, 1]} : vector<256x512xf32> to vector<8x512xf32>
    %157 = arith.maximumf %155, %156 : vector<8x512xf32>
    %cst_24 = arith.constant dense<0xFF800000> : vector<512xf32>
    %158 = vector.multi_reduction <maximumf>, %157, %cst_24 [0] : vector<8x512xf32> to vector<512xf32>
    %159 = vector.shape_cast %158 : vector<512xf32> to vector<1x512xf32>
    %160 = arith.maximumf %108, %125 : vector<1x512xf32>
    %161 = arith.maximumf %142, %159 : vector<1x512xf32>
    %162 = arith.maximumf %160, %161 : vector<1x512xf32>
    %c1_25 = arith.constant 1 : index
    %c0_26 = arith.constant 0 : index
    %163 = vector.load %arg7[%c1_25, %c0_26] : memref<2x2560xf32, #tpu.memory_space<vmem>>, vector<1x512xf32>
    tpu.vector_store %arg7[%c1_25, %c0_26], %108 {strides = array<i32>} : memref<2x2560xf32, #tpu.memory_space<vmem>>, vector<1x512xf32>,
    %c1_27 = arith.constant 1 : index
    %c512_28 = arith.constant 512 : index
    %164 = vector.load %arg7[%c1_27, %c512_28] : memref<2x2560xf32, #tpu.memory_space<vmem>>, vector<1x512xf32>
    tpu.vector_store %arg7[%c1_27, %c512_28], %125 {strides = array<i32>} : memref<2x2560xf32, #tpu.memory_space<vmem>>, vector<1x512xf32>,
    %c1_29 = arith.constant 1 : index
    %c1024_30 = arith.constant 1024 : index
    %165 = vector.load %arg7[%c1_29, %c1024_30] : memref<2x2560xf32, #tpu.memory_space<vmem>>, vector<1x512xf32>
    tpu.vector_store %arg7[%c1_29, %c1024_30], %142 {strides = array<i32>} : memref<2x2560xf32, #tpu.memory_space<vmem>>, vector<1x512xf32>,
    %c1_31 = arith.constant 1 : index
    %c1536_32 = arith.constant 1536 : index
    %166 = vector.load %arg7[%c1_31, %c1536_32] : memref<2x2560xf32, #tpu.memory_space<vmem>>, vector<1x512xf32>
    tpu.vector_store %arg7[%c1_31, %c1536_32], %159 {strides = array<i32>} : memref<2x2560xf32, #tpu.memory_space<vmem>>, vector<1x512xf32>,
    %c1_33 = arith.constant 1 : index
    %c2048_34 = arith.constant 2048 : index
    %167 = vector.load %arg7[%c1_33, %c2048_34] : memref<2x2560xf32, #tpu.memory_space<vmem>>, vector<1x512xf32>
    tpu.vector_store %arg7[%c1_33, %c2048_34], %162 {strides = array<i32>} : memref<2x2560xf32, #tpu.memory_space<vmem>>, vector<1x512xf32>,
    %c0_35 = arith.constant 0 : index
    %c0_36 = arith.constant 0 : index
    %168 = vector.load %arg7[%c0_35, %c0_36] : memref<2x2560xf32, #tpu.memory_space<vmem>>, vector<2x2560xf32>
    %c0_37 = arith.constant 0 : index
    %c0_38 = arith.constant 0 : index
    %169 = vector.load %arg4[%c0_37, %c0_38] : memref<2x2560xf32, #tpu.memory_space<vmem>>, vector<2x2560xf32>
    %170 = tpu.iota {dimensions = array<i32: 1>} : vector<2x128xi32>
    %cst_39 = arith.constant 0.000000e+00 : f32
    %171 = vector.broadcast %cst_39 : f32 to vector<2x128xf32>
    %172 = vector.extract_strided_slice %169 {offsets = [0, 0], sizes = [1, 2560], strides = [1, 1]} : vector<2x2560xf32> to vector<1x2560xf32>
    %173 = vector.broadcast %172 : vector<1x2560xf32> to vector<2x2560xf32>
    %174 = arith.mulf %168, %173 : vector<2x2560xf32>
    %cst_40 = arith.constant dense<0.000000e+00> : vector<2xf32>
    %175 = vector.multi_reduction <add>, %174, %cst_40 [1] : vector<2x2560xf32> to vector<2xf32>
    %176 = vector.shape_cast %175 : vector<2xf32> to vector<2x1xf32>
    %c0_i32 = arith.constant 0 : i32
    %177 = vector.broadcast %c0_i32 : i32 to vector<2x128xi32>
    %178 = arith.cmpi eq, %170, %177 : vector<2x128xi32>
    %179 = vector.shape_cast %176 : vector<2x1xf32> to vector<2x1xf32>
    %180 = vector.broadcast %179 : vector<2x1xf32> to vector<2x128xf32>
    %181 = arith.select %178, %180, %171 : vector<2x128xi1>, vector<2x128xf32>
    %182 = vector.extract_strided_slice %169 {offsets = [1, 0], sizes = [1, 2560], strides = [1, 1]} : vector<2x2560xf32> to vector<1x2560xf32>
    %183 = vector.broadcast %182 : vector<1x2560xf32> to vector<2x2560xf32>
    %184 = arith.mulf %168, %183 : vector<2x2560xf32>
    %cst_41 = arith.constant dense<0.000000e+00> : vector<2xf32>
    %185 = vector.multi_reduction <add>, %184, %cst_41 [1] : vector<2x2560xf32> to vector<2xf32>
    %186 = vector.shape_cast %185 : vector<2xf32> to vector<2x1xf32>
    %c1_i32 = arith.constant 1 : i32
    %187 = vector.broadcast %c1_i32 : i32 to vector<2x128xi32>
    %188 = arith.cmpi eq, %170, %187 : vector<2x128xi32>
    %189 = vector.shape_cast %186 : vector<2x1xf32> to vector<2x1xf32>
    %190 = vector.broadcast %189 : vector<2x1xf32> to vector<2x128xf32>
    %191 = arith.select %188, %190, %181 : vector<2x128xi1>, vector<2x128xf32>
    %c0_42 = arith.constant 0 : index
    %c0_43 = arith.constant 0 : index
    %192 = vector.load %arg5[%c0_42, %c0_43] : memref<1x128xf32, #tpu.memory_space<vmem>>, vector<1x128xf32>
    %193 = vector.broadcast %192 : vector<1x128xf32> to vector<2x128xf32>
    %194 = arith.addf %191, %193 : vector<2x128xf32>
    %c0_44 = arith.constant 0 : index
    %c0_45 = arith.constant 0 : index
    %195 = vector.load %arg6[%c0_44, %c0_45] : memref<2x128xf32, #tpu.memory_space<vmem>>, vector<2x128xf32>
    tpu.vector_store %arg6[%c0_44, %c0_45], %194 {strides = array<i32>} : memref<2x128xf32, #tpu.memory_space<vmem>>, vector<2x128xf32>,
    return
  }
  func.func @transform_0(%arg0: i32) -> (i32, i32, i32) {
    %c0_i32 = arith.constant 0 : i32
    %c0_i32_0 = arith.constant 0 : i32
    %c0_i32_1 = arith.constant 0 : i32
    return %arg0, %c0_i32, %c0_i32_0 : i32, i32, i32
  }
  func.func @transform_1(%arg0: i32) -> (i32, i32) {
    %c0_i32 = arith.constant 0 : i32
    %c0_i32_0 = arith.constant 0 : i32
    %c0_i32_1 = arith.constant 0 : i32
    return %c0_i32, %c0_i32_0 : i32, i32
  }
  func.func @transform_2(%arg0: i32) -> (i32, i32) {
    %c0_i32 = arith.constant 0 : i32
    %c0_i32_0 = arith.constant 0 : i32
    %c0_i32_1 = arith.constant 0 : i32
    return %c0_i32, %c0_i32_0 : i32, i32
  }
  func.func @transform_3(%arg0: i32) -> (i32, i32) {
    %c0_i32 = arith.constant 0 : i32
    %c0_i32_0 = arith.constant 0 : i32
    %c0_i32_1 = arith.constant 0 : i32
    return %c0_i32, %c0_i32_0 : i32, i32
  }
  func.func @transform_4(%arg0: i32) -> (i32, i32) {
    %c0_i32 = arith.constant 0 : i32
    %c0_i32_0 = arith.constant 0 : i32
    %c0_i32_1 = arith.constant 0 : i32
    return %c0_i32, %c0_i32_0 : i32, i32
  }
  func.func @transform_5(%arg0: i32) -> (i32, i32) {
    %c0_i32 = arith.constant 0 : i32
    %c0_i32_0 = arith.constant 0 : i32
    return %arg0, %c0_i32 : i32, i32
  }
}

</mosaic_0001>

<llo_original>
// kernel: spp_net_forward.1
$region0: #{spp_net_forward.1}
  #allocation0 [shape = 'u32[]', space=smem, size = 0x4, offset = 0x4, fixed_abs, tag = 'smem constant byte address 0x4 - core index']
  #allocation1 [shape = 'u32[144,128]{1,0:T(1,128)}', space=vmem, size = 0x12000, scoped, tag = 'internal scratch']
  #allocation2 [shape = 'f32[2,2560]{1,0:T(2,128)}', space=vmem, size = 0x5000, scoped, tag = 'scratch operand']
  %s0 = inlined_call_operand.vmem [shape: f32[2,4,256], index: 0, kind: input, shape index: {}]
  %s1 = inlined_call_operand.vmem [shape: f32[4,512], index: 1, kind: input, shape index: {}]
  %s2 = inlined_call_operand.vmem [shape: f32[1,512], index: 2, kind: input, shape index: {}]
  %s3 = inlined_call_operand.vmem [shape: f32[2,2560], index: 3, kind: input, shape index: {}]
  %s4 = inlined_call_operand.vmem [shape: f32[1,128], index: 4, kind: input, shape index: {}]
  %s5 = inlined_call_operand.hbm [shape: f32[2,128], index: 5, kind: output, shape index: {}]
  %s6 = sld [smem:[#allocation0]]
  $region30: #{spp_net_forward.1} parent=0
    _
  %s8 = ssub.s32 1, %s6
  %s9 = scalar_select 0, %s8, %s6
  $region1: #{spp_net_forward.1} parent=0
    #allocation3 [shape = 'u8[1024]{0}', space=vmem, size = 0x400, scoped, tag = 'output window, operand 0, single buffered']
    #allocation4 [shape = 's32[1]{0}', space=sflag, size = 0x4, scoped, tag = 'scoped memory for spp_net_forward.1']
    %10 = vsyncpa [#allocation4], 0
    // Predicated region
    $region2: #{spp_net_forward.1} parent=1 // pred_check
      _
    $region3: #{spp_net_forward.1} parent=1 // pred_check_branch
      %12 = sbr.rel (0) target = $region5
    $region4: #{spp_net_forward.1} parent=1 // pred_region
      _
    $region5: #{spp_net_forward.1} parent=1 // pred_fallthru
      _
    // Predicated region
    $region6: #{spp_net_forward.1} parent=1 // pred_check
      _
    $region7: #{spp_net_forward.1} parent=1 // pred_check_branch
      %14 = sbr.rel (0) target = $region9
    $region8: #{spp_net_forward.1} parent=1 // pred_region
      _
    $region9: #{spp_net_forward.1} parent=1 // pred_fallthru
      _
    // Predicated region
    $region10: #{spp_net_forward.1} parent=1 // pred_check
      _
    $region11: #{spp_net_forward.1} parent=1 // pred_check_branch
      %16 = sbr.rel (0) target = $region13
    $region12: #{spp_net_forward.1} parent=1 // pred_region
      _
    $region13: #{spp_net_forward.1} parent=1 // pred_fallthru
      _
    // Predicated region
    $region14: #{spp_net_forward.1} parent=1 // pred_check
      _
    $region15: #{spp_net_forward.1} parent=1 // pred_check_branch
      %18 = sbr.rel (0) target = $region17
    $region16: #{spp_net_forward.1} parent=1 // pred_region
      _
    $region17: #{spp_net_forward.1} parent=1 // pred_fallthru
      _
    // Predicated region
    $region18: #{spp_net_forward.1} parent=1 // pred_check
      _
    $region19: #{spp_net_forward.1} parent=1 // pred_check_branch
      %20 = sbr.rel (0) target = $region21
    $region20: #{spp_net_forward.1} parent=1 // pred_region
      _
    $region21: #{spp_net_forward.1} parent=1 // pred_fallthru
      _
    %v21 = vld [vmem:[%s1] sm:$0xff]
    %v22 = vld [vmem:[%s1 + $0x8] sm:$0xff]
    %v23 = vld [vmem:[%s2] sm:$0xf]
    %v24 = vld [vmem:[%s0] sm:$0xff]
    %v26 = vlaneseq
    %v27 = vshrl.u32 %v26, 7
    %v28 = vsub.s32 0, %v27
    %v29 = vrot.slane %v23, %v28
    %v30 = vlaneseq
    %v31 = vshrl.u32 %v30, 7
    %v32 = vsub.s32 1, %v31
    %v33 = vrot.slane %v23, %v32
    %v34 = vlaneseq
    %v35 = vshrl.u32 %v34, 7
    %v36 = vsub.s32 2, %v35
    %v37 = vrot.slane %v23, %v36
    %v38 = vlaneseq
    %v39 = vshrl.u32 %v38, 7
    %v40 = vsub.s32 3, %v39
    %v41 = vrot.slane %v23, %v40
    %v47 = vcombine.high %v24, %v24
    %49 = vxpose.xlu0.b32.start [1/16] %v24, 128
    %50 = vxpose.xlu0.b32.cont [2/16] 0.0, 128
    %51 = vxpose.xlu0.b32.cont [3/16] 0.0, 128
    %52 = vxpose.xlu0.b32.cont [4/16] 0.0, 128
    %53 = vxpose.xlu0.b32.cont [5/16] 0.0, 128
    %54 = vxpose.xlu0.b32.cont [6/16] 0.0, 128
    %55 = vxpose.xlu0.b32.cont [7/16] 0.0, 128
    %56 = vxpose.xlu0.b32.cont [8/16] 0.0, 128
    %57 = vxpose.xlu0.b32.cont [9/16] 0.0, 128
    %58 = vxpose.xlu0.b32.cont [10/16] 0.0, 128
    %59 = vxpose.xlu0.b32.cont [11/16] 0.0, 128
    %60 = vxpose.xlu0.b32.cont [12/16] 0.0, 128
    %61 = vxpose.xlu0.b32.cont [13/16] 0.0, 128
    %62 = vxpose.xlu0.b32.cont [14/16] 0.0, 128
    %63 = vxpose.xlu0.b32.cont [15/16] 0.0, 128
    %64 = vxpose.xlu0.b32.end [16/16] 0.0, 128
    %v65 = vpop.trf.xlu0
    %v66 = vpop.trf.xlu0
    %v67 = vpop.trf.xlu0
    %v68 = vpop.trf.xlu0
    %v69 = vpop.trf.xlu0
    %v70 = vpop.trf.xlu0
    %v71 = vpop.trf.xlu0
    %v72 = vpop.trf.xlu0
    %v73 = vpop.trf.xlu0
    %v74 = vpop.trf.xlu0
    %v75 = vpop.trf.xlu0
    %v76 = vpop.trf.xlu0
    %v77 = vpop.trf.xlu0
    %v78 = vpop.trf.xlu0
    %v79 = vpop.trf.xlu0
    %v80 = vpop.trf.xlu0
    %81 = vxpose.xlu0.b32.start [1/16] %v47, 128
    %82 = vxpose.xlu0.b32.cont [2/16] 0.0, 128
    %83 = vxpose.xlu0.b32.cont [3/16] 0.0, 128
    %84 = vxpose.xlu0.b32.cont [4/16] 0.0, 128
    %85 = vxpose.xlu0.b32.cont [5/16] 0.0, 128
    %86 = vxpose.xlu0.b32.cont [6/16] 0.0, 128
    %87 = vxpose.xlu0.b32.cont [7/16] 0.0, 128
    %88 = vxpose.xlu0.b32.cont [8/16] 0.0, 128
    %89 = vxpose.xlu0.b32.cont [9/16] 0.0, 128
    %90 = vxpose.xlu0.b32.cont [10/16] 0.0, 128
    %91 = vxpose.xlu0.b32.cont [11/16] 0.0, 128
    %92 = vxpose.xlu0.b32.cont [12/16] 0.0, 128
    %93 = vxpose.xlu0.b32.cont [13/16] 0.0, 128
    %94 = vxpose.xlu0.b32.cont [14/16] 0.0, 128
    %95 = vxpose.xlu0.b32.cont [15/16] 0.0, 128
    %96 = vxpose.xlu0.b32.end [16/16] 0.0, 128
    %v97 = vpop.trf.xlu0
    %v98 = vpop.trf.xlu0
    %v99 = vpop.trf.xlu0
    %v100 = vpop.trf.xlu0
    %v101 = vpop.trf.xlu0
    %v102 = vpop.trf.xlu0
    %v103 = vpop.trf.xlu0
    %v104 = vpop.trf.xlu0
    %v105 = vpop.trf.xlu0
    %v106 = vpop.trf.xlu0
    %v107 = vpop.trf.xlu0
    %v108 = vpop.trf.xlu0
    %v109 = vpop.trf.xlu0
    %v110 = vpop.trf.xlu0
    %v111 = vpop.trf.xlu0
    %v112 = vpop.trf.xlu0
    %v115 = vcombine.high %v21, %v21
    %v116 = vcombine.high %v22, %v22
    %vm117 = vcmask 31744
    %v119 = vsel %vm117, %v65, 0
    %v122 = vsel %vm117, %v66, 0
    %v125 = vsel %vm117, %v67, 0
    %v128 = vsel %vm117, %v68, 0
    %v131 = vsel %vm117, %v69, 0
    %v134 = vsel %vm117, %v70, 0
    %v137 = vsel %vm117, %v71, 0
    %v140 = vsel %vm117, %v72, 0
    %v143 = vsel %vm117, %v73, 0
    %v146 = vsel %vm117, %v74, 0
    %v149 = vsel %vm117, %v75, 0
    %v152 = vsel %vm117, %v76, 0
    %v155 = vsel %vm117, %v77, 0
    %v158 = vsel %vm117, %v78, 0
    %v161 = vsel %vm117, %v79, 0
    %v164 = vsel %vm117, %v80, 0
    %v167 = vsel %vm117, %v97, 0
    %v170 = vsel %vm117, %v98, 0
    %v173 = vsel %vm117, %v99, 0
    %v176 = vsel %vm117, %v100, 0
    %v179 = vsel %vm117, %v101, 0
    %v182 = vsel %vm117, %v102, 0
    %v185 = vsel %vm117, %v103, 0
    %v188 = vsel %vm117, %v104, 0
    %v191 = vsel %vm117, %v105, 0
    %v194 = vsel %vm117, %v106, 0
    %v197 = vsel %vm117, %v107, 0
    %v200 = vsel %vm117, %v108, 0
    %v203 = vsel %vm117, %v109, 0
    %v206 = vsel %vm117, %v110, 0
    %v209 = vsel %vm117, %v111, 0
    %v212 = vsel %vm117, %v112, 0
    %vm214 = vcmask 1043456
    %v215 = vsel %vm214, %v21, 0
    %v217 = vsel %vm214, %v115, 0
    %v219 = vsel %vm214, %v22, 0
    %v221 = vsel %vm214, %v116, 0
    %v223 = vand.u32 %v217, 4294901760
    %224 = vmatprep.subr.mxu0 %v223
    %v225 = vand.u32 %v215, 4294901760
    %226 = vmatpush1.msra.mxu0 %v225
    %227 = vmatprep.subr.mxu0 0.0
    %228 = vmatpush1.msra.mxu0 0.0
    %229 = vmatprep.subr.mxu0 0.0
    %230 = vmatpush1.msra.mxu0 0.0
    %231 = vmatprep.subr.mxu0 0.0
    %232 = vmatpush1.msra.mxu0 0.0
    %233 = vmatprep.subr.mxu0 0.0
    %234 = vmatpush1.msra.mxu0 0.0
    %235 = vmatprep.subr.mxu0 0.0
    %236 = vmatpush1.msra.mxu0 0.0
    %237 = vmatprep.subr.mxu0 0.0
    %238 = vmatpush1.msra.mxu0 0.0
    %239 = vmatprep.subr.mxu0 0.0
    %240 = vmatpush1.msra.mxu0 0.0
    %241 = vmatprep.subr.mxu0 0.0
    %242 = vmatpush1.msra.mxu0 0.0
    %243 = vmatprep.subr.mxu0 0.0
    %244 = vmatpush1.msra.mxu0 0.0
    %245 = vmatprep.subr.mxu0 0.0
    %246 = vmatpush1.msra.mxu0 0.0
    %247 = vmatprep.subr.mxu0 0.0
    %248 = vmatpush1.msra.mxu0 0.0
    %249 = vmatprep.subr.mxu0 0.0
    %250 = vmatpush1.msra.mxu0 0.0
    %251 = vmatprep.subr.mxu0 0.0
    %252 = vmatpush1.msra.mxu0 0.0
    %253 = vmatprep.subr.mxu0 0.0
    %254 = vmatpush1.msra.mxu0 0.0
    %255 = vmatprep.subr.mxu0 0.0
    %256 = vmatpush1.msra.mxu0 0.0
    %257 = vmatprep.subr.mxu0 0.0
    %258 = vmatpush1.msra.mxu0 0.0
    %259 = vmatprep.subr.mxu0 0.0
    %260 = vmatpush1.msra.mxu0 0.0
    %261 = vmatprep.subr.mxu0 0.0
    %262 = vmatpush1.msra.mxu0 0.0
    %263 = vmatprep.subr.mxu0 0.0
    %264 = vmatpush1.msra.mxu0 0.0
    %265 = vmatprep.subr.mxu0 0.0
    %266 = vmatpush1.msra.mxu0 0.0
    %267 = vmatprep.subr.mxu0 0.0
    %268 = vmatpush1.msra.mxu0 0.0
    %269 = vmatprep.subr.mxu0 0.0
    %270 = vmatpush1.msra.mxu0 0.0
    %271 = vmatprep.subr.mxu0 0.0
    %272 = vmatpush1.msra.mxu0 0.0
    %273 = vmatprep.subr.mxu0 0.0
    %274 = vmatpush1.msra.mxu0 0.0
    %275 = vmatprep.subr.mxu0 0.0
    %276 = vmatpush1.msra.mxu0 0.0
    %277 = vmatprep.subr.mxu0 0.0
    %278 = vmatpush1.msra.mxu0 0.0
    %279 = vmatprep.subr.mxu0 0.0
    %280 = vmatpush1.msra.mxu0 0.0
    %281 = vmatprep.subr.mxu0 0.0
    %282 = vmatpush1.msra.mxu0 0.0
    %283 = vmatprep.subr.mxu0 0.0
    %284 = vmatpush1.msra.mxu0 0.0
    %285 = vmatprep.subr.mxu0 0.0
    %286 = vmatpush1.msra.mxu0 0.0
    %287 = vmatprep.subr.mxu0 0.0
    %288 = vmatpush1.msra.mxu0 0.0
    %289 = vmatprep.mubr.f32.mxu0 0.0
    %v290 = vand.u32 %v119, 4294901760
    %v291 = vsub.f32 %v119, %v290
    %v292 = vand.u32 %v291, 4294901760
    %v293 = vsub.f32 %v291, %v292
    %v294 = vand.u32 %v293, 4294901760
    %295 = vmatmul.mubr.f32.gmra.mrb[0].mxu0 %v294
    %v296 = vpop.f32.mrb[0].mxu0
    %v297 = vadd.f32 %v29, %v296
    %v298 = vpop.f32.mrb[0].mxu0
    %v299 = vadd.f32 %v33, %v298
    %300 = vmatprep.mubr.f32.mxu0 0.0
    %v301 = vand.u32 %v122, 4294901760
    %v302 = vsub.f32 %v122, %v301
    %v303 = vand.u32 %v302, 4294901760
    %v304 = vsub.f32 %v302, %v303
    %v305 = vand.u32 %v304, 4294901760
    %306 = vmatmul.mubr.f32.gmra.mrb[0].mxu0 %v305
    %v307 = vpop.f32.mrb[0].mxu0
    %v308 = vadd.f32 %v29, %v307
    %v309 = vpop.f32.mrb[0].mxu0
    %v310 = vadd.f32 %v33, %v309
    %311 = vmatprep.mubr.f32.mxu0 0.0
    %v312 = vand.u32 %v125, 4294901760
    %v313 = vsub.f32 %v125, %v312
    %v314 = vand.u32 %v313, 4294901760
    %v315 = vsub.f32 %v313, %v314
    %v316 = vand.u32 %v315, 4294901760
    %317 = vmatmul.mubr.f32.gmra.mrb[0].mxu0 %v316
    %v318 = vpop.f32.mrb[0].mxu0
    %v319 = vadd.f32 %v29, %v318
    %v320 = vpop.f32.mrb[0].mxu0
    %v321 = vadd.f32 %v33, %v320
    %322 = vmatprep.mubr.f32.mxu0 0.0
    %v323 = vand.u32 %v128, 4294901760
    %v324 = vsub.f32 %v128, %v323
    %v325 = vand.u32 %v324, 4294901760
    %v326 = vsub.f32 %v324, %v325
    %v327 = vand.u32 %v326, 4294901760
    %328 = vmatmul.mubr.f32.gmra.mrb[0].mxu0 %v327
    %v329 = vpop.f32.mrb[0].mxu0
    %v330 = vadd.f32 %v29, %v329
    %v331 = vpop.f32.mrb[0].mxu0
    %v332 = vadd.f32 %v33, %v331
    %333 = vmatprep.mubr.f32.mxu0 0.0
    %v334 = vand.u32 %v131, 4294901760
    %v335 = vsub.f32 %v131, %v334
    %v336 = vand.u32 %v335, 4294901760
    %v337 = vsub.f32 %v335, %v336
    %v338 = vand.u32 %v337, 4294901760
    %339 = vmatmul.mubr.f32.gmra.mrb[0].mxu0 %v338
    %v340 = vpop.f32.mrb[0].mxu0
    %v341 = vadd.f32 %v29, %v340
    %v342 = vpop.f32.mrb[0].mxu0
    %v343 = vadd.f32 %v33, %v342
    %344 = vmatprep.mubr.f32.mxu0 0.0
    %v345 = vand.u32 %v134, 4294901760
    %v346 = vsub.f32 %v134, %v345
    %v347 = vand.u32 %v346, 4294901760
    %v348 = vsub.f32 %v346, %v347
    %v349 = vand.u32 %v348, 4294901760
    %350 = vmatmul.mubr.f32.gmra.mrb[0].mxu0 %v349
    %v351 = vpop.f32.mrb[0].mxu0
    %v352 = vadd.f32 %v29, %v351
    %v353 = vpop.f32.mrb[0].mxu0
    %v354 = vadd.f32 %v33, %v353
    %355 = vmatprep.mubr.f32.mxu0 0.0
    %v356 = vand.u32 %v137, 4294901760
    %v357 = vsub.f32 %v137, %v356
    %v358 = vand.u32 %v357, 4294901760
    %v359 = vsub.f32 %v357, %v358
    %v360 = vand.u32 %v359, 4294901760
    %361 = vmatmul.mubr.f32.gmra.mrb[0].mxu0 %v360
    %v362 = vpop.f32.mrb[0].mxu0
    %v363 = vadd.f32 %v29, %v362
    %v364 = vpop.f32.mrb[0].mxu0
    %v365 = vadd.f32 %v33, %v364
    %366 = vmatprep.mubr.f32.mxu0 0.0
    %v367 = vand.u32 %v140, 4294901760
    %v368 = vsub.f32 %v140, %v367
    %v369 = vand.u32 %v368, 4294901760
    %v370 = vsub.f32 %v368, %v369
    %v371 = vand.u32 %v370, 4294901760
    %372 = vmatmul.mubr.f32.gmra.mrb[0].mxu0 %v371
    %v373 = vpop.f32.mrb[0].mxu0
    %v374 = vadd.f32 %v29, %v373
    %v375 = vpop.f32.mrb[0].mxu0
    %v376 = vadd.f32 %v33, %v375
    %377 = vmatprep.mubr.f32.mxu0 0.0
    %v378 = vand.u32 %v143, 4294901760
    %v379 = vsub.f32 %v143, %v378
    %v380 = vand.u32 %v379, 4294901760
    %v381 = vsub.f32 %v379, %v380
    %v382 = vand.u32 %v381, 4294901760
    %383 = vmatmul.mubr.f32.gmra.mrb[0].mxu0 %v382
    %v384 = vpop.f32.mrb[0].mxu0
    %v385 = vadd.f32 %v29, %v384
    %v386 = vpop.f32.mrb[0].mxu0
    %v387 = vadd.f32 %v33, %v386
    %388 = vmatprep.mubr.f32.mxu0 0.0
    %v389 = vand.u32 %v146, 4294901760
    %v390 = vsub.f32 %v146, %v389
    %v391 = vand.u32 %v390, 4294901760
    %v392 = vsub.f32 %v390, %v391
    %v393 = vand.u32 %v392, 4294901760
    %394 = vmatmul.mubr.f32.gmra.mrb[0].mxu0 %v393
    %v395 = vpop.f32.mrb[0].mxu0
    %v396 = vadd.f32 %v29, %v395
    %v397 = vpop.f32.mrb[0].mxu0
    %v398 = vadd.f32 %v33, %v397
    %399 = vmatprep.mubr.f32.mxu0 0.0
    %v400 = vand.u32 %v149, 4294901760
    %v401 = vsub.f32 %v149, %v400
    %v402 = vand.u32 %v401, 4294901760
    %v403 = vsub.f32 %v401, %v402
    %v404 = vand.u32 %v403, 4294901760
    %405 = vmatmul.mubr.f32.gmra.mrb[0].mxu0 %v404
    %v406 = vpop.f32.mrb[0].mxu0
    %v407 = vadd.f32 %v29, %v406
    %v408 = vpop.f32.mrb[0].mxu0
    %v409 = vadd.f32 %v33, %v408
    %410 = vmatprep.mubr.f32.mxu0 0.0
    %v411 = vand.u32 %v152, 4294901760
    %v412 = vsub.f32 %v152, %v411
    %v413 = vand.u32 %v412, 4294901760
    %v414 = vsub.f32 %v412, %v413
    %v415 = vand.u32 %v414, 4294901760
    %416 = vmatmul.mubr.f32.gmra.mrb[0].mxu0 %v415
    %v417 = vpop.f32.mrb[0].mxu0
    %v418 = vadd.f32 %v29, %v417
    %v419 = vpop.f32.mrb[0].mxu0
    %v420 = vadd.f32 %v33, %v419
    %421 = vmatprep.mubr.f32.mxu0 0.0
    %v422 = vand.u32 %v155, 4294901760
    %v423 = vsub.f32 %v155, %v422
    %v424 = vand.u32 %v423, 4294901760
    %v425 = vsub.f32 %v423, %v424
    %v426 = vand.u32 %v425, 4294901760
    %427 = vmatmul.mubr.f32.gmra.mrb[0].mxu0 %v426
    %v428 = vpop.f32.mrb[0].mxu0
    %v429 = vadd.f32 %v29, %v428
    %v430 = vpop.f32.mrb[0].mxu0
    %v431 = vadd.f32 %v33, %v430
    %432 = vmatprep.mubr.f32.mxu0 0.0
    %v433 = vand.u32 %v158, 4294901760
    %v434 = vsub.f32 %v158, %v433
    %v435 = vand.u32 %v434, 4294901760
    %v436 = vsub.f32 %v434, %v435
    %v437 = vand.u32 %v436, 4294901760
    %438 = vmatmul.mubr.f32.gmra.mrb[0].mxu0 %v437
    %v439 = vpop.f32.mrb[0].mxu0
    %v440 = vadd.f32 %v29, %v439
    %v441 = vpop.f32.mrb[0].mxu0
    %v442 = vadd.f32 %v33, %v441
    %443 = vmatprep.mubr.f32.mxu0 0.0
    %v444 = vand.u32 %v161, 4294901760
    %v445 = vsub.f32 %v161, %v444
    %v446 = vand.u32 %v445, 4294901760
    %v447 = vsub.f32 %v445, %v446
    %v448 = vand.u32 %v447, 4294901760
    %449 = vmatmul.mubr.f32.gmra.mrb[0].mxu0 %v448
    %v450 = vpop.f32.mrb[0].mxu0
    %v451 = vadd.f32 %v29, %v450
    %v452 = vpop.f32.mrb[0].mxu0
    %v453 = vadd.f32 %v33, %v452
    %454 = vmatprep.mubr.f32.mxu0 0.0
    %v455 = vand.u32 %v164, 4294901760
    %v456 = vsub.f32 %v164, %v455
    %v457 = vand.u32 %v456, 4294901760
    %v458 = vsub.f32 %v456, %v457
    %v459 = vand.u32 %v458, 4294901760
    %460 = vmatmul.mubr.f32.gmra.mrb[0].mxu0 %v459
    %v461 = vpop.f32.mrb[0].mxu0
    %v462 = vadd.f32 %v29, %v461
    %v463 = vpop.f32.mrb[0].mxu0
    %v464 = vadd.f32 %v33, %v463
    %465 = vmatprep.mubr.f32.mxu0 0.0
    %v466 = vand.u32 %v167, 4294901760
    %v467 = vsub.f32 %v167, %v466
    %v468 = vand.u32 %v467, 4294901760
    %v469 = vsub.f32 %v467, %v468
    %v470 = vand.u32 %v469, 4294901760
    %471 = vmatmul.mubr.f32.gmra.mrb[0].mxu0 %v470
    %v472 = vpop.f32.mrb[0].mxu0
    %v473 = vadd.f32 %v29, %v472
    %v474 = vpop.f32.mrb[0].mxu0
    %v475 = vadd.f32 %v33, %v474
    %476 = vmatprep.mubr.f32.mxu0 0.0
    %v477 = vand.u32 %v170, 4294901760
    %v478 = vsub.f32 %v170, %v477
    %v479 = vand.u32 %v478, 4294901760
    %v480 = vsub.f32 %v478, %v479
    %v481 = vand.u32 %v480, 4294901760
    %482 = vmatmul.mubr.f32.gmra.mrb[0].mxu0 %v481
    %v483 = vpop.f32.mrb[0].mxu0
    %v484 = vadd.f32 %v29, %v483
    %v485 = vpop.f32.mrb[0].mxu0
    %v486 = vadd.f32 %v33, %v485
    %487 = vmatprep.mubr.f32.mxu0 0.0
    %v488 = vand.u32 %v173, 4294901760
    %v489 = vsub.f32 %v173, %v488
    %v490 = vand.u32 %v489, 4294901760
    %v491 = vsub.f32 %v489, %v490
    %v492 = vand.u32 %v491, 4294901760
    %493 = vmatmul.mubr.f32.gmra.mrb[0].mxu0 %v492
    %v494 = vpop.f32.mrb[0].mxu0
    %v495 = vadd.f32 %v29, %v494
    %v496 = vpop.f32.mrb[0].mxu0
    %v497 = vadd.f32 %v33, %v496
    %498 = vmatprep.mubr.f32.mxu0 0.0
    %v499 = vand.u32 %v176, 4294901760
    %v500 = vsub.f32 %v176, %v499
    %v501 = vand.u32 %v500, 4294901760
    %v502 = vsub.f32 %v500, %v501
    %v503 = vand.u32 %v502, 4294901760
    %504 = vmatmul.mubr.f32.gmra.mrb[0].mxu0 %v503
    %v505 = vpop.f32.mrb[0].mxu0
    %v506 = vadd.f32 %v29, %v505
    %v507 = vpop.f32.mrb[0].mxu0
    %v508 = vadd.f32 %v33, %v507
    %509 = vmatprep.mubr.f32.mxu0 0.0
    %v510 = vand.u32 %v179, 4294901760
    %v511 = vsub.f32 %v179, %v510
    %v512 = vand.u32 %v511, 4294901760
    %v513 = vsub.f32 %v511, %v512
    %v514 = vand.u32 %v513, 4294901760
    %515 = vmatmul.mubr.f32.gmra.mrb[0].mxu0 %v514
    %v516 = vpop.f32.mrb[0].mxu0
    %v517 = vadd.f32 %v29, %v516
    %v518 = vpop.f32.mrb[0].mxu0
    %v519 = vadd.f32 %v33, %v518
    %520 = vmatprep.mubr.f32.mxu0 0.0
    %v521 = vand.u32 %v182, 4294901760
    %v522 = vsub.f32 %v182, %v521
    %v523 = vand.u32 %v522, 4294901760
    %v524 = vsub.f32 %v522, %v523
    %v525 = vand.u32 %v524, 4294901760
    %526 = vmatmul.mubr.f32.gmra.mrb[0].mxu0 %v525
    %v527 = vpop.f32.mrb[0].mxu0
    %v528 = vadd.f32 %v29, %v527
    %v529 = vpop.f32.mrb[0].mxu0
    %v530 = vadd.f32 %v33, %v529
    %531 = vmatprep.mubr.f32.mxu0 0.0
    %v532 = vand.u32 %v185, 4294901760
    %v533 = vsub.f32 %v185, %v532
    %v534 = vand.u32 %v533, 4294901760
    %v535 = vsub.f32 %v533, %v534
    %v536 = vand.u32 %v535, 4294901760
    %537 = vmatmul.mubr.f32.gmra.mrb[0].mxu0 %v536
    %v538 = vpop.f32.mrb[0].mxu0
    %v539 = vadd.f32 %v29, %v538
    %v540 = vpop.f32.mrb[0].mxu0
    %v541 = vadd.f32 %v33, %v540
    %542 = vmatprep.mubr.f32.mxu0 0.0
    %v543 = vand.u32 %v188, 4294901760
    %v544 = vsub.f32 %v188, %v543
    %v545 = vand.u32 %v544, 4294901760
    %v546 = vsub.f32 %v544, %v545
    %v547 = vand.u32 %v546, 4294901760
    %548 = vmatmul.mubr.f32.gmra.mrb[0].mxu0 %v547
    %v549 = vpop.f32.mrb[0].mxu0
    %v550 = vadd.f32 %v29, %v549
    %v551 = vpop.f32.mrb[0].mxu0
    %v552 = vadd.f32 %v33, %v551
    %553 = vmatprep.mubr.f32.mxu0 0.0
    %v554 = vand.u32 %v191, 4294901760
    %v555 = vsub.f32 %v191, %v554
    %v556 = vand.u32 %v555, 4294901760
    %v557 = vsub.f32 %v555, %v556
    %v558 = vand.u32 %v557, 4294901760
    %559 = vmatmul.mubr.f32.gmra.mrb[0].mxu0 %v558
    %v560 = vpop.f32.mrb[0].mxu0
    %v561 = vadd.f32 %v29, %v560
    %v562 = vpop.f32.mrb[0].mxu0
    %v563 = vadd.f32 %v33, %v562
    %564 = vmatprep.mubr.f32.mxu0 0.0
    %v565 = vand.u32 %v194, 4294901760
    %v566 = vsub.f32 %v194, %v565
    %v567 = vand.u32 %v566, 4294901760
    %v568 = vsub.f32 %v566, %v567
    %v569 = vand.u32 %v568, 4294901760
    %570 = vmatmul.mubr.f32.gmra.mrb[0].mxu0 %v569
    %v571 = vpop.f32.mrb[0].mxu0
    %v572 = vadd.f32 %v29, %v571
    %v573 = vpop.f32.mrb[0].mxu0
    %v574 = vadd.f32 %v33, %v573
    %575 = vmatprep.mubr.f32.mxu0 0.0
    %v576 = vand.u32 %v197, 4294901760
    %v577 = vsub.f32 %v197, %v576
    %v578 = vand.u32 %v577, 4294901760
    %v579 = vsub.f32 %v577, %v578
    %v580 = vand.u32 %v579, 4294901760
    %581 = vmatmul.mubr.f32.gmra.mrb[0].mxu0 %v580
    %v582 = vpop.f32.mrb[0].mxu0
    %v583 = vadd.f32 %v29, %v582
    %v584 = vpop.f32.mrb[0].mxu0
    %v585 = vadd.f32 %v33, %v584
    %586 = vmatprep.mubr.f32.mxu0 0.0
    %v587 = vand.u32 %v200, 4294901760
    %v588 = vsub.f32 %v200, %v587
    %v589 = vand.u32 %v588, 4294901760
    %v590 = vsub.f32 %v588, %v589
    %v591 = vand.u32 %v590, 4294901760
    %592 = vmatmul.mubr.f32.gmra.mrb[0].mxu0 %v591
    %v593 = vpop.f32.mrb[0].mxu0
    %v594 = vadd.f32 %v29, %v593
    %v595 = vpop.f32.mrb[0].mxu0
    %v596 = vadd.f32 %v33, %v595
    %597 = vmatprep.mubr.f32.mxu0 0.0
    %v598 = vand.u32 %v203, 4294901760
    %v599 = vsub.f32 %v203, %v598
    %v600 = vand.u32 %v599, 4294901760
    %v601 = vsub.f32 %v599, %v600
    %v602 = vand.u32 %v601, 4294901760
    %603 = vmatmul.mubr.f32.gmra.mrb[0].mxu0 %v602
    %v604 = vpop.f32.mrb[0].mxu0
    %v605 = vadd.f32 %v29, %v604
    %v606 = vpop.f32.mrb[0].mxu0
    %v607 = vadd.f32 %v33, %v606
    %608 = vmatprep.mubr.f32.mxu0 0.0
    %v609 = vand.u32 %v206, 4294901760
    %v610 = vsub.f32 %v206, %v609
    %v611 = vand.u32 %v610, 4294901760
    %v612 = vsub.f32 %v610, %v611
    %v613 = vand.u32 %v612, 4294901760
    %614 = vmatmul.mubr.f32.gmra.mrb[0].mxu0 %v613
    %v615 = vpop.f32.mrb[0].mxu0
    %v616 = vadd.f32 %v29, %v615
    %v617 = vpop.f32.mrb[0].mxu0
    %v618 = vadd.f32 %v33, %v617
    %619 = vmatprep.mubr.f32.mxu0 0.0
    %v620 = vand.u32 %v209, 4294901760
    %v621 = vsub.f32 %v209, %v620
    %v622 = vand.u32 %v621, 4294901760
    %v623 = vsub.f32 %v621, %v622
    %v624 = vand.u32 %v623, 4294901760
    %625 = vmatmul.mubr.f32.gmra.mrb[0].mxu0 %v624
    %v626 = vpop.f32.mrb[0].mxu0
    %v627 = vadd.f32 %v29, %v626
    %v628 = vpop.f32.mrb[0].mxu0
    %v629 = vadd.f32 %v33, %v628
    %630 = vmatprep.mubr.f32.mxu0 0.0
    %v631 = vand.u32 %v212, 4294901760
    %v632 = vsub.f32 %v212, %v631
    %v633 = vand.u32 %v632, 4294901760
    %v634 = vsub.f32 %v632, %v633
    %v635 = vand.u32 %v634, 4294901760
    %636 = vmatmul.mubr.f32.gmra.mrb[0].mxu0 %v635
    %v637 = vpop.f32.mrb[0].mxu0
    %v638 = vadd.f32 %v29, %v637
    %v639 = vpop.f32.mrb[0].mxu0
    %v640 = vadd.f32 %v33, %v639
    %641 = vdwg.mxu0
    %v642 = vand.u32 %v217, 4294901760
    %v643 = vsub.f32 %v217, %v642
    %v644 = vand.u32 %v643, 4294901760
    %v645 = vsub.f32 %v643, %v644
    %v646 = vand.u32 %v645, 4294901760
    %647 = vmatprep.subr.mxu0 %v646
    %v648 = vand.u32 %v215, 4294901760
    %v649 = vsub.f32 %v215, %v648
    %v650 = vand.u32 %v649, 4294901760
    %v651 = vsub.f32 %v649, %v650
    %v652 = vand.u32 %v651, 4294901760
    %653 = vmatpush1.msra.mxu0 %v652
    %654 = vmatprep.subr.mxu0 0.0
    %655 = vmatpush1.msra.mxu0 0.0
    %656 = vmatprep.subr.mxu0 0.0
    %657 = vmatpush1.msra.mxu0 0.0
    %658 = vmatprep.subr.mxu0 0.0
    %659 = vmatpush1.msra.mxu0 0.0
    %660 = vmatprep.subr.mxu0 0.0
    %661 = vmatpush1.msra.mxu0 0.0
    %662 = vmatprep.subr.mxu0 0.0
    %663 = vmatpush1.msra.mxu0 0.0
    %664 = vmatprep.subr.mxu0 0.0
    %665 = vmatpush1.msra.mxu0 0.0
    %666 = vmatprep.subr.mxu0 0.0
    %667 = vmatpush1.msra.mxu0 0.0
    %668 = vmatprep.subr.mxu0 0.0
    %669 = vmatpush1.msra.mxu0 0.0
    %670 = vmatprep.subr.mxu0 0.0
    %671 = vmatpush1.msra.mxu0 0.0
    %672 = vmatprep.subr.mxu0 0.0
    %673 = vmatpush1.msra.mxu0 0.0
    %674 = vmatprep.subr.mxu0 0.0
    %675 = vmatpush1.msra.mxu0 0.0
    %676 = vmatprep.subr.mxu0 0.0
    %677 = vmatpush1.msra.mxu0 0.0
    %678 = vmatprep.subr.mxu0 0.0
    %679 = vmatpush1.msra.mxu0 0.0
    %680 = vmatprep.subr.mxu0 0.0
    %681 = vmatpush1.msra.mxu0 0.0
    %682 = vmatprep.subr.mxu0 0.0
    %683 = vmatpush1.msra.mxu0 0.0
    %684 = vmatprep.subr.mxu0 0.0
    %685 = vmatpush1.msra.mxu0 0.0
    %686 = vmatprep.subr.mxu0 0.0
    %687 = vmatpush1.msra.mxu0 0.0
    %688 = vmatprep.subr.mxu0 0.0
    %689 = vmatpush1.msra.mxu0 0.0
    %690 = vmatprep.subr.mxu0 0.0
    %691 = vmatpush1.msra.mxu0 0.0
    %692 = vmatprep.subr.mxu0 0.0
    %693 = vmatpush1.msra.mxu0 0.0
    %694 = vmatprep.subr.mxu0 0.0
    %695 = vmatpush1.msra.mxu0 0.0
    %696 = vmatprep.subr.mxu0 0.0
    %697 = vmatpush1.msra.mxu0 0.0
    %698 = vmatprep.subr.mxu0 0.0
    %699 = vmatpush1.msra.mxu0 0.0
    %700 = vmatprep.subr.mxu0 0.0
    %701 = vmatpush1.msra.mxu0 0.0
    %702 = vmatprep.subr.mxu0 0.0
    %703 = vmatpush1.msra.mxu0 0.0
    %704 = vmatprep.subr.mxu0 0.0
    %705 = vmatpush1.msra.mxu0 0.0
    %706 = vmatprep.subr.mxu0 0.0
    %707 = vmatpush1.msra.mxu0 0.0
    %708 = vmatprep.subr.mxu0 0.0
    %709 = vmatpush1.msra.mxu0 0.0
    %710 = vmatprep.subr.mxu0 0.0
    %711 = vmatpush1.msra.mxu0 0.0
    %712 = vmatprep.subr.mxu0 0.0
    %713 = vmatpush1.msra.mxu0 0.0
    %714 = vmatprep.subr.mxu0 0.0
    %715 = vmatpush1.msra.mxu0 0.0
    %716 = vmatprep.mubr.f32.mxu0 0.0
    %v717 = vand.u32 %v119, 4294901760
    %718 = vmatmul.mubr.f32.gmra.mrb[0].mxu0 %v717
    %v719 = vpop.f32.mrb[0].mxu0
    %v720 = vadd.f32 %v297, %v719
    %v721 = vpop.f32.mrb[0].mxu0
    %v722 = vadd.f32 %v299, %v721
    %723 = vmatprep.mubr.f32.mxu0 0.0
    %v724 = vand.u32 %v122, 4294901760
    %725 = vmatmul.mubr.f32.gmra.mrb[0].mxu0 %v724
    %v726 = vpop.f32.mrb[0].mxu0
    %v727 = vadd.f32 %v308, %v726
    %v728 = vpop.f32.mrb[0].mxu0
    %v729 = vadd.f32 %v310, %v728
    %730 = vmatprep.mubr.f32.mxu0 0.0
    %v731 = vand.u32 %v125, 4294901760
    %732 = vmatmul.mubr.f32.gmra.mrb[0].mxu0 %v731
    %v733 = vpop.f32.mrb[0].mxu0
    %v734 = vadd.f32 %v319, %v733
    %v735 = vpop.f32.mrb[0].mxu0
    %v736 = vadd.f32 %v321, %v735
    %737 = vmatprep.mubr.f32.mxu0 0.0
    %v738 = vand.u32 %v128, 4294901760
    %739 = vmatmul.mubr.f32.gmra.mrb[0].mxu0 %v738
    %v740 = vpop.f32.mrb[0].mxu0
    %v741 = vadd.f32 %v330, %v740
    %v742 = vpop.f32.mrb[0].mxu0
    %v743 = vadd.f32 %v332, %v742
    %744 = vmatprep.mubr.f32.mxu0 0.0
    %v745 = vand.u32 %v131, 4294901760
    %746 = vmatmul.mubr.f32.gmra.mrb[0].mxu0 %v745
    %v747 = vpop.f32.mrb[0].mxu0
    %v748 = vadd.f32 %v341, %v747
    %v749 = vpop.f32.mrb[0].mxu0
    %v750 = vadd.f32 %v343, %v749
    %751 = vmatprep.mubr.f32.mxu0 0.0
    %v752 = vand.u32 %v134, 4294901760
    %753 = vmatmul.mubr.f32.gmra.mrb[0].mxu0 %v752
    %v754 = vpop.f32.mrb[0].mxu0
    %v755 = vadd.f32 %v352, %v754
    %v756 = vpop.f32.mrb[0].mxu0
    %v757 = vadd.f32 %v354, %v756
    %758 = vmatprep.mubr.f32.mxu0 0.0
    %v759 = vand.u32 %v137, 4294901760
    %760 = vmatmul.mubr.f32.gmra.mrb[0].mxu0 %v759
    %v761 = vpop.f32.mrb[0].mxu0
    %v762 = vadd.f32 %v363, %v761
    %v763 = vpop.f32.mrb[0].mxu0
    %v764 = vadd.f32 %v365, %v763
    %765 = vmatprep.mubr.f32.mxu0 0.0
    %v766 = vand.u32 %v140, 4294901760
    %767 = vmatmul.mubr.f32.gmra.mrb[0].mxu0 %v766
    %v768 = vpop.f32.mrb[0].mxu0
    %v769 = vadd.f32 %v374, %v768
    %v770 = vpop.f32.mrb[0].mxu0
    %v771 = vadd.f32 %v376, %v770
    %772 = vmatprep.mubr.f32.mxu0 0.0
    %v773 = vand.u32 %v143, 4294901760
    %774 = vmatmul.mubr.f32.gmra.mrb[0].mxu0 %v773
    %v775 = vpop.f32.mrb[0].mxu0
    %v776 = vadd.f32 %v385, %v775
    %v777 = vpop.f32.mrb[0].mxu0
    %v778 = vadd.f32 %v387, %v777
    %779 = vmatprep.mubr.f32.mxu0 0.0
    %v780 = vand.u32 %v146, 4294901760
    %781 = vmatmul.mubr.f32.gmra.mrb[0].mxu0 %v780
    %v782 = vpop.f32.mrb[0].mxu0
    %v783 = vadd.f32 %v396, %v782
    %v784 = vpop.f32.mrb[0].mxu0
    %v785 = vadd.f32 %v398, %v784
    %786 = vmatprep.mubr.f32.mxu0 0.0
    %v787 = vand.u32 %v149, 4294901760
    %788 = vmatmul.mubr.f32.gmra.mrb[0].mxu0 %v787
    %v789 = vpop.f32.mrb[0].mxu0
    %v790 = vadd.f32 %v407, %v789
    %v791 = vpop.f32.mrb[0].mxu0
    %v792 = vadd.f32 %v409, %v791
    %793 = vmatprep.mubr.f32.mxu0 0.0
    %v794 = vand.u32 %v152, 4294901760
    %795 = vmatmul.mubr.f32.gmra.mrb[0].mxu0 %v794
    %v796 = vpop.f32.mrb[0].mxu0
    %v797 = vadd.f32 %v418, %v796
    %v798 = vpop.f32.mrb[0].mxu0
    %v799 = vadd.f32 %v420, %v798
    %800 = vmatprep.mubr.f32.mxu0 0.0
    %v801 = vand.u32 %v155, 4294901760
    %802 = vmatmul.mubr.f32.gmra.mrb[0].mxu0 %v801
    %v803 = vpop.f32.mrb[0].mxu0
    %v804 = vadd.f32 %v429, %v803
    %v805 = vpop.f32.mrb[0].mxu0
    %v806 = vadd.f32 %v431, %v805
    %807 = vmatprep.mubr.f32.mxu0 0.0
    %v808 = vand.u32 %v158, 4294901760
    %809 = vmatmul.mubr.f32.gmra.mrb[0].mxu0 %v808
    %v810 = vpop.f32.mrb[0].mxu0
    %v811 = vadd.f32 %v440, %v810
    %v812 = vpop.f32.mrb[0].mxu0
    %v813 = vadd.f32 %v442, %v812
    %814 = vmatprep.mubr.f32.mxu0 0.0
    %v815 = vand.u32 %v161, 4294901760
    %816 = vmatmul.mubr.f32.gmra.mrb[0].mxu0 %v815
    %v817 = vpop.f32.mrb[0].mxu0
    %v818 = vadd.f32 %v451, %v817
    %v819 = vpop.f32.mrb[0].mxu0
    %v820 = vadd.f32 %v453, %v819
    %821 = vmatprep.mubr.f32.mxu0 0.0
    %v822 = vand.u32 %v164, 4294901760
    %823 = vmatmul.mubr.f32.gmra.mrb[0].mxu0 %v822
    %v824 = vpop.f32.mrb[0].mxu0
    %v825 = vadd.f32 %v462, %v824
    %v826 = vpop.f32.mrb[0].mxu0
    %v827 = vadd.f32 %v464, %v826
    %828 = vmatprep.mubr.f32.mxu0 0.0
    %v829 = vand.u32 %v167, 4294901760
    %830 = vmatmul.mubr.f32.gmra.mrb[0].mxu0 %v829
    %v831 = vpop.f32.mrb[0].mxu0
    %v832 = vadd.f32 %v473, %v831
    %v833 = vpop.f32.mrb[0].mxu0
    %v834 = vadd.f32 %v475, %v833
    %835 = vmatprep.mubr.f32.mxu0 0.0
    %v836 = vand.u32 %v170, 4294901760
    %837 = vmatmul.mubr.f32.gmra.mrb[0].mxu0 %v836
    %v838 = vpop.f32.mrb[0].mxu0
    %v839 = vadd.f32 %v484, %v838
    %v840 = vpop.f32.mrb[0].mxu0
    %v841 = vadd.f32 %v486, %v840
    %842 = vmatprep.mubr.f32.mxu0 0.0
    %v843 = vand.u32 %v173, 4294901760
    %844 = vmatmul.mubr.f32.gmra.mrb[0].mxu0 %v843
    %v845 = vpop.f32.mrb[0].mxu0
    %v846 = vadd.f32 %v495, %v845
    %v847 = vpop.f32.mrb[0].mxu0
    %v848 = vadd.f32 %v497, %v847
    %849 = vmatprep.mubr.f32.mxu0 0.0
    %v850 = vand.u32 %v176, 4294901760
    %851 = vmatmul.mubr.f32.gmra.mrb[0].mxu0 %v850
    %v852 = vpop.f32.mrb[0].mxu0
    %v853 = vadd.f32 %v506, %v852
    %v854 = vpop.f32.mrb[0].mxu0
    %v855 = vadd.f32 %v508, %v854
    %856 = vmatprep.mubr.f32.mxu0 0.0
    %v857 = vand.u32 %v179, 4294901760
    %858 = vmatmul.mubr.f32.gmra.mrb[0].mxu0 %v857
    %v859 = vpop.f32.mrb[0].mxu0
    %v860 = vadd.f32 %v517, %v859
    %v861 = vpop.f32.mrb[0].mxu0
    %v862 = vadd.f32 %v519, %v861
    %863 = vmatprep.mubr.f32.mxu0 0.0
    %v864 = vand.u32 %v182, 4294901760
    %865 = vmatmul.mubr.f32.gmra.mrb[0].mxu0 %v864
    %v866 = vpop.f32.mrb[0].mxu0
    %v867 = vadd.f32 %v528, %v866
    %v868 = vpop.f32.mrb[0].mxu0
    %v869 = vadd.f32 %v530, %v868
    %870 = vmatprep.mubr.f32.mxu0 0.0
    %v871 = vand.u32 %v185, 4294901760
    %872 = vmatmul.mubr.f32.gmra.mrb[0].mxu0 %v871
    %v873 = vpop.f32.mrb[0].mxu0
    %v874 = vadd.f32 %v539, %v873
    %v875 = vpop.f32.mrb[0].mxu0
    %v876 = vadd.f32 %v541, %v875
    %877 = vmatprep.mubr.f32.mxu0 0.0
    %v878 = vand.u32 %v188, 4294901760
    %879 = vmatmul.mubr.f32.gmra.mrb[0].mxu0 %v878
    %v880 = vpop.f32.mrb[0].mxu0
    %v881 = vadd.f32 %v550, %v880
    %v882 = vpop.f32.mrb[0].mxu0
    %v883 = vadd.f32 %v552, %v882
    %884 = vmatprep.mubr.f32.mxu0 0.0
    %v885 = vand.u32 %v191, 4294901760
    %886 = vmatmul.mubr.f32.gmra.mrb[0].mxu0 %v885
    %v887 = vpop.f32.mrb[0].mxu0
    %v888 = vadd.f32 %v561, %v887
    %v889 = vpop.f32.mrb[0].mxu0
    %v890 = vadd.f32 %v563, %v889
    %891 = vmatprep.mubr.f32.mxu0 0.0
    %v892 = vand.u32 %v194, 4294901760
    %893 = vmatmul.mubr.f32.gmra.mrb[0].mxu0 %v892
    %v894 = vpop.f32.mrb[0].mxu0
    %v895 = vadd.f32 %v572, %v894
    %v896 = vpop.f32.mrb[0].mxu0
    %v897 = vadd.f32 %v574, %v896
    %898 = vmatprep.mubr.f32.mxu0 0.0
    %v899 = vand.u32 %v197, 4294901760
    %900 = vmatmul.mubr.f32.gmra.mrb[0].mxu0 %v899
    %v901 = vpop.f32.mrb[0].mxu0
    %v902 = vadd.f32 %v583, %v901
    %v903 = vpop.f32.mrb[0].mxu0
    %v904 = vadd.f32 %v585, %v903
    %905 = vmatprep.mubr.f32.mxu0 0.0
    %v906 = vand.u32 %v200, 4294901760
    %907 = vmatmul.mubr.f32.gmra.mrb[0].mxu0 %v906
    %v908 = vpop.f32.mrb[0].mxu0
    %v909 = vadd.f32 %v594, %v908
    %v910 = vpop.f32.mrb[0].mxu0
    %v911 = vadd.f32 %v596, %v910
    %912 = vmatprep.mubr.f32.mxu0 0.0
    %v913 = vand.u32 %v203, 4294901760
    %914 = vmatmul.mubr.f32.gmra.mrb[0].mxu0 %v913
    %v915 = vpop.f32.mrb[0].mxu0
    %v916 = vadd.f32 %v605, %v915
    %v917 = vpop.f32.mrb[0].mxu0
    %v918 = vadd.f32 %v607, %v917
    %919 = vmatprep.mubr.f32.mxu0 0.0
    %v920 = vand.u32 %v206, 4294901760
    %921 = vmatmul.mubr.f32.gmra.mrb[0].mxu0 %v920
    %v922 = vpop.f32.mrb[0].mxu0
    %v923 = vadd.f32 %v616, %v922
    %v924 = vpop.f32.mrb[0].mxu0
    %v925 = vadd.f32 %v618, %v924
    %926 = vmatprep.mubr.f32.mxu0 0.0
    %v927 = vand.u32 %v209, 4294901760
    %928 = vmatmul.mubr.f32.gmra.mrb[0].mxu0 %v927
    %v929 = vpop.f32.mrb[0].mxu0
    %v930 = vadd.f32 %v627, %v929
    %v931 = vpop.f32.mrb[0].mxu0
    %v932 = vadd.f32 %v629, %v931
    %933 = vmatprep.mubr.f32.mxu0 0.0
    %v934 = vand.u32 %v212, 4294901760
    %935 = vmatmul.mubr.f32.gmra.mrb[0].mxu0 %v934
    %v936 = vpop.f32.mrb[0].mxu0
    %v937 = vadd.f32 %v638, %v936
    %v938 = vpop.f32.mrb[0].mxu0
    %v939 = vadd.f32 %v640, %v938
    %940 = vdwg.mxu0
    %v941 = vand.u32 %v217, 4294901760
    %v942 = vsub.f32 %v217, %v941
    %943 = vmatprep.subr.mxu0 %v942
    %v944 = vand.u32 %v215, 4294901760
    %v945 = vsub.f32 %v215, %v944
    %946 = vmatpush1.msra.mxu0 %v945
    %947 = vmatprep.subr.mxu0 0.0
    %948 = vmatpush1.msra.mxu0 0.0
    %949 = vmatprep.subr.mxu0 0.0
    %950 = vmatpush1.msra.mxu0 0.0
    %951 = vmatprep.subr.mxu0 0.0
    %952 = vmatpush1.msra.mxu0 0.0
    %953 = vmatprep.subr.mxu0 0.0
    %954 = vmatpush1.msra.mxu0 0.0
    %955 = vmatprep.subr.mxu0 0.0
    %956 = vmatpush1.msra.mxu0 0.0
    %957 = vmatprep.subr.mxu0 0.0
    %958 = vmatpush1.msra.mxu0 0.0
    %959 = vmatprep.subr.mxu0 0.0
    %960 = vmatpush1.msra.mxu0 0.0
    %961 = vmatprep.subr.mxu0 0.0
    %962 = vmatpush1.msra.mxu0 0.0
    %963 = vmatprep.subr.mxu0 0.0
    %964 = vmatpush1.msra.mxu0 0.0
    %965 = vmatprep.subr.mxu0 0.0
    %966 = vmatpush1.msra.mxu0 0.0
    %967 = vmatprep.subr.mxu0 0.0
    %968 = vmatpush1.msra.mxu0 0.0
    %969 = vmatprep.subr.mxu0 0.0
    %970 = vmatpush1.msra.mxu0 0.0
    %971 = vmatprep.subr.mxu0 0.0
    %972 = vmatpush1.msra.mxu0 0.0
    %973 = vmatprep.subr.mxu0 0.0
    %974 = vmatpush1.msra.mxu0 0.0
    %975 = vmatprep.subr.mxu0 0.0
    %976 = vmatpush1.msra.mxu0 0.0
    %977 = vmatprep.subr.mxu0 0.0
    %978 = vmatpush1.msra.mxu0 0.0
    %979 = vmatprep.subr.mxu0 0.0
    %980 = vmatpush1.msra.mxu0 0.0
    %981 = vmatprep.subr.mxu0 0.0
    %982 = vmatpush1.msra.mxu0 0.0
    %983 = vmatprep.subr.mxu0 0.0
    %984 = vmatpush1.msra.mxu0 0.0
    %985 = vmatprep.subr.mxu0 0.0
    %986 = vmatpush1.msra.mxu0 0.0
    %987 = vmatprep.subr.mxu0 0.0
    %988 = vmatpush1.msra.mxu0 0.0
    %989 = vmatprep.subr.mxu0 0.0
    %990 = vmatpush1.msra.mxu0 0.0
    %991 = vmatprep.subr.mxu0 0.0
    %992 = vmatpush1.msra.mxu0 0.0
    %993 = vmatprep.subr.mxu0 0.0
    %994 = vmatpush1.msra.mxu0 0.0
    %995 = vmatprep.subr.mxu0 0.0
    %996 = vmatpush1.msra.mxu0 0.0
    %997 = vmatprep.subr.mxu0 0.0
    %998 = vmatpush1.msra.mxu0 0.0
    %999 = vmatprep.subr.mxu0 0.0
    %1000 = vmatpush1.msra.mxu0 0.0
    %1001 = vmatprep.subr.mxu0 0.0
    %1002 = vmatpush1.msra.mxu0 0.0
    %1003 = vmatprep.subr.mxu0 0.0
    %1004 = vmatpush1.msra.mxu0 0.0
    %1005 = vmatprep.subr.mxu0 0.0
    %1006 = vmatpush1.msra.mxu0 0.0
    %1007 = vmatprep.subr.mxu0 0.0
    %1008 = vmatpush1.msra.mxu0 0.0
    %1009 = vmatprep.mubr.f32.mxu0 0.0
    %v1010 = vand.u32 %v119, 4294901760
    %v1011 = vsub.f32 %v119, %v1010
    %1012 = vmatmul.mubr.f32.gmra.mrb[0].mxu0 %v1011
    %v1013 = vpop.f32.mrb[0].mxu0
    %v1014 = vadd.f32 %v720, %v1013
    %v1015 = vpop.f32.mrb[0].mxu0
    %v1016 = vadd.f32 %v722, %v1015
    %1017 = vmatprep.mubr.f32.mxu0 0.0
    %v1018 = vand.u32 %v122, 4294901760
    %v1019 = vsub.f32 %v122, %v1018
    %1020 = vmatmul.mubr.f32.gmra.mrb[0].mxu0 %v1019
    %v1021 = vpop.f32.mrb[0].mxu0
    %v1022 = vadd.f32 %v727, %v1021
    %v1023 = vpop.f32.mrb[0].mxu0
    %v1024 = vadd.f32 %v729, %v1023
    %1025 = vmatprep.mubr.f32.mxu0 0.0
    %v1026 = vand.u32 %v125, 4294901760
    %v1027 = vsub.f32 %v125, %v1026
    %1028 = vmatmul.mubr.f32.gmra.mrb[0].mxu0 %v1027
    %v1029 = vpop.f32.mrb[0].mxu0
    %v1030 = vadd.f32 %v734, %v1029
    %v1031 = vpop.f32.mrb[0].mxu0
    %v1032 = vadd.f32 %v736, %v1031
    %1033 = vmatprep.mubr.f32.mxu0 0.0
    %v1034 = vand.u32 %v128, 4294901760
    %v1035 = vsub.f32 %v128, %v1034
    %1036 = vmatmul.mubr.f32.gmra.mrb[0].mxu0 %v1035
    %v1037 = vpop.f32.mrb[0].mxu0
    %v1038 = vadd.f32 %v741, %v1037
    %v1039 = vpop.f32.mrb[0].mxu0
    %v1040 = vadd.f32 %v743, %v1039
    %1041 = vmatprep.mubr.f32.mxu0 0.0
    %v1042 = vand.u32 %v131, 4294901760
    %v1043 = vsub.f32 %v131, %v1042
    %1044 = vmatmul.mubr.f32.gmra.mrb[0].mxu0 %v1043
    %v1045 = vpop.f32.mrb[0].mxu0
    %v1046 = vadd.f32 %v748, %v1045
    %v1047 = vpop.f32.mrb[0].mxu0
    %v1048 = vadd.f32 %v750, %v1047
    %1049 = vmatprep.mubr.f32.mxu0 0.0
    %v1050 = vand.u32 %v134, 4294901760
    %v1051 = vsub.f32 %v134, %v1050
    %1052 = vmatmul.mubr.f32.gmra.mrb[0].mxu0 %v1051
    %v1053 = vpop.f32.mrb[0].mxu0
    %v1054 = vadd.f32 %v755, %v1053
    %v1055 = vpop.f32.mrb[0].mxu0
    %v1056 = vadd.f32 %v757, %v1055
    %1057 = vmatprep.mubr.f32.mxu0 0.0
    %v1058 = vand.u32 %v137, 4294901760
    %v1059 = vsub.f32 %v137, %v1058
    %1060 = vmatmul.mubr.f32.gmra.mrb[0].mxu0 %v1059
    %v1061 = vpop.f32.mrb[0].mxu0
    %v1062 = vadd.f32 %v762, %v1061
    %v1063 = vpop.f32.mrb[0].mxu0
    %v1064 = vadd.f32 %v764, %v1063
    %1065 = vmatprep.mubr.f32.mxu0 0.0
    %v1066 = vand.u32 %v140, 4294901760
    %v1067 = vsub.f32 %v140, %v1066
    %1068 = vmatmul.mubr.f32.gmra.mrb[0].mxu0 %v1067
    %v1069 = vpop.f32.mrb[0].mxu0
    %v1070 = vadd.f32 %v769, %v1069
    %v1071 = vpop.f32.mrb[0].mxu0
    %v1072 = vadd.f32 %v771, %v1071
    %1073 = vmatprep.mubr.f32.mxu0 0.0
    %v1074 = vand.u32 %v143, 4294901760
    %v1075 = vsub.f32 %v143, %v1074
    %1076 = vmatmul.mubr.f32.gmra.mrb[0].mxu0 %v1075
    %v1077 = vpop.f32.mrb[0].mxu0
    %v1078 = vadd.f32 %v776, %v1077
    %v1079 = vpop.f32.mrb[0].mxu0
    %v1080 = vadd.f32 %v778, %v1079
    %1081 = vmatprep.mubr.f32.mxu0 0.0
    %v1082 = vand.u32 %v146, 4294901760
    %v1083 = vsub.f32 %v146, %v1082
    %1084 = vmatmul.mubr.f32.gmra.mrb[0].mxu0 %v1083
    %v1085 = vpop.f32.mrb[0].mxu0
    %v1086 = vadd.f32 %v783, %v1085
    %v1087 = vpop.f32.mrb[0].mxu0
    %v1088 = vadd.f32 %v785, %v1087
    %1089 = vmatprep.mubr.f32.mxu0 0.0
    %v1090 = vand.u32 %v149, 4294901760
    %v1091 = vsub.f32 %v149, %v1090
    %1092 = vmatmul.mubr.f32.gmra.mrb[0].mxu0 %v1091
    %v1093 = vpop.f32.mrb[0].mxu0
    %v1094 = vadd.f32 %v790, %v1093
    %v1095 = vpop.f32.mrb[0].mxu0
    %v1096 = vadd.f32 %v792, %v1095
    %1097 = vmatprep.mubr.f32.mxu0 0.0
    %v1098 = vand.u32 %v152, 4294901760
    %v1099 = vsub.f32 %v152, %v1098
    %1100 = vmatmul.mubr.f32.gmra.mrb[0].mxu0 %v1099
    %v1101 = vpop.f32.mrb[0].mxu0
    %v1102 = vadd.f32 %v797, %v1101
    %v1103 = vpop.f32.mrb[0].mxu0
    %v1104 = vadd.f32 %v799, %v1103
    %1105 = vmatprep.mubr.f32.mxu0 0.0
    %v1106 = vand.u32 %v155, 4294901760
    %v1107 = vsub.f32 %v155, %v1106
    %1108 = vmatmul.mubr.f32.gmra.mrb[0].mxu0 %v1107
    %v1109 = vpop.f32.mrb[0].mxu0
    %v1110 = vadd.f32 %v804, %v1109
    %v1111 = vpop.f32.mrb[0].mxu0
    %v1112 = vadd.f32 %v806, %v1111
    %1113 = vmatprep.mubr.f32.mxu0 0.0
    %v1114 = vand.u32 %v158, 4294901760
    %v1115 = vsub.f32 %v158, %v1114
    %1116 = vmatmul.mubr.f32.gmra.mrb[0].mxu0 %v1115
    %v1117 = vpop.f32.mrb[0].mxu0
    %v1118 = vadd.f32 %v811, %v1117
    %v1119 = vpop.f32.mrb[0].mxu0
    %v1120 = vadd.f32 %v813, %v1119
    %1121 = vmatprep.mubr.f32.mxu0 0.0
    %v1122 = vand.u32 %v161, 4294901760
    %v1123 = vsub.f32 %v161, %v1122
    %1124 = vmatmul.mubr.f32.gmra.mrb[0].mxu0 %v1123
    %v1125 = vpop.f32.mrb[0].mxu0
    %v1126 = vadd.f32 %v818, %v1125
    %v1127 = vpop.f32.mrb[0].mxu0
    %v1128 = vadd.f32 %v820, %v1127
    %1129 = vmatprep.mubr.f32.mxu0 0.0
    %v1130 = vand.u32 %v164, 4294901760
    %v1131 = vsub.f32 %v164, %v1130
    %1132 = vmatmul.mubr.f32.gmra.mrb[0].mxu0 %v1131
    %v1133 = vpop.f32.mrb[0].mxu0
    %v1134 = vadd.f32 %v825, %v1133
    %v1135 = vpop.f32.mrb[0].mxu0
    %v1136 = vadd.f32 %v827, %v1135
    %1137 = vmatprep.mubr.f32.mxu0 0.0
    %v1138 = vand.u32 %v167, 4294901760
    %v1139 = vsub.f32 %v167, %v1138
    %1140 = vmatmul.mubr.f32.gmra.mrb[0].mxu0 %v1139
    %v1141 = vpop.f32.mrb[0].mxu0
    %v1142 = vadd.f32 %v832, %v1141
    %v1143 = vpop.f32.mrb[0].mxu0
    %v1144 = vadd.f32 %v834, %v1143
    %1145 = vmatprep.mubr.f32.mxu0 0.0
    %v1146 = vand.u32 %v170, 4294901760
    %v1147 = vsub.f32 %v170, %v1146
    %1148 = vmatmul.mubr.f32.gmra.mrb[0].mxu0 %v1147
    %v1149 = vpop.f32.mrb[0].mxu0
    %v1150 = vadd.f32 %v839, %v1149
    %v1151 = vpop.f32.mrb[0].mxu0
    %v1152 = vadd.f32 %v841, %v1151
    %1153 = vmatprep.mubr.f32.mxu0 0.0
    %v1154 = vand.u32 %v173, 4294901760
    %v1155 = vsub.f32 %v173, %v1154
    %1156 = vmatmul.mubr.f32.gmra.mrb[0].mxu0 %v1155
    %v1157 = vpop.f32.mrb[0].mxu0
    %v1158 = vadd.f32 %v846, %v1157
    %v1159 = vpop.f32.mrb[0].mxu0
    %v1160 = vadd.f32 %v848, %v1159
    %1161 = vmatprep.mubr.f32.mxu0 0.0
    %v1162 = vand.u32 %v176, 4294901760
    %v1163 = vsub.f32 %v176, %v1162
    %1164 = vmatmul.mubr.f32.gmra.mrb[0].mxu0 %v1163
    %v1165 = vpop.f32.mrb[0].mxu0
    %v1166 = vadd.f32 %v853, %v1165
    %v1167 = vpop.f32.mrb[0].mxu0
    %v1168 = vadd.f32 %v855, %v1167
    %1169 = vmatprep.mubr.f32.mxu0 0.0
    %v1170 = vand.u32 %v179, 4294901760
    %v1171 = vsub.f32 %v179, %v1170
    %1172 = vmatmul.mubr.f32.gmra.mrb[0].mxu0 %v1171
    %v1173 = vpop.f32.mrb[0].mxu0
    %v1174 = vadd.f32 %v860, %v1173
    %v1175 = vpop.f32.mrb[0].mxu0
    %v1176 = vadd.f32 %v862, %v1175
    %1177 = vmatprep.mubr.f32.mxu0 0.0
    %v1178 = vand.u32 %v182, 4294901760
    %v1179 = vsub.f32 %v182, %v1178
    %1180 = vmatmul.mubr.f32.gmra.mrb[0].mxu0 %v1179
    %v1181 = vpop.f32.mrb[0].mxu0
    %v1182 = vadd.f32 %v867, %v1181
    %v1183 = vpop.f32.mrb[0].mxu0
    %v1184 = vadd.f32 %v869, %v1183
    %1185 = vmatprep.mubr.f32.mxu0 0.0
    %v1186 = vand.u32 %v185, 4294901760
    %v1187 = vsub.f32 %v185, %v1186
    %1188 = vmatmul.mubr.f32.gmra.mrb[0].mxu0 %v1187
    %v1189 = vpop.f32.mrb[0].mxu0
    %v1190 = vadd.f32 %v874, %v1189
    %v1191 = vpop.f32.mrb[0].mxu0
    %v1192 = vadd.f32 %v876, %v1191
    %1193 = vmatprep.mubr.f32.mxu0 0.0
    %v1194 = vand.u32 %v188, 4294901760
    %v1195 = vsub.f32 %v188, %v1194
    %1196 = vmatmul.mubr.f32.gmra.mrb[0].mxu0 %v1195
    %v1197 = vpop.f32.mrb[0].mxu0
    %v1198 = vadd.f32 %v881, %v1197
    %v1199 = vpop.f32.mrb[0].mxu0
    %v1200 = vadd.f32 %v883, %v1199
    %1201 = vmatprep.mubr.f32.mxu0 0.0
    %v1202 = vand.u32 %v191, 4294901760
    %v1203 = vsub.f32 %v191, %v1202
    %1204 = vmatmul.mubr.f32.gmra.mrb[0].mxu0 %v1203
    %v1205 = vpop.f32.mrb[0].mxu0
    %v1206 = vadd.f32 %v888, %v1205
    %v1207 = vpop.f32.mrb[0].mxu0
    %v1208 = vadd.f32 %v890, %v1207
    %1209 = vmatprep.mubr.f32.mxu0 0.0
    %v1210 = vand.u32 %v194, 4294901760
    %v1211 = vsub.f32 %v194, %v1210
    %1212 = vmatmul.mubr.f32.gmra.mrb[0].mxu0 %v1211
    %v1213 = vpop.f32.mrb[0].mxu0
    %v1214 = vadd.f32 %v895, %v1213
    %v1215 = vpop.f32.mrb[0].mxu0
    %v1216 = vadd.f32 %v897, %v1215
    %1217 = vmatprep.mubr.f32.mxu0 0.0
    %v1218 = vand.u32 %v197, 4294901760
    %v1219 = vsub.f32 %v197, %v1218
    %1220 = vmatmul.mubr.f32.gmra.mrb[0].mxu0 %v1219
    %v1221 = vpop.f32.mrb[0].mxu0
    %v1222 = vadd.f32 %v902, %v1221
    %v1223 = vpop.f32.mrb[0].mxu0
    %v1224 = vadd.f32 %v904, %v1223
    %1225 = vmatprep.mubr.f32.mxu0 0.0
    %v1226 = vand.u32 %v200, 4294901760
    %v1227 = vsub.f32 %v200, %v1226
    %1228 = vmatmul.mubr.f32.gmra.mrb[0].mxu0 %v1227
    %v1229 = vpop.f32.mrb[0].mxu0
    %v1230 = vadd.f32 %v909, %v1229
    %v1231 = vpop.f32.mrb[0].mxu0
    %v1232 = vadd.f32 %v911, %v1231
    %1233 = vmatprep.mubr.f32.mxu0 0.0
    %v1234 = vand.u32 %v203, 4294901760
    %v1235 = vsub.f32 %v203, %v1234
    %1236 = vmatmul.mubr.f32.gmra.mrb[0].mxu0 %v1235
    %v1237 = vpop.f32.mrb[0].mxu0
    %v1238 = vadd.f32 %v916, %v1237
    %v1239 = vpop.f32.mrb[0].mxu0
    %v1240 = vadd.f32 %v918, %v1239
    %1241 = vmatprep.mubr.f32.mxu0 0.0
    %v1242 = vand.u32 %v206, 4294901760
    %v1243 = vsub.f32 %v206, %v1242
    %1244 = vmatmul.mubr.f32.gmra.mrb[0].mxu0 %v1243
    %v1245 = vpop.f32.mrb[0].mxu0
    %v1246 = vadd.f32 %v923, %v1245
    %v1247 = vpop.f32.mrb[0].mxu0
    %v1248 = vadd.f32 %v925, %v1247
    %1249 = vmatprep.mubr.f32.mxu0 0.0
    %v1250 = vand.u32 %v209, 4294901760
    %v1251 = vsub.f32 %v209, %v1250
    %1252 = vmatmul.mubr.f32.gmra.mrb[0].mxu0 %v1251
    %v1253 = vpop.f32.mrb[0].mxu0
    %v1254 = vadd.f32 %v930, %v1253
    %v1255 = vpop.f32.mrb[0].mxu0
    %v1256 = vadd.f32 %v932, %v1255
    %1257 = vmatprep.mubr.f32.mxu0 0.0
    %v1258 = vand.u32 %v212, 4294901760
    %v1259 = vsub.f32 %v212, %v1258
    %1260 = vmatmul.mubr.f32.gmra.mrb[0].mxu0 %v1259
    %v1261 = vpop.f32.mrb[0].mxu0
    %v1262 = vadd.f32 %v937, %v1261
    %v1263 = vpop.f32.mrb[0].mxu0
    %v1264 = vadd.f32 %v939, %v1263
    %1265 = vdwg.mxu0
    %v1266 = vand.u32 %v217, 4294901760
    %1267 = vmatprep.subr.mxu0 %v1266
    %v1268 = vand.u32 %v215, 4294901760
    %1269 = vmatpush1.msra.mxu0 %v1268
    %1270 = vmatprep.subr.mxu0 0.0
    %1271 = vmatpush1.msra.mxu0 0.0
    %1272 = vmatprep.subr.mxu0 0.0
    %1273 = vmatpush1.msra.mxu0 0.0
    %1274 = vmatprep.subr.mxu0 0.0
    %1275 = vmatpush1.msra.mxu0 0.0
    %1276 = vmatprep.subr.mxu0 0.0
    %1277 = vmatpush1.msra.mxu0 0.0
    %1278 = vmatprep.subr.mxu0 0.0
    %1279 = vmatpush1.msra.mxu0 0.0
    %1280 = vmatprep.subr.mxu0 0.0
    %1281 = vmatpush1.msra.mxu0 0.0
    %1282 = vmatprep.subr.mxu0 0.0
    %1283 = vmatpush1.msra.mxu0 0.0
    %1284 = vmatprep.subr.mxu0 0.0
    %1285 = vmatpush1.msra.mxu0 0.0
    %1286 = vmatprep.subr.mxu0 0.0
    %1287 = vmatpush1.msra.mxu0 0.0
    %1288 = vmatprep.subr.mxu0 0.0
    %1289 = vmatpush1.msra.mxu0 0.0
    %1290 = vmatprep.subr.mxu0 0.0
    %1291 = vmatpush1.msra.mxu0 0.0
    %1292 = vmatprep.subr.mxu0 0.0
    %1293 = vmatpush1.msra.mxu0 0.0
    %1294 = vmatprep.subr.mxu0 0.0
    %1295 = vmatpush1.msra.mxu0 0.0
    %1296 = vmatprep.subr.mxu0 0.0
    %1297 = vmatpush1.msra.mxu0 0.0
    %1298 = vmatprep.subr.mxu0 0.0
    %1299 = vmatpush1.msra.mxu0 0.0
    %1300 = vmatprep.subr.mxu0 0.0
    %1301 = vmatpush1.msra.mxu0 0.0
    %1302 = vmatprep.subr.mxu0 0.0
    %1303 = vmatpush1.msra.mxu0 0.0
    %1304 = vmatprep.subr.mxu0 0.0
    %1305 = vmatpush1.msra.mxu0 0.0
    %1306 = vmatprep.subr.mxu0 0.0
    %1307 = vmatpush1.msra.mxu0 0.0
    %1308 = vmatprep.subr.mxu0 0.0
    %1309 = vmatpush1.msra.mxu0 0.0
    %1310 = vmatprep.subr.mxu0 0.0
    %1311 = vmatpush1.msra.mxu0 0.0
    %1312 = vmatprep.subr.mxu0 0.0
    %1313 = vmatpush1.msra.mxu0 0.0
    %1314 = vmatprep.subr.mxu0 0.0
    %1315 = vmatpush1.msra.mxu0 0.0
    %1316 = vmatprep.subr.mxu0 0.0
    %1317 = vmatpush1.msra.mxu0 0.0
    %1318 = vmatprep.subr.mxu0 0.0
    %1319 = vmatpush1.msra.mxu0 0.0
    %1320 = vmatprep.subr.mxu0 0.0
    %1321 = vmatpush1.msra.mxu0 0.0
    %1322 = vmatprep.subr.mxu0 0.0
    %1323 = vmatpush1.msra.mxu0 0.0
    %1324 = vmatprep.subr.mxu0 0.0
    %1325 = vmatpush1.msra.mxu0 0.0
    %1326 = vmatprep.subr.mxu0 0.0
    %1327 = vmatpush1.msra.mxu0 0.0
    %1328 = vmatprep.subr.mxu0 0.0
    %1329 = vmatpush1.msra.mxu0 0.0
    %1330 = vmatprep.subr.mxu0 0.0
    %1331 = vmatpush1.msra.mxu0 0.0
    %1332 = vmatprep.mubr.f32.mxu0 0.0
    %v1333 = vand.u32 %v119, 4294901760
    %v1334 = vsub.f32 %v119, %v1333
    %v1335 = vand.u32 %v1334, 4294901760
    %1336 = vmatmul.mubr.f32.gmra.mrb[0].mxu0 %v1335
    %v1337 = vpop.f32.mrb[0].mxu0
    %v1338 = vadd.f32 %v1014, %v1337
    %v1339 = vpop.f32.mrb[0].mxu0
    %v1340 = vadd.f32 %v1016, %v1339
    %1341 = vmatprep.mubr.f32.mxu0 0.0
    %v1342 = vand.u32 %v122, 4294901760
    %v1343 = vsub.f32 %v122, %v1342
    %v1344 = vand.u32 %v1343, 4294901760
    %1345 = vmatmul.mubr.f32.gmra.mrb[0].mxu0 %v1344
    %v1346 = vpop.f32.mrb[0].mxu0
    %v1347 = vadd.f32 %v1022, %v1346
    %v1348 = vpop.f32.mrb[0].mxu0
    %v1349 = vadd.f32 %v1024, %v1348
    %1350 = vmatprep.mubr.f32.mxu0 0.0
    %v1351 = vand.u32 %v125, 4294901760
    %v1352 = vsub.f32 %v125, %v1351
    %v1353 = vand.u32 %v1352, 4294901760
    %1354 = vmatmul.mubr.f32.gmra.mrb[0].mxu0 %v1353
    %v1355 = vpop.f32.mrb[0].mxu0
    %v1356 = vadd.f32 %v1030, %v1355
    %v1357 = vpop.f32.mrb[0].mxu0
    %v1358 = vadd.f32 %v1032, %v1357
    %1359 = vmatprep.mubr.f32.mxu0 0.0
    %v1360 = vand.u32 %v128, 4294901760
    %v1361 = vsub.f32 %v128, %v1360
    %v1362 = vand.u32 %v1361, 4294901760
    %1363 = vmatmul.mubr.f32.gmra.mrb[0].mxu0 %v1362
    %v1364 = vpop.f32.mrb[0].mxu0
    %v1365 = vadd.f32 %v1038, %v1364
    %v1366 = vpop.f32.mrb[0].mxu0
    %v1367 = vadd.f32 %v1040, %v1366
    %1368 = vmatprep.mubr.f32.mxu0 0.0
    %v1369 = vand.u32 %v131, 4294901760
    %v1370 = vsub.f32 %v131, %v1369
    %v1371 = vand.u32 %v1370, 4294901760
    %1372 = vmatmul.mubr.f32.gmra.mrb[0].mxu0 %v1371
    %v1373 = vpop.f32.mrb[0].mxu0
    %v1374 = vadd.f32 %v1046, %v1373
    %v1375 = vpop.f32.mrb[0].mxu0
    %v1376 = vadd.f32 %v1048, %v1375
    %1377 = vmatprep.mubr.f32.mxu0 0.0
    %v1378 = vand.u32 %v134, 4294901760
    %v1379 = vsub.f32 %v134, %v1378
    %v1380 = vand.u32 %v1379, 4294901760
    %1381 = vmatmul.mubr.f32.gmra.mrb[0].mxu0 %v1380
    %v1382 = vpop.f32.mrb[0].mxu0
    %v1383 = vadd.f32 %v1054, %v1382
    %v1384 = vpop.f32.mrb[0].mxu0
    %v1385 = vadd.f32 %v1056, %v1384
    %1386 = vmatprep.mubr.f32.mxu0 0.0
    %v1387 = vand.u32 %v137, 4294901760
    %v1388 = vsub.f32 %v137, %v1387
    %v1389 = vand.u32 %v1388, 4294901760
    %1390 = vmatmul.mubr.f32.gmra.mrb[0].mxu0 %v1389
    %v1391 = vpop.f32.mrb[0].mxu0
    %v1392 = vadd.f32 %v1062, %v1391
    %v1393 = vpop.f32.mrb[0].mxu0
    %v1394 = vadd.f32 %v1064, %v1393
    %1395 = vmatprep.mubr.f32.mxu0 0.0
    %v1396 = vand.u32 %v140, 4294901760
    %v1397 = vsub.f32 %v140, %v1396
    %v1398 = vand.u32 %v1397, 4294901760
    %1399 = vmatmul.mubr.f32.gmra.mrb[0].mxu0 %v1398
    %v1400 = vpop.f32.mrb[0].mxu0
    %v1401 = vadd.f32 %v1070, %v1400
    %v1402 = vpop.f32.mrb[0].mxu0
    %v1403 = vadd.f32 %v1072, %v1402
    %1404 = vmatprep.mubr.f32.mxu0 0.0
    %v1405 = vand.u32 %v143, 4294901760
    %v1406 = vsub.f32 %v143, %v1405
    %v1407 = vand.u32 %v1406, 4294901760
    %1408 = vmatmul.mubr.f32.gmra.mrb[0].mxu0 %v1407
    %v1409 = vpop.f32.mrb[0].mxu0
    %v1410 = vadd.f32 %v1078, %v1409
    %v1411 = vpop.f32.mrb[0].mxu0
    %v1412 = vadd.f32 %v1080, %v1411
    %1413 = vmatprep.mubr.f32.mxu0 0.0
    %v1414 = vand.u32 %v146, 4294901760
    %v1415 = vsub.f32 %v146, %v1414
    %v1416 = vand.u32 %v1415, 4294901760
    %1417 = vmatmul.mubr.f32.gmra.mrb[0].mxu0 %v1416
    %v1418 = vpop.f32.mrb[0].mxu0
    %v1419 = vadd.f32 %v1086, %v1418
    %v1420 = vpop.f32.mrb[0].mxu0
    %v1421 = vadd.f32 %v1088, %v1420
    %1422 = vmatprep.mubr.f32.mxu0 0.0
    %v1423 = vand.u32 %v149, 4294901760
    %v1424 = vsub.f32 %v149, %v1423
    %v1425 = vand.u32 %v1424, 4294901760
    %1426 = vmatmul.mubr.f32.gmra.mrb[0].mxu0 %v1425
    %v1427 = vpop.f32.mrb[0].mxu0
    %v1428 = vadd.f32 %v1094, %v1427
    %v1429 = vpop.f32.mrb[0].mxu0
    %v1430 = vadd.f32 %v1096, %v1429
    %1431 = vmatprep.mubr.f32.mxu0 0.0
    %v1432 = vand.u32 %v152, 4294901760
    %v1433 = vsub.f32 %v152, %v1432
    %v1434 = vand.u32 %v1433, 4294901760
    %1435 = vmatmul.mubr.f32.gmra.mrb[0].mxu0 %v1434
    %v1436 = vpop.f32.mrb[0].mxu0
    %v1437 = vadd.f32 %v1102, %v1436
    %v1438 = vpop.f32.mrb[0].mxu0
    %v1439 = vadd.f32 %v1104, %v1438
    %1440 = vmatprep.mubr.f32.mxu0 0.0
    %v1441 = vand.u32 %v155, 4294901760
    %v1442 = vsub.f32 %v155, %v1441
    %v1443 = vand.u32 %v1442, 4294901760
    %1444 = vmatmul.mubr.f32.gmra.mrb[0].mxu0 %v1443
    %v1445 = vpop.f32.mrb[0].mxu0
    %v1446 = vadd.f32 %v1110, %v1445
    %v1447 = vpop.f32.mrb[0].mxu0
    %v1448 = vadd.f32 %v1112, %v1447
    %1449 = vmatprep.mubr.f32.mxu0 0.0
    %v1450 = vand.u32 %v158, 4294901760
    %v1451 = vsub.f32 %v158, %v1450
    %v1452 = vand.u32 %v1451, 4294901760
    %1453 = vmatmul.mubr.f32.gmra.mrb[0].mxu0 %v1452
    %v1454 = vpop.f32.mrb[0].mxu0
    %v1455 = vadd.f32 %v1118, %v1454
    %v1456 = vpop.f32.mrb[0].mxu0
    %v1457 = vadd.f32 %v1120, %v1456
    %1458 = vmatprep.mubr.f32.mxu0 0.0
    %v1459 = vand.u32 %v161, 4294901760
    %v1460 = vsub.f32 %v161, %v1459
    %v1461 = vand.u32 %v1460, 4294901760
    %1462 = vmatmul.mubr.f32.gmra.mrb[0].mxu0 %v1461
    %v1463 = vpop.f32.mrb[0].mxu0
    %v1464 = vadd.f32 %v1126, %v1463
    %v1465 = vpop.f32.mrb[0].mxu0
    %v1466 = vadd.f32 %v1128, %v1465
    %1467 = vmatprep.mubr.f32.mxu0 0.0
    %v1468 = vand.u32 %v164, 4294901760
    %v1469 = vsub.f32 %v164, %v1468
    %v1470 = vand.u32 %v1469, 4294901760
    %1471 = vmatmul.mubr.f32.gmra.mrb[0].mxu0 %v1470
    %v1472 = vpop.f32.mrb[0].mxu0
    %v1473 = vadd.f32 %v1134, %v1472
    %v1474 = vpop.f32.mrb[0].mxu0
    %v1475 = vadd.f32 %v1136, %v1474
    %1476 = vmatprep.mubr.f32.mxu0 0.0
    %v1477 = vand.u32 %v167, 4294901760
    %v1478 = vsub.f32 %v167, %v1477
    %v1479 = vand.u32 %v1478, 4294901760
    %1480 = vmatmul.mubr.f32.gmra.mrb[0].mxu0 %v1479
    %v1481 = vpop.f32.mrb[0].mxu0
    %v1482 = vadd.f32 %v1142, %v1481
    %v1483 = vpop.f32.mrb[0].mxu0
    %v1484 = vadd.f32 %v1144, %v1483
    %1485 = vmatprep.mubr.f32.mxu0 0.0
    %v1486 = vand.u32 %v170, 4294901760
    %v1487 = vsub.f32 %v170, %v1486
    %v1488 = vand.u32 %v1487, 4294901760
    %1489 = vmatmul.mubr.f32.gmra.mrb[0].mxu0 %v1488
    %v1490 = vpop.f32.mrb[0].mxu0
    %v1491 = vadd.f32 %v1150, %v1490
    %v1492 = vpop.f32.mrb[0].mxu0
    %v1493 = vadd.f32 %v1152, %v1492
    %1494 = vmatprep.mubr.f32.mxu0 0.0
    %v1495 = vand.u32 %v173, 4294901760
    %v1496 = vsub.f32 %v173, %v1495
    %v1497 = vand.u32 %v1496, 4294901760
    %1498 = vmatmul.mubr.f32.gmra.mrb[0].mxu0 %v1497
    %v1499 = vpop.f32.mrb[0].mxu0
    %v1500 = vadd.f32 %v1158, %v1499
    %v1501 = vpop.f32.mrb[0].mxu0
    %v1502 = vadd.f32 %v1160, %v1501
    %1503 = vmatprep.mubr.f32.mxu0 0.0
    %v1504 = vand.u32 %v176, 4294901760
    %v1505 = vsub.f32 %v176, %v1504
    %v1506 = vand.u32 %v1505, 4294901760
    %1507 = vmatmul.mubr.f32.gmra.mrb[0].mxu0 %v1506
    %v1508 = vpop.f32.mrb[0].mxu0
    %v1509 = vadd.f32 %v1166, %v1508
    %v1510 = vpop.f32.mrb[0].mxu0
    %v1511 = vadd.f32 %v1168, %v1510
    %1512 = vmatprep.mubr.f32.mxu0 0.0
    %v1513 = vand.u32 %v179, 4294901760
    %v1514 = vsub.f32 %v179, %v1513
    %v1515 = vand.u32 %v1514, 4294901760
    %1516 = vmatmul.mubr.f32.gmra.mrb[0].mxu0 %v1515
    %v1517 = vpop.f32.mrb[0].mxu0
    %v1518 = vadd.f32 %v1174, %v1517
    %v1519 = vpop.f32.mrb[0].mxu0
    %v1520 = vadd.f32 %v1176, %v1519
    %1521 = vmatprep.mubr.f32.mxu0 0.0
    %v1522 = vand.u32 %v182, 4294901760
    %v1523 = vsub.f32 %v182, %v1522
    %v1524 = vand.u32 %v1523, 4294901760
    %1525 = vmatmul.mubr.f32.gmra.mrb[0].mxu0 %v1524
    %v1526 = vpop.f32.mrb[0].mxu0
    %v1527 = vadd.f32 %v1182, %v1526
    %v1528 = vpop.f32.mrb[0].mxu0
    %v1529 = vadd.f32 %v1184, %v1528
    %1530 = vmatprep.mubr.f32.mxu0 0.0
    %v1531 = vand.u32 %v185, 4294901760
    %v1532 = vsub.f32 %v185, %v1531
    %v1533 = vand.u32 %v1532, 4294901760
    %1534 = vmatmul.mubr.f32.gmra.mrb[0].mxu0 %v1533
    %v1535 = vpop.f32.mrb[0].mxu0
    %v1536 = vadd.f32 %v1190, %v1535
    %v1537 = vpop.f32.mrb[0].mxu0
    %v1538 = vadd.f32 %v1192, %v1537
    %1539 = vmatprep.mubr.f32.mxu0 0.0
    %v1540 = vand.u32 %v188, 4294901760
    %v1541 = vsub.f32 %v188, %v1540
    %v1542 = vand.u32 %v1541, 4294901760
    %1543 = vmatmul.mubr.f32.gmra.mrb[0].mxu0 %v1542
    %v1544 = vpop.f32.mrb[0].mxu0
    %v1545 = vadd.f32 %v1198, %v1544
    %v1546 = vpop.f32.mrb[0].mxu0
    %v1547 = vadd.f32 %v1200, %v1546
    %1548 = vmatprep.mubr.f32.mxu0 0.0
    %v1549 = vand.u32 %v191, 4294901760
    %v1550 = vsub.f32 %v191, %v1549
    %v1551 = vand.u32 %v1550, 4294901760
    %1552 = vmatmul.mubr.f32.gmra.mrb[0].mxu0 %v1551
    %v1553 = vpop.f32.mrb[0].mxu0
    %v1554 = vadd.f32 %v1206, %v1553
    %v1555 = vpop.f32.mrb[0].mxu0
    %v1556 = vadd.f32 %v1208, %v1555
    %1557 = vmatprep.mubr.f32.mxu0 0.0
    %v1558 = vand.u32 %v194, 4294901760
    %v1559 = vsub.f32 %v194, %v1558
    %v1560 = vand.u32 %v1559, 4294901760
    %1561 = vmatmul.mubr.f32.gmra.mrb[0].mxu0 %v1560
    %v1562 = vpop.f32.mrb[0].mxu0
    %v1563 = vadd.f32 %v1214, %v1562
    %v1564 = vpop.f32.mrb[0].mxu0
    %v1565 = vadd.f32 %v1216, %v1564
    %1566 = vmatprep.mubr.f32.mxu0 0.0
    %v1567 = vand.u32 %v197, 4294901760
    %v1568 = vsub.f32 %v197, %v1567
    %v1569 = vand.u32 %v1568, 4294901760
    %1570 = vmatmul.mubr.f32.gmra.mrb[0].mxu0 %v1569
    %v1571 = vpop.f32.mrb[0].mxu0
    %v1572 = vadd.f32 %v1222, %v1571
    %v1573 = vpop.f32.mrb[0].mxu0
    %v1574 = vadd.f32 %v1224, %v1573
    %1575 = vmatprep.mubr.f32.mxu0 0.0
    %v1576 = vand.u32 %v200, 4294901760
    %v1577 = vsub.f32 %v200, %v1576
    %v1578 = vand.u32 %v1577, 4294901760
    %1579 = vmatmul.mubr.f32.gmra.mrb[0].mxu0 %v1578
    %v1580 = vpop.f32.mrb[0].mxu0
    %v1581 = vadd.f32 %v1230, %v1580
    %v1582 = vpop.f32.mrb[0].mxu0
    %v1583 = vadd.f32 %v1232, %v1582
    %1584 = vmatprep.mubr.f32.mxu0 0.0
    %v1585 = vand.u32 %v203, 4294901760
    %v1586 = vsub.f32 %v203, %v1585
    %v1587 = vand.u32 %v1586, 4294901760
    %1588 = vmatmul.mubr.f32.gmra.mrb[0].mxu0 %v1587
    %v1589 = vpop.f32.mrb[0].mxu0
    %v1590 = vadd.f32 %v1238, %v1589
    %v1591 = vpop.f32.mrb[0].mxu0
    %v1592 = vadd.f32 %v1240, %v1591
    %1593 = vmatprep.mubr.f32.mxu0 0.0
    %v1594 = vand.u32 %v206, 4294901760
    %v1595 = vsub.f32 %v206, %v1594
    %v1596 = vand.u32 %v1595, 4294901760
    %1597 = vmatmul.mubr.f32.gmra.mrb[0].mxu0 %v1596
    %v1598 = vpop.f32.mrb[0].mxu0
    %v1599 = vadd.f32 %v1246, %v1598
    %v1600 = vpop.f32.mrb[0].mxu0
    %v1601 = vadd.f32 %v1248, %v1600
    %1602 = vmatprep.mubr.f32.mxu0 0.0
    %v1603 = vand.u32 %v209, 4294901760
    %v1604 = vsub.f32 %v209, %v1603
    %v1605 = vand.u32 %v1604, 4294901760
    %1606 = vmatmul.mubr.f32.gmra.mrb[0].mxu0 %v1605
    %v1607 = vpop.f32.mrb[0].mxu0
    %v1608 = vadd.f32 %v1254, %v1607
    %v1609 = vpop.f32.mrb[0].mxu0
    %v1610 = vadd.f32 %v1256, %v1609
    %1611 = vmatprep.mubr.f32.mxu0 0.0
    %v1612 = vand.u32 %v212, 4294901760
    %v1613 = vsub.f32 %v212, %v1612
    %v1614 = vand.u32 %v1613, 4294901760
    %1615 = vmatmul.mubr.f32.gmra.mrb[0].mxu0 %v1614
    %v1616 = vpop.f32.mrb[0].mxu0
    %v1617 = vadd.f32 %v1262, %v1616
    %v1618 = vpop.f32.mrb[0].mxu0
    %v1619 = vadd.f32 %v1264, %v1618
    %1620 = vdwg.mxu0
    %v1621 = vand.u32 %v217, 4294901760
    %v1622 = vsub.f32 %v217, %v1621
    %v1623 = vand.u32 %v1622, 4294901760
    %1624 = vmatprep.subr.mxu0 %v1623
    %v1625 = vand.u32 %v215, 4294901760
    %v1626 = vsub.f32 %v215, %v1625
    %v1627 = vand.u32 %v1626, 4294901760
    %1628 = vmatpush1.msra.mxu0 %v1627
    %1629 = vmatprep.subr.mxu0 0.0
    %1630 = vmatpush1.msra.mxu0 0.0
    %1631 = vmatprep.subr.mxu0 0.0
    %1632 = vmatpush1.msra.mxu0 0.0
    %1633 = vmatprep.subr.mxu0 0.0
    %1634 = vmatpush1.msra.mxu0 0.0
    %1635 = vmatprep.subr.mxu0 0.0
    %1636 = vmatpush1.msra.mxu0 0.0
    %1637 = vmatprep.subr.mxu0 0.0
    %1638 = vmatpush1.msra.mxu0 0.0
    %1639 = vmatprep.subr.mxu0 0.0
    %1640 = vmatpush1.msra.mxu0 0.0
    %1641 = vmatprep.subr.mxu0 0.0
    %1642 = vmatpush1.msra.mxu0 0.0
    %1643 = vmatprep.subr.mxu0 0.0
    %1644 = vmatpush1.msra.mxu0 0.0
    %1645 = vmatprep.subr.mxu0 0.0
    %1646 = vmatpush1.msra.mxu0 0.0
    %1647 = vmatprep.subr.mxu0 0.0
    %1648 = vmatpush1.msra.mxu0 0.0
    %1649 = vmatprep.subr.mxu0 0.0
    %1650 = vmatpush1.msra.mxu0 0.0
    %1651 = vmatprep.subr.mxu0 0.0
    %1652 = vmatpush1.msra.mxu0 0.0
    %1653 = vmatprep.subr.mxu0 0.0
    %1654 = vmatpush1.msra.mxu0 0.0
    %1655 = vmatprep.subr.mxu0 0.0
    %1656 = vmatpush1.msra.mxu0 0.0
    %1657 = vmatprep.subr.mxu0 0.0
    %1658 = vmatpush1.msra.mxu0 0.0
    %1659 = vmatprep.subr.mxu0 0.0
    %1660 = vmatpush1.msra.mxu0 0.0
    %1661 = vmatprep.subr.mxu0 0.0
    %1662 = vmatpush1.msra.mxu0 0.0
    %1663 = vmatprep.subr.mxu0 0.0
    %1664 = vmatpush1.msra.mxu0 0.0
    %1665 = vmatprep.subr.mxu0 0.0
    %1666 = vmatpush1.msra.mxu0 0.0
    %1667 = vmatprep.subr.mxu0 0.0
    %1668 = vmatpush1.msra.mxu0 0.0
    %1669 = vmatprep.subr.mxu0 0.0
    %1670 = vmatpush1.msra.mxu0 0.0
    %1671 = vmatprep.subr.mxu0 0.0
    %1672 = vmatpush1.msra.mxu0 0.0
    %1673 = vmatprep.subr.mxu0 0.0
    %1674 = vmatpush1.msra.mxu0 0.0
    %1675 = vmatprep.subr.mxu0 0.0
    %1676 = vmatpush1.msra.mxu0 0.0
    %1677 = vmatprep.subr.mxu0 0.0
    %1678 = vmatpush1.msra.mxu0 0.0
    %1679 = vmatprep.subr.mxu0 0.0
    %1680 = vmatpush1.msra.mxu0 0.0
    %1681 = vmatprep.subr.mxu0 0.0
    %1682 = vmatpush1.msra.mxu0 0.0
    %1683 = vmatprep.subr.mxu0 0.0
    %1684 = vmatpush1.msra.mxu0 0.0
    %1685 = vmatprep.subr.mxu0 0.0
    %1686 = vmatpush1.msra.mxu0 0.0
    %1687 = vmatprep.subr.mxu0 0.0
    %1688 = vmatpush1.msra.mxu0 0.0
    %1689 = vmatprep.subr.mxu0 0.0
    %1690 = vmatpush1.msra.mxu0 0.0
    %1691 = vmatprep.mubr.f32.mxu0 0.0
    %v1692 = vand.u32 %v119, 4294901760
    %1693 = vmatmul.mubr.f32.gmra.mrb[0].mxu0 %v1692
    %v1694 = vpop.f32.mrb[0].mxu0
    %v1695 = vadd.f32 %v1338, %v1694
    %v1696 = vpop.f32.mrb[0].mxu0
    %v1697 = vadd.f32 %v1340, %v1696
    %1698 = vmatprep.mubr.f32.mxu0 0.0
    %v1699 = vand.u32 %v122, 4294901760
    %1700 = vmatmul.mubr.f32.gmra.mrb[0].mxu0 %v1699
    %v1701 = vpop.f32.mrb[0].mxu0
    %v1702 = vadd.f32 %v1347, %v1701
    %v1703 = vpop.f32.mrb[0].mxu0
    %v1704 = vadd.f32 %v1349, %v1703
    %1705 = vmatprep.mubr.f32.mxu0 0.0
    %v1706 = vand.u32 %v125, 4294901760
    %1707 = vmatmul.mubr.f32.gmra.mrb[0].mxu0 %v1706
    %v1708 = vpop.f32.mrb[0].mxu0
    %v1709 = vadd.f32 %v1356, %v1708
    %v1710 = vpop.f32.mrb[0].mxu0
    %v1711 = vadd.f32 %v1358, %v1710
    %1712 = vmatprep.mubr.f32.mxu0 0.0
    %v1713 = vand.u32 %v128, 4294901760
    %1714 = vmatmul.mubr.f32.gmra.mrb[0].mxu0 %v1713
    %v1715 = vpop.f32.mrb[0].mxu0
    %v1716 = vadd.f32 %v1365, %v1715
    %v1717 = vpop.f32.mrb[0].mxu0
    %v1718 = vadd.f32 %v1367, %v1717
    %1719 = vmatprep.mubr.f32.mxu0 0.0
    %v1720 = vand.u32 %v131, 4294901760
    %1721 = vmatmul.mubr.f32.gmra.mrb[0].mxu0 %v1720
    %v1722 = vpop.f32.mrb[0].mxu0
    %v1723 = vadd.f32 %v1374, %v1722
    %v1724 = vpop.f32.mrb[0].mxu0
    %v1725 = vadd.f32 %v1376, %v1724
    %1726 = vmatprep.mubr.f32.mxu0 0.0
    %v1727 = vand.u32 %v134, 4294901760
    %1728 = vmatmul.mubr.f32.gmra.mrb[0].mxu0 %v1727
    %v1729 = vpop.f32.mrb[0].mxu0
    %v1730 = vadd.f32 %v1383, %v1729
    %v1731 = vpop.f32.mrb[0].mxu0
    %v1732 = vadd.f32 %v1385, %v1731
    %1733 = vmatprep.mubr.f32.mxu0 0.0
    %v1734 = vand.u32 %v137, 4294901760
    %1735 = vmatmul.mubr.f32.gmra.mrb[0].mxu0 %v1734
    %v1736 = vpop.f32.mrb[0].mxu0
    %v1737 = vadd.f32 %v1392, %v1736
    %v1738 = vpop.f32.mrb[0].mxu0
    %v1739 = vadd.f32 %v1394, %v1738
    %1740 = vmatprep.mubr.f32.mxu0 0.0
    %v1741 = vand.u32 %v140, 4294901760
    %1742 = vmatmul.mubr.f32.gmra.mrb[0].mxu0 %v1741
    %v1743 = vpop.f32.mrb[0].mxu0
    %v1744 = vadd.f32 %v1401, %v1743
    %v1745 = vpop.f32.mrb[0].mxu0
    %v1746 = vadd.f32 %v1403, %v1745
    %1747 = vmatprep.mubr.f32.mxu0 0.0
    %v1748 = vand.u32 %v143, 4294901760
    %1749 = vmatmul.mubr.f32.gmra.mrb[0].mxu0 %v1748
    %v1750 = vpop.f32.mrb[0].mxu0
    %v1751 = vadd.f32 %v1410, %v1750
    %v1752 = vpop.f32.mrb[0].mxu0
    %v1753 = vadd.f32 %v1412, %v1752
    %1754 = vmatprep.mubr.f32.mxu0 0.0
    %v1755 = vand.u32 %v146, 4294901760
    %1756 = vmatmul.mubr.f32.gmra.mrb[0].mxu0 %v1755
    %v1757 = vpop.f32.mrb[0].mxu0
    %v1758 = vadd.f32 %v1419, %v1757
    %v1759 = vpop.f32.mrb[0].mxu0
    %v1760 = vadd.f32 %v1421, %v1759
    %1761 = vmatprep.mubr.f32.mxu0 0.0
    %v1762 = vand.u32 %v149, 4294901760
    %1763 = vmatmul.mubr.f32.gmra.mrb[0].mxu0 %v1762
    %v1764 = vpop.f32.mrb[0].mxu0
    %v1765 = vadd.f32 %v1428, %v1764
    %v1766 = vpop.f32.mrb[0].mxu0
    %v1767 = vadd.f32 %v1430, %v1766
    %1768 = vmatprep.mubr.f32.mxu0 0.0
    %v1769 = vand.u32 %v152, 4294901760
    %1770 = vmatmul.mubr.f32.gmra.mrb[0].mxu0 %v1769
    %v1771 = vpop.f32.mrb[0].mxu0
    %v1772 = vadd.f32 %v1437, %v1771
    %v1773 = vpop.f32.mrb[0].mxu0
    %v1774 = vadd.f32 %v1439, %v1773
    %1775 = vmatprep.mubr.f32.mxu0 0.0
    %v1776 = vand.u32 %v155, 4294901760
    %1777 = vmatmul.mubr.f32.gmra.mrb[0].mxu0 %v1776
    %v1778 = vpop.f32.mrb[0].mxu0
    %v1779 = vadd.f32 %v1446, %v1778
    %v1780 = vpop.f32.mrb[0].mxu0
    %v1781 = vadd.f32 %v1448, %v1780
    %1782 = vmatprep.mubr.f32.mxu0 0.0
    %v1783 = vand.u32 %v158, 4294901760
    %1784 = vmatmul.mubr.f32.gmra.mrb[0].mxu0 %v1783
    %v1785 = vpop.f32.mrb[0].mxu0
    %v1786 = vadd.f32 %v1455, %v1785
    %v1787 = vpop.f32.mrb[0].mxu0
    %v1788 = vadd.f32 %v1457, %v1787
    %1789 = vmatprep.mubr.f32.mxu0 0.0
    %v1790 = vand.u32 %v161, 4294901760
    %1791 = vmatmul.mubr.f32.gmra.mrb[0].mxu0 %v1790
    %v1792 = vpop.f32.mrb[0].mxu0
    %v1793 = vadd.f32 %v1464, %v1792
    %v1794 = vpop.f32.mrb[0].mxu0
    %v1795 = vadd.f32 %v1466, %v1794
    %1796 = vmatprep.mubr.f32.mxu0 0.0
    %v1797 = vand.u32 %v164, 4294901760
    %1798 = vmatmul.mubr.f32.gmra.mrb[0].mxu0 %v1797
    %v1799 = vpop.f32.mrb[0].mxu0
    %v1800 = vadd.f32 %v1473, %v1799
    %v1801 = vpop.f32.mrb[0].mxu0
    %v1802 = vadd.f32 %v1475, %v1801
    %1803 = vmatprep.mubr.f32.mxu0 0.0
    %v1804 = vand.u32 %v167, 4294901760
    %1805 = vmatmul.mubr.f32.gmra.mrb[0].mxu0 %v1804
    %v1806 = vpop.f32.mrb[0].mxu0
    %v1807 = vadd.f32 %v1482, %v1806
    %v1808 = vpop.f32.mrb[0].mxu0
    %v1809 = vadd.f32 %v1484, %v1808
    %1810 = vmatprep.mubr.f32.mxu0 0.0
    %v1811 = vand.u32 %v170, 4294901760
    %1812 = vmatmul.mubr.f32.gmra.mrb[0].mxu0 %v1811
    %v1813 = vpop.f32.mrb[0].mxu0
    %v1814 = vadd.f32 %v1491, %v1813
    %v1815 = vpop.f32.mrb[0].mxu0
    %v1816 = vadd.f32 %v1493, %v1815
    %1817 = vmatprep.mubr.f32.mxu0 0.0
    %v1818 = vand.u32 %v173, 4294901760
    %1819 = vmatmul.mubr.f32.gmra.mrb[0].mxu0 %v1818
    %v1820 = vpop.f32.mrb[0].mxu0
    %v1821 = vadd.f32 %v1500, %v1820
    %v1822 = vpop.f32.mrb[0].mxu0
    %v1823 = vadd.f32 %v1502, %v1822
    %1824 = vmatprep.mubr.f32.mxu0 0.0
    %v1825 = vand.u32 %v176, 4294901760
    %1826 = vmatmul.mubr.f32.gmra.mrb[0].mxu0 %v1825
    %v1827 = vpop.f32.mrb[0].mxu0
    %v1828 = vadd.f32 %v1509, %v1827
    %v1829 = vpop.f32.mrb[0].mxu0
    %v1830 = vadd.f32 %v1511, %v1829
    %1831 = vmatprep.mubr.f32.mxu0 0.0
    %v1832 = vand.u32 %v179, 4294901760
    %1833 = vmatmul.mubr.f32.gmra.mrb[0].mxu0 %v1832
    %v1834 = vpop.f32.mrb[0].mxu0
    %v1835 = vadd.f32 %v1518, %v1834
    %v1836 = vpop.f32.mrb[0].mxu0
    %v1837 = vadd.f32 %v1520, %v1836
    %1838 = vmatprep.mubr.f32.mxu0 0.0
    %v1839 = vand.u32 %v182, 4294901760
    %1840 = vmatmul.mubr.f32.gmra.mrb[0].mxu0 %v1839
    %v1841 = vpop.f32.mrb[0].mxu0
    %v1842 = vadd.f32 %v1527, %v1841
    %v1843 = vpop.f32.mrb[0].mxu0
    %v1844 = vadd.f32 %v1529, %v1843
    %1845 = vmatprep.mubr.f32.mxu0 0.0
    %v1846 = vand.u32 %v185, 4294901760
    %1847 = vmatmul.mubr.f32.gmra.mrb[0].mxu0 %v1846
    %v1848 = vpop.f32.mrb[0].mxu0
    %v1849 = vadd.f32 %v1536, %v1848
    %v1850 = vpop.f32.mrb[0].mxu0
    %v1851 = vadd.f32 %v1538, %v1850
    %1852 = vmatprep.mubr.f32.mxu0 0.0
    %v1853 = vand.u32 %v188, 4294901760
    %1854 = vmatmul.mubr.f32.gmra.mrb[0].mxu0 %v1853
    %v1855 = vpop.f32.mrb[0].mxu0
    %v1856 = vadd.f32 %v1545, %v1855
    %v1857 = vpop.f32.mrb[0].mxu0
    %v1858 = vadd.f32 %v1547, %v1857
    %1859 = vmatprep.mubr.f32.mxu0 0.0
    %v1860 = vand.u32 %v191, 4294901760
    %1861 = vmatmul.mubr.f32.gmra.mrb[0].mxu0 %v1860
    %v1862 = vpop.f32.mrb[0].mxu0
    %v1863 = vadd.f32 %v1554, %v1862
    %v1864 = vpop.f32.mrb[0].mxu0
    %v1865 = vadd.f32 %v1556, %v1864
    %1866 = vmatprep.mubr.f32.mxu0 0.0
    %v1867 = vand.u32 %v194, 4294901760
    %1868 = vmatmul.mubr.f32.gmra.mrb[0].mxu0 %v1867
    %v1869 = vpop.f32.mrb[0].mxu0
    %v1870 = vadd.f32 %v1563, %v1869
    %v1871 = vpop.f32.mrb[0].mxu0
    %v1872 = vadd.f32 %v1565, %v1871
    %1873 = vmatprep.mubr.f32.mxu0 0.0
    %v1874 = vand.u32 %v197, 4294901760
    %1875 = vmatmul.mubr.f32.gmra.mrb[0].mxu0 %v1874
    %v1876 = vpop.f32.mrb[0].mxu0
    %v1877 = vadd.f32 %v1572, %v1876
    %v1878 = vpop.f32.mrb[0].mxu0
    %v1879 = vadd.f32 %v1574, %v1878
    %1880 = vmatprep.mubr.f32.mxu0 0.0
    %v1881 = vand.u32 %v200, 4294901760
    %1882 = vmatmul.mubr.f32.gmra.mrb[0].mxu0 %v1881
    %v1883 = vpop.f32.mrb[0].mxu0
    %v1884 = vadd.f32 %v1581, %v1883
    %v1885 = vpop.f32.mrb[0].mxu0
    %v1886 = vadd.f32 %v1583, %v1885
    %1887 = vmatprep.mubr.f32.mxu0 0.0
    %v1888 = vand.u32 %v203, 4294901760
    %1889 = vmatmul.mubr.f32.gmra.mrb[0].mxu0 %v1888
    %v1890 = vpop.f32.mrb[0].mxu0
    %v1891 = vadd.f32 %v1590, %v1890
    %v1892 = vpop.f32.mrb[0].mxu0
    %v1893 = vadd.f32 %v1592, %v1892
    %1894 = vmatprep.mubr.f32.mxu0 0.0
    %v1895 = vand.u32 %v206, 4294901760
    %1896 = vmatmul.mubr.f32.gmra.mrb[0].mxu0 %v1895
    %v1897 = vpop.f32.mrb[0].mxu0
    %v1898 = vadd.f32 %v1599, %v1897
    %v1899 = vpop.f32.mrb[0].mxu0
    %v1900 = vadd.f32 %v1601, %v1899
    %1901 = vmatprep.mubr.f32.mxu0 0.0
    %v1902 = vand.u32 %v209, 4294901760
    %1903 = vmatmul.mubr.f32.gmra.mrb[0].mxu0 %v1902
    %v1904 = vpop.f32.mrb[0].mxu0
    %v1905 = vadd.f32 %v1608, %v1904
    %v1906 = vpop.f32.mrb[0].mxu0
    %v1907 = vadd.f32 %v1610, %v1906
    %1908 = vmatprep.mubr.f32.mxu0 0.0
    %v1909 = vand.u32 %v212, 4294901760
    %1910 = vmatmul.mubr.f32.gmra.mrb[0].mxu0 %v1909
    %v1911 = vpop.f32.mrb[0].mxu0
    %v1912 = vadd.f32 %v1617, %v1911
    %v1913 = vpop.f32.mrb[0].mxu0
    %v1914 = vadd.f32 %v1619, %v1913
    %1915 = vdwg.mxu0
    %v1916 = vand.u32 %v217, 4294901760
    %1917 = vmatprep.subr.mxu0 %v1916
    %v1918 = vand.u32 %v215, 4294901760
    %1919 = vmatpush1.msra.mxu0 %v1918
    %1920 = vmatprep.subr.mxu0 0.0
    %1921 = vmatpush1.msra.mxu0 0.0
    %1922 = vmatprep.subr.mxu0 0.0
    %1923 = vmatpush1.msra.mxu0 0.0
    %1924 = vmatprep.subr.mxu0 0.0
    %1925 = vmatpush1.msra.mxu0 0.0
    %1926 = vmatprep.subr.mxu0 0.0
    %1927 = vmatpush1.msra.mxu0 0.0
    %1928 = vmatprep.subr.mxu0 0.0
    %1929 = vmatpush1.msra.mxu0 0.0
    %1930 = vmatprep.subr.mxu0 0.0
    %1931 = vmatpush1.msra.mxu0 0.0
    %1932 = vmatprep.subr.mxu0 0.0
    %1933 = vmatpush1.msra.mxu0 0.0
    %1934 = vmatprep.subr.mxu0 0.0
    %1935 = vmatpush1.msra.mxu0 0.0
    %1936 = vmatprep.subr.mxu0 0.0
    %1937 = vmatpush1.msra.mxu0 0.0
    %1938 = vmatprep.subr.mxu0 0.0
    %1939 = vmatpush1.msra.mxu0 0.0
    %1940 = vmatprep.subr.mxu0 0.0
    %1941 = vmatpush1.msra.mxu0 0.0
    %1942 = vmatprep.subr.mxu0 0.0
    %1943 = vmatpush1.msra.mxu0 0.0
    %1944 = vmatprep.subr.mxu0 0.0
    %1945 = vmatpush1.msra.mxu0 0.0
    %1946 = vmatprep.subr.mxu0 0.0
    %1947 = vmatpush1.msra.mxu0 0.0
    %1948 = vmatprep.subr.mxu0 0.0
    %1949 = vmatpush1.msra.mxu0 0.0
    %1950 = vmatprep.subr.mxu0 0.0
    %1951 = vmatpush1.msra.mxu0 0.0
    %1952 = vmatprep.subr.mxu0 0.0
    %1953 = vmatpush1.msra.mxu0 0.0
    %1954 = vmatprep.subr.mxu0 0.0
    %1955 = vmatpush1.msra.mxu0 0.0
    %1956 = vmatprep.subr.mxu0 0.0
    %1957 = vmatpush1.msra.mxu0 0.0
    %1958 = vmatprep.subr.mxu0 0.0
    %1959 = vmatpush1.msra.mxu0 0.0
    %1960 = vmatprep.subr.mxu0 0.0
    %1961 = vmatpush1.msra.mxu0 0.0
    %1962 = vmatprep.subr.mxu0 0.0
    %1963 = vmatpush1.msra.mxu0 0.0
    %1964 = vmatprep.subr.mxu0 0.0
    %1965 = vmatpush1.msra.mxu0 0.0
    %1966 = vmatprep.subr.mxu0 0.0
    %1967 = vmatpush1.msra.mxu0 0.0
    %1968 = vmatprep.subr.mxu0 0.0
    %1969 = vmatpush1.msra.mxu0 0.0
    %1970 = vmatprep.subr.mxu0 0.0
    %1971 = vmatpush1.msra.mxu0 0.0
    %1972 = vmatprep.subr.mxu0 0.0
    %1973 = vmatpush1.msra.mxu0 0.0
    %1974 = vmatprep.subr.mxu0 0.0
    %1975 = vmatpush1.msra.mxu0 0.0
    %1976 = vmatprep.subr.mxu0 0.0
    %1977 = vmatpush1.msra.mxu0 0.0
    %1978 = vmatprep.subr.mxu0 0.0
    %1979 = vmatpush1.msra.mxu0 0.0
    %1980 = vmatprep.subr.mxu0 0.0
    %1981 = vmatpush1.msra.mxu0 0.0
    %1982 = vmatprep.mubr.f32.mxu0 0.0
    %v1983 = vand.u32 %v119, 4294901760
    %1984 = vmatmul.mubr.f32.gmra.mrb[0].mxu0 %v1983
    %v1985 = vpop.f32.mrb[0].mxu0
    %v1986 = vadd.f32 %v1695, %v1985
    %v1987 = vpop.f32.mrb[0].mxu0
    %v1988 = vadd.f32 %v1697, %v1987
    %1989 = vmatprep.mubr.f32.mxu0 0.0
    %v1990 = vand.u32 %v122, 4294901760
    %1991 = vmatmul.mubr.f32.gmra.mrb[0].mxu0 %v1990
    %v1992 = vpop.f32.mrb[0].mxu0
    %v1993 = vadd.f32 %v1702, %v1992
    %v1994 = vpop.f32.mrb[0].mxu0
    %v1995 = vadd.f32 %v1704, %v1994
    %1996 = vmatprep.mubr.f32.mxu0 0.0
    %v1997 = vand.u32 %v125, 4294901760
    %1998 = vmatmul.mubr.f32.gmra.mrb[0].mxu0 %v1997
    %v1999 = vpop.f32.mrb[0].mxu0
    %v2000 = vadd.f32 %v1709, %v1999
    %v2001 = vpop.f32.mrb[0].mxu0
    %v2002 = vadd.f32 %v1711, %v2001
    %2003 = vmatprep.mubr.f32.mxu0 0.0
    %v2004 = vand.u32 %v128, 4294901760
    %2005 = vmatmul.mubr.f32.gmra.mrb[0].mxu0 %v2004
    %v2006 = vpop.f32.mrb[0].mxu0
    %v2007 = vadd.f32 %v1716, %v2006
    %v2008 = vpop.f32.mrb[0].mxu0
    %v2009 = vadd.f32 %v1718, %v2008
    %2010 = vmatprep.mubr.f32.mxu0 0.0
    %v2011 = vand.u32 %v131, 4294901760
    %2012 = vmatmul.mubr.f32.gmra.mrb[0].mxu0 %v2011
    %v2013 = vpop.f32.mrb[0].mxu0
    %v2014 = vadd.f32 %v1723, %v2013
    %v2015 = vpop.f32.mrb[0].mxu0
    %v2016 = vadd.f32 %v1725, %v2015
    %2017 = vmatprep.mubr.f32.mxu0 0.0
    %v2018 = vand.u32 %v134, 4294901760
    %2019 = vmatmul.mubr.f32.gmra.mrb[0].mxu0 %v2018
    %v2020 = vpop.f32.mrb[0].mxu0
    %v2021 = vadd.f32 %v1730, %v2020
    %v2022 = vpop.f32.mrb[0].mxu0
    %v2023 = vadd.f32 %v1732, %v2022
    %2024 = vmatprep.mubr.f32.mxu0 0.0
    %v2025 = vand.u32 %v137, 4294901760
    %2026 = vmatmul.mubr.f32.gmra.mrb[0].mxu0 %v2025
    %v2027 = vpop.f32.mrb[0].mxu0
    %v2028 = vadd.f32 %v1737, %v2027
    %v2029 = vpop.f32.mrb[0].mxu0
    %v2030 = vadd.f32 %v1739, %v2029
    %2031 = vmatprep.mubr.f32.mxu0 0.0
    %v2032 = vand.u32 %v140, 4294901760
    %2033 = vmatmul.mubr.f32.gmra.mrb[0].mxu0 %v2032
    %v2034 = vpop.f32.mrb[0].mxu0
    %v2035 = vadd.f32 %v1744, %v2034
    %v2036 = vpop.f32.mrb[0].mxu0
    %v2037 = vadd.f32 %v1746, %v2036
    %2038 = vmatprep.mubr.f32.mxu0 0.0
    %v2039 = vand.u32 %v143, 4294901760
    %2040 = vmatmul.mubr.f32.gmra.mrb[0].mxu0 %v2039
    %v2041 = vpop.f32.mrb[0].mxu0
    %v2042 = vadd.f32 %v1751, %v2041
    %v2043 = vpop.f32.mrb[0].mxu0
    %v2044 = vadd.f32 %v1753, %v2043
    %2045 = vmatprep.mubr.f32.mxu0 0.0
    %v2046 = vand.u32 %v146, 4294901760
    %2047 = vmatmul.mubr.f32.gmra.mrb[0].mxu0 %v2046
    %v2048 = vpop.f32.mrb[0].mxu0
    %v2049 = vadd.f32 %v1758, %v2048
    %v2050 = vpop.f32.mrb[0].mxu0
    %v2051 = vadd.f32 %v1760, %v2050
    %2052 = vmatprep.mubr.f32.mxu0 0.0
    %v2053 = vand.u32 %v149, 4294901760
    %2054 = vmatmul.mubr.f32.gmra.mrb[0].mxu0 %v2053
    %v2055 = vpop.f32.mrb[0].mxu0
    %v2056 = vadd.f32 %v1765, %v2055
    %v2057 = vpop.f32.mrb[0].mxu0
    %v2058 = vadd.f32 %v1767, %v2057
    %2059 = vmatprep.mubr.f32.mxu0 0.0
    %v2060 = vand.u32 %v152, 4294901760
    %2061 = vmatmul.mubr.f32.gmra.mrb[0].mxu0 %v2060
    %v2062 = vpop.f32.mrb[0].mxu0
    %v2063 = vadd.f32 %v1772, %v2062
    %v2064 = vpop.f32.mrb[0].mxu0
    %v2065 = vadd.f32 %v1774, %v2064
    %2066 = vmatprep.mubr.f32.mxu0 0.0
    %v2067 = vand.u32 %v155, 4294901760
    %2068 = vmatmul.mubr.f32.gmra.mrb[0].mxu0 %v2067
    %v2069 = vpop.f32.mrb[0].mxu0
    %v2070 = vadd.f32 %v1779, %v2069
    %v2071 = vpop.f32.mrb[0].mxu0
    %v2072 = vadd.f32 %v1781, %v2071
    %2073 = vmatprep.mubr.f32.mxu0 0.0
    %v2074 = vand.u32 %v158, 4294901760
    %2075 = vmatmul.mubr.f32.gmra.mrb[0].mxu0 %v2074
    %v2076 = vpop.f32.mrb[0].mxu0
    %v2077 = vadd.f32 %v1786, %v2076
    %v2078 = vpop.f32.mrb[0].mxu0
    %v2079 = vadd.f32 %v1788, %v2078
    %2080 = vmatprep.mubr.f32.mxu0 0.0
    %v2081 = vand.u32 %v161, 4294901760
    %2082 = vmatmul.mubr.f32.gmra.mrb[0].mxu0 %v2081
    %v2083 = vpop.f32.mrb[0].mxu0
    %v2084 = vadd.f32 %v1793, %v2083
    %v2085 = vpop.f32.mrb[0].mxu0
    %v2086 = vadd.f32 %v1795, %v2085
    %2087 = vmatprep.mubr.f32.mxu0 0.0
    %v2088 = vand.u32 %v164, 4294901760
    %2089 = vmatmul.mubr.f32.gmra.mrb[0].mxu0 %v2088
    %v2090 = vpop.f32.mrb[0].mxu0
    %v2091 = vadd.f32 %v1800, %v2090
    %v2092 = vpop.f32.mrb[0].mxu0
    %v2093 = vadd.f32 %v1802, %v2092
    %2094 = vmatprep.mubr.f32.mxu0 0.0
    %v2095 = vand.u32 %v167, 4294901760
    %2096 = vmatmul.mubr.f32.gmra.mrb[0].mxu0 %v2095
    %v2097 = vpop.f32.mrb[0].mxu0
    %v2098 = vadd.f32 %v1807, %v2097
    %v2099 = vpop.f32.mrb[0].mxu0
    %v2100 = vadd.f32 %v1809, %v2099
    %2101 = vmatprep.mubr.f32.mxu0 0.0
    %v2102 = vand.u32 %v170, 4294901760
    %2103 = vmatmul.mubr.f32.gmra.mrb[0].mxu0 %v2102
    %v2104 = vpop.f32.mrb[0].mxu0
    %v2105 = vadd.f32 %v1814, %v2104
    %v2106 = vpop.f32.mrb[0].mxu0
    %v2107 = vadd.f32 %v1816, %v2106
    %2108 = vmatprep.mubr.f32.mxu0 0.0
    %v2109 = vand.u32 %v173, 4294901760
    %2110 = vmatmul.mubr.f32.gmra.mrb[0].mxu0 %v2109
    %v2111 = vpop.f32.mrb[0].mxu0
    %v2112 = vadd.f32 %v1821, %v2111
    %v2113 = vpop.f32.mrb[0].mxu0
    %v2114 = vadd.f32 %v1823, %v2113
    %2115 = vmatprep.mubr.f32.mxu0 0.0
    %v2116 = vand.u32 %v176, 4294901760
    %2117 = vmatmul.mubr.f32.gmra.mrb[0].mxu0 %v2116
    %v2118 = vpop.f32.mrb[0].mxu0
    %v2119 = vadd.f32 %v1828, %v2118
    %v2120 = vpop.f32.mrb[0].mxu0
    %v2121 = vadd.f32 %v1830, %v2120
    %2122 = vmatprep.mubr.f32.mxu0 0.0
    %v2123 = vand.u32 %v179, 4294901760
    %2124 = vmatmul.mubr.f32.gmra.mrb[0].mxu0 %v2123
    %v2125 = vpop.f32.mrb[0].mxu0
    %v2126 = vadd.f32 %v1835, %v2125
    %v2127 = vpop.f32.mrb[0].mxu0
    %v2128 = vadd.f32 %v1837, %v2127
    %2129 = vmatprep.mubr.f32.mxu0 0.0
    %v2130 = vand.u32 %v182, 4294901760
    %2131 = vmatmul.mubr.f32.gmra.mrb[0].mxu0 %v2130
    %v2132 = vpop.f32.mrb[0].mxu0
    %v2133 = vadd.f32 %v1842, %v2132
    %v2134 = vpop.f32.mrb[0].mxu0
    %v2135 = vadd.f32 %v1844, %v2134
    %2136 = vmatprep.mubr.f32.mxu0 0.0
    %v2137 = vand.u32 %v185, 4294901760
    %2138 = vmatmul.mubr.f32.gmra.mrb[0].mxu0 %v2137
    %v2139 = vpop.f32.mrb[0].mxu0
    %v2140 = vadd.f32 %v1849, %v2139
    %v2141 = vpop.f32.mrb[0].mxu0
    %v2142 = vadd.f32 %v1851, %v2141
    %2143 = vmatprep.mubr.f32.mxu0 0.0
    %v2144 = vand.u32 %v188, 4294901760
    %2145 = vmatmul.mubr.f32.gmra.mrb[0].mxu0 %v2144
    %v2146 = vpop.f32.mrb[0].mxu0
    %v2147 = vadd.f32 %v1856, %v2146
    %v2148 = vpop.f32.mrb[0].mxu0
    %v2149 = vadd.f32 %v1858, %v2148
    %2150 = vmatprep.mubr.f32.mxu0 0.0
    %v2151 = vand.u32 %v191, 4294901760
    %2152 = vmatmul.mubr.f32.gmra.mrb[0].mxu0 %v2151
    %v2153 = vpop.f32.mrb[0].mxu0
    %v2154 = vadd.f32 %v1863, %v2153
    %v2155 = vpop.f32.mrb[0].mxu0
    %v2156 = vadd.f32 %v1865, %v2155
    %2157 = vmatprep.mubr.f32.mxu0 0.0
    %v2158 = vand.u32 %v194, 4294901760
    %2159 = vmatmul.mubr.f32.gmra.mrb[0].mxu0 %v2158
    %v2160 = vpop.f32.mrb[0].mxu0
    %v2161 = vadd.f32 %v1870, %v2160
    %v2162 = vpop.f32.mrb[0].mxu0
    %v2163 = vadd.f32 %v1872, %v2162
    %2164 = vmatprep.mubr.f32.mxu0 0.0
    %v2165 = vand.u32 %v197, 4294901760
    %2166 = vmatmul.mubr.f32.gmra.mrb[0].mxu0 %v2165
    %v2167 = vpop.f32.mrb[0].mxu0
    %v2168 = vadd.f32 %v1877, %v2167
    %v2169 = vpop.f32.mrb[0].mxu0
    %v2170 = vadd.f32 %v1879, %v2169
    %2171 = vmatprep.mubr.f32.mxu0 0.0
    %v2172 = vand.u32 %v200, 4294901760
    %2173 = vmatmul.mubr.f32.gmra.mrb[0].mxu0 %v2172
    %v2174 = vpop.f32.mrb[0].mxu0
    %v2175 = vadd.f32 %v1884, %v2174
    %v2176 = vpop.f32.mrb[0].mxu0
    %v2177 = vadd.f32 %v1886, %v2176
    %2178 = vmatprep.mubr.f32.mxu0 0.0
    %v2179 = vand.u32 %v203, 4294901760
    %2180 = vmatmul.mubr.f32.gmra.mrb[0].mxu0 %v2179
    %v2181 = vpop.f32.mrb[0].mxu0
    %v2182 = vadd.f32 %v1891, %v2181
    %v2183 = vpop.f32.mrb[0].mxu0
    %v2184 = vadd.f32 %v1893, %v2183
    %2185 = vmatprep.mubr.f32.mxu0 0.0
    %v2186 = vand.u32 %v206, 4294901760
    %2187 = vmatmul.mubr.f32.gmra.mrb[0].mxu0 %v2186
    %v2188 = vpop.f32.mrb[0].mxu0
    %v2189 = vadd.f32 %v1898, %v2188
    %v2190 = vpop.f32.mrb[0].mxu0
    %v2191 = vadd.f32 %v1900, %v2190
    %2192 = vmatprep.mubr.f32.mxu0 0.0
    %v2193 = vand.u32 %v209, 4294901760
    %2194 = vmatmul.mubr.f32.gmra.mrb[0].mxu0 %v2193
    %v2195 = vpop.f32.mrb[0].mxu0
    %v2196 = vadd.f32 %v1905, %v2195
    %v2197 = vpop.f32.mrb[0].mxu0
    %v2198 = vadd.f32 %v1907, %v2197
    %2199 = vmatprep.mubr.f32.mxu0 0.0
    %v2200 = vand.u32 %v212, 4294901760
    %2201 = vmatmul.mubr.f32.gmra.mrb[0].mxu0 %v2200
    %v2202 = vpop.f32.mrb[0].mxu0
    %v2203 = vadd.f32 %v1912, %v2202
    %v2204 = vpop.f32.mrb[0].mxu0
    %v2205 = vadd.f32 %v1914, %v2204
    %2206 = vdwg.mxu0
    %v2207 = vand.u32 %v221, 4294901760
    %2208 = vmatprep.subr.mxu0 %v2207
    %v2209 = vand.u32 %v219, 4294901760
    %2210 = vmatpush1.msra.mxu0 %v2209
    %2211 = vmatprep.subr.mxu0 0.0
    %2212 = vmatpush1.msra.mxu0 0.0
    %2213 = vmatprep.subr.mxu0 0.0
    %2214 = vmatpush1.msra.mxu0 0.0
    %2215 = vmatprep.subr.mxu0 0.0
    %2216 = vmatpush1.msra.mxu0 0.0
    %2217 = vmatprep.subr.mxu0 0.0
    %2218 = vmatpush1.msra.mxu0 0.0
    %2219 = vmatprep.subr.mxu0 0.0
    %2220 = vmatpush1.msra.mxu0 0.0
    %2221 = vmatprep.subr.mxu0 0.0
    %2222 = vmatpush1.msra.mxu0 0.0
    %2223 = vmatprep.subr.mxu0 0.0
    %2224 = vmatpush1.msra.mxu0 0.0
    %2225 = vmatprep.subr.mxu0 0.0
    %2226 = vmatpush1.msra.mxu0 0.0
    %2227 = vmatprep.subr.mxu0 0.0
    %2228 = vmatpush1.msra.mxu0 0.0
    %2229 = vmatprep.subr.mxu0 0.0
    %2230 = vmatpush1.msra.mxu0 0.0
    %2231 = vmatprep.subr.mxu0 0.0
    %2232 = vmatpush1.msra.mxu0 0.0
    %2233 = vmatprep.subr.mxu0 0.0
    %2234 = vmatpush1.msra.mxu0 0.0
    %2235 = vmatprep.subr.mxu0 0.0
    %2236 = vmatpush1.msra.mxu0 0.0
    %2237 = vmatprep.subr.mxu0 0.0
    %2238 = vmatpush1.msra.mxu0 0.0
    %2239 = vmatprep.subr.mxu0 0.0
    %2240 = vmatpush1.msra.mxu0 0.0
    %2241 = vmatprep.subr.mxu0 0.0
    %2242 = vmatpush1.msra.mxu0 0.0
    %2243 = vmatprep.subr.mxu0 0.0
    %2244 = vmatpush1.msra.mxu0 0.0
    %2245 = vmatprep.subr.mxu0 0.0
    %2246 = vmatpush1.msra.mxu0 0.0
    %2247 = vmatprep.subr.mxu0 0.0
    %2248 = vmatpush1.msra.mxu0 0.0
    %2249 = vmatprep.subr.mxu0 0.0
    %2250 = vmatpush1.msra.mxu0 0.0
    %2251 = vmatprep.subr.mxu0 0.0
    %2252 = vmatpush1.msra.mxu0 0.0
    %2253 = vmatprep.subr.mxu0 0.0
    %2254 = vmatpush1.msra.mxu0 0.0
    %2255 = vmatprep.subr.mxu0 0.0
    %2256 = vmatpush1.msra.mxu0 0.0
    %2257 = vmatprep.subr.mxu0 0.0
    %2258 = vmatpush1.msra.mxu0 0.0
    %2259 = vmatprep.subr.mxu0 0.0
    %2260 = vmatpush1.msra.mxu0 0.0
    %2261 = vmatprep.subr.mxu0 0.0
    %2262 = vmatpush1.msra.mxu0 0.0
    %2263 = vmatprep.subr.mxu0 0.0
    %2264 = vmatpush1.msra.mxu0 0.0
    %2265 = vmatprep.subr.mxu0 0.0
    %2266 = vmatpush1.msra.mxu0 0.0
    %2267 = vmatprep.subr.mxu0 0.0
    %2268 = vmatpush1.msra.mxu0 0.0
    %2269 = vmatprep.subr.mxu0 0.0
    %2270 = vmatpush1.msra.mxu0 0.0
    %2271 = vmatprep.subr.mxu0 0.0
    %2272 = vmatpush1.msra.mxu0 0.0
    %2273 = vmatprep.mubr.f32.mxu0 0.0
    %v2274 = vand.u32 %v119, 4294901760
    %v2275 = vsub.f32 %v119, %v2274
    %v2276 = vand.u32 %v2275, 4294901760
    %v2277 = vsub.f32 %v2275, %v2276
    %v2278 = vand.u32 %v2277, 4294901760
    %2279 = vmatmul.mubr.f32.gmra.mrb[0].mxu0 %v2278
    %v2280 = vpop.f32.mrb[0].mxu0
    %v2281 = vadd.f32 %v37, %v2280
    %v2282 = vpop.f32.mrb[0].mxu0
    %v2283 = vadd.f32 %v41, %v2282
    %2284 = vmatprep.mubr.f32.mxu0 0.0
    %v2285 = vand.u32 %v122, 4294901760
    %v2286 = vsub.f32 %v122, %v2285
    %v2287 = vand.u32 %v2286, 4294901760
    %v2288 = vsub.f32 %v2286, %v2287
    %v2289 = vand.u32 %v2288, 4294901760
    %2290 = vmatmul.mubr.f32.gmra.mrb[0].mxu0 %v2289
    %v2291 = vpop.f32.mrb[0].mxu0
    %v2292 = vadd.f32 %v37, %v2291
    %v2293 = vpop.f32.mrb[0].mxu0
    %v2294 = vadd.f32 %v41, %v2293
    %2295 = vmatprep.mubr.f32.mxu0 0.0
    %v2296 = vand.u32 %v125, 4294901760
    %v2297 = vsub.f32 %v125, %v2296
    %v2298 = vand.u32 %v2297, 4294901760
    %v2299 = vsub.f32 %v2297, %v2298
    %v2300 = vand.u32 %v2299, 4294901760
    %2301 = vmatmul.mubr.f32.gmra.mrb[0].mxu0 %v2300
    %v2302 = vpop.f32.mrb[0].mxu0
    %v2303 = vadd.f32 %v37, %v2302
    %v2304 = vpop.f32.mrb[0].mxu0
    %v2305 = vadd.f32 %v41, %v2304
    %2306 = vmatprep.mubr.f32.mxu0 0.0
    %v2307 = vand.u32 %v128, 4294901760
    %v2308 = vsub.f32 %v128, %v2307
    %v2309 = vand.u32 %v2308, 4294901760
    %v2310 = vsub.f32 %v2308, %v2309
    %v2311 = vand.u32 %v2310, 4294901760
    %2312 = vmatmul.mubr.f32.gmra.mrb[0].mxu0 %v2311
    %v2313 = vpop.f32.mrb[0].mxu0
    %v2314 = vadd.f32 %v37, %v2313
    %v2315 = vpop.f32.mrb[0].mxu0
    %v2316 = vadd.f32 %v41, %v2315
    %2317 = vmatprep.mubr.f32.mxu0 0.0
    %v2318 = vand.u32 %v131, 4294901760
    %v2319 = vsub.f32 %v131, %v2318
    %v2320 = vand.u32 %v2319, 4294901760
    %v2321 = vsub.f32 %v2319, %v2320
    %v2322 = vand.u32 %v2321, 4294901760
    %2323 = vmatmul.mubr.f32.gmra.mrb[0].mxu0 %v2322
    %v2324 = vpop.f32.mrb[0].mxu0
    %v2325 = vadd.f32 %v37, %v2324
    %v2326 = vpop.f32.mrb[0].mxu0
    %v2327 = vadd.f32 %v41, %v2326
    %2328 = vmatprep.mubr.f32.mxu0 0.0
    %v2329 = vand.u32 %v134, 4294901760
    %v2330 = vsub.f32 %v134, %v2329
    %v2331 = vand.u32 %v2330, 4294901760
    %v2332 = vsub.f32 %v2330, %v2331
    %v2333 = vand.u32 %v2332, 4294901760
    %2334 = vmatmul.mubr.f32.gmra.mrb[0].mxu0 %v2333
    %v2335 = vpop.f32.mrb[0].mxu0
    %v2336 = vadd.f32 %v37, %v2335
    %v2337 = vpop.f32.mrb[0].mxu0
    %v2338 = vadd.f32 %v41, %v2337
    %2339 = vmatprep.mubr.f32.mxu0 0.0
    %v2340 = vand.u32 %v137, 4294901760
    %v2341 = vsub.f32 %v137, %v2340
    %v2342 = vand.u32 %v2341, 4294901760
    %v2343 = vsub.f32 %v2341, %v2342
    %v2344 = vand.u32 %v2343, 4294901760
    %2345 = vmatmul.mubr.f32.gmra.mrb[0].mxu0 %v2344
    %v2346 = vpop.f32.mrb[0].mxu0
    %v2347 = vadd.f32 %v37, %v2346
    %v2348 = vpop.f32.mrb[0].mxu0
    %v2349 = vadd.f32 %v41, %v2348
    %2350 = vmatprep.mubr.f32.mxu0 0.0
    %v2351 = vand.u32 %v140, 4294901760
    %v2352 = vsub.f32 %v140, %v2351
    %v2353 = vand.u32 %v2352, 4294901760
    %v2354 = vsub.f32 %v2352, %v2353
    %v2355 = vand.u32 %v2354, 4294901760
    %2356 = vmatmul.mubr.f32.gmra.mrb[0].mxu0 %v2355
    %v2357 = vpop.f32.mrb[0].mxu0
    %v2358 = vadd.f32 %v37, %v2357
    %v2359 = vpop.f32.mrb[0].mxu0
    %v2360 = vadd.f32 %v41, %v2359
    %2361 = vmatprep.mubr.f32.mxu0 0.0
    %v2362 = vand.u32 %v143, 4294901760
    %v2363 = vsub.f32 %v143, %v2362
    %v2364 = vand.u32 %v2363, 4294901760
    %v2365 = vsub.f32 %v2363, %v2364
    %v2366 = vand.u32 %v2365, 4294901760
    %2367 = vmatmul.mubr.f32.gmra.mrb[0].mxu0 %v2366
    %v2368 = vpop.f32.mrb[0].mxu0
    %v2369 = vadd.f32 %v37, %v2368
    %v2370 = vpop.f32.mrb[0].mxu0
    %v2371 = vadd.f32 %v41, %v2370
    %2372 = vmatprep.mubr.f32.mxu0 0.0
    %v2373 = vand.u32 %v146, 4294901760
    %v2374 = vsub.f32 %v146, %v2373
    %v2375 = vand.u32 %v2374, 4294901760
    %v2376 = vsub.f32 %v2374, %v2375
    %v2377 = vand.u32 %v2376, 4294901760
    %2378 = vmatmul.mubr.f32.gmra.mrb[0].mxu0 %v2377
    %v2379 = vpop.f32.mrb[0].mxu0
    %v2380 = vadd.f32 %v37, %v2379
    %v2381 = vpop.f32.mrb[0].mxu0
    %v2382 = vadd.f32 %v41, %v2381
    %2383 = vmatprep.mubr.f32.mxu0 0.0
    %v2384 = vand.u32 %v149, 4294901760
    %v2385 = vsub.f32 %v149, %v2384
    %v2386 = vand.u32 %v2385, 4294901760
    %v2387 = vsub.f32 %v2385, %v2386
    %v2388 = vand.u32 %v2387, 4294901760
    %2389 = vmatmul.mubr.f32.gmra.mrb[0].mxu0 %v2388
    %v2390 = vpop.f32.mrb[0].mxu0
    %v2391 = vadd.f32 %v37, %v2390
    %v2392 = vpop.f32.mrb[0].mxu0
    %v2393 = vadd.f32 %v41, %v2392
    %2394 = vmatprep.mubr.f32.mxu0 0.0
    %v2395 = vand.u32 %v152, 4294901760
    %v2396 = vsub.f32 %v152, %v2395
    %v2397 = vand.u32 %v2396, 4294901760
    %v2398 = vsub.f32 %v2396, %v2397
    %v2399 = vand.u32 %v2398, 4294901760
    %2400 = vmatmul.mubr.f32.gmra.mrb[0].mxu0 %v2399
    %v2401 = vpop.f32.mrb[0].mxu0
    %v2402 = vadd.f32 %v37, %v2401
    %v2403 = vpop.f32.mrb[0].mxu0
    %v2404 = vadd.f32 %v41, %v2403
    %2405 = vmatprep.mubr.f32.mxu0 0.0
    %v2406 = vand.u32 %v155, 4294901760
    %v2407 = vsub.f32 %v155, %v2406
    %v2408 = vand.u32 %v2407, 4294901760
    %v2409 = vsub.f32 %v2407, %v2408
    %v2410 = vand.u32 %v2409, 4294901760
    %2411 = vmatmul.mubr.f32.gmra.mrb[0].mxu0 %v2410
    %v2412 = vpop.f32.mrb[0].mxu0
    %v2413 = vadd.f32 %v37, %v2412
    %v2414 = vpop.f32.mrb[0].mxu0
    %v2415 = vadd.f32 %v41, %v2414
    %2416 = vmatprep.mubr.f32.mxu0 0.0
    %v2417 = vand.u32 %v158, 4294901760
    %v2418 = vsub.f32 %v158, %v2417
    %v2419 = vand.u32 %v2418, 4294901760
    %v2420 = vsub.f32 %v2418, %v2419
    %v2421 = vand.u32 %v2420, 4294901760
    %2422 = vmatmul.mubr.f32.gmra.mrb[0].mxu0 %v2421
    %v2423 = vpop.f32.mrb[0].mxu0
    %v2424 = vadd.f32 %v37, %v2423
    %v2425 = vpop.f32.mrb[0].mxu0
    %v2426 = vadd.f32 %v41, %v2425
    %2427 = vmatprep.mubr.f32.mxu0 0.0
    %v2428 = vand.u32 %v161, 4294901760
    %v2429 = vsub.f32 %v161, %v2428
    %v2430 = vand.u32 %v2429, 4294901760
    %v2431 = vsub.f32 %v2429, %v2430
    %v2432 = vand.u32 %v2431, 4294901760
    %2433 = vmatmul.mubr.f32.gmra.mrb[0].mxu0 %v2432
    %v2434 = vpop.f32.mrb[0].mxu0
    %v2435 = vadd.f32 %v37, %v2434
    %v2436 = vpop.f32.mrb[0].mxu0
    %v2437 = vadd.f32 %v41, %v2436
    %2438 = vmatprep.mubr.f32.mxu0 0.0
    %v2439 = vand.u32 %v164, 4294901760
    %v2440 = vsub.f32 %v164, %v2439
    %v2441 = vand.u32 %v2440, 4294901760
    %v2442 = vsub.f32 %v2440, %v2441
    %v2443 = vand.u32 %v2442, 4294901760
    %2444 = vmatmul.mubr.f32.gmra.mrb[0].mxu0 %v2443
    %v2445 = vpop.f32.mrb[0].mxu0
    %v2446 = vadd.f32 %v37, %v2445
    %v2447 = vpop.f32.mrb[0].mxu0
    %v2448 = vadd.f32 %v41, %v2447
    %2449 = vmatprep.mubr.f32.mxu0 0.0
    %v2450 = vand.u32 %v167, 4294901760
    %v2451 = vsub.f32 %v167, %v2450
    %v2452 = vand.u32 %v2451, 4294901760
    %v2453 = vsub.f32 %v2451, %v2452
    %v2454 = vand.u32 %v2453, 4294901760
    %2455 = vmatmul.mubr.f32.gmra.mrb[0].mxu0 %v2454
    %v2456 = vpop.f32.mrb[0].mxu0
    %v2457 = vadd.f32 %v37, %v2456
    %v2458 = vpop.f32.mrb[0].mxu0
    %v2459 = vadd.f32 %v41, %v2458
    %2460 = vmatprep.mubr.f32.mxu0 0.0
    %v2461 = vand.u32 %v170, 4294901760
    %v2462 = vsub.f32 %v170, %v2461
    %v2463 = vand.u32 %v2462, 4294901760
    %v2464 = vsub.f32 %v2462, %v2463
    %v2465 = vand.u32 %v2464, 4294901760
    %2466 = vmatmul.mubr.f32.gmra.mrb[0].mxu0 %v2465
    %v2467 = vpop.f32.mrb[0].mxu0
    %v2468 = vadd.f32 %v37, %v2467
    %v2469 = vpop.f32.mrb[0].mxu0
    %v2470 = vadd.f32 %v41, %v2469
    %2471 = vmatprep.mubr.f32.mxu0 0.0
    %v2472 = vand.u32 %v173, 4294901760
    %v2473 = vsub.f32 %v173, %v2472
    %v2474 = vand.u32 %v2473, 4294901760
    %v2475 = vsub.f32 %v2473, %v2474
    %v2476 = vand.u32 %v2475, 4294901760
    %2477 = vmatmul.mubr.f32.gmra.mrb[0].mxu0 %v2476
    %v2478 = vpop.f32.mrb[0].mxu0
    %v2479 = vadd.f32 %v37, %v2478
    %v2480 = vpop.f32.mrb[0].mxu0
    %v2481 = vadd.f32 %v41, %v2480
    %2482 = vmatprep.mubr.f32.mxu0 0.0
    %v2483 = vand.u32 %v176, 4294901760
    %v2484 = vsub.f32 %v176, %v2483
    %v2485 = vand.u32 %v2484, 4294901760
    %v2486 = vsub.f32 %v2484, %v2485
    %v2487 = vand.u32 %v2486, 4294901760
    %2488 = vmatmul.mubr.f32.gmra.mrb[0].mxu0 %v2487
    %v2489 = vpop.f32.mrb[0].mxu0
    %v2490 = vadd.f32 %v37, %v2489
    %v2491 = vpop.f32.mrb[0].mxu0
    %v2492 = vadd.f32 %v41, %v2491
    %2493 = vmatprep.mubr.f32.mxu0 0.0
    %v2494 = vand.u32 %v179, 4294901760
    %v2495 = vsub.f32 %v179, %v2494
    %v2496 = vand.u32 %v2495, 4294901760
    %v2497 = vsub.f32 %v2495, %v2496
    %v2498 = vand.u32 %v2497, 4294901760
    %2499 = vmatmul.mubr.f32.gmra.mrb[0].mxu0 %v2498
    %v2500 = vpop.f32.mrb[0].mxu0
    %v2501 = vadd.f32 %v37, %v2500
    %v2502 = vpop.f32.mrb[0].mxu0
    %v2503 = vadd.f32 %v41, %v2502
    %2504 = vmatprep.mubr.f32.mxu0 0.0
    %v2505 = vand.u32 %v182, 4294901760
    %v2506 = vsub.f32 %v182, %v2505
    %v2507 = vand.u32 %v2506, 4294901760
    %v2508 = vsub.f32 %v2506, %v2507
    %v2509 = vand.u32 %v2508, 4294901760
    %2510 = vmatmul.mubr.f32.gmra.mrb[0].mxu0 %v2509
    %v2511 = vpop.f32.mrb[0].mxu0
    %v2512 = vadd.f32 %v37, %v2511
    %v2513 = vpop.f32.mrb[0].mxu0
    %v2514 = vadd.f32 %v41, %v2513
    %2515 = vmatprep.mubr.f32.mxu0 0.0
    %v2516 = vand.u32 %v185, 4294901760
    %v2517 = vsub.f32 %v185, %v2516
    %v2518 = vand.u32 %v2517, 4294901760
    %v2519 = vsub.f32 %v2517, %v2518
    %v2520 = vand.u32 %v2519, 4294901760
    %2521 = vmatmul.mubr.f32.gmra.mrb[0].mxu0 %v2520
    %v2522 = vpop.f32.mrb[0].mxu0
    %v2523 = vadd.f32 %v37, %v2522
    %v2524 = vpop.f32.mrb[0].mxu0
    %v2525 = vadd.f32 %v41, %v2524
    %2526 = vmatprep.mubr.f32.mxu0 0.0
    %v2527 = vand.u32 %v188, 4294901760
    %v2528 = vsub.f32 %v188, %v2527
    %v2529 = vand.u32 %v2528, 4294901760
    %v2530 = vsub.f32 %v2528, %v2529
    %v2531 = vand.u32 %v2530, 4294901760
    %2532 = vmatmul.mubr.f32.gmra.mrb[0].mxu0 %v2531
    %v2533 = vpop.f32.mrb[0].mxu0
    %v2534 = vadd.f32 %v37, %v2533
    %v2535 = vpop.f32.mrb[0].mxu0
    %v2536 = vadd.f32 %v41, %v2535
    %2537 = vmatprep.mubr.f32.mxu0 0.0
    %v2538 = vand.u32 %v191, 4294901760
    %v2539 = vsub.f32 %v191, %v2538
    %v2540 = vand.u32 %v2539, 4294901760
    %v2541 = vsub.f32 %v2539, %v2540
    %v2542 = vand.u32 %v2541, 4294901760
    %2543 = vmatmul.mubr.f32.gmra.mrb[0].mxu0 %v2542
    %v2544 = vpop.f32.mrb[0].mxu0
    %v2545 = vadd.f32 %v37, %v2544
    %v2546 = vpop.f32.mrb[0].mxu0
    %v2547 = vadd.f32 %v41, %v2546
    %2548 = vmatprep.mubr.f32.mxu0 0.0
    %v2549 = vand.u32 %v194, 4294901760
    %v2550 = vsub.f32 %v194, %v2549
    %v2551 = vand.u32 %v2550, 4294901760
    %v2552 = vsub.f32 %v2550, %v2551
    %v2553 = vand.u32 %v2552, 4294901760
    %2554 = vmatmul.mubr.f32.gmra.mrb[0].mxu0 %v2553
    %v2555 = vpop.f32.mrb[0].mxu0
    %v2556 = vadd.f32 %v37, %v2555
    %v2557 = vpop.f32.mrb[0].mxu0
    %v2558 = vadd.f32 %v41, %v2557
    %2559 = vmatprep.mubr.f32.mxu0 0.0
    %v2560 = vand.u32 %v197, 4294901760
    %v2561 = vsub.f32 %v197, %v2560
    %v2562 = vand.u32 %v2561, 4294901760
    %v2563 = vsub.f32 %v2561, %v2562
    %v2564 = vand.u32 %v2563, 4294901760
    %2565 = vmatmul.mubr.f32.gmra.mrb[0].mxu0 %v2564
    %v2566 = vpop.f32.mrb[0].mxu0
    %v2567 = vadd.f32 %v37, %v2566
    %v2568 = vpop.f32.mrb[0].mxu0
    %v2569 = vadd.f32 %v41, %v2568
    %2570 = vmatprep.mubr.f32.mxu0 0.0
    %v2571 = vand.u32 %v200, 4294901760
    %v2572 = vsub.f32 %v200, %v2571
    %v2573 = vand.u32 %v2572, 4294901760
    %v2574 = vsub.f32 %v2572, %v2573
    %v2575 = vand.u32 %v2574, 4294901760
    %2576 = vmatmul.mubr.f32.gmra.mrb[0].mxu0 %v2575
    %v2577 = vpop.f32.mrb[0].mxu0
    %v2578 = vadd.f32 %v37, %v2577
    %v2579 = vpop.f32.mrb[0].mxu0
    %v2580 = vadd.f32 %v41, %v2579
    %2581 = vmatprep.mubr.f32.mxu0 0.0
    %v2582 = vand.u32 %v203, 4294901760
    %v2583 = vsub.f32 %v203, %v2582
    %v2584 = vand.u32 %v2583, 4294901760
    %v2585 = vsub.f32 %v2583, %v2584
    %v2586 = vand.u32 %v2585, 4294901760
    %2587 = vmatmul.mubr.f32.gmra.mrb[0].mxu0 %v2586
    %v2588 = vpop.f32.mrb[0].mxu0
    %v2589 = vadd.f32 %v37, %v2588
    %v2590 = vpop.f32.mrb[0].mxu0
    %v2591 = vadd.f32 %v41, %v2590
    %2592 = vmatprep.mubr.f32.mxu0 0.0
    %v2593 = vand.u32 %v206, 4294901760
    %v2594 = vsub.f32 %v206, %v2593
    %v2595 = vand.u32 %v2594, 4294901760
    %v2596 = vsub.f32 %v2594, %v2595
    %v2597 = vand.u32 %v2596, 4294901760
    %2598 = vmatmul.mubr.f32.gmra.mrb[0].mxu0 %v2597
    %v2599 = vpop.f32.mrb[0].mxu0
    %v2600 = vadd.f32 %v37, %v2599
    %v2601 = vpop.f32.mrb[0].mxu0
    %v2602 = vadd.f32 %v41, %v2601
    %2603 = vmatprep.mubr.f32.mxu0 0.0
    %v2604 = vand.u32 %v209, 4294901760
    %v2605 = vsub.f32 %v209, %v2604
    %v2606 = vand.u32 %v2605, 4294901760
    %v2607 = vsub.f32 %v2605, %v2606
    %v2608 = vand.u32 %v2607, 4294901760
    %2609 = vmatmul.mubr.f32.gmra.mrb[0].mxu0 %v2608
    %v2610 = vpop.f32.mrb[0].mxu0
    %v2611 = vadd.f32 %v37, %v2610
    %v2612 = vpop.f32.mrb[0].mxu0
    %v2613 = vadd.f32 %v41, %v2612
    %2614 = vmatprep.mubr.f32.mxu0 0.0
    %v2615 = vand.u32 %v212, 4294901760
    %v2616 = vsub.f32 %v212, %v2615
    %v2617 = vand.u32 %v2616, 4294901760
    %v2618 = vsub.f32 %v2616, %v2617
    %v2619 = vand.u32 %v2618, 4294901760
    %2620 = vmatmul.mubr.f32.gmra.mrb[0].mxu0 %v2619
    %v2621 = vpop.f32.mrb[0].mxu0
    %v2622 = vadd.f32 %v37, %v2621
    %v2623 = vpop.f32.mrb[0].mxu0
    %v2624 = vadd.f32 %v41, %v2623
    %2625 = vdwg.mxu0
    %v2626 = vand.u32 %v221, 4294901760
    %v2627 = vsub.f32 %v221, %v2626
    %v2628 = vand.u32 %v2627, 4294901760
    %v2629 = vsub.f32 %v2627, %v2628
    %v2630 = vand.u32 %v2629, 4294901760
    %2631 = vmatprep.subr.mxu0 %v2630
    %v2632 = vand.u32 %v219, 4294901760
    %v2633 = vsub.f32 %v219, %v2632
    %v2634 = vand.u32 %v2633, 4294901760
    %v2635 = vsub.f32 %v2633, %v2634
    %v2636 = vand.u32 %v2635, 4294901760
    %2637 = vmatpush1.msra.mxu0 %v2636
    %2638 = vmatprep.subr.mxu0 0.0
    %2639 = vmatpush1.msra.mxu0 0.0
    %2640 = vmatprep.subr.mxu0 0.0
    %2641 = vmatpush1.msra.mxu0 0.0
    %2642 = vmatprep.subr.mxu0 0.0
    %2643 = vmatpush1.msra.mxu0 0.0
    %2644 = vmatprep.subr.mxu0 0.0
    %2645 = vmatpush1.msra.mxu0 0.0
    %2646 = vmatprep.subr.mxu0 0.0
    %2647 = vmatpush1.msra.mxu0 0.0
    %2648 = vmatprep.subr.mxu0 0.0
    %2649 = vmatpush1.msra.mxu0 0.0
    %2650 = vmatprep.subr.mxu0 0.0
    %2651 = vmatpush1.msra.mxu0 0.0
    %2652 = vmatprep.subr.mxu0 0.0
    %2653 = vmatpush1.msra.mxu0 0.0
    %2654 = vmatprep.subr.mxu0 0.0
    %2655 = vmatpush1.msra.mxu0 0.0
    %2656 = vmatprep.subr.mxu0 0.0
    %2657 = vmatpush1.msra.mxu0 0.0
    %2658 = vmatprep.subr.mxu0 0.0
    %2659 = vmatpush1.msra.mxu0 0.0
    %2660 = vmatprep.subr.mxu0 0.0
    %2661 = vmatpush1.msra.mxu0 0.0
    %2662 = vmatprep.subr.mxu0 0.0
    %2663 = vmatpush1.msra.mxu0 0.0
    %2664 = vmatprep.subr.mxu0 0.0
    %2665 = vmatpush1.msra.mxu0 0.0
    %2666 = vmatprep.subr.mxu0 0.0
    %2667 = vmatpush1.msra.mxu0 0.0
    %2668 = vmatprep.subr.mxu0 0.0
    %2669 = vmatpush1.msra.mxu0 0.0
    %2670 = vmatprep.subr.mxu0 0.0
    %2671 = vmatpush1.msra.mxu0 0.0
    %2672 = vmatprep.subr.mxu0 0.0
    %2673 = vmatpush1.msra.mxu0 0.0
    %2674 = vmatprep.subr.mxu0 0.0
    %2675 = vmatpush1.msra.mxu0 0.0
    %2676 = vmatprep.subr.mxu0 0.0
    %2677 = vmatpush1.msra.mxu0 0.0
    %2678 = vmatprep.subr.mxu0 0.0
    %2679 = vmatpush1.msra.mxu0 0.0
    %2680 = vmatprep.subr.mxu0 0.0
    %2681 = vmatpush1.msra.mxu0 0.0
    %2682 = vmatprep.subr.mxu0 0.0
    %2683 = vmatpush1.msra.mxu0 0.0
    %2684 = vmatprep.subr.mxu0 0.0
    %2685 = vmatpush1.msra.mxu0 0.0
    %2686 = vmatprep.subr.mxu0 0.0
    %2687 = vmatpush1.msra.mxu0 0.0
    %2688 = vmatprep.subr.mxu0 0.0
    %2689 = vmatpush1.msra.mxu0 0.0
    %2690 = vmatprep.subr.mxu0 0.0
    %2691 = vmatpush1.msra.mxu0 0.0
    %2692 = vmatprep.subr.mxu0 0.0
    %2693 = vmatpush1.msra.mxu0 0.0
    %2694 = vmatprep.subr.mxu0 0.0
    %2695 = vmatpush1.msra.mxu0 0.0
    %2696 = vmatprep.subr.mxu0 0.0
    %2697 = vmatpush1.msra.mxu0 0.0
    %2698 = vmatprep.subr.mxu0 0.0
    %2699 = vmatpush1.msra.mxu0 0.0
    %2700 = vmatprep.mubr.f32.mxu0 0.0
    %v2701 = vand.u32 %v119, 4294901760
    %2702 = vmatmul.mubr.f32.gmra.mrb[0].mxu0 %v2701
    %v2703 = vpop.f32.mrb[0].mxu0
    %v2704 = vadd.f32 %v2281, %v2703
    %v2705 = vpop.f32.mrb[0].mxu0
    %v2706 = vadd.f32 %v2283, %v2705
    %2707 = vmatprep.mubr.f32.mxu0 0.0
    %v2708 = vand.u32 %v122, 4294901760
    %2709 = vmatmul.mubr.f32.gmra.mrb[0].mxu0 %v2708
    %v2710 = vpop.f32.mrb[0].mxu0
    %v2711 = vadd.f32 %v2292, %v2710
    %v2712 = vpop.f32.mrb[0].mxu0
    %v2713 = vadd.f32 %v2294, %v2712
    %2714 = vmatprep.mubr.f32.mxu0 0.0
    %v2715 = vand.u32 %v125, 4294901760
    %2716 = vmatmul.mubr.f32.gmra.mrb[0].mxu0 %v2715
    %v2717 = vpop.f32.mrb[0].mxu0
    %v2718 = vadd.f32 %v2303, %v2717
    %v2719 = vpop.f32.mrb[0].mxu0
    %v2720 = vadd.f32 %v2305, %v2719
    %2721 = vmatprep.mubr.f32.mxu0 0.0
    %v2722 = vand.u32 %v128, 4294901760
    %2723 = vmatmul.mubr.f32.gmra.mrb[0].mxu0 %v2722
    %v2724 = vpop.f32.mrb[0].mxu0
    %v2725 = vadd.f32 %v2314, %v2724
    %v2726 = vpop.f32.mrb[0].mxu0
    %v2727 = vadd.f32 %v2316, %v2726
    %2728 = vmatprep.mubr.f32.mxu0 0.0
    %v2729 = vand.u32 %v131, 4294901760
    %2730 = vmatmul.mubr.f32.gmra.mrb[0].mxu0 %v2729
    %v2731 = vpop.f32.mrb[0].mxu0
    %v2732 = vadd.f32 %v2325, %v2731
    %v2733 = vpop.f32.mrb[0].mxu0
    %v2734 = vadd.f32 %v2327, %v2733
    %2735 = vmatprep.mubr.f32.mxu0 0.0
    %v2736 = vand.u32 %v134, 4294901760
    %2737 = vmatmul.mubr.f32.gmra.mrb[0].mxu0 %v2736
    %v2738 = vpop.f32.mrb[0].mxu0
    %v2739 = vadd.f32 %v2336, %v2738
    %v2740 = vpop.f32.mrb[0].mxu0
    %v2741 = vadd.f32 %v2338, %v2740
    %2742 = vmatprep.mubr.f32.mxu0 0.0
    %v2743 = vand.u32 %v137, 4294901760
    %2744 = vmatmul.mubr.f32.gmra.mrb[0].mxu0 %v2743
    %v2745 = vpop.f32.mrb[0].mxu0
    %v2746 = vadd.f32 %v2347, %v2745
    %v2747 = vpop.f32.mrb[0].mxu0
    %v2748 = vadd.f32 %v2349, %v2747
    %2749 = vmatprep.mubr.f32.mxu0 0.0
    %v2750 = vand.u32 %v140, 4294901760
    %2751 = vmatmul.mubr.f32.gmra.mrb[0].mxu0 %v2750
    %v2752 = vpop.f32.mrb[0].mxu0
    %v2753 = vadd.f32 %v2358, %v2752
    %v2754 = vpop.f32.mrb[0].mxu0
    %v2755 = vadd.f32 %v2360, %v2754
    %2756 = vmatprep.mubr.f32.mxu0 0.0
    %v2757 = vand.u32 %v143, 4294901760
    %2758 = vmatmul.mubr.f32.gmra.mrb[0].mxu0 %v2757
    %v2759 = vpop.f32.mrb[0].mxu0
    %v2760 = vadd.f32 %v2369, %v2759
    %v2761 = vpop.f32.mrb[0].mxu0
    %v2762 = vadd.f32 %v2371, %v2761
    %2763 = vmatprep.mubr.f32.mxu0 0.0
    %v2764 = vand.u32 %v146, 4294901760
    %2765 = vmatmul.mubr.f32.gmra.mrb[0].mxu0 %v2764
    %v2766 = vpop.f32.mrb[0].mxu0
    %v2767 = vadd.f32 %v2380, %v2766
    %v2768 = vpop.f32.mrb[0].mxu0
    %v2769 = vadd.f32 %v2382, %v2768
    %2770 = vmatprep.mubr.f32.mxu0 0.0
    %v2771 = vand.u32 %v149, 4294901760
    %2772 = vmatmul.mubr.f32.gmra.mrb[0].mxu0 %v2771
    %v2773 = vpop.f32.mrb[0].mxu0
    %v2774 = vadd.f32 %v2391, %v2773
    %v2775 = vpop.f32.mrb[0].mxu0
    %v2776 = vadd.f32 %v2393, %v2775
    %2777 = vmatprep.mubr.f32.mxu0 0.0
    %v2778 = vand.u32 %v152, 4294901760
    %2779 = vmatmul.mubr.f32.gmra.mrb[0].mxu0 %v2778
    %v2780 = vpop.f32.mrb[0].mxu0
    %v2781 = vadd.f32 %v2402, %v2780
    %v2782 = vpop.f32.mrb[0].mxu0
    %v2783 = vadd.f32 %v2404, %v2782
    %2784 = vmatprep.mubr.f32.mxu0 0.0
    %v2785 = vand.u32 %v155, 4294901760
    %2786 = vmatmul.mubr.f32.gmra.mrb[0].mxu0 %v2785
    %v2787 = vpop.f32.mrb[0].mxu0
    %v2788 = vadd.f32 %v2413, %v2787
    %v2789 = vpop.f32.mrb[0].mxu0
    %v2790 = vadd.f32 %v2415, %v2789
    %2791 = vmatprep.mubr.f32.mxu0 0.0
    %v2792 = vand.u32 %v158, 4294901760
    %2793 = vmatmul.mubr.f32.gmra.mrb[0].mxu0 %v2792
    %v2794 = vpop.f32.mrb[0].mxu0
    %v2795 = vadd.f32 %v2424, %v2794
    %v2796 = vpop.f32.mrb[0].mxu0
    %v2797 = vadd.f32 %v2426, %v2796
    %2798 = vmatprep.mubr.f32.mxu0 0.0
    %v2799 = vand.u32 %v161, 4294901760
    %2800 = vmatmul.mubr.f32.gmra.mrb[0].mxu0 %v2799
    %v2801 = vpop.f32.mrb[0].mxu0
    %v2802 = vadd.f32 %v2435, %v2801
    %v2803 = vpop.f32.mrb[0].mxu0
    %v2804 = vadd.f32 %v2437, %v2803
    %2805 = vmatprep.mubr.f32.mxu0 0.0
    %v2806 = vand.u32 %v164, 4294901760
    %2807 = vmatmul.mubr.f32.gmra.mrb[0].mxu0 %v2806
    %v2808 = vpop.f32.mrb[0].mxu0
    %v2809 = vadd.f32 %v2446, %v2808
    %v2810 = vpop.f32.mrb[0].mxu0
    %v2811 = vadd.f32 %v2448, %v2810
    %2812 = vmatprep.mubr.f32.mxu0 0.0
    %v2813 = vand.u32 %v167, 4294901760
    %2814 = vmatmul.mubr.f32.gmra.mrb[0].mxu0 %v2813
    %v2815 = vpop.f32.mrb[0].mxu0
    %v2816 = vadd.f32 %v2457, %v2815
    %v2817 = vpop.f32.mrb[0].mxu0
    %v2818 = vadd.f32 %v2459, %v2817
    %2819 = vmatprep.mubr.f32.mxu0 0.0
    %v2820 = vand.u32 %v170, 4294901760
    %2821 = vmatmul.mubr.f32.gmra.mrb[0].mxu0 %v2820
    %v2822 = vpop.f32.mrb[0].mxu0
    %v2823 = vadd.f32 %v2468, %v2822
    %v2824 = vpop.f32.mrb[0].mxu0
    %v2825 = vadd.f32 %v2470, %v2824
    %2826 = vmatprep.mubr.f32.mxu0 0.0
    %v2827 = vand.u32 %v173, 4294901760
    %2828 = vmatmul.mubr.f32.gmra.mrb[0].mxu0 %v2827
    %v2829 = vpop.f32.mrb[0].mxu0
    %v2830 = vadd.f32 %v2479, %v2829
    %v2831 = vpop.f32.mrb[0].mxu0
    %v2832 = vadd.f32 %v2481, %v2831
    %2833 = vmatprep.mubr.f32.mxu0 0.0
    %v2834 = vand.u32 %v176, 4294901760
    %2835 = vmatmul.mubr.f32.gmra.mrb[0].mxu0 %v2834
    %v2836 = vpop.f32.mrb[0].mxu0
    %v2837 = vadd.f32 %v2490, %v2836
    %v2838 = vpop.f32.mrb[0].mxu0
    %v2839 = vadd.f32 %v2492, %v2838
    %2840 = vmatprep.mubr.f32.mxu0 0.0
    %v2841 = vand.u32 %v179, 4294901760
    %2842 = vmatmul.mubr.f32.gmra.mrb[0].mxu0 %v2841
    %v2843 = vpop.f32.mrb[0].mxu0
    %v2844 = vadd.f32 %v2501, %v2843
    %v2845 = vpop.f32.mrb[0].mxu0
    %v2846 = vadd.f32 %v2503, %v2845
    %2847 = vmatprep.mubr.f32.mxu0 0.0
    %v2848 = vand.u32 %v182, 4294901760
    %2849 = vmatmul.mubr.f32.gmra.mrb[0].mxu0 %v2848
    %v2850 = vpop.f32.mrb[0].mxu0
    %v2851 = vadd.f32 %v2512, %v2850
    %v2852 = vpop.f32.mrb[0].mxu0
    %v2853 = vadd.f32 %v2514, %v2852
    %2854 = vmatprep.mubr.f32.mxu0 0.0
    %v2855 = vand.u32 %v185, 4294901760
    %2856 = vmatmul.mubr.f32.gmra.mrb[0].mxu0 %v2855
    %v2857 = vpop.f32.mrb[0].mxu0
    %v2858 = vadd.f32 %v2523, %v2857
    %v2859 = vpop.f32.mrb[0].mxu0
    %v2860 = vadd.f32 %v2525, %v2859
    %2861 = vmatprep.mubr.f32.mxu0 0.0
    %v2862 = vand.u32 %v188, 4294901760
    %2863 = vmatmul.mubr.f32.gmra.mrb[0].mxu0 %v2862
    %v2864 = vpop.f32.mrb[0].mxu0
    %v2865 = vadd.f32 %v2534, %v2864
    %v2866 = vpop.f32.mrb[0].mxu0
    %v2867 = vadd.f32 %v2536, %v2866
    %2868 = vmatprep.mubr.f32.mxu0 0.0
    %v2869 = vand.u32 %v191, 4294901760
    %2870 = vmatmul.mubr.f32.gmra.mrb[0].mxu0 %v2869
    %v2871 = vpop.f32.mrb[0].mxu0
    %v2872 = vadd.f32 %v2545, %v2871
    %v2873 = vpop.f32.mrb[0].mxu0
    %v2874 = vadd.f32 %v2547, %v2873
    %2875 = vmatprep.mubr.f32.mxu0 0.0
    %v2876 = vand.u32 %v194, 4294901760
    %2877 = vmatmul.mubr.f32.gmra.mrb[0].mxu0 %v2876
    %v2878 = vpop.f32.mrb[0].mxu0
    %v2879 = vadd.f32 %v2556, %v2878
    %v2880 = vpop.f32.mrb[0].mxu0
    %v2881 = vadd.f32 %v2558, %v2880
    %2882 = vmatprep.mubr.f32.mxu0 0.0
    %v2883 = vand.u32 %v197, 4294901760
    %2884 = vmatmul.mubr.f32.gmra.mrb[0].mxu0 %v2883
    %v2885 = vpop.f32.mrb[0].mxu0
    %v2886 = vadd.f32 %v2567, %v2885
    %v2887 = vpop.f32.mrb[0].mxu0
    %v2888 = vadd.f32 %v2569, %v2887
    %2889 = vmatprep.mubr.f32.mxu0 0.0
    %v2890 = vand.u32 %v200, 4294901760
    %2891 = vmatmul.mubr.f32.gmra.mrb[0].mxu0 %v2890
    %v2892 = vpop.f32.mrb[0].mxu0
    %v2893 = vadd.f32 %v2578, %v2892
    %v2894 = vpop.f32.mrb[0].mxu0
    %v2895 = vadd.f32 %v2580, %v2894
    %2896 = vmatprep.mubr.f32.mxu0 0.0
    %v2897 = vand.u32 %v203, 4294901760
    %2898 = vmatmul.mubr.f32.gmra.mrb[0].mxu0 %v2897
    %v2899 = vpop.f32.mrb[0].mxu0
    %v2900 = vadd.f32 %v2589, %v2899
    %v2901 = vpop.f32.mrb[0].mxu0
    %v2902 = vadd.f32 %v2591, %v2901
    %2903 = vmatprep.mubr.f32.mxu0 0.0
    %v2904 = vand.u32 %v206, 4294901760
    %2905 = vmatmul.mubr.f32.gmra.mrb[0].mxu0 %v2904
    %v2906 = vpop.f32.mrb[0].mxu0
    %v2907 = vadd.f32 %v2600, %v2906
    %v2908 = vpop.f32.mrb[0].mxu0
    %v2909 = vadd.f32 %v2602, %v2908
    %2910 = vmatprep.mubr.f32.mxu0 0.0
    %v2911 = vand.u32 %v209, 4294901760
    %2912 = vmatmul.mubr.f32.gmra.mrb[0].mxu0 %v2911
    %v2913 = vpop.f32.mrb[0].mxu0
    %v2914 = vadd.f32 %v2611, %v2913
    %v2915 = vpop.f32.mrb[0].mxu0
    %v2916 = vadd.f32 %v2613, %v2915
    %2917 = vmatprep.mubr.f32.mxu0 0.0
    %v2918 = vand.u32 %v212, 4294901760
    %2919 = vmatmul.mubr.f32.gmra.mrb[0].mxu0 %v2918
    %v2920 = vpop.f32.mrb[0].mxu0
    %v2921 = vadd.f32 %v2622, %v2920
    %v2922 = vpop.f32.mrb[0].mxu0
    %v2923 = vadd.f32 %v2624, %v2922
    %2924 = vdwg.mxu0
    %v2925 = vand.u32 %v221, 4294901760
    %v2926 = vsub.f32 %v221, %v2925
    %2927 = vmatprep.subr.mxu0 %v2926
    %v2928 = vand.u32 %v219, 4294901760
    %v2929 = vsub.f32 %v219, %v2928
    %2930 = vmatpush1.msra.mxu0 %v2929
    %2931 = vmatprep.subr.mxu0 0.0
    %2932 = vmatpush1.msra.mxu0 0.0
    %2933 = vmatprep.subr.mxu0 0.0
    %2934 = vmatpush1.msra.mxu0 0.0
    %2935 = vmatprep.subr.mxu0 0.0
    %2936 = vmatpush1.msra.mxu0 0.0
    %2937 = vmatprep.subr.mxu0 0.0
    %2938 = vmatpush1.msra.mxu0 0.0
    %2939 = vmatprep.subr.mxu0 0.0
    %2940 = vmatpush1.msra.mxu0 0.0
    %2941 = vmatprep.subr.mxu0 0.0
    %2942 = vmatpush1.msra.mxu0 0.0
    %2943 = vmatprep.subr.mxu0 0.0
    %2944 = vmatpush1.msra.mxu0 0.0
    %2945 = vmatprep.subr.mxu0 0.0
    %2946 = vmatpush1.msra.mxu0 0.0
    %2947 = vmatprep.subr.mxu0 0.0
    %2948 = vmatpush1.msra.mxu0 0.0
    %2949 = vmatprep.subr.mxu0 0.0
    %2950 = vmatpush1.msra.mxu0 0.0
    %2951 = vmatprep.subr.mxu0 0.0
    %2952 = vmatpush1.msra.mxu0 0.0
    %2953 = vmatprep.subr.mxu0 0.0
    %2954 = vmatpush1.msra.mxu0 0.0
    %2955 = vmatprep.subr.mxu0 0.0
    %2956 = vmatpush1.msra.mxu0 0.0
    %2957 = vmatprep.subr.mxu0 0.0
    %2958 = vmatpush1.msra.mxu0 0.0
    %2959 = vmatprep.subr.mxu0 0.0
    %2960 = vmatpush1.msra.mxu0 0.0
    %2961 = vmatprep.subr.mxu0 0.0
    %2962 = vmatpush1.msra.mxu0 0.0
    %2963 = vmatprep.subr.mxu0 0.0
    %2964 = vmatpush1.msra.mxu0 0.0
    %2965 = vmatprep.subr.mxu0 0.0
    %2966 = vmatpush1.msra.mxu0 0.0
    %2967 = vmatprep.subr.mxu0 0.0
    %2968 = vmatpush1.msra.mxu0 0.0
    %2969 = vmatprep.subr.mxu0 0.0
    %2970 = vmatpush1.msra.mxu0 0.0
    %2971 = vmatprep.subr.mxu0 0.0
    %2972 = vmatpush1.msra.mxu0 0.0
    %2973 = vmatprep.subr.mxu0 0.0
    %2974 = vmatpush1.msra.mxu0 0.0
    %2975 = vmatprep.subr.mxu0 0.0
    %2976 = vmatpush1.msra.mxu0 0.0
    %2977 = vmatprep.subr.mxu0 0.0
    %2978 = vmatpush1.msra.mxu0 0.0
    %2979 = vmatprep.subr.mxu0 0.0
    %2980 = vmatpush1.msra.mxu0 0.0
    %2981 = vmatprep.subr.mxu0 0.0
    %2982 = vmatpush1.msra.mxu0 0.0
    %2983 = vmatprep.subr.mxu0 0.0
    %2984 = vmatpush1.msra.mxu0 0.0
    %2985 = vmatprep.subr.mxu0 0.0
    %2986 = vmatpush1.msra.mxu0 0.0
    %2987 = vmatprep.subr.mxu0 0.0
    %2988 = vmatpush1.msra.mxu0 0.0
    %2989 = vmatprep.subr.mxu0 0.0
    %2990 = vmatpush1.msra.mxu0 0.0
    %2991 = vmatprep.subr.mxu0 0.0
    %2992 = vmatpush1.msra.mxu0 0.0
    %2993 = vmatprep.mubr.f32.mxu0 0.0
    %v2994 = vand.u32 %v119, 4294901760
    %v2995 = vsub.f32 %v119, %v2994
    %2996 = vmatmul.mubr.f32.gmra.mrb[0].mxu0 %v2995
    %v2997 = vpop.f32.mrb[0].mxu0
    %v2998 = vadd.f32 %v2704, %v2997
    %v2999 = vpop.f32.mrb[0].mxu0
    %v3000 = vadd.f32 %v2706, %v2999
    %3001 = vmatprep.mubr.f32.mxu0 0.0
    %v3002 = vand.u32 %v122, 4294901760
    %v3003 = vsub.f32 %v122, %v3002
    %3004 = vmatmul.mubr.f32.gmra.mrb[0].mxu0 %v3003
    %v3005 = vpop.f32.mrb[0].mxu0
    %v3006 = vadd.f32 %v2711, %v3005
    %v3007 = vpop.f32.mrb[0].mxu0
    %v3008 = vadd.f32 %v2713, %v3007
    %3009 = vmatprep.mubr.f32.mxu0 0.0
    %v3010 = vand.u32 %v125, 4294901760
    %v3011 = vsub.f32 %v125, %v3010
    %3012 = vmatmul.mubr.f32.gmra.mrb[0].mxu0 %v3011
    %v3013 = vpop.f32.mrb[0].mxu0
    %v3014 = vadd.f32 %v2718, %v3013
    %v3015 = vpop.f32.mrb[0].mxu0
    %v3016 = vadd.f32 %v2720, %v3015
    %3017 = vmatprep.mubr.f32.mxu0 0.0
    %v3018 = vand.u32 %v128, 4294901760
    %v3019 = vsub.f32 %v128, %v3018
    %3020 = vmatmul.mubr.f32.gmra.mrb[0].mxu0 %v3019
    %v3021 = vpop.f32.mrb[0].mxu0
    %v3022 = vadd.f32 %v2725, %v3021
    %v3023 = vpop.f32.mrb[0].mxu0
    %v3024 = vadd.f32 %v2727, %v3023
    %3025 = vmatprep.mubr.f32.mxu0 0.0
    %v3026 = vand.u32 %v131, 4294901760
    %v3027 = vsub.f32 %v131, %v3026
    %3028 = vmatmul.mubr.f32.gmra.mrb[0].mxu0 %v3027
    %v3029 = vpop.f32.mrb[0].mxu0
    %v3030 = vadd.f32 %v2732, %v3029
    %v3031 = vpop.f32.mrb[0].mxu0
    %v3032 = vadd.f32 %v2734, %v3031
    %3033 = vmatprep.mubr.f32.mxu0 0.0
    %v3034 = vand.u32 %v134, 4294901760
    %v3035 = vsub.f32 %v134, %v3034
    %3036 = vmatmul.mubr.f32.gmra.mrb[0].mxu0 %v3035
    %v3037 = vpop.f32.mrb[0].mxu0
    %v3038 = vadd.f32 %v2739, %v3037
    %v3039 = vpop.f32.mrb[0].mxu0
    %v3040 = vadd.f32 %v2741, %v3039
    %3041 = vmatprep.mubr.f32.mxu0 0.0
    %v3042 = vand.u32 %v137, 4294901760
    %v3043 = vsub.f32 %v137, %v3042
    %3044 = vmatmul.mubr.f32.gmra.mrb[0].mxu0 %v3043
    %v3045 = vpop.f32.mrb[0].mxu0
    %v3046 = vadd.f32 %v2746, %v3045
    %v3047 = vpop.f32.mrb[0].mxu0
    %v3048 = vadd.f32 %v2748, %v3047
    %3049 = vmatprep.mubr.f32.mxu0 0.0
    %v3050 = vand.u32 %v140, 4294901760
    %v3051 = vsub.f32 %v140, %v3050
    %3052 = vmatmul.mubr.f32.gmra.mrb[0].mxu0 %v3051
    %v3053 = vpop.f32.mrb[0].mxu0
    %v3054 = vadd.f32 %v2753, %v3053
    %v3055 = vpop.f32.mrb[0].mxu0
    %v3056 = vadd.f32 %v2755, %v3055
    %3057 = vmatprep.mubr.f32.mxu0 0.0
    %v3058 = vand.u32 %v143, 4294901760
    %v3059 = vsub.f32 %v143, %v3058
    %3060 = vmatmul.mubr.f32.gmra.mrb[0].mxu0 %v3059
    %v3061 = vpop.f32.mrb[0].mxu0
    %v3062 = vadd.f32 %v2760, %v3061
    %v3063 = vpop.f32.mrb[0].mxu0
    %v3064 = vadd.f32 %v2762, %v3063
    %3065 = vmatprep.mubr.f32.mxu0 0.0
    %v3066 = vand.u32 %v146, 4294901760
    %v3067 = vsub.f32 %v146, %v3066
    %3068 = vmatmul.mubr.f32.gmra.mrb[0].mxu0 %v3067
    %v3069 = vpop.f32.mrb[0].mxu0
    %v3070 = vadd.f32 %v2767, %v3069
    %v3071 = vpop.f32.mrb[0].mxu0
    %v3072 = vadd.f32 %v2769, %v3071
    %3073 = vmatprep.mubr.f32.mxu0 0.0
    %v3074 = vand.u32 %v149, 4294901760
    %v3075 = vsub.f32 %v149, %v3074
    %3076 = vmatmul.mubr.f32.gmra.mrb[0].mxu0 %v3075
    %v3077 = vpop.f32.mrb[0].mxu0
    %v3078 = vadd.f32 %v2774, %v3077
    %v3079 = vpop.f32.mrb[0].mxu0
    %v3080 = vadd.f32 %v2776, %v3079
    %3081 = vmatprep.mubr.f32.mxu0 0.0
    %v3082 = vand.u32 %v152, 4294901760
    %v3083 = vsub.f32 %v152, %v3082
    %3084 = vmatmul.mubr.f32.gmra.mrb[0].mxu0 %v3083
    %v3085 = vpop.f32.mrb[0].mxu0
    %v3086 = vadd.f32 %v2781, %v3085
    %v3087 = vpop.f32.mrb[0].mxu0
    %v3088 = vadd.f32 %v2783, %v3087
    %3089 = vmatprep.mubr.f32.mxu0 0.0
    %v3090 = vand.u32 %v155, 4294901760
    %v3091 = vsub.f32 %v155, %v3090
    %3092 = vmatmul.mubr.f32.gmra.mrb[0].mxu0 %v3091
    %v3093 = vpop.f32.mrb[0].mxu0
    %v3094 = vadd.f32 %v2788, %v3093
    %v3095 = vpop.f32.mrb[0].mxu0
    %v3096 = vadd.f32 %v2790, %v3095
    %3097 = vmatprep.mubr.f32.mxu0 0.0
    %v3098 = vand.u32 %v158, 4294901760
    %v3099 = vsub.f32 %v158, %v3098
    %3100 = vmatmul.mubr.f32.gmra.mrb[0].mxu0 %v3099
    %v3101 = vpop.f32.mrb[0].mxu0
    %v3102 = vadd.f32 %v2795, %v3101
    %v3103 = vpop.f32.mrb[0].mxu0
    %v3104 = vadd.f32 %v2797, %v3103
    %3105 = vmatprep.mubr.f32.mxu0 0.0
    %v3106 = vand.u32 %v161, 4294901760
    %v3107 = vsub.f32 %v161, %v3106
    %3108 = vmatmul.mubr.f32.gmra.mrb[0].mxu0 %v3107
    %v3109 = vpop.f32.mrb[0].mxu0
    %v3110 = vadd.f32 %v2802, %v3109
    %v3111 = vpop.f32.mrb[0].mxu0
    %v3112 = vadd.f32 %v2804, %v3111
    %3113 = vmatprep.mubr.f32.mxu0 0.0
    %v3114 = vand.u32 %v164, 4294901760
    %v3115 = vsub.f32 %v164, %v3114
    %3116 = vmatmul.mubr.f32.gmra.mrb[0].mxu0 %v3115
    %v3117 = vpop.f32.mrb[0].mxu0
    %v3118 = vadd.f32 %v2809, %v3117
    %v3119 = vpop.f32.mrb[0].mxu0
    %v3120 = vadd.f32 %v2811, %v3119
    %3121 = vmatprep.mubr.f32.mxu0 0.0
    %v3122 = vand.u32 %v167, 4294901760
    %v3123 = vsub.f32 %v167, %v3122
    %3124 = vmatmul.mubr.f32.gmra.mrb[0].mxu0 %v3123
    %v3125 = vpop.f32.mrb[0].mxu0
    %v3126 = vadd.f32 %v2816, %v3125
    %v3127 = vpop.f32.mrb[0].mxu0
    %v3128 = vadd.f32 %v2818, %v3127
    %3129 = vmatprep.mubr.f32.mxu0 0.0
    %v3130 = vand.u32 %v170, 4294901760
    %v3131 = vsub.f32 %v170, %v3130
    %3132 = vmatmul.mubr.f32.gmra.mrb[0].mxu0 %v3131
    %v3133 = vpop.f32.mrb[0].mxu0
    %v3134 = vadd.f32 %v2823, %v3133
    %v3135 = vpop.f32.mrb[0].mxu0
    %v3136 = vadd.f32 %v2825, %v3135
    %3137 = vmatprep.mubr.f32.mxu0 0.0
    %v3138 = vand.u32 %v173, 4294901760
    %v3139 = vsub.f32 %v173, %v3138
    %3140 = vmatmul.mubr.f32.gmra.mrb[0].mxu0 %v3139
    %v3141 = vpop.f32.mrb[0].mxu0
    %v3142 = vadd.f32 %v2830, %v3141
    %v3143 = vpop.f32.mrb[0].mxu0
    %v3144 = vadd.f32 %v2832, %v3143
    %3145 = vmatprep.mubr.f32.mxu0 0.0
    %v3146 = vand.u32 %v176, 4294901760
    %v3147 = vsub.f32 %v176, %v3146
    %3148 = vmatmul.mubr.f32.gmra.mrb[0].mxu0 %v3147
    %v3149 = vpop.f32.mrb[0].mxu0
    %v3150 = vadd.f32 %v2837, %v3149
    %v3151 = vpop.f32.mrb[0].mxu0
    %v3152 = vadd.f32 %v2839, %v3151
    %3153 = vmatprep.mubr.f32.mxu0 0.0
    %v3154 = vand.u32 %v179, 4294901760
    %v3155 = vsub.f32 %v179, %v3154
    %3156 = vmatmul.mubr.f32.gmra.mrb[0].mxu0 %v3155
    %v3157 = vpop.f32.mrb[0].mxu0
    %v3158 = vadd.f32 %v2844, %v3157
    %v3159 = vpop.f32.mrb[0].mxu0
    %v3160 = vadd.f32 %v2846, %v3159
    %3161 = vmatprep.mubr.f32.mxu0 0.0
    %v3162 = vand.u32 %v182, 4294901760
    %v3163 = vsub.f32 %v182, %v3162
    %3164 = vmatmul.mubr.f32.gmra.mrb[0].mxu0 %v3163
    %v3165 = vpop.f32.mrb[0].mxu0
    %v3166 = vadd.f32 %v2851, %v3165
    %v3167 = vpop.f32.mrb[0].mxu0
    %v3168 = vadd.f32 %v2853, %v3167
    %3169 = vmatprep.mubr.f32.mxu0 0.0
    %v3170 = vand.u32 %v185, 4294901760
    %v3171 = vsub.f32 %v185, %v3170
    %3172 = vmatmul.mubr.f32.gmra.mrb[0].mxu0 %v3171
    %v3173 = vpop.f32.mrb[0].mxu0
    %v3174 = vadd.f32 %v2858, %v3173
    %v3175 = vpop.f32.mrb[0].mxu0
    %v3176 = vadd.f32 %v2860, %v3175
    %3177 = vmatprep.mubr.f32.mxu0 0.0
    %v3178 = vand.u32 %v188, 4294901760
    %v3179 = vsub.f32 %v188, %v3178
    %3180 = vmatmul.mubr.f32.gmra.mrb[0].mxu0 %v3179
    %v3181 = vpop.f32.mrb[0].mxu0
    %v3182 = vadd.f32 %v2865, %v3181
    %v3183 = vpop.f32.mrb[0].mxu0
    %v3184 = vadd.f32 %v2867, %v3183
    %3185 = vmatprep.mubr.f32.mxu0 0.0
    %v3186 = vand.u32 %v191, 4294901760
    %v3187 = vsub.f32 %v191, %v3186
    %3188 = vmatmul.mubr.f32.gmra.mrb[0].mxu0 %v3187
    %v3189 = vpop.f32.mrb[0].mxu0
    %v3190 = vadd.f32 %v2872, %v3189
    %v3191 = vpop.f32.mrb[0].mxu0
    %v3192 = vadd.f32 %v2874, %v3191
    %3193 = vmatprep.mubr.f32.mxu0 0.0
    %v3194 = vand.u32 %v194, 4294901760
    %v3195 = vsub.f32 %v194, %v3194
    %3196 = vmatmul.mubr.f32.gmra.mrb[0].mxu0 %v3195
    %v3197 = vpop.f32.mrb[0].mxu0
    %v3198 = vadd.f32 %v2879, %v3197
    %v3199 = vpop.f32.mrb[0].mxu0
    %v3200 = vadd.f32 %v2881, %v3199
    %3201 = vmatprep.mubr.f32.mxu0 0.0
    %v3202 = vand.u32 %v197, 4294901760
    %v3203 = vsub.f32 %v197, %v3202
    %3204 = vmatmul.mubr.f32.gmra.mrb[0].mxu0 %v3203
    %v3205 = vpop.f32.mrb[0].mxu0
    %v3206 = vadd.f32 %v2886, %v3205
    %v3207 = vpop.f32.mrb[0].mxu0
    %v3208 = vadd.f32 %v2888, %v3207
    %3209 = vmatprep.mubr.f32.mxu0 0.0
    %v3210 = vand.u32 %v200, 4294901760
    %v3211 = vsub.f32 %v200, %v3210
    %3212 = vmatmul.mubr.f32.gmra.mrb[0].mxu0 %v3211
    %v3213 = vpop.f32.mrb[0].mxu0
    %v3214 = vadd.f32 %v2893, %v3213
    %v3215 = vpop.f32.mrb[0].mxu0
    %v3216 = vadd.f32 %v2895, %v3215
    %3217 = vmatprep.mubr.f32.mxu0 0.0
    %v3218 = vand.u32 %v203, 4294901760
    %v3219 = vsub.f32 %v203, %v3218
    %3220 = vmatmul.mubr.f32.gmra.mrb[0].mxu0 %v3219
    %v3221 = vpop.f32.mrb[0].mxu0
    %v3222 = vadd.f32 %v2900, %v3221
    %v3223 = vpop.f32.mrb[0].mxu0
    %v3224 = vadd.f32 %v2902, %v3223
    %3225 = vmatprep.mubr.f32.mxu0 0.0
    %v3226 = vand.u32 %v206, 4294901760
    %v3227 = vsub.f32 %v206, %v3226
    %3228 = vmatmul.mubr.f32.gmra.mrb[0].mxu0 %v3227
    %v3229 = vpop.f32.mrb[0].mxu0
    %v3230 = vadd.f32 %v2907, %v3229
    %v3231 = vpop.f32.mrb[0].mxu0
    %v3232 = vadd.f32 %v2909, %v3231
    %3233 = vmatprep.mubr.f32.mxu0 0.0
    %v3234 = vand.u32 %v209, 4294901760
    %v3235 = vsub.f32 %v209, %v3234
    %3236 = vmatmul.mubr.f32.gmra.mrb[0].mxu0 %v3235
    %v3237 = vpop.f32.mrb[0].mxu0
    %v3238 = vadd.f32 %v2914, %v3237
    %v3239 = vpop.f32.mrb[0].mxu0
    %v3240 = vadd.f32 %v2916, %v3239
    %3241 = vmatprep.mubr.f32.mxu0 0.0
    %v3242 = vand.u32 %v212, 4294901760
    %v3243 = vsub.f32 %v212, %v3242
    %3244 = vmatmul.mubr.f32.gmra.mrb[0].mxu0 %v3243
    %v3245 = vpop.f32.mrb[0].mxu0
    %v3246 = vadd.f32 %v2921, %v3245
    %v3247 = vpop.f32.mrb[0].mxu0
    %v3248 = vadd.f32 %v2923, %v3247
    %3249 = vdwg.mxu0
    %v3250 = vand.u32 %v221, 4294901760
    %3251 = vmatprep.subr.mxu0 %v3250
    %v3252 = vand.u32 %v219, 4294901760
    %3253 = vmatpush1.msra.mxu0 %v3252
    %3254 = vmatprep.subr.mxu0 0.0
    %3255 = vmatpush1.msra.mxu0 0.0
    %3256 = vmatprep.subr.mxu0 0.0
    %3257 = vmatpush1.msra.mxu0 0.0
    %3258 = vmatprep.subr.mxu0 0.0
    %3259 = vmatpush1.msra.mxu0 0.0
    %3260 = vmatprep.subr.mxu0 0.0
    %3261 = vmatpush1.msra.mxu0 0.0
    %3262 = vmatprep.subr.mxu0 0.0
    %3263 = vmatpush1.msra.mxu0 0.0
    %3264 = vmatprep.subr.mxu0 0.0
    %3265 = vmatpush1.msra.mxu0 0.0
    %3266 = vmatprep.subr.mxu0 0.0
    %3267 = vmatpush1.msra.mxu0 0.0
    %3268 = vmatprep.subr.mxu0 0.0
    %3269 = vmatpush1.msra.mxu0 0.0
    %3270 = vmatprep.subr.mxu0 0.0
    %3271 = vmatpush1.msra.mxu0 0.0
    %3272 = vmatprep.subr.mxu0 0.0
    %3273 = vmatpush1.msra.mxu0 0.0
    %3274 = vmatprep.subr.mxu0 0.0
    %3275 = vmatpush1.msra.mxu0 0.0
    %3276 = vmatprep.subr.mxu0 0.0
    %3277 = vmatpush1.msra.mxu0 0.0
    %3278 = vmatprep.subr.mxu0 0.0
    %3279 = vmatpush1.msra.mxu0 0.0
    %3280 = vmatprep.subr.mxu0 0.0
    %3281 = vmatpush1.msra.mxu0 0.0
    %3282 = vmatprep.subr.mxu0 0.0
    %3283 = vmatpush1.msra.mxu0 0.0
    %3284 = vmatprep.subr.mxu0 0.0
    %3285 = vmatpush1.msra.mxu0 0.0
    %3286 = vmatprep.subr.mxu0 0.0
    %3287 = vmatpush1.msra.mxu0 0.0
    %3288 = vmatprep.subr.mxu0 0.0
    %3289 = vmatpush1.msra.mxu0 0.0
    %3290 = vmatprep.subr.mxu0 0.0
    %3291 = vmatpush1.msra.mxu0 0.0
    %3292 = vmatprep.subr.mxu0 0.0
    %3293 = vmatpush1.msra.mxu0 0.0
    %3294 = vmatprep.subr.mxu0 0.0
    %3295 = vmatpush1.msra.mxu0 0.0
    %3296 = vmatprep.subr.mxu0 0.0
    %3297 = vmatpush1.msra.mxu0 0.0
    %3298 = vmatprep.subr.mxu0 0.0
    %3299 = vmatpush1.msra.mxu0 0.0
    %3300 = vmatprep.subr.mxu0 0.0
    %3301 = vmatpush1.msra.mxu0 0.0
    %3302 = vmatprep.subr.mxu0 0.0
    %3303 = vmatpush1.msra.mxu0 0.0
    %3304 = vmatprep.subr.mxu0 0.0
    %3305 = vmatpush1.msra.mxu0 0.0
    %3306 = vmatprep.subr.mxu0 0.0
    %3307 = vmatpush1.msra.mxu0 0.0
    %3308 = vmatprep.subr.mxu0 0.0
    %3309 = vmatpush1.msra.mxu0 0.0
    %3310 = vmatprep.subr.mxu0 0.0
    %3311 = vmatpush1.msra.mxu0 0.0
    %3312 = vmatprep.subr.mxu0 0.0
    %3313 = vmatpush1.msra.mxu0 0.0
    %3314 = vmatprep.subr.mxu0 0.0
    %3315 = vmatpush1.msra.mxu0 0.0
    %3316 = vmatprep.mubr.f32.mxu0 0.0
    %v3317 = vand.u32 %v119, 4294901760
    %v3318 = vsub.f32 %v119, %v3317
    %v3319 = vand.u32 %v3318, 4294901760
    %3320 = vmatmul.mubr.f32.gmra.mrb[0].mxu0 %v3319
    %v3321 = vpop.f32.mrb[0].mxu0
    %v3322 = vadd.f32 %v2998, %v3321
    %v3323 = vpop.f32.mrb[0].mxu0
    %v3324 = vadd.f32 %v3000, %v3323
    %3325 = vmatprep.mubr.f32.mxu0 0.0
    %v3326 = vand.u32 %v122, 4294901760
    %v3327 = vsub.f32 %v122, %v3326
    %v3328 = vand.u32 %v3327, 4294901760
    %3329 = vmatmul.mubr.f32.gmra.mrb[0].mxu0 %v3328
    %v3330 = vpop.f32.mrb[0].mxu0
    %v3331 = vadd.f32 %v3006, %v3330
    %v3332 = vpop.f32.mrb[0].mxu0
    %v3333 = vadd.f32 %v3008, %v3332
    %3334 = vmatprep.mubr.f32.mxu0 0.0
    %v3335 = vand.u32 %v125, 4294901760
    %v3336 = vsub.f32 %v125, %v3335
    %v3337 = vand.u32 %v3336, 4294901760
    %3338 = vmatmul.mubr.f32.gmra.mrb[0].mxu0 %v3337
    %v3339 = vpop.f32.mrb[0].mxu0
    %v3340 = vadd.f32 %v3014, %v3339
    %v3341 = vpop.f32.mrb[0].mxu0
    %v3342 = vadd.f32 %v3016, %v3341
    %3343 = vmatprep.mubr.f32.mxu0 0.0
    %v3344 = vand.u32 %v128, 4294901760
    %v3345 = vsub.f32 %v128, %v3344
    %v3346 = vand.u32 %v3345, 4294901760
    %3347 = vmatmul.mubr.f32.gmra.mrb[0].mxu0 %v3346
    %v3348 = vpop.f32.mrb[0].mxu0
    %v3349 = vadd.f32 %v3022, %v3348
    %v3350 = vpop.f32.mrb[0].mxu0
    %v3351 = vadd.f32 %v3024, %v3350
    %3352 = vmatprep.mubr.f32.mxu0 0.0
    %v3353 = vand.u32 %v131, 4294901760
    %v3354 = vsub.f32 %v131, %v3353
    %v3355 = vand.u32 %v3354, 4294901760
    %3356 = vmatmul.mubr.f32.gmra.mrb[0].mxu0 %v3355
    %v3357 = vpop.f32.mrb[0].mxu0
    %v3358 = vadd.f32 %v3030, %v3357
    %v3359 = vpop.f32.mrb[0].mxu0
    %v3360 = vadd.f32 %v3032, %v3359
    %3361 = vmatprep.mubr.f32.mxu0 0.0
    %v3362 = vand.u32 %v134, 4294901760
    %v3363 = vsub.f32 %v134, %v3362
    %v3364 = vand.u32 %v3363, 4294901760
    %3365 = vmatmul.mubr.f32.gmra.mrb[0].mxu0 %v3364
    %v3366 = vpop.f32.mrb[0].mxu0
    %v3367 = vadd.f32 %v3038, %v3366
    %v3368 = vpop.f32.mrb[0].mxu0
    %v3369 = vadd.f32 %v3040, %v3368
    %3370 = vmatprep.mubr.f32.mxu0 0.0
    %v3371 = vand.u32 %v137, 4294901760
    %v3372 = vsub.f32 %v137, %v3371
    %v3373 = vand.u32 %v3372, 4294901760
    %3374 = vmatmul.mubr.f32.gmra.mrb[0].mxu0 %v3373
    %v3375 = vpop.f32.mrb[0].mxu0
    %v3376 = vadd.f32 %v3046, %v3375
    %v3377 = vpop.f32.mrb[0].mxu0
    %v3378 = vadd.f32 %v3048, %v3377
    %3379 = vmatprep.mubr.f32.mxu0 0.0
    %v3380 = vand.u32 %v140, 4294901760
    %v3381 = vsub.f32 %v140, %v3380
    %v3382 = vand.u32 %v3381, 4294901760
    %3383 = vmatmul.mubr.f32.gmra.mrb[0].mxu0 %v3382
    %v3384 = vpop.f32.mrb[0].mxu0
    %v3385 = vadd.f32 %v3054, %v3384
    %v3386 = vpop.f32.mrb[0].mxu0
    %v3387 = vadd.f32 %v3056, %v3386
    %3388 = vmatprep.mubr.f32.mxu0 0.0
    %v3389 = vand.u32 %v143, 4294901760
    %v3390 = vsub.f32 %v143, %v3389
    %v3391 = vand.u32 %v3390, 4294901760
    %3392 = vmatmul.mubr.f32.gmra.mrb[0].mxu0 %v3391
    %v3393 = vpop.f32.mrb[0].mxu0
    %v3394 = vadd.f32 %v3062, %v3393
    %v3395 = vpop.f32.mrb[0].mxu0
    %v3396 = vadd.f32 %v3064, %v3395
    %3397 = vmatprep.mubr.f32.mxu0 0.0
    %v3398 = vand.u32 %v146, 4294901760
    %v3399 = vsub.f32 %v146, %v3398
    %v3400 = vand.u32 %v3399, 4294901760
    %3401 = vmatmul.mubr.f32.gmra.mrb[0].mxu0 %v3400
    %v3402 = vpop.f32.mrb[0].mxu0
    %v3403 = vadd.f32 %v3070, %v3402
    %v3404 = vpop.f32.mrb[0].mxu0
    %v3405 = vadd.f32 %v3072, %v3404
    %3406 = vmatprep.mubr.f32.mxu0 0.0
    %v3407 = vand.u32 %v149, 4294901760
    %v3408 = vsub.f32 %v149, %v3407
    %v3409 = vand.u32 %v3408, 4294901760
    %3410 = vmatmul.mubr.f32.gmra.mrb[0].mxu0 %v3409
    %v3411 = vpop.f32.mrb[0].mxu0
    %v3412 = vadd.f32 %v3078, %v3411
    %v3413 = vpop.f32.mrb[0].mxu0
    %v3414 = vadd.f32 %v3080, %v3413
    %3415 = vmatprep.mubr.f32.mxu0 0.0
    %v3416 = vand.u32 %v152, 4294901760
    %v3417 = vsub.f32 %v152, %v3416
    %v3418 = vand.u32 %v3417, 4294901760
    %3419 = vmatmul.mubr.f32.gmra.mrb[0].mxu0 %v3418
    %v3420 = vpop.f32.mrb[0].mxu0
    %v3421 = vadd.f32 %v3086, %v3420
    %v3422 = vpop.f32.mrb[0].mxu0
    %v3423 = vadd.f32 %v3088, %v3422
    %3424 = vmatprep.mubr.f32.mxu0 0.0
    %v3425 = vand.u32 %v155, 4294901760
    %v3426 = vsub.f32 %v155, %v3425
    %v3427 = vand.u32 %v3426, 4294901760
    %3428 = vmatmul.mubr.f32.gmra.mrb[0].mxu0 %v3427
    %v3429 = vpop.f32.mrb[0].mxu0
    %v3430 = vadd.f32 %v3094, %v3429
    %v3431 = vpop.f32.mrb[0].mxu0
    %v3432 = vadd.f32 %v3096, %v3431
    %3433 = vmatprep.mubr.f32.mxu0 0.0
    %v3434 = vand.u32 %v158, 4294901760
    %v3435 = vsub.f32 %v158, %v3434
    %v3436 = vand.u32 %v3435, 4294901760
    %3437 = vmatmul.mubr.f32.gmra.mrb[0].mxu0 %v3436
    %v3438 = vpop.f32.mrb[0].mxu0
    %v3439 = vadd.f32 %v3102, %v3438
    %v3440 = vpop.f32.mrb[0].mxu0
    %v3441 = vadd.f32 %v3104, %v3440
    %3442 = vmatprep.mubr.f32.mxu0 0.0
    %v3443 = vand.u32 %v161, 4294901760
    %v3444 = vsub.f32 %v161, %v3443
    %v3445 = vand.u32 %v3444, 4294901760
    %3446 = vmatmul.mubr.f32.gmra.mrb[0].mxu0 %v3445
    %v3447 = vpop.f32.mrb[0].mxu0
    %v3448 = vadd.f32 %v3110, %v3447
    %v3449 = vpop.f32.mrb[0].mxu0
    %v3450 = vadd.f32 %v3112, %v3449
    %3451 = vmatprep.mubr.f32.mxu0 0.0
    %v3452 = vand.u32 %v164, 4294901760
    %v3453 = vsub.f32 %v164, %v3452
    %v3454 = vand.u32 %v3453, 4294901760
    %3455 = vmatmul.mubr.f32.gmra.mrb[0].mxu0 %v3454
    %v3456 = vpop.f32.mrb[0].mxu0
    %v3457 = vadd.f32 %v3118, %v3456
    %v3458 = vpop.f32.mrb[0].mxu0
    %v3459 = vadd.f32 %v3120, %v3458
    %3460 = vmatprep.mubr.f32.mxu0 0.0
    %v3461 = vand.u32 %v167, 4294901760
    %v3462 = vsub.f32 %v167, %v3461
    %v3463 = vand.u32 %v3462, 4294901760
    %3464 = vmatmul.mubr.f32.gmra.mrb[0].mxu0 %v3463
    %v3465 = vpop.f32.mrb[0].mxu0
    %v3466 = vadd.f32 %v3126, %v3465
    %v3467 = vpop.f32.mrb[0].mxu0
    %v3468 = vadd.f32 %v3128, %v3467
    %3469 = vmatprep.mubr.f32.mxu0 0.0
    %v3470 = vand.u32 %v170, 4294901760
    %v3471 = vsub.f32 %v170, %v3470
    %v3472 = vand.u32 %v3471, 4294901760
    %3473 = vmatmul.mubr.f32.gmra.mrb[0].mxu0 %v3472
    %v3474 = vpop.f32.mrb[0].mxu0
    %v3475 = vadd.f32 %v3134, %v3474
    %v3476 = vpop.f32.mrb[0].mxu0
    %v3477 = vadd.f32 %v3136, %v3476
    %3478 = vmatprep.mubr.f32.mxu0 0.0
    %v3479 = vand.u32 %v173, 4294901760
    %v3480 = vsub.f32 %v173, %v3479
    %v3481 = vand.u32 %v3480, 4294901760
    %3482 = vmatmul.mubr.f32.gmra.mrb[0].mxu0 %v3481
    %v3483 = vpop.f32.mrb[0].mxu0
    %v3484 = vadd.f32 %v3142, %v3483
    %v3485 = vpop.f32.mrb[0].mxu0
    %v3486 = vadd.f32 %v3144, %v3485
    %3487 = vmatprep.mubr.f32.mxu0 0.0
    %v3488 = vand.u32 %v176, 4294901760
    %v3489 = vsub.f32 %v176, %v3488
    %v3490 = vand.u32 %v3489, 4294901760
    %3491 = vmatmul.mubr.f32.gmra.mrb[0].mxu0 %v3490
    %v3492 = vpop.f32.mrb[0].mxu0
    %v3493 = vadd.f32 %v3150, %v3492
    %v3494 = vpop.f32.mrb[0].mxu0
    %v3495 = vadd.f32 %v3152, %v3494
    %3496 = vmatprep.mubr.f32.mxu0 0.0
    %v3497 = vand.u32 %v179, 4294901760
    %v3498 = vsub.f32 %v179, %v3497
    %v3499 = vand.u32 %v3498, 4294901760
    %3500 = vmatmul.mubr.f32.gmra.mrb[0].mxu0 %v3499
    %v3501 = vpop.f32.mrb[0].mxu0
    %v3502 = vadd.f32 %v3158, %v3501
    %v3503 = vpop.f32.mrb[0].mxu0
    %v3504 = vadd.f32 %v3160, %v3503
    %3505 = vmatprep.mubr.f32.mxu0 0.0
    %v3506 = vand.u32 %v182, 4294901760
    %v3507 = vsub.f32 %v182, %v3506
    %v3508 = vand.u32 %v3507, 4294901760
    %3509 = vmatmul.mubr.f32.gmra.mrb[0].mxu0 %v3508
    %v3510 = vpop.f32.mrb[0].mxu0
    %v3511 = vadd.f32 %v3166, %v3510
    %v3512 = vpop.f32.mrb[0].mxu0
    %v3513 = vadd.f32 %v3168, %v3512
    %3514 = vmatprep.mubr.f32.mxu0 0.0
    %v3515 = vand.u32 %v185, 4294901760
    %v3516 = vsub.f32 %v185, %v3515
    %v3517 = vand.u32 %v3516, 4294901760
    %3518 = vmatmul.mubr.f32.gmra.mrb[0].mxu0 %v3517
    %v3519 = vpop.f32.mrb[0].mxu0
    %v3520 = vadd.f32 %v3174, %v3519
    %v3521 = vpop.f32.mrb[0].mxu0
    %v3522 = vadd.f32 %v3176, %v3521
    %3523 = vmatprep.mubr.f32.mxu0 0.0
    %v3524 = vand.u32 %v188, 4294901760
    %v3525 = vsub.f32 %v188, %v3524
    %v3526 = vand.u32 %v3525, 4294901760
    %3527 = vmatmul.mubr.f32.gmra.mrb[0].mxu0 %v3526
    %v3528 = vpop.f32.mrb[0].mxu0
    %v3529 = vadd.f32 %v3182, %v3528
    %v3530 = vpop.f32.mrb[0].mxu0
    %v3531 = vadd.f32 %v3184, %v3530
    %3532 = vmatprep.mubr.f32.mxu0 0.0
    %v3533 = vand.u32 %v191, 4294901760
    %v3534 = vsub.f32 %v191, %v3533
    %v3535 = vand.u32 %v3534, 4294901760
    %3536 = vmatmul.mubr.f32.gmra.mrb[0].mxu0 %v3535
    %v3537 = vpop.f32.mrb[0].mxu0
    %v3538 = vadd.f32 %v3190, %v3537
    %v3539 = vpop.f32.mrb[0].mxu0
    %v3540 = vadd.f32 %v3192, %v3539
    %3541 = vmatprep.mubr.f32.mxu0 0.0
    %v3542 = vand.u32 %v194, 4294901760
    %v3543 = vsub.f32 %v194, %v3542
    %v3544 = vand.u32 %v3543, 4294901760
    %3545 = vmatmul.mubr.f32.gmra.mrb[0].mxu0 %v3544
    %v3546 = vpop.f32.mrb[0].mxu0
    %v3547 = vadd.f32 %v3198, %v3546
    %v3548 = vpop.f32.mrb[0].mxu0
    %v3549 = vadd.f32 %v3200, %v3548
    %3550 = vmatprep.mubr.f32.mxu0 0.0
    %v3551 = vand.u32 %v197, 4294901760
    %v3552 = vsub.f32 %v197, %v3551
    %v3553 = vand.u32 %v3552, 4294901760
    %3554 = vmatmul.mubr.f32.gmra.mrb[0].mxu0 %v3553
    %v3555 = vpop.f32.mrb[0].mxu0
    %v3556 = vadd.f32 %v3206, %v3555
    %v3557 = vpop.f32.mrb[0].mxu0
    %v3558 = vadd.f32 %v3208, %v3557
    %3559 = vmatprep.mubr.f32.mxu0 0.0
    %v3560 = vand.u32 %v200, 4294901760
    %v3561 = vsub.f32 %v200, %v3560
    %v3562 = vand.u32 %v3561, 4294901760
    %3563 = vmatmul.mubr.f32.gmra.mrb[0].mxu0 %v3562
    %v3564 = vpop.f32.mrb[0].mxu0
    %v3565 = vadd.f32 %v3214, %v3564
    %v3566 = vpop.f32.mrb[0].mxu0
    %v3567 = vadd.f32 %v3216, %v3566
    %3568 = vmatprep.mubr.f32.mxu0 0.0
    %v3569 = vand.u32 %v203, 4294901760
    %v3570 = vsub.f32 %v203, %v3569
    %v3571 = vand.u32 %v3570, 4294901760
    %3572 = vmatmul.mubr.f32.gmra.mrb[0].mxu0 %v3571
    %v3573 = vpop.f32.mrb[0].mxu0
    %v3574 = vadd.f32 %v3222, %v3573
    %v3575 = vpop.f32.mrb[0].mxu0
    %v3576 = vadd.f32 %v3224, %v3575
    %3577 = vmatprep.mubr.f32.mxu0 0.0
    %v3578 = vand.u32 %v206, 4294901760
    %v3579 = vsub.f32 %v206, %v3578
    %v3580 = vand.u32 %v3579, 4294901760
    %3581 = vmatmul.mubr.f32.gmra.mrb[0].mxu0 %v3580
    %v3582 = vpop.f32.mrb[0].mxu0
    %v3583 = vadd.f32 %v3230, %v3582
    %v3584 = vpop.f32.mrb[0].mxu0
    %v3585 = vadd.f32 %v3232, %v3584
    %3586 = vmatprep.mubr.f32.mxu0 0.0
    %v3587 = vand.u32 %v209, 4294901760
    %v3588 = vsub.f32 %v209, %v3587
    %v3589 = vand.u32 %v3588, 4294901760
    %3590 = vmatmul.mubr.f32.gmra.mrb[0].mxu0 %v3589
    %v3591 = vpop.f32.mrb[0].mxu0
    %v3592 = vadd.f32 %v3238, %v3591
    %v3593 = vpop.f32.mrb[0].mxu0
    %v3594 = vadd.f32 %v3240, %v3593
    %3595 = vmatprep.mubr.f32.mxu0 0.0
    %v3596 = vand.u32 %v212, 4294901760
    %v3597 = vsub.f32 %v212, %v3596
    %v3598 = vand.u32 %v3597, 4294901760
    %3599 = vmatmul.mubr.f32.gmra.mrb[0].mxu0 %v3598
    %v3600 = vpop.f32.mrb[0].mxu0
    %v3601 = vadd.f32 %v3246, %v3600
    %v3602 = vpop.f32.mrb[0].mxu0
    %v3603 = vadd.f32 %v3248, %v3602
    %3604 = vdwg.mxu0
    %v3605 = vand.u32 %v221, 4294901760
    %v3606 = vsub.f32 %v221, %v3605
    %v3607 = vand.u32 %v3606, 4294901760
    %3608 = vmatprep.subr.mxu0 %v3607
    %v3609 = vand.u32 %v219, 4294901760
    %v3610 = vsub.f32 %v219, %v3609
    %v3611 = vand.u32 %v3610, 4294901760
    %3612 = vmatpush1.msra.mxu0 %v3611
    %3613 = vmatprep.subr.mxu0 0.0
    %3614 = vmatpush1.msra.mxu0 0.0
    %3615 = vmatprep.subr.mxu0 0.0
    %3616 = vmatpush1.msra.mxu0 0.0
    %3617 = vmatprep.subr.mxu0 0.0
    %3618 = vmatpush1.msra.mxu0 0.0
    %3619 = vmatprep.subr.mxu0 0.0
    %3620 = vmatpush1.msra.mxu0 0.0
    %3621 = vmatprep.subr.mxu0 0.0
    %3622 = vmatpush1.msra.mxu0 0.0
    %3623 = vmatprep.subr.mxu0 0.0
    %3624 = vmatpush1.msra.mxu0 0.0
    %3625 = vmatprep.subr.mxu0 0.0
    %3626 = vmatpush1.msra.mxu0 0.0
    %3627 = vmatprep.subr.mxu0 0.0
    %3628 = vmatpush1.msra.mxu0 0.0
    %3629 = vmatprep.subr.mxu0 0.0
    %3630 = vmatpush1.msra.mxu0 0.0
    %3631 = vmatprep.subr.mxu0 0.0
    %3632 = vmatpush1.msra.mxu0 0.0
    %3633 = vmatprep.subr.mxu0 0.0
    %3634 = vmatpush1.msra.mxu0 0.0
    %3635 = vmatprep.subr.mxu0 0.0
    %3636 = vmatpush1.msra.mxu0 0.0
    %3637 = vmatprep.subr.mxu0 0.0
    %3638 = vmatpush1.msra.mxu0 0.0
    %3639 = vmatprep.subr.mxu0 0.0
    %3640 = vmatpush1.msra.mxu0 0.0
    %3641 = vmatprep.subr.mxu0 0.0
    %3642 = vmatpush1.msra.mxu0 0.0
    %3643 = vmatprep.subr.mxu0 0.0
    %3644 = vmatpush1.msra.mxu0 0.0
    %3645 = vmatprep.subr.mxu0 0.0
    %3646 = vmatpush1.msra.mxu0 0.0
    %3647 = vmatprep.subr.mxu0 0.0
    %3648 = vmatpush1.msra.mxu0 0.0
    %3649 = vmatprep.subr.mxu0 0.0
    %3650 = vmatpush1.msra.mxu0 0.0
    %3651 = vmatprep.subr.mxu0 0.0
    %3652 = vmatpush1.msra.mxu0 0.0
    %3653 = vmatprep.subr.mxu0 0.0
    %3654 = vmatpush1.msra.mxu0 0.0
    %3655 = vmatprep.subr.mxu0 0.0
    %3656 = vmatpush1.msra.mxu0 0.0
    %3657 = vmatprep.subr.mxu0 0.0
    %3658 = vmatpush1.msra.mxu0 0.0
    %3659 = vmatprep.subr.mxu0 0.0
    %3660 = vmatpush1.msra.mxu0 0.0
    %3661 = vmatprep.subr.mxu0 0.0
    %3662 = vmatpush1.msra.mxu0 0.0
    %3663 = vmatprep.subr.mxu0 0.0
    %3664 = vmatpush1.msra.mxu0 0.0
    %3665 = vmatprep.subr.mxu0 0.0
    %3666 = vmatpush1.msra.mxu0 0.0
    %3667 = vmatprep.subr.mxu0 0.0
    %3668 = vmatpush1.msra.mxu0 0.0
    %3669 = vmatprep.subr.mxu0 0.0
    %3670 = vmatpush1.msra.mxu0 0.0
    %3671 = vmatprep.subr.mxu0 0.0
    %3672 = vmatpush1.msra.mxu0 0.0
    %3673 = vmatprep.subr.mxu0 0.0
    %3674 = vmatpush1.msra.mxu0 0.0
    %3675 = vmatprep.mubr.f32.mxu0 0.0
    %v3676 = vand.u32 %v119, 4294901760
    %3677 = vmatmul.mubr.f32.gmra.mrb[0].mxu0 %v3676
    %v3678 = vpop.f32.mrb[0].mxu0
    %v3679 = vadd.f32 %v3322, %v3678
    %v3680 = vpop.f32.mrb[0].mxu0
    %v3681 = vadd.f32 %v3324, %v3680
    %3682 = vmatprep.mubr.f32.mxu0 0.0
    %v3683 = vand.u32 %v122, 4294901760
    %3684 = vmatmul.mubr.f32.gmra.mrb[0].mxu0 %v3683
    %v3685 = vpop.f32.mrb[0].mxu0
    %v3686 = vadd.f32 %v3331, %v3685
    %v3687 = vpop.f32.mrb[0].mxu0
    %v3688 = vadd.f32 %v3333, %v3687
    %3689 = vmatprep.mubr.f32.mxu0 0.0
    %v3690 = vand.u32 %v125, 4294901760
    %3691 = vmatmul.mubr.f32.gmra.mrb[0].mxu0 %v3690
    %v3692 = vpop.f32.mrb[0].mxu0
    %v3693 = vadd.f32 %v3340, %v3692
    %v3694 = vpop.f32.mrb[0].mxu0
    %v3695 = vadd.f32 %v3342, %v3694
    %3696 = vmatprep.mubr.f32.mxu0 0.0
    %v3697 = vand.u32 %v128, 4294901760
    %3698 = vmatmul.mubr.f32.gmra.mrb[0].mxu0 %v3697
    %v3699 = vpop.f32.mrb[0].mxu0
    %v3700 = vadd.f32 %v3349, %v3699
    %v3701 = vpop.f32.mrb[0].mxu0
    %v3702 = vadd.f32 %v3351, %v3701
    %3703 = vmatprep.mubr.f32.mxu0 0.0
    %v3704 = vand.u32 %v131, 4294901760
    %3705 = vmatmul.mubr.f32.gmra.mrb[0].mxu0 %v3704
    %v3706 = vpop.f32.mrb[0].mxu0
    %v3707 = vadd.f32 %v3358, %v3706
    %v3708 = vpop.f32.mrb[0].mxu0
    %v3709 = vadd.f32 %v3360, %v3708
    %3710 = vmatprep.mubr.f32.mxu0 0.0
    %v3711 = vand.u32 %v134, 4294901760
    %3712 = vmatmul.mubr.f32.gmra.mrb[0].mxu0 %v3711
    %v3713 = vpop.f32.mrb[0].mxu0
    %v3714 = vadd.f32 %v3367, %v3713
    %v3715 = vpop.f32.mrb[0].mxu0
    %v3716 = vadd.f32 %v3369, %v3715
    %3717 = vmatprep.mubr.f32.mxu0 0.0
    %v3718 = vand.u32 %v137, 4294901760
    %3719 = vmatmul.mubr.f32.gmra.mrb[0].mxu0 %v3718
    %v3720 = vpop.f32.mrb[0].mxu0
    %v3721 = vadd.f32 %v3376, %v3720
    %v3722 = vpop.f32.mrb[0].mxu0
    %v3723 = vadd.f32 %v3378, %v3722
    %3724 = vmatprep.mubr.f32.mxu0 0.0
    %v3725 = vand.u32 %v140, 4294901760
    %3726 = vmatmul.mubr.f32.gmra.mrb[0].mxu0 %v3725
    %v3727 = vpop.f32.mrb[0].mxu0
    %v3728 = vadd.f32 %v3385, %v3727
    %v3729 = vpop.f32.mrb[0].mxu0
    %v3730 = vadd.f32 %v3387, %v3729
    %3731 = vmatprep.mubr.f32.mxu0 0.0
    %v3732 = vand.u32 %v143, 4294901760
    %3733 = vmatmul.mubr.f32.gmra.mrb[0].mxu0 %v3732
    %v3734 = vpop.f32.mrb[0].mxu0
    %v3735 = vadd.f32 %v3394, %v3734
    %v3736 = vpop.f32.mrb[0].mxu0
    %v3737 = vadd.f32 %v3396, %v3736
    %3738 = vmatprep.mubr.f32.mxu0 0.0
    %v3739 = vand.u32 %v146, 4294901760
    %3740 = vmatmul.mubr.f32.gmra.mrb[0].mxu0 %v3739
    %v3741 = vpop.f32.mrb[0].mxu0
    %v3742 = vadd.f32 %v3403, %v3741
    %v3743 = vpop.f32.mrb[0].mxu0
    %v3744 = vadd.f32 %v3405, %v3743
    %3745 = vmatprep.mubr.f32.mxu0 0.0
    %v3746 = vand.u32 %v149, 4294901760
    %3747 = vmatmul.mubr.f32.gmra.mrb[0].mxu0 %v3746
    %v3748 = vpop.f32.mrb[0].mxu0
    %v3749 = vadd.f32 %v3412, %v3748
    %v3750 = vpop.f32.mrb[0].mxu0
    %v3751 = vadd.f32 %v3414, %v3750
    %3752 = vmatprep.mubr.f32.mxu0 0.0
    %v3753 = vand.u32 %v152, 4294901760
    %3754 = vmatmul.mubr.f32.gmra.mrb[0].mxu0 %v3753
    %v3755 = vpop.f32.mrb[0].mxu0
    %v3756 = vadd.f32 %v3421, %v3755
    %v3757 = vpop.f32.mrb[0].mxu0
    %v3758 = vadd.f32 %v3423, %v3757
    %3759 = vmatprep.mubr.f32.mxu0 0.0
    %v3760 = vand.u32 %v155, 4294901760
    %3761 = vmatmul.mubr.f32.gmra.mrb[0].mxu0 %v3760
    %v3762 = vpop.f32.mrb[0].mxu0
    %v3763 = vadd.f32 %v3430, %v3762
    %v3764 = vpop.f32.mrb[0].mxu0
    %v3765 = vadd.f32 %v3432, %v3764
    %3766 = vmatprep.mubr.f32.mxu0 0.0
    %v3767 = vand.u32 %v158, 4294901760
    %3768 = vmatmul.mubr.f32.gmra.mrb[0].mxu0 %v3767
    %v3769 = vpop.f32.mrb[0].mxu0
    %v3770 = vadd.f32 %v3439, %v3769
    %v3771 = vpop.f32.mrb[0].mxu0
    %v3772 = vadd.f32 %v3441, %v3771
    %3773 = vmatprep.mubr.f32.mxu0 0.0
    %v3774 = vand.u32 %v161, 4294901760
    %3775 = vmatmul.mubr.f32.gmra.mrb[0].mxu0 %v3774
    %v3776 = vpop.f32.mrb[0].mxu0
    %v3777 = vadd.f32 %v3448, %v3776
    %v3778 = vpop.f32.mrb[0].mxu0
    %v3779 = vadd.f32 %v3450, %v3778
    %3780 = vmatprep.mubr.f32.mxu0 0.0
    %v3781 = vand.u32 %v164, 4294901760
    %3782 = vmatmul.mubr.f32.gmra.mrb[0].mxu0 %v3781
    %v3783 = vpop.f32.mrb[0].mxu0
    %v3784 = vadd.f32 %v3457, %v3783
    %v3785 = vpop.f32.mrb[0].mxu0
    %v3786 = vadd.f32 %v3459, %v3785
    %3787 = vmatprep.mubr.f32.mxu0 0.0
    %v3788 = vand.u32 %v167, 4294901760
    %3789 = vmatmul.mubr.f32.gmra.mrb[0].mxu0 %v3788
    %v3790 = vpop.f32.mrb[0].mxu0
    %v3791 = vadd.f32 %v3466, %v3790
    %v3792 = vpop.f32.mrb[0].mxu0
    %v3793 = vadd.f32 %v3468, %v3792
    %3794 = vmatprep.mubr.f32.mxu0 0.0
    %v3795 = vand.u32 %v170, 4294901760
    %3796 = vmatmul.mubr.f32.gmra.mrb[0].mxu0 %v3795
    %v3797 = vpop.f32.mrb[0].mxu0
    %v3798 = vadd.f32 %v3475, %v3797
    %v3799 = vpop.f32.mrb[0].mxu0
    %v3800 = vadd.f32 %v3477, %v3799
    %3801 = vmatprep.mubr.f32.mxu0 0.0
    %v3802 = vand.u32 %v173, 4294901760
    %3803 = vmatmul.mubr.f32.gmra.mrb[0].mxu0 %v3802
    %v3804 = vpop.f32.mrb[0].mxu0
    %v3805 = vadd.f32 %v3484, %v3804
    %v3806 = vpop.f32.mrb[0].mxu0
    %v3807 = vadd.f32 %v3486, %v3806
    %3808 = vmatprep.mubr.f32.mxu0 0.0
    %v3809 = vand.u32 %v176, 4294901760
    %3810 = vmatmul.mubr.f32.gmra.mrb[0].mxu0 %v3809
    %v3811 = vpop.f32.mrb[0].mxu0
    %v3812 = vadd.f32 %v3493, %v3811
    %v3813 = vpop.f32.mrb[0].mxu0
    %v3814 = vadd.f32 %v3495, %v3813
    %3815 = vmatprep.mubr.f32.mxu0 0.0
    %v3816 = vand.u32 %v179, 4294901760
    %3817 = vmatmul.mubr.f32.gmra.mrb[0].mxu0 %v3816
    %v3818 = vpop.f32.mrb[0].mxu0
    %v3819 = vadd.f32 %v3502, %v3818
    %v3820 = vpop.f32.mrb[0].mxu0
    %v3821 = vadd.f32 %v3504, %v3820
    %3822 = vmatprep.mubr.f32.mxu0 0.0
    %v3823 = vand.u32 %v182, 4294901760
    %3824 = vmatmul.mubr.f32.gmra.mrb[0].mxu0 %v3823
    %v3825 = vpop.f32.mrb[0].mxu0
    %v3826 = vadd.f32 %v3511, %v3825
    %v3827 = vpop.f32.mrb[0].mxu0
    %v3828 = vadd.f32 %v3513, %v3827
    %3829 = vmatprep.mubr.f32.mxu0 0.0
    %v3830 = vand.u32 %v185, 4294901760
    %3831 = vmatmul.mubr.f32.gmra.mrb[0].mxu0 %v3830
    %v3832 = vpop.f32.mrb[0].mxu0
    %v3833 = vadd.f32 %v3520, %v3832
    %v3834 = vpop.f32.mrb[0].mxu0
    %v3835 = vadd.f32 %v3522, %v3834
    %3836 = vmatprep.mubr.f32.mxu0 0.0
    %v3837 = vand.u32 %v188, 4294901760
    %3838 = vmatmul.mubr.f32.gmra.mrb[0].mxu0 %v3837
    %v3839 = vpop.f32.mrb[0].mxu0
    %v3840 = vadd.f32 %v3529, %v3839
    %v3841 = vpop.f32.mrb[0].mxu0
    %v3842 = vadd.f32 %v3531, %v3841
    %3843 = vmatprep.mubr.f32.mxu0 0.0
    %v3844 = vand.u32 %v191, 4294901760
    %3845 = vmatmul.mubr.f32.gmra.mrb[0].mxu0 %v3844
    %v3846 = vpop.f32.mrb[0].mxu0
    %v3847 = vadd.f32 %v3538, %v3846
    %v3848 = vpop.f32.mrb[0].mxu0
    %v3849 = vadd.f32 %v3540, %v3848
    %3850 = vmatprep.mubr.f32.mxu0 0.0
    %v3851 = vand.u32 %v194, 4294901760
    %3852 = vmatmul.mubr.f32.gmra.mrb[0].mxu0 %v3851
    %v3853 = vpop.f32.mrb[0].mxu0
    %v3854 = vadd.f32 %v3547, %v3853
    %v3855 = vpop.f32.mrb[0].mxu0
    %v3856 = vadd.f32 %v3549, %v3855
    %3857 = vmatprep.mubr.f32.mxu0 0.0
    %v3858 = vand.u32 %v197, 4294901760
    %3859 = vmatmul.mubr.f32.gmra.mrb[0].mxu0 %v3858
    %v3860 = vpop.f32.mrb[0].mxu0
    %v3861 = vadd.f32 %v3556, %v3860
    %v3862 = vpop.f32.mrb[0].mxu0
    %v3863 = vadd.f32 %v3558, %v3862
    %3864 = vmatprep.mubr.f32.mxu0 0.0
    %v3865 = vand.u32 %v200, 4294901760
    %3866 = vmatmul.mubr.f32.gmra.mrb[0].mxu0 %v3865
    %v3867 = vpop.f32.mrb[0].mxu0
    %v3868 = vadd.f32 %v3565, %v3867
    %v3869 = vpop.f32.mrb[0].mxu0
    %v3870 = vadd.f32 %v3567, %v3869
    %3871 = vmatprep.mubr.f32.mxu0 0.0
    %v3872 = vand.u32 %v203, 4294901760
    %3873 = vmatmul.mubr.f32.gmra.mrb[0].mxu0 %v3872
    %v3874 = vpop.f32.mrb[0].mxu0
    %v3875 = vadd.f32 %v3574, %v3874
    %v3876 = vpop.f32.mrb[0].mxu0
    %v3877 = vadd.f32 %v3576, %v3876
    %3878 = vmatprep.mubr.f32.mxu0 0.0
    %v3879 = vand.u32 %v206, 4294901760
    %3880 = vmatmul.mubr.f32.gmra.mrb[0].mxu0 %v3879
    %v3881 = vpop.f32.mrb[0].mxu0
    %v3882 = vadd.f32 %v3583, %v3881
    %v3883 = vpop.f32.mrb[0].mxu0
    %v3884 = vadd.f32 %v3585, %v3883
    %3885 = vmatprep.mubr.f32.mxu0 0.0
    %v3886 = vand.u32 %v209, 4294901760
    %3887 = vmatmul.mubr.f32.gmra.mrb[0].mxu0 %v3886
    %v3888 = vpop.f32.mrb[0].mxu0
    %v3889 = vadd.f32 %v3592, %v3888
    %v3890 = vpop.f32.mrb[0].mxu0
    %v3891 = vadd.f32 %v3594, %v3890
    %3892 = vmatprep.mubr.f32.mxu0 0.0
    %v3893 = vand.u32 %v212, 4294901760
    %3894 = vmatmul.mubr.f32.gmra.mrb[0].mxu0 %v3893
    %v3895 = vpop.f32.mrb[0].mxu0
    %v3896 = vadd.f32 %v3601, %v3895
    %v3897 = vpop.f32.mrb[0].mxu0
    %v3898 = vadd.f32 %v3603, %v3897
    %3899 = vdwg.mxu0
    %v3900 = vand.u32 %v221, 4294901760
    %3901 = vmatprep.subr.mxu0 %v3900
    %v3902 = vand.u32 %v219, 4294901760
    %3903 = vmatpush1.msra.mxu0 %v3902
    %3904 = vmatprep.subr.mxu0 0.0
    %3905 = vmatpush1.msra.mxu0 0.0
    %3906 = vmatprep.subr.mxu0 0.0
    %3907 = vmatpush1.msra.mxu0 0.0
    %3908 = vmatprep.subr.mxu0 0.0
    %3909 = vmatpush1.msra.mxu0 0.0
    %3910 = vmatprep.subr.mxu0 0.0
    %3911 = vmatpush1.msra.mxu0 0.0
    %3912 = vmatprep.subr.mxu0 0.0
    %3913 = vmatpush1.msra.mxu0 0.0
    %3914 = vmatprep.subr.mxu0 0.0
    %3915 = vmatpush1.msra.mxu0 0.0
    %3916 = vmatprep.subr.mxu0 0.0
    %3917 = vmatpush1.msra.mxu0 0.0
    %3918 = vmatprep.subr.mxu0 0.0
    %3919 = vmatpush1.msra.mxu0 0.0
    %3920 = vmatprep.subr.mxu0 0.0
    %3921 = vmatpush1.msra.mxu0 0.0
    %3922 = vmatprep.subr.mxu0 0.0
    %3923 = vmatpush1.msra.mxu0 0.0
    %3924 = vmatprep.subr.mxu0 0.0
    %3925 = vmatpush1.msra.mxu0 0.0
    %3926 = vmatprep.subr.mxu0 0.0
    %3927 = vmatpush1.msra.mxu0 0.0
    %3928 = vmatprep.subr.mxu0 0.0
    %3929 = vmatpush1.msra.mxu0 0.0
    %3930 = vmatprep.subr.mxu0 0.0
    %3931 = vmatpush1.msra.mxu0 0.0
    %3932 = vmatprep.subr.mxu0 0.0
    %3933 = vmatpush1.msra.mxu0 0.0
    %3934 = vmatprep.subr.mxu0 0.0
    %3935 = vmatpush1.msra.mxu0 0.0
    %3936 = vmatprep.subr.mxu0 0.0
    %3937 = vmatpush1.msra.mxu0 0.0
    %3938 = vmatprep.subr.mxu0 0.0
    %3939 = vmatpush1.msra.mxu0 0.0
    %3940 = vmatprep.subr.mxu0 0.0
    %3941 = vmatpush1.msra.mxu0 0.0
    %3942 = vmatprep.subr.mxu0 0.0
    %3943 = vmatpush1.msra.mxu0 0.0
    %3944 = vmatprep.subr.mxu0 0.0
    %3945 = vmatpush1.msra.mxu0 0.0
    %3946 = vmatprep.subr.mxu0 0.0
    %3947 = vmatpush1.msra.mxu0 0.0
    %3948 = vmatprep.subr.mxu0 0.0
    %3949 = vmatpush1.msra.mxu0 0.0
    %3950 = vmatprep.subr.mxu0 0.0
    %3951 = vmatpush1.msra.mxu0 0.0
    %3952 = vmatprep.subr.mxu0 0.0
    %3953 = vmatpush1.msra.mxu0 0.0
    %3954 = vmatprep.subr.mxu0 0.0
    %3955 = vmatpush1.msra.mxu0 0.0
    %3956 = vmatprep.subr.mxu0 0.0
    %3957 = vmatpush1.msra.mxu0 0.0
    %3958 = vmatprep.subr.mxu0 0.0
    %3959 = vmatpush1.msra.mxu0 0.0
    %3960 = vmatprep.subr.mxu0 0.0
    %3961 = vmatpush1.msra.mxu0 0.0
    %3962 = vmatprep.subr.mxu0 0.0
    %3963 = vmatpush1.msra.mxu0 0.0
    %3964 = vmatprep.subr.mxu0 0.0
    %3965 = vmatpush1.msra.mxu0 0.0
    %3966 = vmatprep.mubr.f32.mxu0 0.0
    %v3967 = vand.u32 %v119, 4294901760
    %3968 = vmatmul.mubr.f32.gmra.mrb[0].mxu0 %v3967
    %v3969 = vpop.f32.mrb[0].mxu0
    %v3970 = vadd.f32 %v3679, %v3969
    %v3971 = vpop.f32.mrb[0].mxu0
    %v3972 = vadd.f32 %v3681, %v3971
    %3973 = vmatprep.mubr.f32.mxu0 0.0
    %v3974 = vand.u32 %v122, 4294901760
    %3975 = vmatmul.mubr.f32.gmra.mrb[0].mxu0 %v3974
    %v3976 = vpop.f32.mrb[0].mxu0
    %v3977 = vadd.f32 %v3686, %v3976
    %v3978 = vpop.f32.mrb[0].mxu0
    %v3979 = vadd.f32 %v3688, %v3978
    %3980 = vmatprep.mubr.f32.mxu0 0.0
    %v3981 = vand.u32 %v125, 4294901760
    %3982 = vmatmul.mubr.f32.gmra.mrb[0].mxu0 %v3981
    %v3983 = vpop.f32.mrb[0].mxu0
    %v3984 = vadd.f32 %v3693, %v3983
    %v3985 = vpop.f32.mrb[0].mxu0
    %v3986 = vadd.f32 %v3695, %v3985
    %3987 = vmatprep.mubr.f32.mxu0 0.0
    %v3988 = vand.u32 %v128, 4294901760
    %3989 = vmatmul.mubr.f32.gmra.mrb[0].mxu0 %v3988
    %v3990 = vpop.f32.mrb[0].mxu0
    %v3991 = vadd.f32 %v3700, %v3990
    %v3992 = vpop.f32.mrb[0].mxu0
    %v3993 = vadd.f32 %v3702, %v3992
    %3994 = vmatprep.mubr.f32.mxu0 0.0
    %v3995 = vand.u32 %v131, 4294901760
    %3996 = vmatmul.mubr.f32.gmra.mrb[0].mxu0 %v3995
    %v3997 = vpop.f32.mrb[0].mxu0
    %v3998 = vadd.f32 %v3707, %v3997
    %v3999 = vpop.f32.mrb[0].mxu0
    %v4000 = vadd.f32 %v3709, %v3999
    %4001 = vmatprep.mubr.f32.mxu0 0.0
    %v4002 = vand.u32 %v134, 4294901760
    %4003 = vmatmul.mubr.f32.gmra.mrb[0].mxu0 %v4002
    %v4004 = vpop.f32.mrb[0].mxu0
    %v4005 = vadd.f32 %v3714, %v4004
    %v4006 = vpop.f32.mrb[0].mxu0
    %v4007 = vadd.f32 %v3716, %v4006
    %4008 = vmatprep.mubr.f32.mxu0 0.0
    %v4009 = vand.u32 %v137, 4294901760
    %4010 = vmatmul.mubr.f32.gmra.mrb[0].mxu0 %v4009
    %v4011 = vpop.f32.mrb[0].mxu0
    %v4012 = vadd.f32 %v3721, %v4011
    %v4013 = vpop.f32.mrb[0].mxu0
    %v4014 = vadd.f32 %v3723, %v4013
    %4015 = vmatprep.mubr.f32.mxu0 0.0
    %v4016 = vand.u32 %v140, 4294901760
    %4017 = vmatmul.mubr.f32.gmra.mrb[0].mxu0 %v4016
    %v4018 = vpop.f32.mrb[0].mxu0
    %v4019 = vadd.f32 %v3728, %v4018
    %v4020 = vpop.f32.mrb[0].mxu0
    %v4021 = vadd.f32 %v3730, %v4020
    %4022 = vmatprep.mubr.f32.mxu0 0.0
    %v4023 = vand.u32 %v143, 4294901760
    %4024 = vmatmul.mubr.f32.gmra.mrb[0].mxu0 %v4023
    %v4025 = vpop.f32.mrb[0].mxu0
    %v4026 = vadd.f32 %v3735, %v4025
    %v4027 = vpop.f32.mrb[0].mxu0
    %v4028 = vadd.f32 %v3737, %v4027
    %4029 = vmatprep.mubr.f32.mxu0 0.0
    %v4030 = vand.u32 %v146, 4294901760
    %4031 = vmatmul.mubr.f32.gmra.mrb[0].mxu0 %v4030
    %v4032 = vpop.f32.mrb[0].mxu0
    %v4033 = vadd.f32 %v3742, %v4032
    %v4034 = vpop.f32.mrb[0].mxu0
    %v4035 = vadd.f32 %v3744, %v4034
    %4036 = vmatprep.mubr.f32.mxu0 0.0
    %v4037 = vand.u32 %v149, 4294901760
    %4038 = vmatmul.mubr.f32.gmra.mrb[0].mxu0 %v4037
    %v4039 = vpop.f32.mrb[0].mxu0
    %v4040 = vadd.f32 %v3749, %v4039
    %v4041 = vpop.f32.mrb[0].mxu0
    %v4042 = vadd.f32 %v3751, %v4041
    %4043 = vmatprep.mubr.f32.mxu0 0.0
    %v4044 = vand.u32 %v152, 4294901760
    %4045 = vmatmul.mubr.f32.gmra.mrb[0].mxu0 %v4044
    %v4046 = vpop.f32.mrb[0].mxu0
    %v4047 = vadd.f32 %v3756, %v4046
    %v4048 = vpop.f32.mrb[0].mxu0
    %v4049 = vadd.f32 %v3758, %v4048
    %4050 = vmatprep.mubr.f32.mxu0 0.0
    %v4051 = vand.u32 %v155, 4294901760
    %4052 = vmatmul.mubr.f32.gmra.mrb[0].mxu0 %v4051
    %v4053 = vpop.f32.mrb[0].mxu0
    %v4054 = vadd.f32 %v3763, %v4053
    %v4055 = vpop.f32.mrb[0].mxu0
    %v4056 = vadd.f32 %v3765, %v4055
    %4057 = vmatprep.mubr.f32.mxu0 0.0
    %v4058 = vand.u32 %v158, 4294901760
    %4059 = vmatmul.mubr.f32.gmra.mrb[0].mxu0 %v4058
    %v4060 = vpop.f32.mrb[0].mxu0
    %v4061 = vadd.f32 %v3770, %v4060
    %v4062 = vpop.f32.mrb[0].mxu0
    %v4063 = vadd.f32 %v3772, %v4062
    %4064 = vmatprep.mubr.f32.mxu0 0.0
    %v4065 = vand.u32 %v161, 4294901760
    %4066 = vmatmul.mubr.f32.gmra.mrb[0].mxu0 %v4065
    %v4067 = vpop.f32.mrb[0].mxu0
    %v4068 = vadd.f32 %v3777, %v4067
    %v4069 = vpop.f32.mrb[0].mxu0
    %v4070 = vadd.f32 %v3779, %v4069
    %4071 = vmatprep.mubr.f32.mxu0 0.0
    %v4072 = vand.u32 %v164, 4294901760
    %4073 = vmatmul.mubr.f32.gmra.mrb[0].mxu0 %v4072
    %v4074 = vpop.f32.mrb[0].mxu0
    %v4075 = vadd.f32 %v3784, %v4074
    %v4076 = vpop.f32.mrb[0].mxu0
    %v4077 = vadd.f32 %v3786, %v4076
    %4078 = vmatprep.mubr.f32.mxu0 0.0
    %v4079 = vand.u32 %v167, 4294901760
    %4080 = vmatmul.mubr.f32.gmra.mrb[0].mxu0 %v4079
    %v4081 = vpop.f32.mrb[0].mxu0
    %v4082 = vadd.f32 %v3791, %v4081
    %v4083 = vpop.f32.mrb[0].mxu0
    %v4084 = vadd.f32 %v3793, %v4083
    %4085 = vmatprep.mubr.f32.mxu0 0.0
    %v4086 = vand.u32 %v170, 4294901760
    %4087 = vmatmul.mubr.f32.gmra.mrb[0].mxu0 %v4086
    %v4088 = vpop.f32.mrb[0].mxu0
    %v4089 = vadd.f32 %v3798, %v4088
    %v4090 = vpop.f32.mrb[0].mxu0
    %v4091 = vadd.f32 %v3800, %v4090
    %4092 = vmatprep.mubr.f32.mxu0 0.0
    %v4093 = vand.u32 %v173, 4294901760
    %4094 = vmatmul.mubr.f32.gmra.mrb[0].mxu0 %v4093
    %v4095 = vpop.f32.mrb[0].mxu0
    %v4096 = vadd.f32 %v3805, %v4095
    %v4097 = vpop.f32.mrb[0].mxu0
    %v4098 = vadd.f32 %v3807, %v4097
    %4099 = vmatprep.mubr.f32.mxu0 0.0
    %v4100 = vand.u32 %v176, 4294901760
    %4101 = vmatmul.mubr.f32.gmra.mrb[0].mxu0 %v4100
    %v4102 = vpop.f32.mrb[0].mxu0
    %v4103 = vadd.f32 %v3812, %v4102
    %v4104 = vpop.f32.mrb[0].mxu0
    %v4105 = vadd.f32 %v3814, %v4104
    %4106 = vmatprep.mubr.f32.mxu0 0.0
    %v4107 = vand.u32 %v179, 4294901760
    %4108 = vmatmul.mubr.f32.gmra.mrb[0].mxu0 %v4107
    %v4109 = vpop.f32.mrb[0].mxu0
    %v4110 = vadd.f32 %v3819, %v4109
    %v4111 = vpop.f32.mrb[0].mxu0
    %v4112 = vadd.f32 %v3821, %v4111
    %4113 = vmatprep.mubr.f32.mxu0 0.0
    %v4114 = vand.u32 %v182, 4294901760
    %4115 = vmatmul.mubr.f32.gmra.mrb[0].mxu0 %v4114
    %v4116 = vpop.f32.mrb[0].mxu0
    %v4117 = vadd.f32 %v3826, %v4116
    %v4118 = vpop.f32.mrb[0].mxu0
    %v4119 = vadd.f32 %v3828, %v4118
    %4120 = vmatprep.mubr.f32.mxu0 0.0
    %v4121 = vand.u32 %v185, 4294901760
    %4122 = vmatmul.mubr.f32.gmra.mrb[0].mxu0 %v4121
    %v4123 = vpop.f32.mrb[0].mxu0
    %v4124 = vadd.f32 %v3833, %v4123
    %v4125 = vpop.f32.mrb[0].mxu0
    %v4126 = vadd.f32 %v3835, %v4125
    %4127 = vmatprep.mubr.f32.mxu0 0.0
    %v4128 = vand.u32 %v188, 4294901760
    %4129 = vmatmul.mubr.f32.gmra.mrb[0].mxu0 %v4128
    %v4130 = vpop.f32.mrb[0].mxu0
    %v4131 = vadd.f32 %v3840, %v4130
    %v4132 = vpop.f32.mrb[0].mxu0
    %v4133 = vadd.f32 %v3842, %v4132
    %4134 = vmatprep.mubr.f32.mxu0 0.0
    %v4135 = vand.u32 %v191, 4294901760
    %4136 = vmatmul.mubr.f32.gmra.mrb[0].mxu0 %v4135
    %v4137 = vpop.f32.mrb[0].mxu0
    %v4138 = vadd.f32 %v3847, %v4137
    %v4139 = vpop.f32.mrb[0].mxu0
    %v4140 = vadd.f32 %v3849, %v4139
    %4141 = vmatprep.mubr.f32.mxu0 0.0
    %v4142 = vand.u32 %v194, 4294901760
    %4143 = vmatmul.mubr.f32.gmra.mrb[0].mxu0 %v4142
    %v4144 = vpop.f32.mrb[0].mxu0
    %v4145 = vadd.f32 %v3854, %v4144
    %v4146 = vpop.f32.mrb[0].mxu0
    %v4147 = vadd.f32 %v3856, %v4146
    %4148 = vmatprep.mubr.f32.mxu0 0.0
    %v4149 = vand.u32 %v197, 4294901760
    %4150 = vmatmul.mubr.f32.gmra.mrb[0].mxu0 %v4149
    %v4151 = vpop.f32.mrb[0].mxu0
    %v4152 = vadd.f32 %v3861, %v4151
    %v4153 = vpop.f32.mrb[0].mxu0
    %v4154 = vadd.f32 %v3863, %v4153
    %4155 = vmatprep.mubr.f32.mxu0 0.0
    %v4156 = vand.u32 %v200, 4294901760
    %4157 = vmatmul.mubr.f32.gmra.mrb[0].mxu0 %v4156
    %v4158 = vpop.f32.mrb[0].mxu0
    %v4159 = vadd.f32 %v3868, %v4158
    %v4160 = vpop.f32.mrb[0].mxu0
    %v4161 = vadd.f32 %v3870, %v4160
    %4162 = vmatprep.mubr.f32.mxu0 0.0
    %v4163 = vand.u32 %v203, 4294901760
    %4164 = vmatmul.mubr.f32.gmra.mrb[0].mxu0 %v4163
    %v4165 = vpop.f32.mrb[0].mxu0
    %v4166 = vadd.f32 %v3875, %v4165
    %v4167 = vpop.f32.mrb[0].mxu0
    %v4168 = vadd.f32 %v3877, %v4167
    %4169 = vmatprep.mubr.f32.mxu0 0.0
    %v4170 = vand.u32 %v206, 4294901760
    %4171 = vmatmul.mubr.f32.gmra.mrb[0].mxu0 %v4170
    %v4172 = vpop.f32.mrb[0].mxu0
    %v4173 = vadd.f32 %v3882, %v4172
    %v4174 = vpop.f32.mrb[0].mxu0
    %v4175 = vadd.f32 %v3884, %v4174
    %4176 = vmatprep.mubr.f32.mxu0 0.0
    %v4177 = vand.u32 %v209, 4294901760
    %4178 = vmatmul.mubr.f32.gmra.mrb[0].mxu0 %v4177
    %v4179 = vpop.f32.mrb[0].mxu0
    %v4180 = vadd.f32 %v3889, %v4179
    %v4181 = vpop.f32.mrb[0].mxu0
    %v4182 = vadd.f32 %v3891, %v4181
    %4183 = vmatprep.mubr.f32.mxu0 0.0
    %v4184 = vand.u32 %v212, 4294901760
    %4185 = vmatmul.mubr.f32.gmra.mrb[0].mxu0 %v4184
    %v4186 = vpop.f32.mrb[0].mxu0
    %v4187 = vadd.f32 %v3896, %v4186
    %v4188 = vpop.f32.mrb[0].mxu0
    %v4189 = vadd.f32 %v3898, %v4188
    %4190 = vdwg.mxu0
    %v4191 = vmax.f32 %v1986, 0.0
    %v4192 = vmax.f32 %v1988, 0.0
    %v4193 = vmax.f32 %v3970, 0.0
    %v4194 = vmax.f32 %v3972, 0.0
    %v4195 = vmax.f32 %v1993, 0.0
    %v4196 = vmax.f32 %v1995, 0.0
    %v4197 = vmax.f32 %v3977, 0.0
    %v4198 = vmax.f32 %v3979, 0.0
    %v4199 = vmax.f32 %v2000, 0.0
    %v4200 = vmax.f32 %v2002, 0.0
    %v4201 = vmax.f32 %v3984, 0.0
    %v4202 = vmax.f32 %v3986, 0.0
    %v4203 = vmax.f32 %v2007, 0.0
    %v4204 = vmax.f32 %v2009, 0.0
    %v4205 = vmax.f32 %v3991, 0.0
    %v4206 = vmax.f32 %v3993, 0.0
    %v4207 = vmax.f32 %v2014, 0.0
    %v4208 = vmax.f32 %v2016, 0.0
    %v4209 = vmax.f32 %v3998, 0.0
    %v4210 = vmax.f32 %v4000, 0.0
    %v4211 = vmax.f32 %v2021, 0.0
    %v4212 = vmax.f32 %v2023, 0.0
    %v4213 = vmax.f32 %v4005, 0.0
    %v4214 = vmax.f32 %v4007, 0.0
    %v4215 = vmax.f32 %v2028, 0.0
    %v4216 = vmax.f32 %v2030, 0.0
    %v4217 = vmax.f32 %v4012, 0.0
    %v4218 = vmax.f32 %v4014, 0.0
    %v4219 = vmax.f32 %v2035, 0.0
    %v4220 = vmax.f32 %v2037, 0.0
    %v4221 = vmax.f32 %v4019, 0.0
    %v4222 = vmax.f32 %v4021, 0.0
    %v4223 = vmax.f32 %v2042, 0.0
    %v4224 = vmax.f32 %v2044, 0.0
    %v4225 = vmax.f32 %v4026, 0.0
    %v4226 = vmax.f32 %v4028, 0.0
    %v4227 = vmax.f32 %v2049, 0.0
    %v4228 = vmax.f32 %v2051, 0.0
    %v4229 = vmax.f32 %v4033, 0.0
    %v4230 = vmax.f32 %v4035, 0.0
    %v4231 = vmax.f32 %v2056, 0.0
    %v4232 = vmax.f32 %v2058, 0.0
    %v4233 = vmax.f32 %v4040, 0.0
    %v4234 = vmax.f32 %v4042, 0.0
    %v4235 = vmax.f32 %v2063, 0.0
    %v4236 = vmax.f32 %v2065, 0.0
    %v4237 = vmax.f32 %v4047, 0.0
    %v4238 = vmax.f32 %v4049, 0.0
    %v4239 = vmax.f32 %v2070, 0.0
    %v4240 = vmax.f32 %v2072, 0.0
    %v4241 = vmax.f32 %v4054, 0.0
    %v4242 = vmax.f32 %v4056, 0.0
    %v4243 = vmax.f32 %v2077, 0.0
    %v4244 = vmax.f32 %v2079, 0.0
    %v4245 = vmax.f32 %v4061, 0.0
    %v4246 = vmax.f32 %v4063, 0.0
    %v4247 = vmax.f32 %v2084, 0.0
    %v4248 = vmax.f32 %v2086, 0.0
    %v4249 = vmax.f32 %v4068, 0.0
    %v4250 = vmax.f32 %v4070, 0.0
    %v4251 = vmax.f32 %v2091, 0.0
    %v4252 = vmax.f32 %v2093, 0.0
    %v4253 = vmax.f32 %v4075, 0.0
    %v4254 = vmax.f32 %v4077, 0.0
    %v4255 = vmax.f32 %v2098, 0.0
    %v4256 = vmax.f32 %v2100, 0.0
    %v4257 = vmax.f32 %v4082, 0.0
    %v4258 = vmax.f32 %v4084, 0.0
    %v4259 = vmax.f32 %v2105, 0.0
    %v4260 = vmax.f32 %v2107, 0.0
    %v4261 = vmax.f32 %v4089, 0.0
    %v4262 = vmax.f32 %v4091, 0.0
    %v4263 = vmax.f32 %v2112, 0.0
    %v4264 = vmax.f32 %v2114, 0.0
    %v4265 = vmax.f32 %v4096, 0.0
    %v4266 = vmax.f32 %v4098, 0.0
    %v4267 = vmax.f32 %v2119, 0.0
    %v4268 = vmax.f32 %v2121, 0.0
    %v4269 = vmax.f32 %v4103, 0.0
    %v4270 = vmax.f32 %v4105, 0.0
    %v4271 = vmax.f32 %v2126, 0.0
    %v4272 = vmax.f32 %v2128, 0.0
    %v4273 = vmax.f32 %v4110, 0.0
    %v4274 = vmax.f32 %v4112, 0.0
    %v4275 = vmax.f32 %v2133, 0.0
    %v4276 = vmax.f32 %v2135, 0.0
    %v4277 = vmax.f32 %v4117, 0.0
    %v4278 = vmax.f32 %v4119, 0.0
    %v4279 = vmax.f32 %v2140, 0.0
    %v4280 = vmax.f32 %v2142, 0.0
    %v4281 = vmax.f32 %v4124, 0.0
    %v4282 = vmax.f32 %v4126, 0.0
    %v4283 = vmax.f32 %v2147, 0.0
    %v4284 = vmax.f32 %v2149, 0.0
    %v4285 = vmax.f32 %v4131, 0.0
    %v4286 = vmax.f32 %v4133, 0.0
    %v4287 = vmax.f32 %v2154, 0.0
    %v4288 = vmax.f32 %v2156, 0.0
    %v4289 = vmax.f32 %v4138, 0.0
    %v4290 = vmax.f32 %v4140, 0.0
    %v4291 = vmax.f32 %v2161, 0.0
    %v4292 = vmax.f32 %v2163, 0.0
    %v4293 = vmax.f32 %v4145, 0.0
    %v4294 = vmax.f32 %v4147, 0.0
    %v4295 = vmax.f32 %v2168, 0.0
    %v4296 = vmax.f32 %v2170, 0.0
    %v4297 = vmax.f32 %v4152, 0.0
    %v4298 = vmax.f32 %v4154, 0.0
    %v4299 = vmax.f32 %v2175, 0.0
    %v4300 = vmax.f32 %v2177, 0.0
    %v4301 = vmax.f32 %v4159, 0.0
    %v4302 = vmax.f32 %v4161, 0.0
    %v4303 = vmax.f32 %v2182, 0.0
    %v4304 = vmax.f32 %v2184, 0.0
    %v4305 = vmax.f32 %v4166, 0.0
    %v4306 = vmax.f32 %v4168, 0.0
    %v4307 = vmax.f32 %v2189, 0.0
    %v4308 = vmax.f32 %v2191, 0.0
    %v4309 = vmax.f32 %v4173, 0.0
    %v4310 = vmax.f32 %v4175, 0.0
    %v4311 = vmax.f32 %v2196, 0.0
    %v4312 = vmax.f32 %v2198, 0.0
    %v4313 = vmax.f32 %v4180, 0.0
    %v4314 = vmax.f32 %v4182, 0.0
    %v4315 = vmax.f32 %v2203, 0.0
    %v4316 = vmax.f32 %v2205, 0.0
    %v4317 = vmax.f32 %v4187, 0.0
    %v4318 = vmax.f32 %v4189, 0.0
    %v4319 = vmax.f32 %v4191, %v4199
    %v4320 = vmax.f32 %v4192, %v4200
    %v4321 = vmax.f32 %v4193, %v4201
    %v4322 = vmax.f32 %v4194, %v4202
    %v4323 = vmax.f32 %v4319, %v4207
    %v4324 = vmax.f32 %v4320, %v4208
    %v4325 = vmax.f32 %v4321, %v4209
    %v4326 = vmax.f32 %v4322, %v4210
    %v4327 = vmax.f32 %v4323, %v4215
    %v4328 = vmax.f32 %v4324, %v4216
    %v4329 = vmax.f32 %v4325, %v4217
    %v4330 = vmax.f32 %v4326, %v4218
    %v4331 = vmax.f32 %v4327, %v4223
    %v4332 = vmax.f32 %v4328, %v4224
    %v4333 = vmax.f32 %v4329, %v4225
    %v4334 = vmax.f32 %v4330, %v4226
    %v4335 = vmax.f32 %v4331, %v4231
    %v4336 = vmax.f32 %v4332, %v4232
    %v4337 = vmax.f32 %v4333, %v4233
    %v4338 = vmax.f32 %v4334, %v4234
    %v4339 = vmax.f32 %v4335, %v4239
    %v4340 = vmax.f32 %v4336, %v4240
    %v4341 = vmax.f32 %v4337, %v4241
    %v4342 = vmax.f32 %v4338, %v4242
    %v4343 = vmax.f32 %v4339, %v4247
    %v4344 = vmax.f32 %v4340, %v4248
    %v4345 = vmax.f32 %v4341, %v4249
    %v4346 = vmax.f32 %v4342, %v4250
    %v4347 = vrot.slane %v4343, 4
    %v4348 = vmax.f32 %v4343, %v4347
    %v4349 = vrot.slane %v4348, 2
    %v4350 = vmax.f32 %v4348, %v4349
    %v4351 = vrot.slane %v4350, 1
    %v4352 = vmax.f32 %v4350, %v4351
    %v4353 = vrot.slane %v4344, 4
    %v4354 = vmax.f32 %v4344, %v4353
    %v4355 = vrot.slane %v4354, 2
    %v4356 = vmax.f32 %v4354, %v4355
    %v4357 = vrot.slane %v4356, 1
    %v4358 = vmax.f32 %v4356, %v4357
    %v4359 = vrot.slane %v4345, 4
    %v4360 = vmax.f32 %v4345, %v4359
    %v4361 = vrot.slane %v4360, 2
    %v4362 = vmax.f32 %v4360, %v4361
    %v4363 = vrot.slane %v4362, 1
    %v4364 = vmax.f32 %v4362, %v4363
    %v4365 = vrot.slane %v4346, 4
    %v4366 = vmax.f32 %v4346, %v4365
    %v4367 = vrot.slane %v4366, 2
    %v4368 = vmax.f32 %v4366, %v4367
    %v4369 = vrot.slane %v4368, 1
    %v4370 = vmax.f32 %v4368, %v4369
    %v4371 = vmax.f32 %v4195, %v4203
    %v4372 = vmax.f32 %v4196, %v4204
    %v4373 = vmax.f32 %v4197, %v4205
    %v4374 = vmax.f32 %v4198, %v4206
    %v4375 = vmax.f32 %v4371, %v4211
    %v4376 = vmax.f32 %v4372, %v4212
    %v4377 = vmax.f32 %v4373, %v4213
    %v4378 = vmax.f32 %v4374, %v4214
    %v4379 = vmax.f32 %v4375, %v4219
    %v4380 = vmax.f32 %v4376, %v4220
    %v4381 = vmax.f32 %v4377, %v4221
    %v4382 = vmax.f32 %v4378, %v4222
    %v4383 = vmax.f32 %v4379, %v4227
    %v4384 = vmax.f32 %v4380, %v4228
    %v4385 = vmax.f32 %v4381, %v4229
    %v4386 = vmax.f32 %v4382, %v4230
    %v4387 = vmax.f32 %v4383, %v4235
    %v4388 = vmax.f32 %v4384, %v4236
    %v4389 = vmax.f32 %v4385, %v4237
    %v4390 = vmax.f32 %v4386, %v4238
    %v4391 = vmax.f32 %v4387, %v4243
    %v4392 = vmax.f32 %v4388, %v4244
    %v4393 = vmax.f32 %v4389, %v4245
    %v4394 = vmax.f32 %v4390, %v4246
    %v4395 = vmax.f32 %v4391, %v4251
    %v4396 = vmax.f32 %v4392, %v4252
    %v4397 = vmax.f32 %v4393, %v4253
    %v4398 = vmax.f32 %v4394, %v4254
    %v4399 = vrot.slane %v4395, 4
    %v4400 = vmax.f32 %v4395, %v4399
    %v4401 = vrot.slane %v4400, 2
    %v4402 = vmax.f32 %v4400, %v4401
    %v4403 = vrot.slane %v4402, 1
    %v4404 = vmax.f32 %v4402, %v4403
    %v4405 = vrot.slane %v4396, 4
    %v4406 = vmax.f32 %v4396, %v4405
    %v4407 = vrot.slane %v4406, 2
    %v4408 = vmax.f32 %v4406, %v4407
    %v4409 = vrot.slane %v4408, 1
    %v4410 = vmax.f32 %v4408, %v4409
    %v4411 = vrot.slane %v4397, 4
    %v4412 = vmax.f32 %v4397, %v4411
    %v4413 = vrot.slane %v4412, 2
    %v4414 = vmax.f32 %v4412, %v4413
    %v4415 = vrot.slane %v4414, 1
    %v4416 = vmax.f32 %v4414, %v4415
    %v4417 = vrot.slane %v4398, 4
    %v4418 = vmax.f32 %v4398, %v4417
    %v4419 = vrot.slane %v4418, 2
    %v4420 = vmax.f32 %v4418, %v4419
    %v4421 = vrot.slane %v4420, 1
    %v4422 = vmax.f32 %v4420, %v4421
    %v4423 = vmax.f32 %v4255, %v4263
    %v4424 = vmax.f32 %v4256, %v4264
    %v4425 = vmax.f32 %v4257, %v4265
    %v4426 = vmax.f32 %v4258, %v4266
    %v4427 = vmax.f32 %v4423, %v4271
    %v4428 = vmax.f32 %v4424, %v4272
    %v4429 = vmax.f32 %v4425, %v4273
    %v4430 = vmax.f32 %v4426, %v4274
    %v4431 = vmax.f32 %v4427, %v4279
    %v4432 = vmax.f32 %v4428, %v4280
    %v4433 = vmax.f32 %v4429, %v4281
    %v4434 = vmax.f32 %v4430, %v4282
    %v4435 = vmax.f32 %v4431, %v4287
    %v4436 = vmax.f32 %v4432, %v4288
    %v4437 = vmax.f32 %v4433, %v4289
    %v4438 = vmax.f32 %v4434, %v4290
    %v4439 = vmax.f32 %v4435, %v4295
    %v4440 = vmax.f32 %v4436, %v4296
    %v4441 = vmax.f32 %v4437, %v4297
    %v4442 = vmax.f32 %v4438, %v4298
    %v4443 = vmax.f32 %v4439, %v4303
    %v4444 = vmax.f32 %v4440, %v4304
    %v4445 = vmax.f32 %v4441, %v4305
    %v4446 = vmax.f32 %v4442, %v4306
    %v4447 = vmax.f32 %v4443, %v4311
    %v4448 = vmax.f32 %v4444, %v4312
    %v4449 = vmax.f32 %v4445, %v4313
    %v4450 = vmax.f32 %v4446, %v4314
    %v4451 = vrot.slane %v4447, 4
    %v4452 = vmax.f32 %v4447, %v4451
    %v4453 = vrot.slane %v4452, 2
    %v4454 = vmax.f32 %v4452, %v4453
    %v4455 = vrot.slane %v4454, 1
    %v4456 = vmax.f32 %v4454, %v4455
    %v4457 = vrot.slane %v4448, 4
    %v4458 = vmax.f32 %v4448, %v4457
    %v4459 = vrot.slane %v4458, 2
    %v4460 = vmax.f32 %v4458, %v4459
    %v4461 = vrot.slane %v4460, 1
    %v4462 = vmax.f32 %v4460, %v4461
    %v4463 = vrot.slane %v4449, 4
    %v4464 = vmax.f32 %v4449, %v4463
    %v4465 = vrot.slane %v4464, 2
    %v4466 = vmax.f32 %v4464, %v4465
    %v4467 = vrot.slane %v4466, 1
    %v4468 = vmax.f32 %v4466, %v4467
    %v4469 = vrot.slane %v4450, 4
    %v4470 = vmax.f32 %v4450, %v4469
    %v4471 = vrot.slane %v4470, 2
    %v4472 = vmax.f32 %v4470, %v4471
    %v4473 = vrot.slane %v4472, 1
    %v4474 = vmax.f32 %v4472, %v4473
    %v4475 = vmax.f32 %v4259, %v4267
    %v4476 = vmax.f32 %v4260, %v4268
    %v4477 = vmax.f32 %v4261, %v4269
    %v4478 = vmax.f32 %v4262, %v4270
    %v4479 = vmax.f32 %v4475, %v4275
    %v4480 = vmax.f32 %v4476, %v4276
    %v4481 = vmax.f32 %v4477, %v4277
    %v4482 = vmax.f32 %v4478, %v4278
    %v4483 = vmax.f32 %v4479, %v4283
    %v4484 = vmax.f32 %v4480, %v4284
    %v4485 = vmax.f32 %v4481, %v4285
    %v4486 = vmax.f32 %v4482, %v4286
    %v4487 = vmax.f32 %v4483, %v4291
    %v4488 = vmax.f32 %v4484, %v4292
    %v4489 = vmax.f32 %v4485, %v4293
    %v4490 = vmax.f32 %v4486, %v4294
    %v4491 = vmax.f32 %v4487, %v4299
    %v4492 = vmax.f32 %v4488, %v4300
    %v4493 = vmax.f32 %v4489, %v4301
    %v4494 = vmax.f32 %v4490, %v4302
    %v4495 = vmax.f32 %v4491, %v4307
    %v4496 = vmax.f32 %v4492, %v4308
    %v4497 = vmax.f32 %v4493, %v4309
    %v4498 = vmax.f32 %v4494, %v4310
    %v4499 = vmax.f32 %v4495, %v4315
    %v4500 = vmax.f32 %v4496, %v4316
    %v4501 = vmax.f32 %v4497, %v4317
    %v4502 = vmax.f32 %v4498, %v4318
    %v4503 = vrot.slane %v4499, 4
    %v4504 = vmax.f32 %v4499, %v4503
    %v4505 = vrot.slane %v4504, 2
    %v4506 = vmax.f32 %v4504, %v4505
    %v4507 = vrot.slane %v4506, 1
    %v4508 = vmax.f32 %v4506, %v4507
    %v4509 = vrot.slane %v4500, 4
    %v4510 = vmax.f32 %v4500, %v4509
    %v4511 = vrot.slane %v4510, 2
    %v4512 = vmax.f32 %v4510, %v4511
    %v4513 = vrot.slane %v4512, 1
    %v4514 = vmax.f32 %v4512, %v4513
    %v4515 = vrot.slane %v4501, 4
    %v4516 = vmax.f32 %v4501, %v4515
    %v4517 = vrot.slane %v4516, 2
    %v4518 = vmax.f32 %v4516, %v4517
    %v4519 = vrot.slane %v4518, 1
    %v4520 = vmax.f32 %v4518, %v4519
    %v4521 = vrot.slane %v4502, 4
    %v4522 = vmax.f32 %v4502, %v4521
    %v4523 = vrot.slane %v4522, 2
    %v4524 = vmax.f32 %v4522, %v4523
    %v4525 = vrot.slane %v4524, 1
    %v4526 = vmax.f32 %v4524, %v4525
    %v4527 = vmax.f32 %v4352, %v4404
    %v4528 = vmax.f32 %v4358, %v4410
    %v4529 = vmax.f32 %v4364, %v4416
    %v4530 = vmax.f32 %v4370, %v4422
    %v4531 = vmax.f32 %v4456, %v4508
    %v4532 = vmax.f32 %v4462, %v4514
    %v4533 = vmax.f32 %v4468, %v4520
    %v4534 = vmax.f32 %v4474, %v4526
    %v4535 = vmax.f32 %v4527, %v4531
    %v4536 = vmax.f32 %v4528, %v4532
    %v4537 = vmax.f32 %v4529, %v4533
    %v4538 = vmax.f32 %v4530, %v4534
    %v4543 = vcombine.low %v4352, %v4358
    %v4544 = vcombine.low %v4364, %v4370
    %v4546 = vunpack.c.l.s4 1966171168
    %v4547 = vunpack.c.0.s8 %v4546
    %v4548 = vlaneseq
    %v4549 = vshrl.u32 %v4548, 7
    %v4550 = vsub.s32 %v4547, %v4549
    %v4551 = vrot.slane %v4543, %v4550
    %v4553 = vunpack.c.l.s4 1966171168
    %v4554 = vunpack.c.0.s8 %v4553
    %v4555 = vlaneseq
    %v4556 = vshrl.u32 %v4555, 7
    %v4557 = vsub.s32 %v4554, %v4556
    %v4558 = vrot.slane %v4544, %v4557
    %v4559 = vcombine.low %v4551, %v4558
    %v4561 = vunpack.c.l.s4 1966171168
    %v4562 = vunpack.c.0.s8 %v4561
    %v4563 = vlaneseq
    %v4564 = vshrl.u32 %v4563, 7
    %v4565 = vsub.s32 %v4562, %v4564
    %v4566 = vrot.slane %v4559, %v4565
    %v4568 = vlaneseq
    %vm4569 = vcmp.ge.s32.totalorder %v4568, 0
    %vm4570 = vcmp.lt.s32.totalorder %v4568, 512
    %vm4571 = vmand %vm4569, %vm4570
    %4572 = vst.msk [vmem:[#allocation2] ss:$2 sm:$0xf] %vm4571, %v4566
    %v4577 = vcombine.low %v4404, %v4410
    %v4578 = vcombine.low %v4416, %v4422
    %v4580 = vunpack.c.l.s4 1966171168
    %v4581 = vunpack.c.0.s8 %v4580
    %v4582 = vlaneseq
    %v4583 = vshrl.u32 %v4582, 7
    %v4584 = vsub.s32 %v4581, %v4583
    %v4585 = vrot.slane %v4577, %v4584
    %v4587 = vunpack.c.l.s4 1966171168
    %v4588 = vunpack.c.0.s8 %v4587
    %v4589 = vlaneseq
    %v4590 = vshrl.u32 %v4589, 7
    %v4591 = vsub.s32 %v4588, %v4590
    %v4592 = vrot.slane %v4578, %v4591
    %v4593 = vcombine.low %v4585, %v4592
    %v4595 = vunpack.c.l.s4 1966171168
    %v4596 = vunpack.c.0.s8 %v4595
    %v4597 = vlaneseq
    %v4598 = vshrl.u32 %v4597, 7
    %v4599 = vsub.s32 %v4596, %v4598
    %v4600 = vrot.slane %v4593, %v4599
    %s4602 = scalar_lea.vmem [#allocation2], 8
    %4603 = vst.msk [vmem:[%s4602] ss:$2 sm:$0xf] %vm4571, %v4600
    %v4608 = vcombine.low %v4456, %v4462
    %v4609 = vcombine.low %v4468, %v4474
    %v4611 = vunpack.c.l.s4 1966171168
    %v4612 = vunpack.c.0.s8 %v4611
    %v4613 = vlaneseq
    %v4614 = vshrl.u32 %v4613, 7
    %v4615 = vsub.s32 %v4612, %v4614
    %v4616 = vrot.slane %v4608, %v4615
    %v4618 = vunpack.c.l.s4 1966171168
    %v4619 = vunpack.c.0.s8 %v4618
    %v4620 = vlaneseq
    %v4621 = vshrl.u32 %v4620, 7
    %v4622 = vsub.s32 %v4619, %v4621
    %v4623 = vrot.slane %v4609, %v4622
    %v4624 = vcombine.low %v4616, %v4623
    %v4626 = vunpack.c.l.s4 1966171168
    %v4627 = vunpack.c.0.s8 %v4626
    %v4628 = vlaneseq
    %v4629 = vshrl.u32 %v4628, 7
    %v4630 = vsub.s32 %v4627, %v4629
    %v4631 = vrot.slane %v4624, %v4630
    %s4633 = scalar_lea.vmem [#allocation2], 16
    %4634 = vst.msk [vmem:[%s4633] ss:$2 sm:$0xf] %vm4571, %v4631
    %v4639 = vcombine.low %v4508, %v4514
    %v4640 = vcombine.low %v4520, %v4526
    %v4642 = vunpack.c.l.s4 1966171168
    %v4643 = vunpack.c.0.s8 %v4642
    %v4644 = vlaneseq
    %v4645 = vshrl.u32 %v4644, 7
    %v4646 = vsub.s32 %v4643, %v4645
    %v4647 = vrot.slane %v4639, %v4646
    %v4649 = vunpack.c.l.s4 1966171168
    %v4650 = vunpack.c.0.s8 %v4649
    %v4651 = vlaneseq
    %v4652 = vshrl.u32 %v4651, 7
    %v4653 = vsub.s32 %v4650, %v4652
    %v4654 = vrot.slane %v4640, %v4653
    %v4655 = vcombine.low %v4647, %v4654
    %v4657 = vunpack.c.l.s4 1966171168
    %v4658 = vunpack.c.0.s8 %v4657
    %v4659 = vlaneseq
    %v4660 = vshrl.u32 %v4659, 7
    %v4661 = vsub.s32 %v4658, %v4660
    %v4662 = vrot.slane %v4655, %v4661
    %s4664 = scalar_lea.vmem [#allocation2], 24
    %4665 = vst.msk [vmem:[%s4664] ss:$2 sm:$0xf] %vm4571, %v4662
    %v4670 = vcombine.low %v4535, %v4536
    %v4671 = vcombine.low %v4537, %v4538
    %v4673 = vunpack.c.l.s4 1966171168
    %v4674 = vunpack.c.0.s8 %v4673
    %v4675 = vlaneseq
    %v4676 = vshrl.u32 %v4675, 7
    %v4677 = vsub.s32 %v4674, %v4676
    %v4678 = vrot.slane %v4670, %v4677
    %v4680 = vunpack.c.l.s4 1966171168
    %v4681 = vunpack.c.0.s8 %v4680
    %v4682 = vlaneseq
    %v4683 = vshrl.u32 %v4682, 7
    %v4684 = vsub.s32 %v4681, %v4683
    %v4685 = vrot.slane %v4671, %v4684
    %v4686 = vcombine.low %v4678, %v4685
    %v4688 = vunpack.c.l.s4 1966171168
    %v4689 = vunpack.c.0.s8 %v4688
    %v4690 = vlaneseq
    %v4691 = vshrl.u32 %v4690, 7
    %v4692 = vsub.s32 %v4689, %v4691
    %v4693 = vrot.slane %v4686, %v4692
    %s4695 = scalar_lea.vmem [#allocation2], 32
    %4696 = vst.msk [vmem:[%s4695] ss:$2 sm:$0xf] %vm4571, %v4693
    %s4697 = scalar_lea.vmem %s0, 8
    %v4698 = vld [vmem:[%s4697] sm:$0xff]
    %v4700 = vcombine.high %v4698, %v4698
    %4702 = vxpose.xlu0.b32.start [1/16] %v4698, 128
    %4703 = vxpose.xlu0.b32.cont [2/16] 0.0, 128
    %4704 = vxpose.xlu0.b32.cont [3/16] 0.0, 128
    %4705 = vxpose.xlu0.b32.cont [4/16] 0.0, 128
    %4706 = vxpose.xlu0.b32.cont [5/16] 0.0, 128
    %4707 = vxpose.xlu0.b32.cont [6/16] 0.0, 128
    %4708 = vxpose.xlu0.b32.cont [7/16] 0.0, 128
    %4709 = vxpose.xlu0.b32.cont [8/16] 0.0, 128
    %4710 = vxpose.xlu0.b32.cont [9/16] 0.0, 128
    %4711 = vxpose.xlu0.b32.cont [10/16] 0.0, 128
    %4712 = vxpose.xlu0.b32.cont [11/16] 0.0, 128
    %4713 = vxpose.xlu0.b32.cont [12/16] 0.0, 128
    %4714 = vxpose.xlu0.b32.cont [13/16] 0.0, 128
    %4715 = vxpose.xlu0.b32.cont [14/16] 0.0, 128
    %4716 = vxpose.xlu0.b32.cont [15/16] 0.0, 128
    %4717 = vxpose.xlu0.b32.end [16/16] 0.0, 128
    %v4718 = vpop.trf.xlu0
    %v4719 = vpop.trf.xlu0
    %v4720 = vpop.trf.xlu0
    %v4721 = vpop.trf.xlu0
    %v4722 = vpop.trf.xlu0
    %v4723 = vpop.trf.xlu0
    %v4724 = vpop.trf.xlu0
    %v4725 = vpop.trf.xlu0
    %v4726 = vpop.trf.xlu0
    %v4727 = vpop.trf.xlu0
    %v4728 = vpop.trf.xlu0
    %v4729 = vpop.trf.xlu0
    %v4730 = vpop.trf.xlu0
    %v4731 = vpop.trf.xlu0
    %v4732 = vpop.trf.xlu0
    %v4733 = vpop.trf.xlu0
    %4734 = vxpose.xlu0.b32.start [1/16] %v4700, 128
    %4735 = vxpose.xlu0.b32.cont [2/16] 0.0, 128
    %4736 = vxpose.xlu0.b32.cont [3/16] 0.0, 128
    %4737 = vxpose.xlu0.b32.cont [4/16] 0.0, 128
    %4738 = vxpose.xlu0.b32.cont [5/16] 0.0, 128
    %4739 = vxpose.xlu0.b32.cont [6/16] 0.0, 128
    %4740 = vxpose.xlu0.b32.cont [7/16] 0.0, 128
    %4741 = vxpose.xlu0.b32.cont [8/16] 0.0, 128
    %4742 = vxpose.xlu0.b32.cont [9/16] 0.0, 128
    %4743 = vxpose.xlu0.b32.cont [10/16] 0.0, 128
    %4744 = vxpose.xlu0.b32.cont [11/16] 0.0, 128
    %4745 = vxpose.xlu0.b32.cont [12/16] 0.0, 128
    %4746 = vxpose.xlu0.b32.cont [13/16] 0.0, 128
    %4747 = vxpose.xlu0.b32.cont [14/16] 0.0, 128
    %4748 = vxpose.xlu0.b32.cont [15/16] 0.0, 128
    %4749 = vxpose.xlu0.b32.end [16/16] 0.0, 128
    %v4750 = vpop.trf.xlu0
    %v4751 = vpop.trf.xlu0
    %v4752 = vpop.trf.xlu0
    %v4753 = vpop.trf.xlu0
    %v4754 = vpop.trf.xlu0
    %v4755 = vpop.trf.xlu0
    %v4756 = vpop.trf.xlu0
    %v4757 = vpop.trf.xlu0
    %v4758 = vpop.trf.xlu0
    %v4759 = vpop.trf.xlu0
    %v4760 = vpop.trf.xlu0
    %v4761 = vpop.trf.xlu0
    %v4762 = vpop.trf.xlu0
    %v4763 = vpop.trf.xlu0
    %v4764 = vpop.trf.xlu0
    %v4765 = vpop.trf.xlu0
    %v4767 = vsel %vm117, %v4718, 0
    %v4770 = vsel %vm117, %v4719, 0
    %v4773 = vsel %vm117, %v4720, 0
    %v4776 = vsel %vm117, %v4721, 0
    %v4779 = vsel %vm117, %v4722, 0
    %v4782 = vsel %vm117, %v4723, 0
    %v4785 = vsel %vm117, %v4724, 0
    %v4788 = vsel %vm117, %v4725, 0
    %v4791 = vsel %vm117, %v4726, 0
    %v4794 = vsel %vm117, %v4727, 0
    %v4797 = vsel %vm117, %v4728, 0
    %v4800 = vsel %vm117, %v4729, 0
    %v4803 = vsel %vm117, %v4730, 0
    %v4806 = vsel %vm117, %v4731, 0
    %v4809 = vsel %vm117, %v4732, 0
    %v4812 = vsel %vm117, %v4733, 0
    %v4815 = vsel %vm117, %v4750, 0
    %v4818 = vsel %vm117, %v4751, 0
    %v4821 = vsel %vm117, %v4752, 0
    %v4824 = vsel %vm117, %v4753, 0
    %v4827 = vsel %vm117, %v4754, 0
    %v4830 = vsel %vm117, %v4755, 0
    %v4833 = vsel %vm117, %v4756, 0
    %v4836 = vsel %vm117, %v4757, 0
    %v4839 = vsel %vm117, %v4758, 0
    %v4842 = vsel %vm117, %v4759, 0
    %v4845 = vsel %vm117, %v4760, 0
    %v4848 = vsel %vm117, %v4761, 0
    %v4851 = vsel %vm117, %v4762, 0
    %v4854 = vsel %vm117, %v4763, 0
    %v4857 = vsel %vm117, %v4764, 0
    %v4860 = vsel %vm117, %v4765, 0
    %v4862 = vand.u32 %v217, 4294901760
    %4863 = vmatprep.subr.mxu0 %v4862
    %v4864 = vand.u32 %v215, 4294901760
    %4865 = vmatpush1.msra.mxu0 %v4864
    %4866 = vmatprep.subr.mxu0 0.0
    %4867 = vmatpush1.msra.mxu0 0.0
    %4868 = vmatprep.subr.mxu0 0.0
    %4869 = vmatpush1.msra.mxu0 0.0
    %4870 = vmatprep.subr.mxu0 0.0
    %4871 = vmatpush1.msra.mxu0 0.0
    %4872 = vmatprep.subr.mxu0 0.0
    %4873 = vmatpush1.msra.mxu0 0.0
    %4874 = vmatprep.subr.mxu0 0.0
    %4875 = vmatpush1.msra.mxu0 0.0
    %4876 = vmatprep.subr.mxu0 0.0
    %4877 = vmatpush1.msra.mxu0 0.0
    %4878 = vmatprep.subr.mxu0 0.0
    %4879 = vmatpush1.msra.mxu0 0.0
    %4880 = vmatprep.subr.mxu0 0.0
    %4881 = vmatpush1.msra.mxu0 0.0
    %4882 = vmatprep.subr.mxu0 0.0
    %4883 = vmatpush1.msra.mxu0 0.0
    %4884 = vmatprep.subr.mxu0 0.0
    %4885 = vmatpush1.msra.mxu0 0.0
    %4886 = vmatprep.subr.mxu0 0.0
    %4887 = vmatpush1.msra.mxu0 0.0
    %4888 = vmatprep.subr.mxu0 0.0
    %4889 = vmatpush1.msra.mxu0 0.0
    %4890 = vmatprep.subr.mxu0 0.0
    %4891 = vmatpush1.msra.mxu0 0.0
    %4892 = vmatprep.subr.mxu0 0.0
    %4893 = vmatpush1.msra.mxu0 0.0
    %4894 = vmatprep.subr.mxu0 0.0
    %4895 = vmatpush1.msra.mxu0 0.0
    %4896 = vmatprep.subr.mxu0 0.0
    %4897 = vmatpush1.msra.mxu0 0.0
    %4898 = vmatprep.subr.mxu0 0.0
    %4899 = vmatpush1.msra.mxu0 0.0
    %4900 = vmatprep.subr.mxu0 0.0
    %4901 = vmatpush1.msra.mxu0 0.0
    %4902 = vmatprep.subr.mxu0 0.0
    %4903 = vmatpush1.msra.mxu0 0.0
    %4904 = vmatprep.subr.mxu0 0.0
    %4905 = vmatpush1.msra.mxu0 0.0
    %4906 = vmatprep.subr.mxu0 0.0
    %4907 = vmatpush1.msra.mxu0 0.0
    %4908 = vmatprep.subr.mxu0 0.0
    %4909 = vmatpush1.msra.mxu0 0.0
    %4910 = vmatprep.subr.mxu0 0.0
    %4911 = vmatpush1.msra.mxu0 0.0
    %4912 = vmatprep.subr.mxu0 0.0
    %4913 = vmatpush1.msra.mxu0 0.0
    %4914 = vmatprep.subr.mxu0 0.0
    %4915 = vmatpush1.msra.mxu0 0.0
    %4916 = vmatprep.subr.mxu0 0.0
    %4917 = vmatpush1.msra.mxu0 0.0
    %4918 = vmatprep.subr.mxu0 0.0
    %4919 = vmatpush1.msra.mxu0 0.0
    %4920 = vmatprep.subr.mxu0 0.0
    %4921 = vmatpush1.msra.mxu0 0.0
    %4922 = vmatprep.subr.mxu0 0.0
    %4923 = vmatpush1.msra.mxu0 0.0
    %4924 = vmatprep.subr.mxu0 0.0
    %4925 = vmatpush1.msra.mxu0 0.0
    %4926 = vmatprep.subr.mxu0 0.0
    %4927 = vmatpush1.msra.mxu0 0.0
    %4928 = vmatprep.mubr.f32.mxu0 0.0
    %v4929 = vand.u32 %v4767, 4294901760
    %v4930 = vsub.f32 %v4767, %v4929
    %v4931 = vand.u32 %v4930, 4294901760
    %v4932 = vsub.f32 %v4930, %v4931
    %v4933 = vand.u32 %v4932, 4294901760
    %4934 = vmatmul.mubr.f32.gmra.mrb[0].mxu0 %v4933
    %v4935 = vpop.f32.mrb[0].mxu0
    %v4936 = vadd.f32 %v29, %v4935
    %v4937 = vpop.f32.mrb[0].mxu0
    %v4938 = vadd.f32 %v33, %v4937
    %4939 = vmatprep.mubr.f32.mxu0 0.0
    %v4940 = vand.u32 %v4770, 4294901760
    %v4941 = vsub.f32 %v4770, %v4940
    %v4942 = vand.u32 %v4941, 4294901760
    %v4943 = vsub.f32 %v4941, %v4942
    %v4944 = vand.u32 %v4943, 4294901760
    %4945 = vmatmul.mubr.f32.gmra.mrb[0].mxu0 %v4944
    %v4946 = vpop.f32.mrb[0].mxu0
    %v4947 = vadd.f32 %v29, %v4946
    %v4948 = vpop.f32.mrb[0].mxu0
    %v4949 = vadd.f32 %v33, %v4948
    %4950 = vmatprep.mubr.f32.mxu0 0.0
    %v4951 = vand.u32 %v4773, 4294901760
    %v4952 = vsub.f32 %v4773, %v4951
    %v4953 = vand.u32 %v4952, 4294901760
    %v4954 = vsub.f32 %v4952, %v4953
    %v4955 = vand.u32 %v4954, 4294901760
    %4956 = vmatmul.mubr.f32.gmra.mrb[0].mxu0 %v4955
    %v4957 = vpop.f32.mrb[0].mxu0
    %v4958 = vadd.f32 %v29, %v4957
    %v4959 = vpop.f32.mrb[0].mxu0
    %v4960 = vadd.f32 %v33, %v4959
    %4961 = vmatprep.mubr.f32.mxu0 0.0
    %v4962 = vand.u32 %v4776, 4294901760
    %v4963 = vsub.f32 %v4776, %v4962
    %v4964 = vand.u32 %v4963, 4294901760
    %v4965 = vsub.f32 %v4963, %v4964
    %v4966 = vand.u32 %v4965, 4294901760
    %4967 = vmatmul.mubr.f32.gmra.mrb[0].mxu0 %v4966
    %v4968 = vpop.f32.mrb[0].mxu0
    %v4969 = vadd.f32 %v29, %v4968
    %v4970 = vpop.f32.mrb[0].mxu0
    %v4971 = vadd.f32 %v33, %v4970
    %4972 = vmatprep.mubr.f32.mxu0 0.0
    %v4973 = vand.u32 %v4779, 4294901760
    %v4974 = vsub.f32 %v4779, %v4973
    %v4975 = vand.u32 %v4974, 4294901760
    %v4976 = vsub.f32 %v4974, %v4975
    %v4977 = vand.u32 %v4976, 4294901760
    %4978 = vmatmul.mubr.f32.gmra.mrb[0].mxu0 %v4977
    %v4979 = vpop.f32.mrb[0].mxu0
    %v4980 = vadd.f32 %v29, %v4979
    %v4981 = vpop.f32.mrb[0].mxu0
    %v4982 = vadd.f32 %v33, %v4981
    %4983 = vmatprep.mubr.f32.mxu0 0.0
    %v4984 = vand.u32 %v4782, 4294901760
    %v4985 = vsub.f32 %v4782, %v4984
    %v4986 = vand.u32 %v4985, 4294901760
    %v4987 = vsub.f32 %v4985, %v4986
    %v4988 = vand.u32 %v4987, 4294901760
    %4989 = vmatmul.mubr.f32.gmra.mrb[0].mxu0 %v4988
    %v4990 = vpop.f32.mrb[0].mxu0
    %v4991 = vadd.f32 %v29, %v4990
    %v4992 = vpop.f32.mrb[0].mxu0
    %v4993 = vadd.f32 %v33, %v4992
    %4994 = vmatprep.mubr.f32.mxu0 0.0
    %v4995 = vand.u32 %v4785, 4294901760
    %v4996 = vsub.f32 %v4785, %v4995
    %v4997 = vand.u32 %v4996, 4294901760
    %v4998 = vsub.f32 %v4996, %v4997
    %v4999 = vand.u32 %v4998, 4294901760
    %5000 = vmatmul.mubr.f32.gmra.mrb[0].mxu0 %v4999
    %v5001 = vpop.f32.mrb[0].mxu0
    %v5002 = vadd.f32 %v29, %v5001
    %v5003 = vpop.f32.mrb[0].mxu0
    %v5004 = vadd.f32 %v33, %v5003
    %5005 = vmatprep.mubr.f32.mxu0 0.0
    %v5006 = vand.u32 %v4788, 4294901760
    %v5007 = vsub.f32 %v4788, %v5006
    %v5008 = vand.u32 %v5007, 4294901760
    %v5009 = vsub.f32 %v5007, %v5008
    %v5010 = vand.u32 %v5009, 4294901760
    %5011 = vmatmul.mubr.f32.gmra.mrb[0].mxu0 %v5010
    %v5012 = vpop.f32.mrb[0].mxu0
    %v5013 = vadd.f32 %v29, %v5012
    %v5014 = vpop.f32.mrb[0].mxu0
    %v5015 = vadd.f32 %v33, %v5014
    %5016 = vmatprep.mubr.f32.mxu0 0.0
    %v5017 = vand.u32 %v4791, 4294901760
    %v5018 = vsub.f32 %v4791, %v5017
    %v5019 = vand.u32 %v5018, 4294901760
    %v5020 = vsub.f32 %v5018, %v5019
    %v5021 = vand.u32 %v5020, 4294901760
    %5022 = vmatmul.mubr.f32.gmra.mrb[0].mxu0 %v5021
    %v5023 = vpop.f32.mrb[0].mxu0
    %v5024 = vadd.f32 %v29, %v5023
    %v5025 = vpop.f32.mrb[0].mxu0
    %v5026 = vadd.f32 %v33, %v5025
    %5027 = vmatprep.mubr.f32.mxu0 0.0
    %v5028 = vand.u32 %v4794, 4294901760
    %v5029 = vsub.f32 %v4794, %v5028
    %v5030 = vand.u32 %v5029, 4294901760
    %v5031 = vsub.f32 %v5029, %v5030
    %v5032 = vand.u32 %v5031, 4294901760
    %5033 = vmatmul.mubr.f32.gmra.mrb[0].mxu0 %v5032
    %v5034 = vpop.f32.mrb[0].mxu0
    %v5035 = vadd.f32 %v29, %v5034
    %v5036 = vpop.f32.mrb[0].mxu0
    %v5037 = vadd.f32 %v33, %v5036
    %5038 = vmatprep.mubr.f32.mxu0 0.0
    %v5039 = vand.u32 %v4797, 4294901760
    %v5040 = vsub.f32 %v4797, %v5039
    %v5041 = vand.u32 %v5040, 4294901760
    %v5042 = vsub.f32 %v5040, %v5041
    %v5043 = vand.u32 %v5042, 4294901760
    %5044 = vmatmul.mubr.f32.gmra.mrb[0].mxu0 %v5043
    %v5045 = vpop.f32.mrb[0].mxu0
    %v5046 = vadd.f32 %v29, %v5045
    %v5047 = vpop.f32.mrb[0].mxu0
    %v5048 = vadd.f32 %v33, %v5047
    %5049 = vmatprep.mubr.f32.mxu0 0.0
    %v5050 = vand.u32 %v4800, 4294901760
    %v5051 = vsub.f32 %v4800, %v5050
    %v5052 = vand.u32 %v5051, 4294901760
    %v5053 = vsub.f32 %v5051, %v5052
    %v5054 = vand.u32 %v5053, 4294901760
    %5055 = vmatmul.mubr.f32.gmra.mrb[0].mxu0 %v5054
    %v5056 = vpop.f32.mrb[0].mxu0
    %v5057 = vadd.f32 %v29, %v5056
    %v5058 = vpop.f32.mrb[0].mxu0
    %v5059 = vadd.f32 %v33, %v5058
    %5060 = vmatprep.mubr.f32.mxu0 0.0
    %v5061 = vand.u32 %v4803, 4294901760
    %v5062 = vsub.f32 %v4803, %v5061
    %v5063 = vand.u32 %v5062, 4294901760
    %v5064 = vsub.f32 %v5062, %v5063
    %v5065 = vand.u32 %v5064, 4294901760
    %5066 = vmatmul.mubr.f32.gmra.mrb[0].mxu0 %v5065
    %v5067 = vpop.f32.mrb[0].mxu0
    %v5068 = vadd.f32 %v29, %v5067
    %v5069 = vpop.f32.mrb[0].mxu0
    %v5070 = vadd.f32 %v33, %v5069
    %5071 = vmatprep.mubr.f32.mxu0 0.0
    %v5072 = vand.u32 %v4806, 4294901760
    %v5073 = vsub.f32 %v4806, %v5072
    %v5074 = vand.u32 %v5073, 4294901760
    %v5075 = vsub.f32 %v5073, %v5074
    %v5076 = vand.u32 %v5075, 4294901760
    %5077 = vmatmul.mubr.f32.gmra.mrb[0].mxu0 %v5076
    %v5078 = vpop.f32.mrb[0].mxu0
    %v5079 = vadd.f32 %v29, %v5078
    %v5080 = vpop.f32.mrb[0].mxu0
    %v5081 = vadd.f32 %v33, %v5080
    %5082 = vmatprep.mubr.f32.mxu0 0.0
    %v5083 = vand.u32 %v4809, 4294901760
    %v5084 = vsub.f32 %v4809, %v5083
    %v5085 = vand.u32 %v5084, 4294901760
    %v5086 = vsub.f32 %v5084, %v5085
    %v5087 = vand.u32 %v5086, 4294901760
    %5088 = vmatmul.mubr.f32.gmra.mrb[0].mxu0 %v5087
    %v5089 = vpop.f32.mrb[0].mxu0
    %v5090 = vadd.f32 %v29, %v5089
    %v5091 = vpop.f32.mrb[0].mxu0
    %v5092 = vadd.f32 %v33, %v5091
    %5093 = vmatprep.mubr.f32.mxu0 0.0
    %v5094 = vand.u32 %v4812, 4294901760
    %v5095 = vsub.f32 %v4812, %v5094
    %v5096 = vand.u32 %v5095, 4294901760
    %v5097 = vsub.f32 %v5095, %v5096
    %v5098 = vand.u32 %v5097, 4294901760
    %5099 = vmatmul.mubr.f32.gmra.mrb[0].mxu0 %v5098
    %v5100 = vpop.f32.mrb[0].mxu0
    %v5101 = vadd.f32 %v29, %v5100
    %v5102 = vpop.f32.mrb[0].mxu0
    %v5103 = vadd.f32 %v33, %v5102
    %5104 = vmatprep.mubr.f32.mxu0 0.0
    %v5105 = vand.u32 %v4815, 4294901760
    %v5106 = vsub.f32 %v4815, %v5105
    %v5107 = vand.u32 %v5106, 4294901760
    %v5108 = vsub.f32 %v5106, %v5107
    %v5109 = vand.u32 %v5108, 4294901760
    %5110 = vmatmul.mubr.f32.gmra.mrb[0].mxu0 %v5109
    %v5111 = vpop.f32.mrb[0].mxu0
    %v5112 = vadd.f32 %v29, %v5111
    %v5113 = vpop.f32.mrb[0].mxu0
    %v5114 = vadd.f32 %v33, %v5113
    %5115 = vmatprep.mubr.f32.mxu0 0.0
    %v5116 = vand.u32 %v4818, 4294901760
    %v5117 = vsub.f32 %v4818, %v5116
    %v5118 = vand.u32 %v5117, 4294901760
    %v5119 = vsub.f32 %v5117, %v5118
    %v5120 = vand.u32 %v5119, 4294901760
    %5121 = vmatmul.mubr.f32.gmra.mrb[0].mxu0 %v5120
    %v5122 = vpop.f32.mrb[0].mxu0
    %v5123 = vadd.f32 %v29, %v5122
    %v5124 = vpop.f32.mrb[0].mxu0
    %v5125 = vadd.f32 %v33, %v5124
    %5126 = vmatprep.mubr.f32.mxu0 0.0
    %v5127 = vand.u32 %v4821, 4294901760
    %v5128 = vsub.f32 %v4821, %v5127
    %v5129 = vand.u32 %v5128, 4294901760
    %v5130 = vsub.f32 %v5128, %v5129
    %v5131 = vand.u32 %v5130, 4294901760
    %5132 = vmatmul.mubr.f32.gmra.mrb[0].mxu0 %v5131
    %v5133 = vpop.f32.mrb[0].mxu0
    %v5134 = vadd.f32 %v29, %v5133
    %v5135 = vpop.f32.mrb[0].mxu0
    %v5136 = vadd.f32 %v33, %v5135
    %5137 = vmatprep.mubr.f32.mxu0 0.0
    %v5138 = vand.u32 %v4824, 4294901760
    %v5139 = vsub.f32 %v4824, %v5138
    %v5140 = vand.u32 %v5139, 4294901760
    %v5141 = vsub.f32 %v5139, %v5140
    %v5142 = vand.u32 %v5141, 4294901760
    %5143 = vmatmul.mubr.f32.gmra.mrb[0].mxu0 %v5142
    %v5144 = vpop.f32.mrb[0].mxu0
    %v5145 = vadd.f32 %v29, %v5144
    %v5146 = vpop.f32.mrb[0].mxu0
    %v5147 = vadd.f32 %v33, %v5146
    %5148 = vmatprep.mubr.f32.mxu0 0.0
    %v5149 = vand.u32 %v4827, 4294901760
    %v5150 = vsub.f32 %v4827, %v5149
    %v5151 = vand.u32 %v5150, 4294901760
    %v5152 = vsub.f32 %v5150, %v5151
    %v5153 = vand.u32 %v5152, 4294901760
    %5154 = vmatmul.mubr.f32.gmra.mrb[0].mxu0 %v5153
    %v5155 = vpop.f32.mrb[0].mxu0
    %v5156 = vadd.f32 %v29, %v5155
    %v5157 = vpop.f32.mrb[0].mxu0
    %v5158 = vadd.f32 %v33, %v5157
    %5159 = vmatprep.mubr.f32.mxu0 0.0
    %v5160 = vand.u32 %v4830, 4294901760
    %v5161 = vsub.f32 %v4830, %v5160
    %v5162 = vand.u32 %v5161, 4294901760
    %v5163 = vsub.f32 %v5161, %v5162
    %v5164 = vand.u32 %v5163, 4294901760
    %5165 = vmatmul.mubr.f32.gmra.mrb[0].mxu0 %v5164
    %v5166 = vpop.f32.mrb[0].mxu0
    %v5167 = vadd.f32 %v29, %v5166
    %v5168 = vpop.f32.mrb[0].mxu0
    %v5169 = vadd.f32 %v33, %v5168
    %5170 = vmatprep.mubr.f32.mxu0 0.0
    %v5171 = vand.u32 %v4833, 4294901760
    %v5172 = vsub.f32 %v4833, %v5171
    %v5173 = vand.u32 %v5172, 4294901760
    %v5174 = vsub.f32 %v5172, %v5173
    %v5175 = vand.u32 %v5174, 4294901760
    %5176 = vmatmul.mubr.f32.gmra.mrb[0].mxu0 %v5175
    %v5177 = vpop.f32.mrb[0].mxu0
    %v5178 = vadd.f32 %v29, %v5177
    %v5179 = vpop.f32.mrb[0].mxu0
    %v5180 = vadd.f32 %v33, %v5179
    %5181 = vmatprep.mubr.f32.mxu0 0.0
    %v5182 = vand.u32 %v4836, 4294901760
    %v5183 = vsub.f32 %v4836, %v5182
    %v5184 = vand.u32 %v5183, 4294901760
    %v5185 = vsub.f32 %v5183, %v5184
    %v5186 = vand.u32 %v5185, 4294901760
    %5187 = vmatmul.mubr.f32.gmra.mrb[0].mxu0 %v5186
    %v5188 = vpop.f32.mrb[0].mxu0
    %v5189 = vadd.f32 %v29, %v5188
    %v5190 = vpop.f32.mrb[0].mxu0
    %v5191 = vadd.f32 %v33, %v5190
    %5192 = vmatprep.mubr.f32.mxu0 0.0
    %v5193 = vand.u32 %v4839, 4294901760
    %v5194 = vsub.f32 %v4839, %v5193
    %v5195 = vand.u32 %v5194, 4294901760
    %v5196 = vsub.f32 %v5194, %v5195
    %v5197 = vand.u32 %v5196, 4294901760
    %5198 = vmatmul.mubr.f32.gmra.mrb[0].mxu0 %v5197
    %v5199 = vpop.f32.mrb[0].mxu0
    %v5200 = vadd.f32 %v29, %v5199
    %v5201 = vpop.f32.mrb[0].mxu0
    %v5202 = vadd.f32 %v33, %v5201
    %5203 = vmatprep.mubr.f32.mxu0 0.0
    %v5204 = vand.u32 %v4842, 4294901760
    %v5205 = vsub.f32 %v4842, %v5204
    %v5206 = vand.u32 %v5205, 4294901760
    %v5207 = vsub.f32 %v5205, %v5206
    %v5208 = vand.u32 %v5207, 4294901760
    %5209 = vmatmul.mubr.f32.gmra.mrb[0].mxu0 %v5208
    %v5210 = vpop.f32.mrb[0].mxu0
    %v5211 = vadd.f32 %v29, %v5210
    %v5212 = vpop.f32.mrb[0].mxu0
    %v5213 = vadd.f32 %v33, %v5212
    %5214 = vmatprep.mubr.f32.mxu0 0.0
    %v5215 = vand.u32 %v4845, 4294901760
    %v5216 = vsub.f32 %v4845, %v5215
    %v5217 = vand.u32 %v5216, 4294901760
    %v5218 = vsub.f32 %v5216, %v5217
    %v5219 = vand.u32 %v5218, 4294901760
    %5220 = vmatmul.mubr.f32.gmra.mrb[0].mxu0 %v5219
    %v5221 = vpop.f32.mrb[0].mxu0
    %v5222 = vadd.f32 %v29, %v5221
    %v5223 = vpop.f32.mrb[0].mxu0
    %v5224 = vadd.f32 %v33, %v5223
    %5225 = vmatprep.mubr.f32.mxu0 0.0
    %v5226 = vand.u32 %v4848, 4294901760
    %v5227 = vsub.f32 %v4848, %v5226
    %v5228 = vand.u32 %v5227, 4294901760
    %v5229 = vsub.f32 %v5227, %v5228
    %v5230 = vand.u32 %v5229, 4294901760
    %5231 = vmatmul.mubr.f32.gmra.mrb[0].mxu0 %v5230
    %v5232 = vpop.f32.mrb[0].mxu0
    %v5233 = vadd.f32 %v29, %v5232
    %v5234 = vpop.f32.mrb[0].mxu0
    %v5235 = vadd.f32 %v33, %v5234
    %5236 = vmatprep.mubr.f32.mxu0 0.0
    %v5237 = vand.u32 %v4851, 4294901760
    %v5238 = vsub.f32 %v4851, %v5237
    %v5239 = vand.u32 %v5238, 4294901760
    %v5240 = vsub.f32 %v5238, %v5239
    %v5241 = vand.u32 %v5240, 4294901760
    %5242 = vmatmul.mubr.f32.gmra.mrb[0].mxu0 %v5241
    %v5243 = vpop.f32.mrb[0].mxu0
    %v5244 = vadd.f32 %v29, %v5243
    %v5245 = vpop.f32.mrb[0].mxu0
    %v5246 = vadd.f32 %v33, %v5245
    %5247 = vmatprep.mubr.f32.mxu0 0.0
    %v5248 = vand.u32 %v4854, 4294901760
    %v5249 = vsub.f32 %v4854, %v5248
    %v5250 = vand.u32 %v5249, 4294901760
    %v5251 = vsub.f32 %v5249, %v5250
    %v5252 = vand.u32 %v5251, 4294901760
    %5253 = vmatmul.mubr.f32.gmra.mrb[0].mxu0 %v5252
    %v5254 = vpop.f32.mrb[0].mxu0
    %v5255 = vadd.f32 %v29, %v5254
    %v5256 = vpop.f32.mrb[0].mxu0
    %v5257 = vadd.f32 %v33, %v5256
    %5258 = vmatprep.mubr.f32.mxu0 0.0
    %v5259 = vand.u32 %v4857, 4294901760
    %v5260 = vsub.f32 %v4857, %v5259
    %v5261 = vand.u32 %v5260, 4294901760
    %v5262 = vsub.f32 %v5260, %v5261
    %v5263 = vand.u32 %v5262, 4294901760
    %5264 = vmatmul.mubr.f32.gmra.mrb[0].mxu0 %v5263
    %v5265 = vpop.f32.mrb[0].mxu0
    %v5266 = vadd.f32 %v29, %v5265
    %v5267 = vpop.f32.mrb[0].mxu0
    %v5268 = vadd.f32 %v33, %v5267
    %5269 = vmatprep.mubr.f32.mxu0 0.0
    %v5270 = vand.u32 %v4860, 4294901760
    %v5271 = vsub.f32 %v4860, %v5270
    %v5272 = vand.u32 %v5271, 4294901760
    %v5273 = vsub.f32 %v5271, %v5272
    %v5274 = vand.u32 %v5273, 4294901760
    %5275 = vmatmul.mubr.f32.gmra.mrb[0].mxu0 %v5274
    %v5276 = vpop.f32.mrb[0].mxu0
    %v5277 = vadd.f32 %v29, %v5276
    %v5278 = vpop.f32.mrb[0].mxu0
    %v5279 = vadd.f32 %v33, %v5278
    %5280 = vdwg.mxu0
    %v5281 = vand.u32 %v217, 4294901760
    %v5282 = vsub.f32 %v217, %v5281
    %v5283 = vand.u32 %v5282, 4294901760
    %v5284 = vsub.f32 %v5282, %v5283
    %v5285 = vand.u32 %v5284, 4294901760
    %5286 = vmatprep.subr.mxu0 %v5285
    %v5287 = vand.u32 %v215, 4294901760
    %v5288 = vsub.f32 %v215, %v5287
    %v5289 = vand.u32 %v5288, 4294901760
    %v5290 = vsub.f32 %v5288, %v5289
    %v5291 = vand.u32 %v5290, 4294901760
    %5292 = vmatpush1.msra.mxu0 %v5291
    %5293 = vmatprep.subr.mxu0 0.0
    %5294 = vmatpush1.msra.mxu0 0.0
    %5295 = vmatprep.subr.mxu0 0.0
    %5296 = vmatpush1.msra.mxu0 0.0
    %5297 = vmatprep.subr.mxu0 0.0
    %5298 = vmatpush1.msra.mxu0 0.0
    %5299 = vmatprep.subr.mxu0 0.0
    %5300 = vmatpush1.msra.mxu0 0.0
    %5301 = vmatprep.subr.mxu0 0.0
    %5302 = vmatpush1.msra.mxu0 0.0
    %5303 = vmatprep.subr.mxu0 0.0
    %5304 = vmatpush1.msra.mxu0 0.0
    %5305 = vmatprep.subr.mxu0 0.0
    %5306 = vmatpush1.msra.mxu0 0.0
    %5307 = vmatprep.subr.mxu0 0.0
    %5308 = vmatpush1.msra.mxu0 0.0
    %5309 = vmatprep.subr.mxu0 0.0
    %5310 = vmatpush1.msra.mxu0 0.0
    %5311 = vmatprep.subr.mxu0 0.0
    %5312 = vmatpush1.msra.mxu0 0.0
    %5313 = vmatprep.subr.mxu0 0.0
    %5314 = vmatpush1.msra.mxu0 0.0
    %5315 = vmatprep.subr.mxu0 0.0
    %5316 = vmatpush1.msra.mxu0 0.0
    %5317 = vmatprep.subr.mxu0 0.0
    %5318 = vmatpush1.msra.mxu0 0.0
    %5319 = vmatprep.subr.mxu0 0.0
    %5320 = vmatpush1.msra.mxu0 0.0
    %5321 = vmatprep.subr.mxu0 0.0
    %5322 = vmatpush1.msra.mxu0 0.0
    %5323 = vmatprep.subr.mxu0 0.0
    %5324 = vmatpush1.msra.mxu0 0.0
    %5325 = vmatprep.subr.mxu0 0.0
    %5326 = vmatpush1.msra.mxu0 0.0
    %5327 = vmatprep.subr.mxu0 0.0
    %5328 = vmatpush1.msra.mxu0 0.0
    %5329 = vmatprep.subr.mxu0 0.0
    %5330 = vmatpush1.msra.mxu0 0.0
    %5331 = vmatprep.subr.mxu0 0.0
    %5332 = vmatpush1.msra.mxu0 0.0
    %5333 = vmatprep.subr.mxu0 0.0
    %5334 = vmatpush1.msra.mxu0 0.0
    %5335 = vmatprep.subr.mxu0 0.0
    %5336 = vmatpush1.msra.mxu0 0.0
    %5337 = vmatprep.subr.mxu0 0.0
    %5338 = vmatpush1.msra.mxu0 0.0
    %5339 = vmatprep.subr.mxu0 0.0
    %5340 = vmatpush1.msra.mxu0 0.0
    %5341 = vmatprep.subr.mxu0 0.0
    %5342 = vmatpush1.msra.mxu0 0.0
    %5343 = vmatprep.subr.mxu0 0.0
    %5344 = vmatpush1.msra.mxu0 0.0
    %5345 = vmatprep.subr.mxu0 0.0
    %5346 = vmatpush1.msra.mxu0 0.0
    %5347 = vmatprep.subr.mxu0 0.0
    %5348 = vmatpush1.msra.mxu0 0.0
    %5349 = vmatprep.subr.mxu0 0.0
    %5350 = vmatpush1.msra.mxu0 0.0
    %5351 = vmatprep.subr.mxu0 0.0
    %5352 = vmatpush1.msra.mxu0 0.0
    %5353 = vmatprep.subr.mxu0 0.0
    %5354 = vmatpush1.msra.mxu0 0.0
    %5355 = vmatprep.mubr.f32.mxu0 0.0
    %v5356 = vand.u32 %v4767, 4294901760
    %5357 = vmatmul.mubr.f32.gmra.mrb[0].mxu0 %v5356
    %v5358 = vpop.f32.mrb[0].mxu0
    %v5359 = vadd.f32 %v4936, %v5358
    %v5360 = vpop.f32.mrb[0].mxu0
    %v5361 = vadd.f32 %v4938, %v5360
    %5362 = vmatprep.mubr.f32.mxu0 0.0
    %v5363 = vand.u32 %v4770, 4294901760
    %5364 = vmatmul.mubr.f32.gmra.mrb[0].mxu0 %v5363
    %v5365 = vpop.f32.mrb[0].mxu0
    %v5366 = vadd.f32 %v4947, %v5365
    %v5367 = vpop.f32.mrb[0].mxu0
    %v5368 = vadd.f32 %v4949, %v5367
    %5369 = vmatprep.mubr.f32.mxu0 0.0
    %v5370 = vand.u32 %v4773, 4294901760
    %5371 = vmatmul.mubr.f32.gmra.mrb[0].mxu0 %v5370
    %v5372 = vpop.f32.mrb[0].mxu0
    %v5373 = vadd.f32 %v4958, %v5372
    %v5374 = vpop.f32.mrb[0].mxu0
    %v5375 = vadd.f32 %v4960, %v5374
    %5376 = vmatprep.mubr.f32.mxu0 0.0
    %v5377 = vand.u32 %v4776, 4294901760
    %5378 = vmatmul.mubr.f32.gmra.mrb[0].mxu0 %v5377
    %v5379 = vpop.f32.mrb[0].mxu0
    %v5380 = vadd.f32 %v4969, %v5379
    %v5381 = vpop.f32.mrb[0].mxu0
    %v5382 = vadd.f32 %v4971, %v5381
    %5383 = vmatprep.mubr.f32.mxu0 0.0
    %v5384 = vand.u32 %v4779, 4294901760
    %5385 = vmatmul.mubr.f32.gmra.mrb[0].mxu0 %v5384
    %v5386 = vpop.f32.mrb[0].mxu0
    %v5387 = vadd.f32 %v4980, %v5386
    %v5388 = vpop.f32.mrb[0].mxu0
    %v5389 = vadd.f32 %v4982, %v5388
    %5390 = vmatprep.mubr.f32.mxu0 0.0
    %v5391 = vand.u32 %v4782, 4294901760
    %5392 = vmatmul.mubr.f32.gmra.mrb[0].mxu0 %v5391
    %v5393 = vpop.f32.mrb[0].mxu0
    %v5394 = vadd.f32 %v4991, %v5393
    %v5395 = vpop.f32.mrb[0].mxu0
    %v5396 = vadd.f32 %v4993, %v5395
    %5397 = vmatprep.mubr.f32.mxu0 0.0
    %v5398 = vand.u32 %v4785, 4294901760
    %5399 = vmatmul.mubr.f32.gmra.mrb[0].mxu0 %v5398
    %v5400 = vpop.f32.mrb[0].mxu0
    %v5401 = vadd.f32 %v5002, %v5400
    %v5402 = vpop.f32.mrb[0].mxu0
    %v5403 = vadd.f32 %v5004, %v5402
    %5404 = vmatprep.mubr.f32.mxu0 0.0
    %v5405 = vand.u32 %v4788, 4294901760
    %5406 = vmatmul.mubr.f32.gmra.mrb[0].mxu0 %v5405
    %v5407 = vpop.f32.mrb[0].mxu0
    %v5408 = vadd.f32 %v5013, %v5407
    %v5409 = vpop.f32.mrb[0].mxu0
    %v5410 = vadd.f32 %v5015, %v5409
    %5411 = vmatprep.mubr.f32.mxu0 0.0
    %v5412 = vand.u32 %v4791, 4294901760
    %5413 = vmatmul.mubr.f32.gmra.mrb[0].mxu0 %v5412
    %v5414 = vpop.f32.mrb[0].mxu0
    %v5415 = vadd.f32 %v5024, %v5414
    %v5416 = vpop.f32.mrb[0].mxu0
    %v5417 = vadd.f32 %v5026, %v5416
    %5418 = vmatprep.mubr.f32.mxu0 0.0
    %v5419 = vand.u32 %v4794, 4294901760
    %5420 = vmatmul.mubr.f32.gmra.mrb[0].mxu0 %v5419
    %v5421 = vpop.f32.mrb[0].mxu0
    %v5422 = vadd.f32 %v5035, %v5421
    %v5423 = vpop.f32.mrb[0].mxu0
    %v5424 = vadd.f32 %v5037, %v5423
    %5425 = vmatprep.mubr.f32.mxu0 0.0
    %v5426 = vand.u32 %v4797, 4294901760
    %5427 = vmatmul.mubr.f32.gmra.mrb[0].mxu0 %v5426
    %v5428 = vpop.f32.mrb[0].mxu0
    %v5429 = vadd.f32 %v5046, %v5428
    %v5430 = vpop.f32.mrb[0].mxu0
    %v5431 = vadd.f32 %v5048, %v5430
    %5432 = vmatprep.mubr.f32.mxu0 0.0
    %v5433 = vand.u32 %v4800, 4294901760
    %5434 = vmatmul.mubr.f32.gmra.mrb[0].mxu0 %v5433
    %v5435 = vpop.f32.mrb[0].mxu0
    %v5436 = vadd.f32 %v5057, %v5435
    %v5437 = vpop.f32.mrb[0].mxu0
    %v5438 = vadd.f32 %v5059, %v5437
    %5439 = vmatprep.mubr.f32.mxu0 0.0
    %v5440 = vand.u32 %v4803, 4294901760
    %5441 = vmatmul.mubr.f32.gmra.mrb[0].mxu0 %v5440
    %v5442 = vpop.f32.mrb[0].mxu0
    %v5443 = vadd.f32 %v5068, %v5442
    %v5444 = vpop.f32.mrb[0].mxu0
    %v5445 = vadd.f32 %v5070, %v5444
    %5446 = vmatprep.mubr.f32.mxu0 0.0
    %v5447 = vand.u32 %v4806, 4294901760
    %5448 = vmatmul.mubr.f32.gmra.mrb[0].mxu0 %v5447
    %v5449 = vpop.f32.mrb[0].mxu0
    %v5450 = vadd.f32 %v5079, %v5449
    %v5451 = vpop.f32.mrb[0].mxu0
    %v5452 = vadd.f32 %v5081, %v5451
    %5453 = vmatprep.mubr.f32.mxu0 0.0
    %v5454 = vand.u32 %v4809, 4294901760
    %5455 = vmatmul.mubr.f32.gmra.mrb[0].mxu0 %v5454
    %v5456 = vpop.f32.mrb[0].mxu0
    %v5457 = vadd.f32 %v5090, %v5456
    %v5458 = vpop.f32.mrb[0].mxu0
    %v5459 = vadd.f32 %v5092, %v5458
    %5460 = vmatprep.mubr.f32.mxu0 0.0
    %v5461 = vand.u32 %v4812, 4294901760
    %5462 = vmatmul.mubr.f32.gmra.mrb[0].mxu0 %v5461
    %v5463 = vpop.f32.mrb[0].mxu0
    %v5464 = vadd.f32 %v5101, %v5463
    %v5465 = vpop.f32.mrb[0].mxu0
    %v5466 = vadd.f32 %v5103, %v5465
    %5467 = vmatprep.mubr.f32.mxu0 0.0
    %v5468 = vand.u32 %v4815, 4294901760
    %5469 = vmatmul.mubr.f32.gmra.mrb[0].mxu0 %v5468
    %v5470 = vpop.f32.mrb[0].mxu0
    %v5471 = vadd.f32 %v5112, %v5470
    %v5472 = vpop.f32.mrb[0].mxu0
    %v5473 = vadd.f32 %v5114, %v5472
    %5474 = vmatprep.mubr.f32.mxu0 0.0
    %v5475 = vand.u32 %v4818, 4294901760
    %5476 = vmatmul.mubr.f32.gmra.mrb[0].mxu0 %v5475
    %v5477 = vpop.f32.mrb[0].mxu0
    %v5478 = vadd.f32 %v5123, %v5477
    %v5479 = vpop.f32.mrb[0].mxu0
    %v5480 = vadd.f32 %v5125, %v5479
    %5481 = vmatprep.mubr.f32.mxu0 0.0
    %v5482 = vand.u32 %v4821, 4294901760
    %5483 = vmatmul.mubr.f32.gmra.mrb[0].mxu0 %v5482
    %v5484 = vpop.f32.mrb[0].mxu0
    %v5485 = vadd.f32 %v5134, %v5484
    %v5486 = vpop.f32.mrb[0].mxu0
    %v5487 = vadd.f32 %v5136, %v5486
    %5488 = vmatprep.mubr.f32.mxu0 0.0
    %v5489 = vand.u32 %v4824, 4294901760
    %5490 = vmatmul.mubr.f32.gmra.mrb[0].mxu0 %v5489
    %v5491 = vpop.f32.mrb[0].mxu0
    %v5492 = vadd.f32 %v5145, %v5491
    %v5493 = vpop.f32.mrb[0].mxu0
    %v5494 = vadd.f32 %v5147, %v5493
    %5495 = vmatprep.mubr.f32.mxu0 0.0
    %v5496 = vand.u32 %v4827, 4294901760
    %5497 = vmatmul.mubr.f32.gmra.mrb[0].mxu0 %v5496
    %v5498 = vpop.f32.mrb[0].mxu0
    %v5499 = vadd.f32 %v5156, %v5498
    %v5500 = vpop.f32.mrb[0].mxu0
    %v5501 = vadd.f32 %v5158, %v5500
    %5502 = vmatprep.mubr.f32.mxu0 0.0
    %v5503 = vand.u32 %v4830, 4294901760
    %5504 = vmatmul.mubr.f32.gmra.mrb[0].mxu0 %v5503
    %v5505 = vpop.f32.mrb[0].mxu0
    %v5506 = vadd.f32 %v5167, %v5505
    %v5507 = vpop.f32.mrb[0].mxu0
    %v5508 = vadd.f32 %v5169, %v5507
    %5509 = vmatprep.mubr.f32.mxu0 0.0
    %v5510 = vand.u32 %v4833, 4294901760
    %5511 = vmatmul.mubr.f32.gmra.mrb[0].mxu0 %v5510
    %v5512 = vpop.f32.mrb[0].mxu0
    %v5513 = vadd.f32 %v5178, %v5512
    %v5514 = vpop.f32.mrb[0].mxu0
    %v5515 = vadd.f32 %v5180, %v5514
    %5516 = vmatprep.mubr.f32.mxu0 0.0
    %v5517 = vand.u32 %v4836, 4294901760
    %5518 = vmatmul.mubr.f32.gmra.mrb[0].mxu0 %v5517
    %v5519 = vpop.f32.mrb[0].mxu0
    %v5520 = vadd.f32 %v5189, %v5519
    %v5521 = vpop.f32.mrb[0].mxu0
    %v5522 = vadd.f32 %v5191, %v5521
    %5523 = vmatprep.mubr.f32.mxu0 0.0
    %v5524 = vand.u32 %v4839, 4294901760
    %5525 = vmatmul.mubr.f32.gmra.mrb[0].mxu0 %v5524
    %v5526 = vpop.f32.mrb[0].mxu0
    %v5527 = vadd.f32 %v5200, %v5526
    %v5528 = vpop.f32.mrb[0].mxu0
    %v5529 = vadd.f32 %v5202, %v5528
    %5530 = vmatprep.mubr.f32.mxu0 0.0
    %v5531 = vand.u32 %v4842, 4294901760
    %5532 = vmatmul.mubr.f32.gmra.mrb[0].mxu0 %v5531
    %v5533 = vpop.f32.mrb[0].mxu0
    %v5534 = vadd.f32 %v5211, %v5533
    %v5535 = vpop.f32.mrb[0].mxu0
    %v5536 = vadd.f32 %v5213, %v5535
    %5537 = vmatprep.mubr.f32.mxu0 0.0
    %v5538 = vand.u32 %v4845, 4294901760
    %5539 = vmatmul.mubr.f32.gmra.mrb[0].mxu0 %v5538
    %v5540 = vpop.f32.mrb[0].mxu0
    %v5541 = vadd.f32 %v5222, %v5540
    %v5542 = vpop.f32.mrb[0].mxu0
    %v5543 = vadd.f32 %v5224, %v5542
    %5544 = vmatprep.mubr.f32.mxu0 0.0
    %v5545 = vand.u32 %v4848, 4294901760
    %5546 = vmatmul.mubr.f32.gmra.mrb[0].mxu0 %v5545
    %v5547 = vpop.f32.mrb[0].mxu0
    %v5548 = vadd.f32 %v5233, %v5547
    %v5549 = vpop.f32.mrb[0].mxu0
    %v5550 = vadd.f32 %v5235, %v5549
    %5551 = vmatprep.mubr.f32.mxu0 0.0
    %v5552 = vand.u32 %v4851, 4294901760
    %5553 = vmatmul.mubr.f32.gmra.mrb[0].mxu0 %v5552
    %v5554 = vpop.f32.mrb[0].mxu0
    %v5555 = vadd.f32 %v5244, %v5554
    %v5556 = vpop.f32.mrb[0].mxu0
    %v5557 = vadd.f32 %v5246, %v5556
    %5558 = vmatprep.mubr.f32.mxu0 0.0
    %v5559 = vand.u32 %v4854, 4294901760
    %5560 = vmatmul.mubr.f32.gmra.mrb[0].mxu0 %v5559
    %v5561 = vpop.f32.mrb[0].mxu0
    %v5562 = vadd.f32 %v5255, %v5561
    %v5563 = vpop.f32.mrb[0].mxu0
    %v5564 = vadd.f32 %v5257, %v5563
    %5565 = vmatprep.mubr.f32.mxu0 0.0
    %v5566 = vand.u32 %v4857, 4294901760
    %5567 = vmatmul.mubr.f32.gmra.mrb[0].mxu0 %v5566
    %v5568 = vpop.f32.mrb[0].mxu0
    %v5569 = vadd.f32 %v5266, %v5568
    %v5570 = vpop.f32.mrb[0].mxu0
    %v5571 = vadd.f32 %v5268, %v5570
    %5572 = vmatprep.mubr.f32.mxu0 0.0
    %v5573 = vand.u32 %v4860, 4294901760
    %5574 = vmatmul.mubr.f32.gmra.mrb[0].mxu0 %v5573
    %v5575 = vpop.f32.mrb[0].mxu0
    %v5576 = vadd.f32 %v5277, %v5575
    %v5577 = vpop.f32.mrb[0].mxu0
    %v5578 = vadd.f32 %v5279, %v5577
    %5579 = vdwg.mxu0
    %v5580 = vand.u32 %v217, 4294901760
    %v5581 = vsub.f32 %v217, %v5580
    %5582 = vmatprep.subr.mxu0 %v5581
    %v5583 = vand.u32 %v215, 4294901760
    %v5584 = vsub.f32 %v215, %v5583
    %5585 = vmatpush1.msra.mxu0 %v5584
    %5586 = vmatprep.subr.mxu0 0.0
    %5587 = vmatpush1.msra.mxu0 0.0
    %5588 = vmatprep.subr.mxu0 0.0
    %5589 = vmatpush1.msra.mxu0 0.0
    %5590 = vmatprep.subr.mxu0 0.0
    %5591 = vmatpush1.msra.mxu0 0.0
    %5592 = vmatprep.subr.mxu0 0.0
    %5593 = vmatpush1.msra.mxu0 0.0
    %5594 = vmatprep.subr.mxu0 0.0
    %5595 = vmatpush1.msra.mxu0 0.0
    %5596 = vmatprep.subr.mxu0 0.0
    %5597 = vmatpush1.msra.mxu0 0.0
    %5598 = vmatprep.subr.mxu0 0.0
    %5599 = vmatpush1.msra.mxu0 0.0
    %5600 = vmatprep.subr.mxu0 0.0
    %5601 = vmatpush1.msra.mxu0 0.0
    %5602 = vmatprep.subr.mxu0 0.0
    %5603 = vmatpush1.msra.mxu0 0.0
    %5604 = vmatprep.subr.mxu0 0.0
    %5605 = vmatpush1.msra.mxu0 0.0
    %5606 = vmatprep.subr.mxu0 0.0
    %5607 = vmatpush1.msra.mxu0 0.0
    %5608 = vmatprep.subr.mxu0 0.0
    %5609 = vmatpush1.msra.mxu0 0.0
    %5610 = vmatprep.subr.mxu0 0.0
    %5611 = vmatpush1.msra.mxu0 0.0
    %5612 = vmatprep.subr.mxu0 0.0
    %5613 = vmatpush1.msra.mxu0 0.0
    %5614 = vmatprep.subr.mxu0 0.0
    %5615 = vmatpush1.msra.mxu0 0.0
    %5616 = vmatprep.subr.mxu0 0.0
    %5617 = vmatpush1.msra.mxu0 0.0
    %5618 = vmatprep.subr.mxu0 0.0
    %5619 = vmatpush1.msra.mxu0 0.0
    %5620 = vmatprep.subr.mxu0 0.0
    %5621 = vmatpush1.msra.mxu0 0.0
    %5622 = vmatprep.subr.mxu0 0.0
    %5623 = vmatpush1.msra.mxu0 0.0
    %5624 = vmatprep.subr.mxu0 0.0
    %5625 = vmatpush1.msra.mxu0 0.0
    %5626 = vmatprep.subr.mxu0 0.0
    %5627 = vmatpush1.msra.mxu0 0.0
    %5628 = vmatprep.subr.mxu0 0.0
    %5629 = vmatpush1.msra.mxu0 0.0
    %5630 = vmatprep.subr.mxu0 0.0
    %5631 = vmatpush1.msra.mxu0 0.0
    %5632 = vmatprep.subr.mxu0 0.0
    %5633 = vmatpush1.msra.mxu0 0.0
    %5634 = vmatprep.subr.mxu0 0.0
    %5635 = vmatpush1.msra.mxu0 0.0
    %5636 = vmatprep.subr.mxu0 0.0
    %5637 = vmatpush1.msra.mxu0 0.0
    %5638 = vmatprep.subr.mxu0 0.0
    %5639 = vmatpush1.msra.mxu0 0.0
    %5640 = vmatprep.subr.mxu0 0.0
    %5641 = vmatpush1.msra.mxu0 0.0
    %5642 = vmatprep.subr.mxu0 0.0
    %5643 = vmatpush1.msra.mxu0 0.0
    %5644 = vmatprep.subr.mxu0 0.0
    %5645 = vmatpush1.msra.mxu0 0.0
    %5646 = vmatprep.subr.mxu0 0.0
    %5647 = vmatpush1.msra.mxu0 0.0
    %5648 = vmatprep.mubr.f32.mxu0 0.0
    %v5649 = vand.u32 %v4767, 4294901760
    %v5650 = vsub.f32 %v4767, %v5649
    %5651 = vmatmul.mubr.f32.gmra.mrb[0].mxu0 %v5650
    %v5652 = vpop.f32.mrb[0].mxu0
    %v5653 = vadd.f32 %v5359, %v5652
    %v5654 = vpop.f32.mrb[0].mxu0
    %v5655 = vadd.f32 %v5361, %v5654
    %5656 = vmatprep.mubr.f32.mxu0 0.0
    %v5657 = vand.u32 %v4770, 4294901760
    %v5658 = vsub.f32 %v4770, %v5657
    %5659 = vmatmul.mubr.f32.gmra.mrb[0].mxu0 %v5658
    %v5660 = vpop.f32.mrb[0].mxu0
    %v5661 = vadd.f32 %v5366, %v5660
    %v5662 = vpop.f32.mrb[0].mxu0
    %v5663 = vadd.f32 %v5368, %v5662
    %5664 = vmatprep.mubr.f32.mxu0 0.0
    %v5665 = vand.u32 %v4773, 4294901760
    %v5666 = vsub.f32 %v4773, %v5665
    %5667 = vmatmul.mubr.f32.gmra.mrb[0].mxu0 %v5666
    %v5668 = vpop.f32.mrb[0].mxu0
    %v5669 = vadd.f32 %v5373, %v5668
    %v5670 = vpop.f32.mrb[0].mxu0
    %v5671 = vadd.f32 %v5375, %v5670
    %5672 = vmatprep.mubr.f32.mxu0 0.0
    %v5673 = vand.u32 %v4776, 4294901760
    %v5674 = vsub.f32 %v4776, %v5673
    %5675 = vmatmul.mubr.f32.gmra.mrb[0].mxu0 %v5674
    %v5676 = vpop.f32.mrb[0].mxu0
    %v5677 = vadd.f32 %v5380, %v5676
    %v5678 = vpop.f32.mrb[0].mxu0
    %v5679 = vadd.f32 %v5382, %v5678
    %5680 = vmatprep.mubr.f32.mxu0 0.0
    %v5681 = vand.u32 %v4779, 4294901760
    %v5682 = vsub.f32 %v4779, %v5681
    %5683 = vmatmul.mubr.f32.gmra.mrb[0].mxu0 %v5682
    %v5684 = vpop.f32.mrb[0].mxu0
    %v5685 = vadd.f32 %v5387, %v5684
    %v5686 = vpop.f32.mrb[0].mxu0
    %v5687 = vadd.f32 %v5389, %v5686
    %5688 = vmatprep.mubr.f32.mxu0 0.0
    %v5689 = vand.u32 %v4782, 4294901760
    %v5690 = vsub.f32 %v4782, %v5689
    %5691 = vmatmul.mubr.f32.gmra.mrb[0].mxu0 %v5690
    %v5692 = vpop.f32.mrb[0].mxu0
    %v5693 = vadd.f32 %v5394, %v5692
    %v5694 = vpop.f32.mrb[0].mxu0
    %v5695 = vadd.f32 %v5396, %v5694
    %5696 = vmatprep.mubr.f32.mxu0 0.0
    %v5697 = vand.u32 %v4785, 4294901760
    %v5698 = vsub.f32 %v4785, %v5697
    %5699 = vmatmul.mubr.f32.gmra.mrb[0].mxu0 %v5698
    %v5700 = vpop.f32.mrb[0].mxu0
    %v5701 = vadd.f32 %v5401, %v5700
    %v5702 = vpop.f32.mrb[0].mxu0
    %v5703 = vadd.f32 %v5403, %v5702
    %5704 = vmatprep.mubr.f32.mxu0 0.0
    %v5705 = vand.u32 %v4788, 4294901760
    %v5706 = vsub.f32 %v4788, %v5705
    %5707 = vmatmul.mubr.f32.gmra.mrb[0].mxu0 %v5706
    %v5708 = vpop.f32.mrb[0].mxu0
    %v5709 = vadd.f32 %v5408, %v5708
    %v5710 = vpop.f32.mrb[0].mxu0
    %v5711 = vadd.f32 %v5410, %v5710
    %5712 = vmatprep.mubr.f32.mxu0 0.0
    %v5713 = vand.u32 %v4791, 4294901760
    %v5714 = vsub.f32 %v4791, %v5713
    %5715 = vmatmul.mubr.f32.gmra.mrb[0].mxu0 %v5714
    %v5716 = vpop.f32.mrb[0].mxu0
    %v5717 = vadd.f32 %v5415, %v5716
    %v5718 = vpop.f32.mrb[0].mxu0
    %v5719 = vadd.f32 %v5417, %v5718
    %5720 = vmatprep.mubr.f32.mxu0 0.0
    %v5721 = vand.u32 %v4794, 4294901760
    %v5722 = vsub.f32 %v4794, %v5721
    %5723 = vmatmul.mubr.f32.gmra.mrb[0].mxu0 %v5722
    %v5724 = vpop.f32.mrb[0].mxu0
    %v5725 = vadd.f32 %v5422, %v5724
    %v5726 = vpop.f32.mrb[0].mxu0
    %v5727 = vadd.f32 %v5424, %v5726
    %5728 = vmatprep.mubr.f32.mxu0 0.0
    %v5729 = vand.u32 %v4797, 4294901760
    %v5730 = vsub.f32 %v4797, %v5729
    %5731 = vmatmul.mubr.f32.gmra.mrb[0].mxu0 %v5730
    %v5732 = vpop.f32.mrb[0].mxu0
    %v5733 = vadd.f32 %v5429, %v5732
    %v5734 = vpop.f32.mrb[0].mxu0
    %v5735 = vadd.f32 %v5431, %v5734
    %5736 = vmatprep.mubr.f32.mxu0 0.0
    %v5737 = vand.u32 %v4800, 4294901760
    %v5738 = vsub.f32 %v4800, %v5737
    %5739 = vmatmul.mubr.f32.gmra.mrb[0].mxu0 %v5738
    %v5740 = vpop.f32.mrb[0].mxu0
    %v5741 = vadd.f32 %v5436, %v5740
    %v5742 = vpop.f32.mrb[0].mxu0
    %v5743 = vadd.f32 %v5438, %v5742
    %5744 = vmatprep.mubr.f32.mxu0 0.0
    %v5745 = vand.u32 %v4803, 4294901760
    %v5746 = vsub.f32 %v4803, %v5745
    %5747 = vmatmul.mubr.f32.gmra.mrb[0].mxu0 %v5746
    %v5748 = vpop.f32.mrb[0].mxu0
    %v5749 = vadd.f32 %v5443, %v5748
    %v5750 = vpop.f32.mrb[0].mxu0
    %v5751 = vadd.f32 %v5445, %v5750
    %5752 = vmatprep.mubr.f32.mxu0 0.0
    %v5753 = vand.u32 %v4806, 4294901760
    %v5754 = vsub.f32 %v4806, %v5753
    %5755 = vmatmul.mubr.f32.gmra.mrb[0].mxu0 %v5754
    %v5756 = vpop.f32.mrb[0].mxu0
    %v5757 = vadd.f32 %v5450, %v5756
    %v5758 = vpop.f32.mrb[0].mxu0
    %v5759 = vadd.f32 %v5452, %v5758
    %5760 = vmatprep.mubr.f32.mxu0 0.0
    %v5761 = vand.u32 %v4809, 4294901760
    %v5762 = vsub.f32 %v4809, %v5761
    %5763 = vmatmul.mubr.f32.gmra.mrb[0].mxu0 %v5762
    %v5764 = vpop.f32.mrb[0].mxu0
    %v5765 = vadd.f32 %v5457, %v5764
    %v5766 = vpop.f32.mrb[0].mxu0
    %v5767 = vadd.f32 %v5459, %v5766
    %5768 = vmatprep.mubr.f32.mxu0 0.0
    %v5769 = vand.u32 %v4812, 4294901760
    %v5770 = vsub.f32 %v4812, %v5769
    %5771 = vmatmul.mubr.f32.gmra.mrb[0].mxu0 %v5770
    %v5772 = vpop.f32.mrb[0].mxu0
    %v5773 = vadd.f32 %v5464, %v5772
    %v5774 = vpop.f32.mrb[0].mxu0
    %v5775 = vadd.f32 %v5466, %v5774
    %5776 = vmatprep.mubr.f32.mxu0 0.0
    %v5777 = vand.u32 %v4815, 4294901760
    %v5778 = vsub.f32 %v4815, %v5777
    %5779 = vmatmul.mubr.f32.gmra.mrb[0].mxu0 %v5778
    %v5780 = vpop.f32.mrb[0].mxu0
    %v5781 = vadd.f32 %v5471, %v5780
    %v5782 = vpop.f32.mrb[0].mxu0
    %v5783 = vadd.f32 %v5473, %v5782
    %5784 = vmatprep.mubr.f32.mxu0 0.0
    %v5785 = vand.u32 %v4818, 4294901760
    %v5786 = vsub.f32 %v4818, %v5785
    %5787 = vmatmul.mubr.f32.gmra.mrb[0].mxu0 %v5786
    %v5788 = vpop.f32.mrb[0].mxu0
    %v5789 = vadd.f32 %v5478, %v5788
    %v5790 = vpop.f32.mrb[0].mxu0
    %v5791 = vadd.f32 %v5480, %v5790
    %5792 = vmatprep.mubr.f32.mxu0 0.0
    %v5793 = vand.u32 %v4821, 4294901760
    %v5794 = vsub.f32 %v4821, %v5793
    %5795 = vmatmul.mubr.f32.gmra.mrb[0].mxu0 %v5794
    %v5796 = vpop.f32.mrb[0].mxu0
    %v5797 = vadd.f32 %v5485, %v5796
    %v5798 = vpop.f32.mrb[0].mxu0
    %v5799 = vadd.f32 %v5487, %v5798
    %5800 = vmatprep.mubr.f32.mxu0 0.0
    %v5801 = vand.u32 %v4824, 4294901760
    %v5802 = vsub.f32 %v4824, %v5801
    %5803 = vmatmul.mubr.f32.gmra.mrb[0].mxu0 %v5802
    %v5804 = vpop.f32.mrb[0].mxu0
    %v5805 = vadd.f32 %v5492, %v5804
    %v5806 = vpop.f32.mrb[0].mxu0
    %v5807 = vadd.f32 %v5494, %v5806
    %5808 = vmatprep.mubr.f32.mxu0 0.0
    %v5809 = vand.u32 %v4827, 4294901760
    %v5810 = vsub.f32 %v4827, %v5809
    %5811 = vmatmul.mubr.f32.gmra.mrb[0].mxu0 %v5810
    %v5812 = vpop.f32.mrb[0].mxu0
    %v5813 = vadd.f32 %v5499, %v5812
    %v5814 = vpop.f32.mrb[0].mxu0
    %v5815 = vadd.f32 %v5501, %v5814
    %5816 = vmatprep.mubr.f32.mxu0 0.0
    %v5817 = vand.u32 %v4830, 4294901760
    %v5818 = vsub.f32 %v4830, %v5817
    %5819 = vmatmul.mubr.f32.gmra.mrb[0].mxu0 %v5818
    %v5820 = vpop.f32.mrb[0].mxu0
    %v5821 = vadd.f32 %v5506, %v5820
    %v5822 = vpop.f32.mrb[0].mxu0
    %v5823 = vadd.f32 %v5508, %v5822
    %5824 = vmatprep.mubr.f32.mxu0 0.0
    %v5825 = vand.u32 %v4833, 4294901760
    %v5826 = vsub.f32 %v4833, %v5825
    %5827 = vmatmul.mubr.f32.gmra.mrb[0].mxu0 %v5826
    %v5828 = vpop.f32.mrb[0].mxu0
    %v5829 = vadd.f32 %v5513, %v5828
    %v5830 = vpop.f32.mrb[0].mxu0
    %v5831 = vadd.f32 %v5515, %v5830
    %5832 = vmatprep.mubr.f32.mxu0 0.0
    %v5833 = vand.u32 %v4836, 4294901760
    %v5834 = vsub.f32 %v4836, %v5833
    %5835 = vmatmul.mubr.f32.gmra.mrb[0].mxu0 %v5834
    %v5836 = vpop.f32.mrb[0].mxu0
    %v5837 = vadd.f32 %v5520, %v5836
    %v5838 = vpop.f32.mrb[0].mxu0
    %v5839 = vadd.f32 %v5522, %v5838
    %5840 = vmatprep.mubr.f32.mxu0 0.0
    %v5841 = vand.u32 %v4839, 4294901760
    %v5842 = vsub.f32 %v4839, %v5841
    %5843 = vmatmul.mubr.f32.gmra.mrb[0].mxu0 %v5842
    %v5844 = vpop.f32.mrb[0].mxu0
    %v5845 = vadd.f32 %v5527, %v5844
    %v5846 = vpop.f32.mrb[0].mxu0
    %v5847 = vadd.f32 %v5529, %v5846
    %5848 = vmatprep.mubr.f32.mxu0 0.0
    %v5849 = vand.u32 %v4842, 4294901760
    %v5850 = vsub.f32 %v4842, %v5849
    %5851 = vmatmul.mubr.f32.gmra.mrb[0].mxu0 %v5850
    %v5852 = vpop.f32.mrb[0].mxu0
    %v5853 = vadd.f32 %v5534, %v5852
    %v5854 = vpop.f32.mrb[0].mxu0
    %v5855 = vadd.f32 %v5536, %v5854
    %5856 = vmatprep.mubr.f32.mxu0 0.0
    %v5857 = vand.u32 %v4845, 4294901760
    %v5858 = vsub.f32 %v4845, %v5857
    %5859 = vmatmul.mubr.f32.gmra.mrb[0].mxu0 %v5858
    %v5860 = vpop.f32.mrb[0].mxu0
    %v5861 = vadd.f32 %v5541, %v5860
    %v5862 = vpop.f32.mrb[0].mxu0
    %v5863 = vadd.f32 %v5543, %v5862
    %5864 = vmatprep.mubr.f32.mxu0 0.0
    %v5865 = vand.u32 %v4848, 4294901760
    %v5866 = vsub.f32 %v4848, %v5865
    %5867 = vmatmul.mubr.f32.gmra.mrb[0].mxu0 %v5866
    %v5868 = vpop.f32.mrb[0].mxu0
    %v5869 = vadd.f32 %v5548, %v5868
    %v5870 = vpop.f32.mrb[0].mxu0
    %v5871 = vadd.f32 %v5550, %v5870
    %5872 = vmatprep.mubr.f32.mxu0 0.0
    %v5873 = vand.u32 %v4851, 4294901760
    %v5874 = vsub.f32 %v4851, %v5873
    %5875 = vmatmul.mubr.f32.gmra.mrb[0].mxu0 %v5874
    %v5876 = vpop.f32.mrb[0].mxu0
    %v5877 = vadd.f32 %v5555, %v5876
    %v5878 = vpop.f32.mrb[0].mxu0
    %v5879 = vadd.f32 %v5557, %v5878
    %5880 = vmatprep.mubr.f32.mxu0 0.0
    %v5881 = vand.u32 %v4854, 4294901760
    %v5882 = vsub.f32 %v4854, %v5881
    %5883 = vmatmul.mubr.f32.gmra.mrb[0].mxu0 %v5882
    %v5884 = vpop.f32.mrb[0].mxu0
    %v5885 = vadd.f32 %v5562, %v5884
    %v5886 = vpop.f32.mrb[0].mxu0
    %v5887 = vadd.f32 %v5564, %v5886
    %5888 = vmatprep.mubr.f32.mxu0 0.0
    %v5889 = vand.u32 %v4857, 4294901760
    %v5890 = vsub.f32 %v4857, %v5889
    %5891 = vmatmul.mubr.f32.gmra.mrb[0].mxu0 %v5890
    %v5892 = vpop.f32.mrb[0].mxu0
    %v5893 = vadd.f32 %v5569, %v5892
    %v5894 = vpop.f32.mrb[0].mxu0
    %v5895 = vadd.f32 %v5571, %v5894
    %5896 = vmatprep.mubr.f32.mxu0 0.0
    %v5897 = vand.u32 %v4860, 4294901760
    %v5898 = vsub.f32 %v4860, %v5897
    %5899 = vmatmul.mubr.f32.gmra.mrb[0].mxu0 %v5898
    %v5900 = vpop.f32.mrb[0].mxu0
    %v5901 = vadd.f32 %v5576, %v5900
    %v5902 = vpop.f32.mrb[0].mxu0
    %v5903 = vadd.f32 %v5578, %v5902
    %5904 = vdwg.mxu0
    %v5905 = vand.u32 %v217, 4294901760
    %5906 = vmatprep.subr.mxu0 %v5905
    %v5907 = vand.u32 %v215, 4294901760
    %5908 = vmatpush1.msra.mxu0 %v5907
    %5909 = vmatprep.subr.mxu0 0.0
    %5910 = vmatpush1.msra.mxu0 0.0
    %5911 = vmatprep.subr.mxu0 0.0
    %5912 = vmatpush1.msra.mxu0 0.0
    %5913 = vmatprep.subr.mxu0 0.0
    %5914 = vmatpush1.msra.mxu0 0.0
    %5915 = vmatprep.subr.mxu0 0.0
    %5916 = vmatpush1.msra.mxu0 0.0
    %5917 = vmatprep.subr.mxu0 0.0
    %5918 = vmatpush1.msra.mxu0 0.0
    %5919 = vmatprep.subr.mxu0 0.0
    %5920 = vmatpush1.msra.mxu0 0.0
    %5921 = vmatprep.subr.mxu0 0.0
    %5922 = vmatpush1.msra.mxu0 0.0
    %5923 = vmatprep.subr.mxu0 0.0
    %5924 = vmatpush1.msra.mxu0 0.0
    %5925 = vmatprep.subr.mxu0 0.0
    %5926 = vmatpush1.msra.mxu0 0.0
    %5927 = vmatprep.subr.mxu0 0.0
    %5928 = vmatpush1.msra.mxu0 0.0
    %5929 = vmatprep.subr.mxu0 0.0
    %5930 = vmatpush1.msra.mxu0 0.0
    %5931 = vmatprep.subr.mxu0 0.0
    %5932 = vmatpush1.msra.mxu0 0.0
    %5933 = vmatprep.subr.mxu0 0.0
    %5934 = vmatpush1.msra.mxu0 0.0
    %5935 = vmatprep.subr.mxu0 0.0
    %5936 = vmatpush1.msra.mxu0 0.0
    %5937 = vmatprep.subr.mxu0 0.0
    %5938 = vmatpush1.msra.mxu0 0.0
    %5939 = vmatprep.subr.mxu0 0.0
    %5940 = vmatpush1.msra.mxu0 0.0
    %5941 = vmatprep.subr.mxu0 0.0
    %5942 = vmatpush1.msra.mxu0 0.0
    %5943 = vmatprep.subr.mxu0 0.0
    %5944 = vmatpush1.msra.mxu0 0.0
    %5945 = vmatprep.subr.mxu0 0.0
    %5946 = vmatpush1.msra.mxu0 0.0
    %5947 = vmatprep.subr.mxu0 0.0
    %5948 = vmatpush1.msra.mxu0 0.0
    %5949 = vmatprep.subr.mxu0 0.0
    %5950 = vmatpush1.msra.mxu0 0.0
    %5951 = vmatprep.subr.mxu0 0.0
    %5952 = vmatpush1.msra.mxu0 0.0
    %5953 = vmatprep.subr.mxu0 0.0
    %5954 = vmatpush1.msra.mxu0 0.0
    %5955 = vmatprep.subr.mxu0 0.0
    %5956 = vmatpush1.msra.mxu0 0.0
    %5957 = vmatprep.subr.mxu0 0.0
    %5958 = vmatpush1.msra.mxu0 0.0
    %5959 = vmatprep.subr.mxu0 0.0
    %5960 = vmatpush1.msra.mxu0 0.0
    %5961 = vmatprep.subr.mxu0 0.0
    %5962 = vmatpush1.msra.mxu0 0.0
    %5963 = vmatprep.subr.mxu0 0.0
    %5964 = vmatpush1.msra.mxu0 0.0
    %5965 = vmatprep.subr.mxu0 0.0
    %5966 = vmatpush1.msra.mxu0 0.0
    %5967 = vmatprep.subr.mxu0 0.0
    %5968 = vmatpush1.msra.mxu0 0.0
    %5969 = vmatprep.subr.mxu0 0.0
    %5970 = vmatpush1.msra.mxu0 0.0
    %5971 = vmatprep.mubr.f32.mxu0 0.0
    %v5972 = vand.u32 %v4767, 4294901760
    %v5973 = vsub.f32 %v4767, %v5972
    %v5974 = vand.u32 %v5973, 4294901760
    %5975 = vmatmul.mubr.f32.gmra.mrb[0].mxu0 %v5974
    %v5976 = vpop.f32.mrb[0].mxu0
    %v5977 = vadd.f32 %v5653, %v5976
    %v5978 = vpop.f32.mrb[0].mxu0
    %v5979 = vadd.f32 %v5655, %v5978
    %5980 = vmatprep.mubr.f32.mxu0 0.0
    %v5981 = vand.u32 %v4770, 4294901760
    %v5982 = vsub.f32 %v4770, %v5981
    %v5983 = vand.u32 %v5982, 4294901760
    %5984 = vmatmul.mubr.f32.gmra.mrb[0].mxu0 %v5983
    %v5985 = vpop.f32.mrb[0].mxu0
    %v5986 = vadd.f32 %v5661, %v5985
    %v5987 = vpop.f32.mrb[0].mxu0
    %v5988 = vadd.f32 %v5663, %v5987
    %5989 = vmatprep.mubr.f32.mxu0 0.0
    %v5990 = vand.u32 %v4773, 4294901760
    %v5991 = vsub.f32 %v4773, %v5990
    %v5992 = vand.u32 %v5991, 4294901760
    %5993 = vmatmul.mubr.f32.gmra.mrb[0].mxu0 %v5992
    %v5994 = vpop.f32.mrb[0].mxu0
    %v5995 = vadd.f32 %v5669, %v5994
    %v5996 = vpop.f32.mrb[0].mxu0
    %v5997 = vadd.f32 %v5671, %v5996
    %5998 = vmatprep.mubr.f32.mxu0 0.0
    %v5999 = vand.u32 %v4776, 4294901760
    %v6000 = vsub.f32 %v4776, %v5999
    %v6001 = vand.u32 %v6000, 4294901760
    %6002 = vmatmul.mubr.f32.gmra.mrb[0].mxu0 %v6001
    %v6003 = vpop.f32.mrb[0].mxu0
    %v6004 = vadd.f32 %v5677, %v6003
    %v6005 = vpop.f32.mrb[0].mxu0
    %v6006 = vadd.f32 %v5679, %v6005
    %6007 = vmatprep.mubr.f32.mxu0 0.0
    %v6008 = vand.u32 %v4779, 4294901760
    %v6009 = vsub.f32 %v4779, %v6008
    %v6010 = vand.u32 %v6009, 4294901760
    %6011 = vmatmul.mubr.f32.gmra.mrb[0].mxu0 %v6010
    %v6012 = vpop.f32.mrb[0].mxu0
    %v6013 = vadd.f32 %v5685, %v6012
    %v6014 = vpop.f32.mrb[0].mxu0
    %v6015 = vadd.f32 %v5687, %v6014
    %6016 = vmatprep.mubr.f32.mxu0 0.0
    %v6017 = vand.u32 %v4782, 4294901760
    %v6018 = vsub.f32 %v4782, %v6017
    %v6019 = vand.u32 %v6018, 4294901760
    %6020 = vmatmul.mubr.f32.gmra.mrb[0].mxu0 %v6019
    %v6021 = vpop.f32.mrb[0].mxu0
    %v6022 = vadd.f32 %v5693, %v6021
    %v6023 = vpop.f32.mrb[0].mxu0
    %v6024 = vadd.f32 %v5695, %v6023
    %6025 = vmatprep.mubr.f32.mxu0 0.0
    %v6026 = vand.u32 %v4785, 4294901760
    %v6027 = vsub.f32 %v4785, %v6026
    %v6028 = vand.u32 %v6027, 4294901760
    %6029 = vmatmul.mubr.f32.gmra.mrb[0].mxu0 %v6028
    %v6030 = vpop.f32.mrb[0].mxu0
    %v6031 = vadd.f32 %v5701, %v6030
    %v6032 = vpop.f32.mrb[0].mxu0
    %v6033 = vadd.f32 %v5703, %v6032
    %6034 = vmatprep.mubr.f32.mxu0 0.0
    %v6035 = vand.u32 %v4788, 4294901760
    %v6036 = vsub.f32 %v4788, %v6035
    %v6037 = vand.u32 %v6036, 4294901760
    %6038 = vmatmul.mubr.f32.gmra.mrb[0].mxu0 %v6037
    %v6039 = vpop.f32.mrb[0].mxu0
    %v6040 = vadd.f32 %v5709, %v6039
    %v6041 = vpop.f32.mrb[0].mxu0
    %v6042 = vadd.f32 %v5711, %v6041
    %6043 = vmatprep.mubr.f32.mxu0 0.0
    %v6044 = vand.u32 %v4791, 4294901760
    %v6045 = vsub.f32 %v4791, %v6044
    %v6046 = vand.u32 %v6045, 4294901760
    %6047 = vmatmul.mubr.f32.gmra.mrb[0].mxu0 %v6046
    %v6048 = vpop.f32.mrb[0].mxu0
    %v6049 = vadd.f32 %v5717, %v6048
    %v6050 = vpop.f32.mrb[0].mxu0
    %v6051 = vadd.f32 %v5719, %v6050
    %6052 = vmatprep.mubr.f32.mxu0 0.0
    %v6053 = vand.u32 %v4794, 4294901760
    %v6054 = vsub.f32 %v4794, %v6053
    %v6055 = vand.u32 %v6054, 4294901760
    %6056 = vmatmul.mubr.f32.gmra.mrb[0].mxu0 %v6055
    %v6057 = vpop.f32.mrb[0].mxu0
    %v6058 = vadd.f32 %v5725, %v6057
    %v6059 = vpop.f32.mrb[0].mxu0
    %v6060 = vadd.f32 %v5727, %v6059
    %6061 = vmatprep.mubr.f32.mxu0 0.0
    %v6062 = vand.u32 %v4797, 4294901760
    %v6063 = vsub.f32 %v4797, %v6062
    %v6064 = vand.u32 %v6063, 4294901760
    %6065 = vmatmul.mubr.f32.gmra.mrb[0].mxu0 %v6064
    %v6066 = vpop.f32.mrb[0].mxu0
    %v6067 = vadd.f32 %v5733, %v6066
    %v6068 = vpop.f32.mrb[0].mxu0
    %v6069 = vadd.f32 %v5735, %v6068
    %6070 = vmatprep.mubr.f32.mxu0 0.0
    %v6071 = vand.u32 %v4800, 4294901760
    %v6072 = vsub.f32 %v4800, %v6071
    %v6073 = vand.u32 %v6072, 4294901760
    %6074 = vmatmul.mubr.f32.gmra.mrb[0].mxu0 %v6073
    %v6075 = vpop.f32.mrb[0].mxu0
    %v6076 = vadd.f32 %v5741, %v6075
    %v6077 = vpop.f32.mrb[0].mxu0
    %v6078 = vadd.f32 %v5743, %v6077
    %6079 = vmatprep.mubr.f32.mxu0 0.0
    %v6080 = vand.u32 %v4803, 4294901760
    %v6081 = vsub.f32 %v4803, %v6080
    %v6082 = vand.u32 %v6081, 4294901760
    %6083 = vmatmul.mubr.f32.gmra.mrb[0].mxu0 %v6082
    %v6084 = vpop.f32.mrb[0].mxu0
    %v6085 = vadd.f32 %v5749, %v6084
    %v6086 = vpop.f32.mrb[0].mxu0
    %v6087 = vadd.f32 %v5751, %v6086
    %6088 = vmatprep.mubr.f32.mxu0 0.0
    %v6089 = vand.u32 %v4806, 4294901760
    %v6090 = vsub.f32 %v4806, %v6089
    %v6091 = vand.u32 %v6090, 4294901760
    %6092 = vmatmul.mubr.f32.gmra.mrb[0].mxu0 %v6091
    %v6093 = vpop.f32.mrb[0].mxu0
    %v6094 = vadd.f32 %v5757, %v6093
    %v6095 = vpop.f32.mrb[0].mxu0
    %v6096 = vadd.f32 %v5759, %v6095
    %6097 = vmatprep.mubr.f32.mxu0 0.0
    %v6098 = vand.u32 %v4809, 4294901760
    %v6099 = vsub.f32 %v4809, %v6098
    %v6100 = vand.u32 %v6099, 4294901760
    %6101 = vmatmul.mubr.f32.gmra.mrb[0].mxu0 %v6100
    %v6102 = vpop.f32.mrb[0].mxu0
    %v6103 = vadd.f32 %v5765, %v6102
    %v6104 = vpop.f32.mrb[0].mxu0
    %v6105 = vadd.f32 %v5767, %v6104
    %6106 = vmatprep.mubr.f32.mxu0 0.0
    %v6107 = vand.u32 %v4812, 4294901760
    %v6108 = vsub.f32 %v4812, %v6107
    %v6109 = vand.u32 %v6108, 4294901760
    %6110 = vmatmul.mubr.f32.gmra.mrb[0].mxu0 %v6109
    %v6111 = vpop.f32.mrb[0].mxu0
    %v6112 = vadd.f32 %v5773, %v6111
    %v6113 = vpop.f32.mrb[0].mxu0
    %v6114 = vadd.f32 %v5775, %v6113
    %6115 = vmatprep.mubr.f32.mxu0 0.0
    %v6116 = vand.u32 %v4815, 4294901760
    %v6117 = vsub.f32 %v4815, %v6116
    %v6118 = vand.u32 %v6117, 4294901760
    %6119 = vmatmul.mubr.f32.gmra.mrb[0].mxu0 %v6118
    %v6120 = vpop.f32.mrb[0].mxu0
    %v6121 = vadd.f32 %v5781, %v6120
    %v6122 = vpop.f32.mrb[0].mxu0
    %v6123 = vadd.f32 %v5783, %v6122
    %6124 = vmatprep.mubr.f32.mxu0 0.0
    %v6125 = vand.u32 %v4818, 4294901760
    %v6126 = vsub.f32 %v4818, %v6125
    %v6127 = vand.u32 %v6126, 4294901760
    %6128 = vmatmul.mubr.f32.gmra.mrb[0].mxu0 %v6127
    %v6129 = vpop.f32.mrb[0].mxu0
    %v6130 = vadd.f32 %v5789, %v6129
    %v6131 = vpop.f32.mrb[0].mxu0
    %v6132 = vadd.f32 %v5791, %v6131
    %6133 = vmatprep.mubr.f32.mxu0 0.0
    %v6134 = vand.u32 %v4821, 4294901760
    %v6135 = vsub.f32 %v4821, %v6134
    %v6136 = vand.u32 %v6135, 4294901760
    %6137 = vmatmul.mubr.f32.gmra.mrb[0].mxu0 %v6136
    %v6138 = vpop.f32.mrb[0].mxu0
    %v6139 = vadd.f32 %v5797, %v6138
    %v6140 = vpop.f32.mrb[0].mxu0
    %v6141 = vadd.f32 %v5799, %v6140
    %6142 = vmatprep.mubr.f32.mxu0 0.0
    %v6143 = vand.u32 %v4824, 4294901760
    %v6144 = vsub.f32 %v4824, %v6143
    %v6145 = vand.u32 %v6144, 4294901760
    %6146 = vmatmul.mubr.f32.gmra.mrb[0].mxu0 %v6145
    %v6147 = vpop.f32.mrb[0].mxu0
    %v6148 = vadd.f32 %v5805, %v6147
    %v6149 = vpop.f32.mrb[0].mxu0
    %v6150 = vadd.f32 %v5807, %v6149
    %6151 = vmatprep.mubr.f32.mxu0 0.0
    %v6152 = vand.u32 %v4827, 4294901760
    %v6153 = vsub.f32 %v4827, %v6152
    %v6154 = vand.u32 %v6153, 4294901760
    %6155 = vmatmul.mubr.f32.gmra.mrb[0].mxu0 %v6154
    %v6156 = vpop.f32.mrb[0].mxu0
    %v6157 = vadd.f32 %v5813, %v6156
    %v6158 = vpop.f32.mrb[0].mxu0
    %v6159 = vadd.f32 %v5815, %v6158
    %6160 = vmatprep.mubr.f32.mxu0 0.0
    %v6161 = vand.u32 %v4830, 4294901760
    %v6162 = vsub.f32 %v4830, %v6161
    %v6163 = vand.u32 %v6162, 4294901760
    %6164 = vmatmul.mubr.f32.gmra.mrb[0].mxu0 %v6163
    %v6165 = vpop.f32.mrb[0].mxu0
    %v6166 = vadd.f32 %v5821, %v6165
    %v6167 = vpop.f32.mrb[0].mxu0
    %v6168 = vadd.f32 %v5823, %v6167
    %6169 = vmatprep.mubr.f32.mxu0 0.0
    %v6170 = vand.u32 %v4833, 4294901760
    %v6171 = vsub.f32 %v4833, %v6170
    %v6172 = vand.u32 %v6171, 4294901760
    %6173 = vmatmul.mubr.f32.gmra.mrb[0].mxu0 %v6172
    %v6174 = vpop.f32.mrb[0].mxu0
    %v6175 = vadd.f32 %v5829, %v6174
    %v6176 = vpop.f32.mrb[0].mxu0
    %v6177 = vadd.f32 %v5831, %v6176
    %6178 = vmatprep.mubr.f32.mxu0 0.0
    %v6179 = vand.u32 %v4836, 4294901760
    %v6180 = vsub.f32 %v4836, %v6179
    %v6181 = vand.u32 %v6180, 4294901760
    %6182 = vmatmul.mubr.f32.gmra.mrb[0].mxu0 %v6181
    %v6183 = vpop.f32.mrb[0].mxu0
    %v6184 = vadd.f32 %v5837, %v6183
    %v6185 = vpop.f32.mrb[0].mxu0
    %v6186 = vadd.f32 %v5839, %v6185
    %6187 = vmatprep.mubr.f32.mxu0 0.0
    %v6188 = vand.u32 %v4839, 4294901760
    %v6189 = vsub.f32 %v4839, %v6188
    %v6190 = vand.u32 %v6189, 4294901760
    %6191 = vmatmul.mubr.f32.gmra.mrb[0].mxu0 %v6190
    %v6192 = vpop.f32.mrb[0].mxu0
    %v6193 = vadd.f32 %v5845, %v6192
    %v6194 = vpop.f32.mrb[0].mxu0
    %v6195 = vadd.f32 %v5847, %v6194
    %6196 = vmatprep.mubr.f32.mxu0 0.0
    %v6197 = vand.u32 %v4842, 4294901760
    %v6198 = vsub.f32 %v4842, %v6197
    %v6199 = vand.u32 %v6198, 4294901760
    %6200 = vmatmul.mubr.f32.gmra.mrb[0].mxu0 %v6199
    %v6201 = vpop.f32.mrb[0].mxu0
    %v6202 = vadd.f32 %v5853, %v6201
    %v6203 = vpop.f32.mrb[0].mxu0
    %v6204 = vadd.f32 %v5855, %v6203
    %6205 = vmatprep.mubr.f32.mxu0 0.0
    %v6206 = vand.u32 %v4845, 4294901760
    %v6207 = vsub.f32 %v4845, %v6206
    %v6208 = vand.u32 %v6207, 4294901760
    %6209 = vmatmul.mubr.f32.gmra.mrb[0].mxu0 %v6208
    %v6210 = vpop.f32.mrb[0].mxu0
    %v6211 = vadd.f32 %v5861, %v6210
    %v6212 = vpop.f32.mrb[0].mxu0
    %v6213 = vadd.f32 %v5863, %v6212
    %6214 = vmatprep.mubr.f32.mxu0 0.0
    %v6215 = vand.u32 %v4848, 4294901760
    %v6216 = vsub.f32 %v4848, %v6215
    %v6217 = vand.u32 %v6216, 4294901760
    %6218 = vmatmul.mubr.f32.gmra.mrb[0].mxu0 %v6217
    %v6219 = vpop.f32.mrb[0].mxu0
    %v6220 = vadd.f32 %v5869, %v6219
    %v6221 = vpop.f32.mrb[0].mxu0
    %v6222 = vadd.f32 %v5871, %v6221
    %6223 = vmatprep.mubr.f32.mxu0 0.0
    %v6224 = vand.u32 %v4851, 4294901760
    %v6225 = vsub.f32 %v4851, %v6224
    %v6226 = vand.u32 %v6225, 4294901760
    %6227 = vmatmul.mubr.f32.gmra.mrb[0].mxu0 %v6226
    %v6228 = vpop.f32.mrb[0].mxu0
    %v6229 = vadd.f32 %v5877, %v6228
    %v6230 = vpop.f32.mrb[0].mxu0
    %v6231 = vadd.f32 %v5879, %v6230
    %6232 = vmatprep.mubr.f32.mxu0 0.0
    %v6233 = vand.u32 %v4854, 4294901760
    %v6234 = vsub.f32 %v4854, %v6233
    %v6235 = vand.u32 %v6234, 4294901760
    %6236 = vmatmul.mubr.f32.gmra.mrb[0].mxu0 %v6235
    %v6237 = vpop.f32.mrb[0].mxu0
    %v6238 = vadd.f32 %v5885, %v6237
    %v6239 = vpop.f32.mrb[0].mxu0
    %v6240 = vadd.f32 %v5887, %v6239
    %6241 = vmatprep.mubr.f32.mxu0 0.0
    %v6242 = vand.u32 %v4857, 4294901760
    %v6243 = vsub.f32 %v4857, %v6242
    %v6244 = vand.u32 %v6243, 4294901760
    %6245 = vmatmul.mubr.f32.gmra.mrb[0].mxu0 %v6244
    %v6246 = vpop.f32.mrb[0].mxu0
    %v6247 = vadd.f32 %v5893, %v6246
    %v6248 = vpop.f32.mrb[0].mxu0
    %v6249 = vadd.f32 %v5895, %v6248
    %6250 = vmatprep.mubr.f32.mxu0 0.0
    %v6251 = vand.u32 %v4860, 4294901760
    %v6252 = vsub.f32 %v4860, %v6251
    %v6253 = vand.u32 %v6252, 4294901760
    %6254 = vmatmul.mubr.f32.gmra.mrb[0].mxu0 %v6253
    %v6255 = vpop.f32.mrb[0].mxu0
    %v6256 = vadd.f32 %v5901, %v6255
    %v6257 = vpop.f32.mrb[0].mxu0
    %v6258 = vadd.f32 %v5903, %v6257
    %6259 = vdwg.mxu0
    %v6260 = vand.u32 %v217, 4294901760
    %v6261 = vsub.f32 %v217, %v6260
    %v6262 = vand.u32 %v6261, 4294901760
    %6263 = vmatprep.subr.mxu0 %v6262
    %v6264 = vand.u32 %v215, 4294901760
    %v6265 = vsub.f32 %v215, %v6264
    %v6266 = vand.u32 %v6265, 4294901760
    %6267 = vmatpush1.msra.mxu0 %v6266
    %6268 = vmatprep.subr.mxu0 0.0
    %6269 = vmatpush1.msra.mxu0 0.0
    %6270 = vmatprep.subr.mxu0 0.0
    %6271 = vmatpush1.msra.mxu0 0.0
    %6272 = vmatprep.subr.mxu0 0.0
    %6273 = vmatpush1.msra.mxu0 0.0
    %6274 = vmatprep.subr.mxu0 0.0
    %6275 = vmatpush1.msra.mxu0 0.0
    %6276 = vmatprep.subr.mxu0 0.0
    %6277 = vmatpush1.msra.mxu0 0.0
    %6278 = vmatprep.subr.mxu0 0.0
    %6279 = vmatpush1.msra.mxu0 0.0
    %6280 = vmatprep.subr.mxu0 0.0
    %6281 = vmatpush1.msra.mxu0 0.0
    %6282 = vmatprep.subr.mxu0 0.0
    %6283 = vmatpush1.msra.mxu0 0.0
    %6284 = vmatprep.subr.mxu0 0.0
    %6285 = vmatpush1.msra.mxu0 0.0
    %6286 = vmatprep.subr.mxu0 0.0
    %6287 = vmatpush1.msra.mxu0 0.0
    %6288 = vmatprep.subr.mxu0 0.0
    %6289 = vmatpush1.msra.mxu0 0.0
    %6290 = vmatprep.subr.mxu0 0.0
    %6291 = vmatpush1.msra.mxu0 0.0
    %6292 = vmatprep.subr.mxu0 0.0
    %6293 = vmatpush1.msra.mxu0 0.0
    %6294 = vmatprep.subr.mxu0 0.0
    %6295 = vmatpush1.msra.mxu0 0.0
    %6296 = vmatprep.subr.mxu0 0.0
    %6297 = vmatpush1.msra.mxu0 0.0
    %6298 = vmatprep.subr.mxu0 0.0
    %6299 = vmatpush1.msra.mxu0 0.0
    %6300 = vmatprep.subr.mxu0 0.0
    %6301 = vmatpush1.msra.mxu0 0.0
    %6302 = vmatprep.subr.mxu0 0.0
    %6303 = vmatpush1.msra.mxu0 0.0
    %6304 = vmatprep.subr.mxu0 0.0
    %6305 = vmatpush1.msra.mxu0 0.0
    %6306 = vmatprep.subr.mxu0 0.0
    %6307 = vmatpush1.msra.mxu0 0.0
    %6308 = vmatprep.subr.mxu0 0.0
    %6309 = vmatpush1.msra.mxu0 0.0
    %6310 = vmatprep.subr.mxu0 0.0
    %6311 = vmatpush1.msra.mxu0 0.0
    %6312 = vmatprep.subr.mxu0 0.0
    %6313 = vmatpush1.msra.mxu0 0.0
    %6314 = vmatprep.subr.mxu0 0.0
    %6315 = vmatpush1.msra.mxu0 0.0
    %6316 = vmatprep.subr.mxu0 0.0
    %6317 = vmatpush1.msra.mxu0 0.0
    %6318 = vmatprep.subr.mxu0 0.0
    %6319 = vmatpush1.msra.mxu0 0.0
    %6320 = vmatprep.subr.mxu0 0.0
    %6321 = vmatpush1.msra.mxu0 0.0
    %6322 = vmatprep.subr.mxu0 0.0
    %6323 = vmatpush1.msra.mxu0 0.0
    %6324 = vmatprep.subr.mxu0 0.0
    %6325 = vmatpush1.msra.mxu0 0.0
    %6326 = vmatprep.subr.mxu0 0.0
    %6327 = vmatpush1.msra.mxu0 0.0
    %6328 = vmatprep.subr.mxu0 0.0
    %6329 = vmatpush1.msra.mxu0 0.0
    %6330 = vmatprep.mubr.f32.mxu0 0.0
    %v6331 = vand.u32 %v4767, 4294901760
    %6332 = vmatmul.mubr.f32.gmra.mrb[0].mxu0 %v6331
    %v6333 = vpop.f32.mrb[0].mxu0
    %v6334 = vadd.f32 %v5977, %v6333
    %v6335 = vpop.f32.mrb[0].mxu0
    %v6336 = vadd.f32 %v5979, %v6335
    %6337 = vmatprep.mubr.f32.mxu0 0.0
    %v6338 = vand.u32 %v4770, 4294901760
    %6339 = vmatmul.mubr.f32.gmra.mrb[0].mxu0 %v6338
    %v6340 = vpop.f32.mrb[0].mxu0
    %v6341 = vadd.f32 %v5986, %v6340
    %v6342 = vpop.f32.mrb[0].mxu0
    %v6343 = vadd.f32 %v5988, %v6342
    %6344 = vmatprep.mubr.f32.mxu0 0.0
    %v6345 = vand.u32 %v4773, 4294901760
    %6346 = vmatmul.mubr.f32.gmra.mrb[0].mxu0 %v6345
    %v6347 = vpop.f32.mrb[0].mxu0
    %v6348 = vadd.f32 %v5995, %v6347
    %v6349 = vpop.f32.mrb[0].mxu0
    %v6350 = vadd.f32 %v5997, %v6349
    %6351 = vmatprep.mubr.f32.mxu0 0.0
    %v6352 = vand.u32 %v4776, 4294901760
    %6353 = vmatmul.mubr.f32.gmra.mrb[0].mxu0 %v6352
    %v6354 = vpop.f32.mrb[0].mxu0
    %v6355 = vadd.f32 %v6004, %v6354
    %v6356 = vpop.f32.mrb[0].mxu0
    %v6357 = vadd.f32 %v6006, %v6356
    %6358 = vmatprep.mubr.f32.mxu0 0.0
    %v6359 = vand.u32 %v4779, 4294901760
    %6360 = vmatmul.mubr.f32.gmra.mrb[0].mxu0 %v6359
    %v6361 = vpop.f32.mrb[0].mxu0
    %v6362 = vadd.f32 %v6013, %v6361
    %v6363 = vpop.f32.mrb[0].mxu0
    %v6364 = vadd.f32 %v6015, %v6363
    %6365 = vmatprep.mubr.f32.mxu0 0.0
    %v6366 = vand.u32 %v4782, 4294901760
    %6367 = vmatmul.mubr.f32.gmra.mrb[0].mxu0 %v6366
    %v6368 = vpop.f32.mrb[0].mxu0
    %v6369 = vadd.f32 %v6022, %v6368
    %v6370 = vpop.f32.mrb[0].mxu0
    %v6371 = vadd.f32 %v6024, %v6370
    %6372 = vmatprep.mubr.f32.mxu0 0.0
    %v6373 = vand.u32 %v4785, 4294901760
    %6374 = vmatmul.mubr.f32.gmra.mrb[0].mxu0 %v6373
    %v6375 = vpop.f32.mrb[0].mxu0
    %v6376 = vadd.f32 %v6031, %v6375
    %v6377 = vpop.f32.mrb[0].mxu0
    %v6378 = vadd.f32 %v6033, %v6377
    %6379 = vmatprep.mubr.f32.mxu0 0.0
    %v6380 = vand.u32 %v4788, 4294901760
    %6381 = vmatmul.mubr.f32.gmra.mrb[0].mxu0 %v6380
    %v6382 = vpop.f32.mrb[0].mxu0
    %v6383 = vadd.f32 %v6040, %v6382
    %v6384 = vpop.f32.mrb[0].mxu0
    %v6385 = vadd.f32 %v6042, %v6384
    %6386 = vmatprep.mubr.f32.mxu0 0.0
    %v6387 = vand.u32 %v4791, 4294901760
    %6388 = vmatmul.mubr.f32.gmra.mrb[0].mxu0 %v6387
    %v6389 = vpop.f32.mrb[0].mxu0
    %v6390 = vadd.f32 %v6049, %v6389
    %v6391 = vpop.f32.mrb[0].mxu0
    %v6392 = vadd.f32 %v6051, %v6391
    %6393 = vmatprep.mubr.f32.mxu0 0.0
    %v6394 = vand.u32 %v4794, 4294901760
    %6395 = vmatmul.mubr.f32.gmra.mrb[0].mxu0 %v6394
    %v6396 = vpop.f32.mrb[0].mxu0
    %v6397 = vadd.f32 %v6058, %v6396
    %v6398 = vpop.f32.mrb[0].mxu0
    %v6399 = vadd.f32 %v6060, %v6398
    %6400 = vmatprep.mubr.f32.mxu0 0.0
    %v6401 = vand.u32 %v4797, 4294901760
    %6402 = vmatmul.mubr.f32.gmra.mrb[0].mxu0 %v6401
    %v6403 = vpop.f32.mrb[0].mxu0
    %v6404 = vadd.f32 %v6067, %v6403
    %v6405 = vpop.f32.mrb[0].mxu0
    %v6406 = vadd.f32 %v6069, %v6405
    %6407 = vmatprep.mubr.f32.mxu0 0.0
    %v6408 = vand.u32 %v4800, 4294901760
    %6409 = vmatmul.mubr.f32.gmra.mrb[0].mxu0 %v6408
    %v6410 = vpop.f32.mrb[0].mxu0
    %v6411 = vadd.f32 %v6076, %v6410
    %v6412 = vpop.f32.mrb[0].mxu0
    %v6413 = vadd.f32 %v6078, %v6412
    %6414 = vmatprep.mubr.f32.mxu0 0.0
    %v6415 = vand.u32 %v4803, 4294901760
    %6416 = vmatmul.mubr.f32.gmra.mrb[0].mxu0 %v6415
    %v6417 = vpop.f32.mrb[0].mxu0
    %v6418 = vadd.f32 %v6085, %v6417
    %v6419 = vpop.f32.mrb[0].mxu0
    %v6420 = vadd.f32 %v6087, %v6419
    %6421 = vmatprep.mubr.f32.mxu0 0.0
    %v6422 = vand.u32 %v4806, 4294901760
    %6423 = vmatmul.mubr.f32.gmra.mrb[0].mxu0 %v6422
    %v6424 = vpop.f32.mrb[0].mxu0
    %v6425 = vadd.f32 %v6094, %v6424
    %v6426 = vpop.f32.mrb[0].mxu0
    %v6427 = vadd.f32 %v6096, %v6426
    %6428 = vmatprep.mubr.f32.mxu0 0.0
    %v6429 = vand.u32 %v4809, 4294901760
    %6430 = vmatmul.mubr.f32.gmra.mrb[0].mxu0 %v6429
    %v6431 = vpop.f32.mrb[0].mxu0
    %v6432 = vadd.f32 %v6103, %v6431
    %v6433 = vpop.f32.mrb[0].mxu0
    %v6434 = vadd.f32 %v6105, %v6433
    %6435 = vmatprep.mubr.f32.mxu0 0.0
    %v6436 = vand.u32 %v4812, 4294901760
    %6437 = vmatmul.mubr.f32.gmra.mrb[0].mxu0 %v6436
    %v6438 = vpop.f32.mrb[0].mxu0
    %v6439 = vadd.f32 %v6112, %v6438
    %v6440 = vpop.f32.mrb[0].mxu0
    %v6441 = vadd.f32 %v6114, %v6440
    %6442 = vmatprep.mubr.f32.mxu0 0.0
    %v6443 = vand.u32 %v4815, 4294901760
    %6444 = vmatmul.mubr.f32.gmra.mrb[0].mxu0 %v6443
    %v6445 = vpop.f32.mrb[0].mxu0
    %v6446 = vadd.f32 %v6121, %v6445
    %v6447 = vpop.f32.mrb[0].mxu0
    %v6448 = vadd.f32 %v6123, %v6447
    %6449 = vmatprep.mubr.f32.mxu0 0.0
    %v6450 = vand.u32 %v4818, 4294901760
    %6451 = vmatmul.mubr.f32.gmra.mrb[0].mxu0 %v6450
    %v6452 = vpop.f32.mrb[0].mxu0
    %v6453 = vadd.f32 %v6130, %v6452
    %v6454 = vpop.f32.mrb[0].mxu0
    %v6455 = vadd.f32 %v6132, %v6454
    %6456 = vmatprep.mubr.f32.mxu0 0.0
    %v6457 = vand.u32 %v4821, 4294901760
    %6458 = vmatmul.mubr.f32.gmra.mrb[0].mxu0 %v6457
    %v6459 = vpop.f32.mrb[0].mxu0
    %v6460 = vadd.f32 %v6139, %v6459
    %v6461 = vpop.f32.mrb[0].mxu0
    %v6462 = vadd.f32 %v6141, %v6461
    %6463 = vmatprep.mubr.f32.mxu0 0.0
    %v6464 = vand.u32 %v4824, 4294901760
    %6465 = vmatmul.mubr.f32.gmra.mrb[0].mxu0 %v6464
    %v6466 = vpop.f32.mrb[0].mxu0
    %v6467 = vadd.f32 %v6148, %v6466
    %v6468 = vpop.f32.mrb[0].mxu0
    %v6469 = vadd.f32 %v6150, %v6468
    %6470 = vmatprep.mubr.f32.mxu0 0.0
    %v6471 = vand.u32 %v4827, 4294901760
    %6472 = vmatmul.mubr.f32.gmra.mrb[0].mxu0 %v6471
    %v6473 = vpop.f32.mrb[0].mxu0
    %v6474 = vadd.f32 %v6157, %v6473
    %v6475 = vpop.f32.mrb[0].mxu0
    %v6476 = vadd.f32 %v6159, %v6475
    %6477 = vmatprep.mubr.f32.mxu0 0.0
    %v6478 = vand.u32 %v4830, 4294901760
    %6479 = vmatmul.mubr.f32.gmra.mrb[0].mxu0 %v6478
    %v6480 = vpop.f32.mrb[0].mxu0
    %v6481 = vadd.f32 %v6166, %v6480
    %v6482 = vpop.f32.mrb[0].mxu0
    %v6483 = vadd.f32 %v6168, %v6482
    %6484 = vmatprep.mubr.f32.mxu0 0.0
    %v6485 = vand.u32 %v4833, 4294901760
    %6486 = vmatmul.mubr.f32.gmra.mrb[0].mxu0 %v6485
    %v6487 = vpop.f32.mrb[0].mxu0
    %v6488 = vadd.f32 %v6175, %v6487
    %v6489 = vpop.f32.mrb[0].mxu0
    %v6490 = vadd.f32 %v6177, %v6489
    %6491 = vmatprep.mubr.f32.mxu0 0.0
    %v6492 = vand.u32 %v4836, 4294901760
    %6493 = vmatmul.mubr.f32.gmra.mrb[0].mxu0 %v6492
    %v6494 = vpop.f32.mrb[0].mxu0
    %v6495 = vadd.f32 %v6184, %v6494
    %v6496 = vpop.f32.mrb[0].mxu0
    %v6497 = vadd.f32 %v6186, %v6496
    %6498 = vmatprep.mubr.f32.mxu0 0.0
    %v6499 = vand.u32 %v4839, 4294901760
    %6500 = vmatmul.mubr.f32.gmra.mrb[0].mxu0 %v6499
    %v6501 = vpop.f32.mrb[0].mxu0
    %v6502 = vadd.f32 %v6193, %v6501
    %v6503 = vpop.f32.mrb[0].mxu0
    %v6504 = vadd.f32 %v6195, %v6503
    %6505 = vmatprep.mubr.f32.mxu0 0.0
    %v6506 = vand.u32 %v4842, 4294901760
    %6507 = vmatmul.mubr.f32.gmra.mrb[0].mxu0 %v6506
    %v6508 = vpop.f32.mrb[0].mxu0
    %v6509 = vadd.f32 %v6202, %v6508
    %v6510 = vpop.f32.mrb[0].mxu0
    %v6511 = vadd.f32 %v6204, %v6510
    %6512 = vmatprep.mubr.f32.mxu0 0.0
    %v6513 = vand.u32 %v4845, 4294901760
    %6514 = vmatmul.mubr.f32.gmra.mrb[0].mxu0 %v6513
    %v6515 = vpop.f32.mrb[0].mxu0
    %v6516 = vadd.f32 %v6211, %v6515
    %v6517 = vpop.f32.mrb[0].mxu0
    %v6518 = vadd.f32 %v6213, %v6517
    %6519 = vmatprep.mubr.f32.mxu0 0.0
    %v6520 = vand.u32 %v4848, 4294901760
    %6521 = vmatmul.mubr.f32.gmra.mrb[0].mxu0 %v6520
    %v6522 = vpop.f32.mrb[0].mxu0
    %v6523 = vadd.f32 %v6220, %v6522
    %v6524 = vpop.f32.mrb[0].mxu0
    %v6525 = vadd.f32 %v6222, %v6524
    %6526 = vmatprep.mubr.f32.mxu0 0.0
    %v6527 = vand.u32 %v4851, 4294901760
    %6528 = vmatmul.mubr.f32.gmra.mrb[0].mxu0 %v6527
    %v6529 = vpop.f32.mrb[0].mxu0
    %v6530 = vadd.f32 %v6229, %v6529
    %v6531 = vpop.f32.mrb[0].mxu0
    %v6532 = vadd.f32 %v6231, %v6531
    %6533 = vmatprep.mubr.f32.mxu0 0.0
    %v6534 = vand.u32 %v4854, 4294901760
    %6535 = vmatmul.mubr.f32.gmra.mrb[0].mxu0 %v6534
    %v6536 = vpop.f32.mrb[0].mxu0
    %v6537 = vadd.f32 %v6238, %v6536
    %v6538 = vpop.f32.mrb[0].mxu0
    %v6539 = vadd.f32 %v6240, %v6538
    %6540 = vmatprep.mubr.f32.mxu0 0.0
    %v6541 = vand.u32 %v4857, 4294901760
    %6542 = vmatmul.mubr.f32.gmra.mrb[0].mxu0 %v6541
    %v6543 = vpop.f32.mrb[0].mxu0
    %v6544 = vadd.f32 %v6247, %v6543
    %v6545 = vpop.f32.mrb[0].mxu0
    %v6546 = vadd.f32 %v6249, %v6545
    %6547 = vmatprep.mubr.f32.mxu0 0.0
    %v6548 = vand.u32 %v4860, 4294901760
    %6549 = vmatmul.mubr.f32.gmra.mrb[0].mxu0 %v6548
    %v6550 = vpop.f32.mrb[0].mxu0
    %v6551 = vadd.f32 %v6256, %v6550
    %v6552 = vpop.f32.mrb[0].mxu0
    %v6553 = vadd.f32 %v6258, %v6552
    %6554 = vdwg.mxu0
    %v6555 = vand.u32 %v217, 4294901760
    %6556 = vmatprep.subr.mxu0 %v6555
    %v6557 = vand.u32 %v215, 4294901760
    %6558 = vmatpush1.msra.mxu0 %v6557
    %6559 = vmatprep.subr.mxu0 0.0
    %6560 = vmatpush1.msra.mxu0 0.0
    %6561 = vmatprep.subr.mxu0 0.0
    %6562 = vmatpush1.msra.mxu0 0.0
    %6563 = vmatprep.subr.mxu0 0.0
    %6564 = vmatpush1.msra.mxu0 0.0
    %6565 = vmatprep.subr.mxu0 0.0
    %6566 = vmatpush1.msra.mxu0 0.0
    %6567 = vmatprep.subr.mxu0 0.0
    %6568 = vmatpush1.msra.mxu0 0.0
    %6569 = vmatprep.subr.mxu0 0.0
    %6570 = vmatpush1.msra.mxu0 0.0
    %6571 = vmatprep.subr.mxu0 0.0
    %6572 = vmatpush1.msra.mxu0 0.0
    %6573 = vmatprep.subr.mxu0 0.0
    %6574 = vmatpush1.msra.mxu0 0.0
    %6575 = vmatprep.subr.mxu0 0.0
    %6576 = vmatpush1.msra.mxu0 0.0
    %6577 = vmatprep.subr.mxu0 0.0
    %6578 = vmatpush1.msra.mxu0 0.0
    %6579 = vmatprep.subr.mxu0 0.0
    %6580 = vmatpush1.msra.mxu0 0.0
    %6581 = vmatprep.subr.mxu0 0.0
    %6582 = vmatpush1.msra.mxu0 0.0
    %6583 = vmatprep.subr.mxu0 0.0
    %6584 = vmatpush1.msra.mxu0 0.0
    %6585 = vmatprep.subr.mxu0 0.0
    %6586 = vmatpush1.msra.mxu0 0.0
    %6587 = vmatprep.subr.mxu0 0.0
    %6588 = vmatpush1.msra.mxu0 0.0
    %6589 = vmatprep.subr.mxu0 0.0
    %6590 = vmatpush1.msra.mxu0 0.0
    %6591 = vmatprep.subr.mxu0 0.0
    %6592 = vmatpush1.msra.mxu0 0.0
    %6593 = vmatprep.subr.mxu0 0.0
    %6594 = vmatpush1.msra.mxu0 0.0
    %6595 = vmatprep.subr.mxu0 0.0
    %6596 = vmatpush1.msra.mxu0 0.0
    %6597 = vmatprep.subr.mxu0 0.0
    %6598 = vmatpush1.msra.mxu0 0.0
    %6599 = vmatprep.subr.mxu0 0.0
    %6600 = vmatpush1.msra.mxu0 0.0
    %6601 = vmatprep.subr.mxu0 0.0
    %6602 = vmatpush1.msra.mxu0 0.0
    %6603 = vmatprep.subr.mxu0 0.0
    %6604 = vmatpush1.msra.mxu0 0.0
    %6605 = vmatprep.subr.mxu0 0.0
    %6606 = vmatpush1.msra.mxu0 0.0
    %6607 = vmatprep.subr.mxu0 0.0
    %6608 = vmatpush1.msra.mxu0 0.0
    %6609 = vmatprep.subr.mxu0 0.0
    %6610 = vmatpush1.msra.mxu0 0.0
    %6611 = vmatprep.subr.mxu0 0.0
    %6612 = vmatpush1.msra.mxu0 0.0
    %6613 = vmatprep.subr.mxu0 0.0
    %6614 = vmatpush1.msra.mxu0 0.0
    %6615 = vmatprep.subr.mxu0 0.0
    %6616 = vmatpush1.msra.mxu0 0.0
    %6617 = vmatprep.subr.mxu0 0.0
    %6618 = vmatpush1.msra.mxu0 0.0
    %6619 = vmatprep.subr.mxu0 0.0
    %6620 = vmatpush1.msra.mxu0 0.0
    %6621 = vmatprep.mubr.f32.mxu0 0.0
    %v6622 = vand.u32 %v4767, 4294901760
    %6623 = vmatmul.mubr.f32.gmra.mrb[0].mxu0 %v6622
    %v6624 = vpop.f32.mrb[0].mxu0
    %v6625 = vadd.f32 %v6334, %v6624
    %v6626 = vpop.f32.mrb[0].mxu0
    %v6627 = vadd.f32 %v6336, %v6626
    %6628 = vmatprep.mubr.f32.mxu0 0.0
    %v6629 = vand.u32 %v4770, 4294901760
    %6630 = vmatmul.mubr.f32.gmra.mrb[0].mxu0 %v6629
    %v6631 = vpop.f32.mrb[0].mxu0
    %v6632 = vadd.f32 %v6341, %v6631
    %v6633 = vpop.f32.mrb[0].mxu0
    %v6634 = vadd.f32 %v6343, %v6633
    %6635 = vmatprep.mubr.f32.mxu0 0.0
    %v6636 = vand.u32 %v4773, 4294901760
    %6637 = vmatmul.mubr.f32.gmra.mrb[0].mxu0 %v6636
    %v6638 = vpop.f32.mrb[0].mxu0
    %v6639 = vadd.f32 %v6348, %v6638
    %v6640 = vpop.f32.mrb[0].mxu0
    %v6641 = vadd.f32 %v6350, %v6640
    %6642 = vmatprep.mubr.f32.mxu0 0.0
    %v6643 = vand.u32 %v4776, 4294901760
    %6644 = vmatmul.mubr.f32.gmra.mrb[0].mxu0 %v6643
    %v6645 = vpop.f32.mrb[0].mxu0
    %v6646 = vadd.f32 %v6355, %v6645
    %v6647 = vpop.f32.mrb[0].mxu0
    %v6648 = vadd.f32 %v6357, %v6647
    %6649 = vmatprep.mubr.f32.mxu0 0.0
    %v6650 = vand.u32 %v4779, 4294901760
    %6651 = vmatmul.mubr.f32.gmra.mrb[0].mxu0 %v6650
    %v6652 = vpop.f32.mrb[0].mxu0
    %v6653 = vadd.f32 %v6362, %v6652
    %v6654 = vpop.f32.mrb[0].mxu0
    %v6655 = vadd.f32 %v6364, %v6654
    %6656 = vmatprep.mubr.f32.mxu0 0.0
    %v6657 = vand.u32 %v4782, 4294901760
    %6658 = vmatmul.mubr.f32.gmra.mrb[0].mxu0 %v6657
    %v6659 = vpop.f32.mrb[0].mxu0
    %v6660 = vadd.f32 %v6369, %v6659
    %v6661 = vpop.f32.mrb[0].mxu0
    %v6662 = vadd.f32 %v6371, %v6661
    %6663 = vmatprep.mubr.f32.mxu0 0.0
    %v6664 = vand.u32 %v4785, 4294901760
    %6665 = vmatmul.mubr.f32.gmra.mrb[0].mxu0 %v6664
    %v6666 = vpop.f32.mrb[0].mxu0
    %v6667 = vadd.f32 %v6376, %v6666
    %v6668 = vpop.f32.mrb[0].mxu0
    %v6669 = vadd.f32 %v6378, %v6668
    %6670 = vmatprep.mubr.f32.mxu0 0.0
    %v6671 = vand.u32 %v4788, 4294901760
    %6672 = vmatmul.mubr.f32.gmra.mrb[0].mxu0 %v6671
    %v6673 = vpop.f32.mrb[0].mxu0
    %v6674 = vadd.f32 %v6383, %v6673
    %v6675 = vpop.f32.mrb[0].mxu0
    %v6676 = vadd.f32 %v6385, %v6675
    %6677 = vmatprep.mubr.f32.mxu0 0.0
    %v6678 = vand.u32 %v4791, 4294901760
    %6679 = vmatmul.mubr.f32.gmra.mrb[0].mxu0 %v6678
    %v6680 = vpop.f32.mrb[0].mxu0
    %v6681 = vadd.f32 %v6390, %v6680
    %v6682 = vpop.f32.mrb[0].mxu0
    %v6683 = vadd.f32 %v6392, %v6682
    %6684 = vmatprep.mubr.f32.mxu0 0.0
    %v6685 = vand.u32 %v4794, 4294901760
    %6686 = vmatmul.mubr.f32.gmra.mrb[0].mxu0 %v6685
    %v6687 = vpop.f32.mrb[0].mxu0
    %v6688 = vadd.f32 %v6397, %v6687
    %v6689 = vpop.f32.mrb[0].mxu0
    %v6690 = vadd.f32 %v6399, %v6689
    %6691 = vmatprep.mubr.f32.mxu0 0.0
    %v6692 = vand.u32 %v4797, 4294901760
    %6693 = vmatmul.mubr.f32.gmra.mrb[0].mxu0 %v6692
    %v6694 = vpop.f32.mrb[0].mxu0
    %v6695 = vadd.f32 %v6404, %v6694
    %v6696 = vpop.f32.mrb[0].mxu0
    %v6697 = vadd.f32 %v6406, %v6696
    %6698 = vmatprep.mubr.f32.mxu0 0.0
    %v6699 = vand.u32 %v4800, 4294901760
    %6700 = vmatmul.mubr.f32.gmra.mrb[0].mxu0 %v6699
    %v6701 = vpop.f32.mrb[0].mxu0
    %v6702 = vadd.f32 %v6411, %v6701
    %v6703 = vpop.f32.mrb[0].mxu0
    %v6704 = vadd.f32 %v6413, %v6703
    %6705 = vmatprep.mubr.f32.mxu0 0.0
    %v6706 = vand.u32 %v4803, 4294901760
    %6707 = vmatmul.mubr.f32.gmra.mrb[0].mxu0 %v6706
    %v6708 = vpop.f32.mrb[0].mxu0
    %v6709 = vadd.f32 %v6418, %v6708
    %v6710 = vpop.f32.mrb[0].mxu0
    %v6711 = vadd.f32 %v6420, %v6710
    %6712 = vmatprep.mubr.f32.mxu0 0.0
    %v6713 = vand.u32 %v4806, 4294901760
    %6714 = vmatmul.mubr.f32.gmra.mrb[0].mxu0 %v6713
    %v6715 = vpop.f32.mrb[0].mxu0
    %v6716 = vadd.f32 %v6425, %v6715
    %v6717 = vpop.f32.mrb[0].mxu0
    %v6718 = vadd.f32 %v6427, %v6717
    %6719 = vmatprep.mubr.f32.mxu0 0.0
    %v6720 = vand.u32 %v4809, 4294901760
    %6721 = vmatmul.mubr.f32.gmra.mrb[0].mxu0 %v6720
    %v6722 = vpop.f32.mrb[0].mxu0
    %v6723 = vadd.f32 %v6432, %v6722
    %v6724 = vpop.f32.mrb[0].mxu0
    %v6725 = vadd.f32 %v6434, %v6724
    %6726 = vmatprep.mubr.f32.mxu0 0.0
    %v6727 = vand.u32 %v4812, 4294901760
    %6728 = vmatmul.mubr.f32.gmra.mrb[0].mxu0 %v6727
    %v6729 = vpop.f32.mrb[0].mxu0
    %v6730 = vadd.f32 %v6439, %v6729
    %v6731 = vpop.f32.mrb[0].mxu0
    %v6732 = vadd.f32 %v6441, %v6731
    %6733 = vmatprep.mubr.f32.mxu0 0.0
    %v6734 = vand.u32 %v4815, 4294901760
    %6735 = vmatmul.mubr.f32.gmra.mrb[0].mxu0 %v6734
    %v6736 = vpop.f32.mrb[0].mxu0
    %v6737 = vadd.f32 %v6446, %v6736
    %v6738 = vpop.f32.mrb[0].mxu0
    %v6739 = vadd.f32 %v6448, %v6738
    %6740 = vmatprep.mubr.f32.mxu0 0.0
    %v6741 = vand.u32 %v4818, 4294901760
    %6742 = vmatmul.mubr.f32.gmra.mrb[0].mxu0 %v6741
    %v6743 = vpop.f32.mrb[0].mxu0
    %v6744 = vadd.f32 %v6453, %v6743
    %v6745 = vpop.f32.mrb[0].mxu0
    %v6746 = vadd.f32 %v6455, %v6745
    %6747 = vmatprep.mubr.f32.mxu0 0.0
    %v6748 = vand.u32 %v4821, 4294901760
    %6749 = vmatmul.mubr.f32.gmra.mrb[0].mxu0 %v6748
    %v6750 = vpop.f32.mrb[0].mxu0
    %v6751 = vadd.f32 %v6460, %v6750
    %v6752 = vpop.f32.mrb[0].mxu0
    %v6753 = vadd.f32 %v6462, %v6752
    %6754 = vmatprep.mubr.f32.mxu0 0.0
    %v6755 = vand.u32 %v4824, 4294901760
    %6756 = vmatmul.mubr.f32.gmra.mrb[0].mxu0 %v6755
    %v6757 = vpop.f32.mrb[0].mxu0
    %v6758 = vadd.f32 %v6467, %v6757
    %v6759 = vpop.f32.mrb[0].mxu0
    %v6760 = vadd.f32 %v6469, %v6759
    %6761 = vmatprep.mubr.f32.mxu0 0.0
    %v6762 = vand.u32 %v4827, 4294901760
    %6763 = vmatmul.mubr.f32.gmra.mrb[0].mxu0 %v6762
    %v6764 = vpop.f32.mrb[0].mxu0
    %v6765 = vadd.f32 %v6474, %v6764
    %v6766 = vpop.f32.mrb[0].mxu0
    %v6767 = vadd.f32 %v6476, %v6766
    %6768 = vmatprep.mubr.f32.mxu0 0.0
    %v6769 = vand.u32 %v4830, 4294901760
    %6770 = vmatmul.mubr.f32.gmra.mrb[0].mxu0 %v6769
    %v6771 = vpop.f32.mrb[0].mxu0
    %v6772 = vadd.f32 %v6481, %v6771
    %v6773 = vpop.f32.mrb[0].mxu0
    %v6774 = vadd.f32 %v6483, %v6773
    %6775 = vmatprep.mubr.f32.mxu0 0.0
    %v6776 = vand.u32 %v4833, 4294901760
    %6777 = vmatmul.mubr.f32.gmra.mrb[0].mxu0 %v6776
    %v6778 = vpop.f32.mrb[0].mxu0
    %v6779 = vadd.f32 %v6488, %v6778
    %v6780 = vpop.f32.mrb[0].mxu0
    %v6781 = vadd.f32 %v6490, %v6780
    %6782 = vmatprep.mubr.f32.mxu0 0.0
    %v6783 = vand.u32 %v4836, 4294901760
    %6784 = vmatmul.mubr.f32.gmra.mrb[0].mxu0 %v6783
    %v6785 = vpop.f32.mrb[0].mxu0
    %v6786 = vadd.f32 %v6495, %v6785
    %v6787 = vpop.f32.mrb[0].mxu0
    %v6788 = vadd.f32 %v6497, %v6787
    %6789 = vmatprep.mubr.f32.mxu0 0.0
    %v6790 = vand.u32 %v4839, 4294901760
    %6791 = vmatmul.mubr.f32.gmra.mrb[0].mxu0 %v6790
    %v6792 = vpop.f32.mrb[0].mxu0
    %v6793 = vadd.f32 %v6502, %v6792
    %v6794 = vpop.f32.mrb[0].mxu0
    %v6795 = vadd.f32 %v6504, %v6794
    %6796 = vmatprep.mubr.f32.mxu0 0.0
    %v6797 = vand.u32 %v4842, 4294901760
    %6798 = vmatmul.mubr.f32.gmra.mrb[0].mxu0 %v6797
    %v6799 = vpop.f32.mrb[0].mxu0
    %v6800 = vadd.f32 %v6509, %v6799
    %v6801 = vpop.f32.mrb[0].mxu0
    %v6802 = vadd.f32 %v6511, %v6801
    %6803 = vmatprep.mubr.f32.mxu0 0.0
    %v6804 = vand.u32 %v4845, 4294901760
    %6805 = vmatmul.mubr.f32.gmra.mrb[0].mxu0 %v6804
    %v6806 = vpop.f32.mrb[0].mxu0
    %v6807 = vadd.f32 %v6516, %v6806
    %v6808 = vpop.f32.mrb[0].mxu0
    %v6809 = vadd.f32 %v6518, %v6808
    %6810 = vmatprep.mubr.f32.mxu0 0.0
    %v6811 = vand.u32 %v4848, 4294901760
    %6812 = vmatmul.mubr.f32.gmra.mrb[0].mxu0 %v6811
    %v6813 = vpop.f32.mrb[0].mxu0
    %v6814 = vadd.f32 %v6523, %v6813
    %v6815 = vpop.f32.mrb[0].mxu0
    %v6816 = vadd.f32 %v6525, %v6815
    %6817 = vmatprep.mubr.f32.mxu0 0.0
    %v6818 = vand.u32 %v4851, 4294901760
    %6819 = vmatmul.mubr.f32.gmra.mrb[0].mxu0 %v6818
    %v6820 = vpop.f32.mrb[0].mxu0
    %v6821 = vadd.f32 %v6530, %v6820
    %v6822 = vpop.f32.mrb[0].mxu0
    %v6823 = vadd.f32 %v6532, %v6822
    %6824 = vmatprep.mubr.f32.mxu0 0.0
    %v6825 = vand.u32 %v4854, 4294901760
    %6826 = vmatmul.mubr.f32.gmra.mrb[0].mxu0 %v6825
    %v6827 = vpop.f32.mrb[0].mxu0
    %v6828 = vadd.f32 %v6537, %v6827
    %v6829 = vpop.f32.mrb[0].mxu0
    %v6830 = vadd.f32 %v6539, %v6829
    %6831 = vmatprep.mubr.f32.mxu0 0.0
    %v6832 = vand.u32 %v4857, 4294901760
    %6833 = vmatmul.mubr.f32.gmra.mrb[0].mxu0 %v6832
    %v6834 = vpop.f32.mrb[0].mxu0
    %v6835 = vadd.f32 %v6544, %v6834
    %v6836 = vpop.f32.mrb[0].mxu0
    %v6837 = vadd.f32 %v6546, %v6836
    %6838 = vmatprep.mubr.f32.mxu0 0.0
    %v6839 = vand.u32 %v4860, 4294901760
    %6840 = vmatmul.mubr.f32.gmra.mrb[0].mxu0 %v6839
    %v6841 = vpop.f32.mrb[0].mxu0
    %v6842 = vadd.f32 %v6551, %v6841
    %v6843 = vpop.f32.mrb[0].mxu0
    %v6844 = vadd.f32 %v6553, %v6843
    %6845 = vdwg.mxu0
    %v6846 = vand.u32 %v221, 4294901760
    %6847 = vmatprep.subr.mxu0 %v6846
    %v6848 = vand.u32 %v219, 4294901760
    %6849 = vmatpush1.msra.mxu0 %v6848
    %6850 = vmatprep.subr.mxu0 0.0
    %6851 = vmatpush1.msra.mxu0 0.0
    %6852 = vmatprep.subr.mxu0 0.0
    %6853 = vmatpush1.msra.mxu0 0.0
    %6854 = vmatprep.subr.mxu0 0.0
    %6855 = vmatpush1.msra.mxu0 0.0
    %6856 = vmatprep.subr.mxu0 0.0
    %6857 = vmatpush1.msra.mxu0 0.0
    %6858 = vmatprep.subr.mxu0 0.0
    %6859 = vmatpush1.msra.mxu0 0.0
    %6860 = vmatprep.subr.mxu0 0.0
    %6861 = vmatpush1.msra.mxu0 0.0
    %6862 = vmatprep.subr.mxu0 0.0
    %6863 = vmatpush1.msra.mxu0 0.0
    %6864 = vmatprep.subr.mxu0 0.0
    %6865 = vmatpush1.msra.mxu0 0.0
    %6866 = vmatprep.subr.mxu0 0.0
    %6867 = vmatpush1.msra.mxu0 0.0
    %6868 = vmatprep.subr.mxu0 0.0
    %6869 = vmatpush1.msra.mxu0 0.0
    %6870 = vmatprep.subr.mxu0 0.0
    %6871 = vmatpush1.msra.mxu0 0.0
    %6872 = vmatprep.subr.mxu0 0.0
    %6873 = vmatpush1.msra.mxu0 0.0
    %6874 = vmatprep.subr.mxu0 0.0
    %6875 = vmatpush1.msra.mxu0 0.0
    %6876 = vmatprep.subr.mxu0 0.0
    %6877 = vmatpush1.msra.mxu0 0.0
    %6878 = vmatprep.subr.mxu0 0.0
    %6879 = vmatpush1.msra.mxu0 0.0
    %6880 = vmatprep.subr.mxu0 0.0
    %6881 = vmatpush1.msra.mxu0 0.0
    %6882 = vmatprep.subr.mxu0 0.0
    %6883 = vmatpush1.msra.mxu0 0.0
    %6884 = vmatprep.subr.mxu0 0.0
    %6885 = vmatpush1.msra.mxu0 0.0
    %6886 = vmatprep.subr.mxu0 0.0
    %6887 = vmatpush1.msra.mxu0 0.0
    %6888 = vmatprep.subr.mxu0 0.0
    %6889 = vmatpush1.msra.mxu0 0.0
    %6890 = vmatprep.subr.mxu0 0.0
    %6891 = vmatpush1.msra.mxu0 0.0
    %6892 = vmatprep.subr.mxu0 0.0
    %6893 = vmatpush1.msra.mxu0 0.0
    %6894 = vmatprep.subr.mxu0 0.0
    %6895 = vmatpush1.msra.mxu0 0.0
    %6896 = vmatprep.subr.mxu0 0.0
    %6897 = vmatpush1.msra.mxu0 0.0
    %6898 = vmatprep.subr.mxu0 0.0
    %6899 = vmatpush1.msra.mxu0 0.0
    %6900 = vmatprep.subr.mxu0 0.0
    %6901 = vmatpush1.msra.mxu0 0.0
    %6902 = vmatprep.subr.mxu0 0.0
    %6903 = vmatpush1.msra.mxu0 0.0
    %6904 = vmatprep.subr.mxu0 0.0
    %6905 = vmatpush1.msra.mxu0 0.0
    %6906 = vmatprep.subr.mxu0 0.0
    %6907 = vmatpush1.msra.mxu0 0.0
    %6908 = vmatprep.subr.mxu0 0.0
    %6909 = vmatpush1.msra.mxu0 0.0
    %6910 = vmatprep.subr.mxu0 0.0
    %6911 = vmatpush1.msra.mxu0 0.0
    %6912 = vmatprep.mubr.f32.mxu0 0.0
    %v6913 = vand.u32 %v4767, 4294901760
    %v6914 = vsub.f32 %v4767, %v6913
    %v6915 = vand.u32 %v6914, 4294901760
    %v6916 = vsub.f32 %v6914, %v6915
    %v6917 = vand.u32 %v6916, 4294901760
    %6918 = vmatmul.mubr.f32.gmra.mrb[0].mxu0 %v6917
    %v6919 = vpop.f32.mrb[0].mxu0
    %v6920 = vadd.f32 %v37, %v6919
    %v6921 = vpop.f32.mrb[0].mxu0
    %v6922 = vadd.f32 %v41, %v6921
    %6923 = vmatprep.mubr.f32.mxu0 0.0
    %v6924 = vand.u32 %v4770, 4294901760
    %v6925 = vsub.f32 %v4770, %v6924
    %v6926 = vand.u32 %v6925, 4294901760
    %v6927 = vsub.f32 %v6925, %v6926
    %v6928 = vand.u32 %v6927, 4294901760
    %6929 = vmatmul.mubr.f32.gmra.mrb[0].mxu0 %v6928
    %v6930 = vpop.f32.mrb[0].mxu0
    %v6931 = vadd.f32 %v37, %v6930
    %v6932 = vpop.f32.mrb[0].mxu0
    %v6933 = vadd.f32 %v41, %v6932
    %6934 = vmatprep.mubr.f32.mxu0 0.0
    %v6935 = vand.u32 %v4773, 4294901760
    %v6936 = vsub.f32 %v4773, %v6935
    %v6937 = vand.u32 %v6936, 4294901760
    %v6938 = vsub.f32 %v6936, %v6937
    %v6939 = vand.u32 %v6938, 4294901760
    %6940 = vmatmul.mubr.f32.gmra.mrb[0].mxu0 %v6939
    %v6941 = vpop.f32.mrb[0].mxu0
    %v6942 = vadd.f32 %v37, %v6941
    %v6943 = vpop.f32.mrb[0].mxu0
    %v6944 = vadd.f32 %v41, %v6943
    %6945 = vmatprep.mubr.f32.mxu0 0.0
    %v6946 = vand.u32 %v4776, 4294901760
    %v6947 = vsub.f32 %v4776, %v6946
    %v6948 = vand.u32 %v6947, 4294901760
    %v6949 = vsub.f32 %v6947, %v6948
    %v6950 = vand.u32 %v6949, 4294901760
    %6951 = vmatmul.mubr.f32.gmra.mrb[0].mxu0 %v6950
    %v6952 = vpop.f32.mrb[0].mxu0
    %v6953 = vadd.f32 %v37, %v6952
    %v6954 = vpop.f32.mrb[0].mxu0
    %v6955 = vadd.f32 %v41, %v6954
    %6956 = vmatprep.mubr.f32.mxu0 0.0
    %v6957 = vand.u32 %v4779, 4294901760
    %v6958 = vsub.f32 %v4779, %v6957
    %v6959 = vand.u32 %v6958, 4294901760
    %v6960 = vsub.f32 %v6958, %v6959
    %v6961 = vand.u32 %v6960, 4294901760
    %6962 = vmatmul.mubr.f32.gmra.mrb[0].mxu0 %v6961
    %v6963 = vpop.f32.mrb[0].mxu0
    %v6964 = vadd.f32 %v37, %v6963
    %v6965 = vpop.f32.mrb[0].mxu0
    %v6966 = vadd.f32 %v41, %v6965
    %6967 = vmatprep.mubr.f32.mxu0 0.0
    %v6968 = vand.u32 %v4782, 4294901760
    %v6969 = vsub.f32 %v4782, %v6968
    %v6970 = vand.u32 %v6969, 4294901760
    %v6971 = vsub.f32 %v6969, %v6970
    %v6972 = vand.u32 %v6971, 4294901760
    %6973 = vmatmul.mubr.f32.gmra.mrb[0].mxu0 %v6972
    %v6974 = vpop.f32.mrb[0].mxu0
    %v6975 = vadd.f32 %v37, %v6974
    %v6976 = vpop.f32.mrb[0].mxu0
    %v6977 = vadd.f32 %v41, %v6976
    %6978 = vmatprep.mubr.f32.mxu0 0.0
    %v6979 = vand.u32 %v4785, 4294901760
    %v6980 = vsub.f32 %v4785, %v6979
    %v6981 = vand.u32 %v6980, 4294901760
    %v6982 = vsub.f32 %v6980, %v6981
    %v6983 = vand.u32 %v6982, 4294901760
    %6984 = vmatmul.mubr.f32.gmra.mrb[0].mxu0 %v6983
    %v6985 = vpop.f32.mrb[0].mxu0
    %v6986 = vadd.f32 %v37, %v6985
    %v6987 = vpop.f32.mrb[0].mxu0
    %v6988 = vadd.f32 %v41, %v6987
    %6989 = vmatprep.mubr.f32.mxu0 0.0
    %v6990 = vand.u32 %v4788, 4294901760
    %v6991 = vsub.f32 %v4788, %v6990
    %v6992 = vand.u32 %v6991, 4294901760
    %v6993 = vsub.f32 %v6991, %v6992
    %v6994 = vand.u32 %v6993, 4294901760
    %6995 = vmatmul.mubr.f32.gmra.mrb[0].mxu0 %v6994
    %v6996 = vpop.f32.mrb[0].mxu0
    %v6997 = vadd.f32 %v37, %v6996
    %v6998 = vpop.f32.mrb[0].mxu0
    %v6999 = vadd.f32 %v41, %v6998
    %7000 = vmatprep.mubr.f32.mxu0 0.0
    %v7001 = vand.u32 %v4791, 4294901760
    %v7002 = vsub.f32 %v4791, %v7001
    %v7003 = vand.u32 %v7002, 4294901760
    %v7004 = vsub.f32 %v7002, %v7003
    %v7005 = vand.u32 %v7004, 4294901760
    %7006 = vmatmul.mubr.f32.gmra.mrb[0].mxu0 %v7005
    %v7007 = vpop.f32.mrb[0].mxu0
    %v7008 = vadd.f32 %v37, %v7007
    %v7009 = vpop.f32.mrb[0].mxu0
    %v7010 = vadd.f32 %v41, %v7009
    %7011 = vmatprep.mubr.f32.mxu0 0.0
    %v7012 = vand.u32 %v4794, 4294901760
    %v7013 = vsub.f32 %v4794, %v7012
    %v7014 = vand.u32 %v7013, 4294901760
    %v7015 = vsub.f32 %v7013, %v7014
    %v7016 = vand.u32 %v7015, 4294901760
    %7017 = vmatmul.mubr.f32.gmra.mrb[0].mxu0 %v7016
    %v7018 = vpop.f32.mrb[0].mxu0
    %v7019 = vadd.f32 %v37, %v7018
    %v7020 = vpop.f32.mrb[0].mxu0
    %v7021 = vadd.f32 %v41, %v7020
    %7022 = vmatprep.mubr.f32.mxu0 0.0
    %v7023 = vand.u32 %v4797, 4294901760
    %v7024 = vsub.f32 %v4797, %v7023
    %v7025 = vand.u32 %v7024, 4294901760
    %v7026 = vsub.f32 %v7024, %v7025
    %v7027 = vand.u32 %v7026, 4294901760
    %7028 = vmatmul.mubr.f32.gmra.mrb[0].mxu0 %v7027
    %v7029 = vpop.f32.mrb[0].mxu0
    %v7030 = vadd.f32 %v37, %v7029
    %v7031 = vpop.f32.mrb[0].mxu0
    %v7032 = vadd.f32 %v41, %v7031
    %7033 = vmatprep.mubr.f32.mxu0 0.0
    %v7034 = vand.u32 %v4800, 4294901760
    %v7035 = vsub.f32 %v4800, %v7034
    %v7036 = vand.u32 %v7035, 4294901760
    %v7037 = vsub.f32 %v7035, %v7036
    %v7038 = vand.u32 %v7037, 4294901760
    %7039 = vmatmul.mubr.f32.gmra.mrb[0].mxu0 %v7038
    %v7040 = vpop.f32.mrb[0].mxu0
    %v7041 = vadd.f32 %v37, %v7040
    %v7042 = vpop.f32.mrb[0].mxu0
    %v7043 = vadd.f32 %v41, %v7042
    %7044 = vmatprep.mubr.f32.mxu0 0.0
    %v7045 = vand.u32 %v4803, 4294901760
    %v7046 = vsub.f32 %v4803, %v7045
    %v7047 = vand.u32 %v7046, 4294901760
    %v7048 = vsub.f32 %v7046, %v7047
    %v7049 = vand.u32 %v7048, 4294901760
    %7050 = vmatmul.mubr.f32.gmra.mrb[0].mxu0 %v7049
    %v7051 = vpop.f32.mrb[0].mxu0
    %v7052 = vadd.f32 %v37, %v7051
    %v7053 = vpop.f32.mrb[0].mxu0
    %v7054 = vadd.f32 %v41, %v7053
    %7055 = vmatprep.mubr.f32.mxu0 0.0
    %v7056 = vand.u32 %v4806, 4294901760
    %v7057 = vsub.f32 %v4806, %v7056
    %v7058 = vand.u32 %v7057, 4294901760
    %v7059 = vsub.f32 %v7057, %v7058
    %v7060 = vand.u32 %v7059, 4294901760
    %7061 = vmatmul.mubr.f32.gmra.mrb[0].mxu0 %v7060
    %v7062 = vpop.f32.mrb[0].mxu0
    %v7063 = vadd.f32 %v37, %v7062
    %v7064 = vpop.f32.mrb[0].mxu0
    %v7065 = vadd.f32 %v41, %v7064
    %7066 = vmatprep.mubr.f32.mxu0 0.0
    %v7067 = vand.u32 %v4809, 4294901760
    %v7068 = vsub.f32 %v4809, %v7067
    %v7069 = vand.u32 %v7068, 4294901760
    %v7070 = vsub.f32 %v7068, %v7069
    %v7071 = vand.u32 %v7070, 4294901760
    %7072 = vmatmul.mubr.f32.gmra.mrb[0].mxu0 %v7071
    %v7073 = vpop.f32.mrb[0].mxu0
    %v7074 = vadd.f32 %v37, %v7073
    %v7075 = vpop.f32.mrb[0].mxu0
    %v7076 = vadd.f32 %v41, %v7075
    %7077 = vmatprep.mubr.f32.mxu0 0.0
    %v7078 = vand.u32 %v4812, 4294901760
    %v7079 = vsub.f32 %v4812, %v7078
    %v7080 = vand.u32 %v7079, 4294901760
    %v7081 = vsub.f32 %v7079, %v7080
    %v7082 = vand.u32 %v7081, 4294901760
    %7083 = vmatmul.mubr.f32.gmra.mrb[0].mxu0 %v7082
    %v7084 = vpop.f32.mrb[0].mxu0
    %v7085 = vadd.f32 %v37, %v7084
    %v7086 = vpop.f32.mrb[0].mxu0
    %v7087 = vadd.f32 %v41, %v7086
    %7088 = vmatprep.mubr.f32.mxu0 0.0
    %v7089 = vand.u32 %v4815, 4294901760
    %v7090 = vsub.f32 %v4815, %v7089
    %v7091 = vand.u32 %v7090, 4294901760
    %v7092 = vsub.f32 %v7090, %v7091
    %v7093 = vand.u32 %v7092, 4294901760
    %7094 = vmatmul.mubr.f32.gmra.mrb[0].mxu0 %v7093
    %v7095 = vpop.f32.mrb[0].mxu0
    %v7096 = vadd.f32 %v37, %v7095
    %v7097 = vpop.f32.mrb[0].mxu0
    %v7098 = vadd.f32 %v41, %v7097
    %7099 = vmatprep.mubr.f32.mxu0 0.0
    %v7100 = vand.u32 %v4818, 4294901760
    %v7101 = vsub.f32 %v4818, %v7100
    %v7102 = vand.u32 %v7101, 4294901760
    %v7103 = vsub.f32 %v7101, %v7102
    %v7104 = vand.u32 %v7103, 4294901760
    %7105 = vmatmul.mubr.f32.gmra.mrb[0].mxu0 %v7104
    %v7106 = vpop.f32.mrb[0].mxu0
    %v7107 = vadd.f32 %v37, %v7106
    %v7108 = vpop.f32.mrb[0].mxu0
    %v7109 = vadd.f32 %v41, %v7108
    %7110 = vmatprep.mubr.f32.mxu0 0.0
    %v7111 = vand.u32 %v4821, 4294901760
    %v7112 = vsub.f32 %v4821, %v7111
    %v7113 = vand.u32 %v7112, 4294901760
    %v7114 = vsub.f32 %v7112, %v7113
    %v7115 = vand.u32 %v7114, 4294901760
    %7116 = vmatmul.mubr.f32.gmra.mrb[0].mxu0 %v7115
    %v7117 = vpop.f32.mrb[0].mxu0
    %v7118 = vadd.f32 %v37, %v7117
    %v7119 = vpop.f32.mrb[0].mxu0
    %v7120 = vadd.f32 %v41, %v7119
    %7121 = vmatprep.mubr.f32.mxu0 0.0
    %v7122 = vand.u32 %v4824, 4294901760
    %v7123 = vsub.f32 %v4824, %v7122
    %v7124 = vand.u32 %v7123, 4294901760
    %v7125 = vsub.f32 %v7123, %v7124
    %v7126 = vand.u32 %v7125, 4294901760
    %7127 = vmatmul.mubr.f32.gmra.mrb[0].mxu0 %v7126
    %v7128 = vpop.f32.mrb[0].mxu0
    %v7129 = vadd.f32 %v37, %v7128
    %v7130 = vpop.f32.mrb[0].mxu0
    %v7131 = vadd.f32 %v41, %v7130
    %7132 = vmatprep.mubr.f32.mxu0 0.0
    %v7133 = vand.u32 %v4827, 4294901760
    %v7134 = vsub.f32 %v4827, %v7133
    %v7135 = vand.u32 %v7134, 4294901760
    %v7136 = vsub.f32 %v7134, %v7135
    %v7137 = vand.u32 %v7136, 4294901760
    %7138 = vmatmul.mubr.f32.gmra.mrb[0].mxu0 %v7137
    %v7139 = vpop.f32.mrb[0].mxu0
    %v7140 = vadd.f32 %v37, %v7139
    %v7141 = vpop.f32.mrb[0].mxu0
    %v7142 = vadd.f32 %v41, %v7141
    %7143 = vmatprep.mubr.f32.mxu0 0.0
    %v7144 = vand.u32 %v4830, 4294901760
    %v7145 = vsub.f32 %v4830, %v7144
    %v7146 = vand.u32 %v7145, 4294901760
    %v7147 = vsub.f32 %v7145, %v7146
    %v7148 = vand.u32 %v7147, 4294901760
    %7149 = vmatmul.mubr.f32.gmra.mrb[0].mxu0 %v7148
    %v7150 = vpop.f32.mrb[0].mxu0
    %v7151 = vadd.f32 %v37, %v7150
    %v7152 = vpop.f32.mrb[0].mxu0
    %v7153 = vadd.f32 %v41, %v7152
    %7154 = vmatprep.mubr.f32.mxu0 0.0
    %v7155 = vand.u32 %v4833, 4294901760
    %v7156 = vsub.f32 %v4833, %v7155
    %v7157 = vand.u32 %v7156, 4294901760
    %v7158 = vsub.f32 %v7156, %v7157
    %v7159 = vand.u32 %v7158, 4294901760
    %7160 = vmatmul.mubr.f32.gmra.mrb[0].mxu0 %v7159
    %v7161 = vpop.f32.mrb[0].mxu0
    %v7162 = vadd.f32 %v37, %v7161
    %v7163 = vpop.f32.mrb[0].mxu0
    %v7164 = vadd.f32 %v41, %v7163
    %7165 = vmatprep.mubr.f32.mxu0 0.0
    %v7166 = vand.u32 %v4836, 4294901760
    %v7167 = vsub.f32 %v4836, %v7166
    %v7168 = vand.u32 %v7167, 4294901760
    %v7169 = vsub.f32 %v7167, %v7168
    %v7170 = vand.u32 %v7169, 4294901760
    %7171 = vmatmul.mubr.f32.gmra.mrb[0].mxu0 %v7170
    %v7172 = vpop.f32.mrb[0].mxu0
    %v7173 = vadd.f32 %v37, %v7172
    %v7174 = vpop.f32.mrb[0].mxu0
    %v7175 = vadd.f32 %v41, %v7174
    %7176 = vmatprep.mubr.f32.mxu0 0.0
    %v7177 = vand.u32 %v4839, 4294901760
    %v7178 = vsub.f32 %v4839, %v7177
    %v7179 = vand.u32 %v7178, 4294901760
    %v7180 = vsub.f32 %v7178, %v7179
    %v7181 = vand.u32 %v7180, 4294901760
    %7182 = vmatmul.mubr.f32.gmra.mrb[0].mxu0 %v7181
    %v7183 = vpop.f32.mrb[0].mxu0
    %v7184 = vadd.f32 %v37, %v7183
    %v7185 = vpop.f32.mrb[0].mxu0
    %v7186 = vadd.f32 %v41, %v7185
    %7187 = vmatprep.mubr.f32.mxu0 0.0
    %v7188 = vand.u32 %v4842, 4294901760
    %v7189 = vsub.f32 %v4842, %v7188
    %v7190 = vand.u32 %v7189, 4294901760
    %v7191 = vsub.f32 %v7189, %v7190
    %v7192 = vand.u32 %v7191, 4294901760
    %7193 = vmatmul.mubr.f32.gmra.mrb[0].mxu0 %v7192
    %v7194 = vpop.f32.mrb[0].mxu0
    %v7195 = vadd.f32 %v37, %v7194
    %v7196 = vpop.f32.mrb[0].mxu0
    %v7197 = vadd.f32 %v41, %v7196
    %7198 = vmatprep.mubr.f32.mxu0 0.0
    %v7199 = vand.u32 %v4845, 4294901760
    %v7200 = vsub.f32 %v4845, %v7199
    %v7201 = vand.u32 %v7200, 4294901760
    %v7202 = vsub.f32 %v7200, %v7201
    %v7203 = vand.u32 %v7202, 4294901760
    %7204 = vmatmul.mubr.f32.gmra.mrb[0].mxu0 %v7203
    %v7205 = vpop.f32.mrb[0].mxu0
    %v7206 = vadd.f32 %v37, %v7205
    %v7207 = vpop.f32.mrb[0].mxu0
    %v7208 = vadd.f32 %v41, %v7207
    %7209 = vmatprep.mubr.f32.mxu0 0.0
    %v7210 = vand.u32 %v4848, 4294901760
    %v7211 = vsub.f32 %v4848, %v7210
    %v7212 = vand.u32 %v7211, 4294901760
    %v7213 = vsub.f32 %v7211, %v7212
    %v7214 = vand.u32 %v7213, 4294901760
    %7215 = vmatmul.mubr.f32.gmra.mrb[0].mxu0 %v7214
    %v7216 = vpop.f32.mrb[0].mxu0
    %v7217 = vadd.f32 %v37, %v7216
    %v7218 = vpop.f32.mrb[0].mxu0
    %v7219 = vadd.f32 %v41, %v7218
    %7220 = vmatprep.mubr.f32.mxu0 0.0
    %v7221 = vand.u32 %v4851, 4294901760
    %v7222 = vsub.f32 %v4851, %v7221
    %v7223 = vand.u32 %v7222, 4294901760
    %v7224 = vsub.f32 %v7222, %v7223
    %v7225 = vand.u32 %v7224, 4294901760
    %7226 = vmatmul.mubr.f32.gmra.mrb[0].mxu0 %v7225
    %v7227 = vpop.f32.mrb[0].mxu0
    %v7228 = vadd.f32 %v37, %v7227
    %v7229 = vpop.f32.mrb[0].mxu0
    %v7230 = vadd.f32 %v41, %v7229
    %7231 = vmatprep.mubr.f32.mxu0 0.0
    %v7232 = vand.u32 %v4854, 4294901760
    %v7233 = vsub.f32 %v4854, %v7232
    %v7234 = vand.u32 %v7233, 4294901760
    %v7235 = vsub.f32 %v7233, %v7234
    %v7236 = vand.u32 %v7235, 4294901760
    %7237 = vmatmul.mubr.f32.gmra.mrb[0].mxu0 %v7236
    %v7238 = vpop.f32.mrb[0].mxu0
    %v7239 = vadd.f32 %v37, %v7238
    %v7240 = vpop.f32.mrb[0].mxu0
    %v7241 = vadd.f32 %v41, %v7240
    %7242 = vmatprep.mubr.f32.mxu0 0.0
    %v7243 = vand.u32 %v4857, 4294901760
    %v7244 = vsub.f32 %v4857, %v7243
    %v7245 = vand.u32 %v7244, 4294901760
    %v7246 = vsub.f32 %v7244, %v7245
    %v7247 = vand.u32 %v7246, 4294901760
    %7248 = vmatmul.mubr.f32.gmra.mrb[0].mxu0 %v7247
    %v7249 = vpop.f32.mrb[0].mxu0
    %v7250 = vadd.f32 %v37, %v7249
    %v7251 = vpop.f32.mrb[0].mxu0
    %v7252 = vadd.f32 %v41, %v7251
    %7253 = vmatprep.mubr.f32.mxu0 0.0
    %v7254 = vand.u32 %v4860, 4294901760
    %v7255 = vsub.f32 %v4860, %v7254
    %v7256 = vand.u32 %v7255, 4294901760
    %v7257 = vsub.f32 %v7255, %v7256
    %v7258 = vand.u32 %v7257, 4294901760
    %7259 = vmatmul.mubr.f32.gmra.mrb[0].mxu0 %v7258
    %v7260 = vpop.f32.mrb[0].mxu0
    %v7261 = vadd.f32 %v37, %v7260
    %v7262 = vpop.f32.mrb[0].mxu0
    %v7263 = vadd.f32 %v41, %v7262
    %7264 = vdwg.mxu0
    %v7265 = vand.u32 %v221, 4294901760
    %v7266 = vsub.f32 %v221, %v7265
    %v7267 = vand.u32 %v7266, 4294901760
    %v7268 = vsub.f32 %v7266, %v7267
    %v7269 = vand.u32 %v7268, 4294901760
    %7270 = vmatprep.subr.mxu0 %v7269
    %v7271 = vand.u32 %v219, 4294901760
    %v7272 = vsub.f32 %v219, %v7271
    %v7273 = vand.u32 %v7272, 4294901760
    %v7274 = vsub.f32 %v7272, %v7273
    %v7275 = vand.u32 %v7274, 4294901760
    %7276 = vmatpush1.msra.mxu0 %v7275
    %7277 = vmatprep.subr.mxu0 0.0
    %7278 = vmatpush1.msra.mxu0 0.0
    %7279 = vmatprep.subr.mxu0 0.0
    %7280 = vmatpush1.msra.mxu0 0.0
    %7281 = vmatprep.subr.mxu0 0.0
    %7282 = vmatpush1.msra.mxu0 0.0
    %7283 = vmatprep.subr.mxu0 0.0
    %7284 = vmatpush1.msra.mxu0 0.0
    %7285 = vmatprep.subr.mxu0 0.0
    %7286 = vmatpush1.msra.mxu0 0.0
    %7287 = vmatprep.subr.mxu0 0.0
    %7288 = vmatpush1.msra.mxu0 0.0
    %7289 = vmatprep.subr.mxu0 0.0
    %7290 = vmatpush1.msra.mxu0 0.0
    %7291 = vmatprep.subr.mxu0 0.0
    %7292 = vmatpush1.msra.mxu0 0.0
    %7293 = vmatprep.subr.mxu0 0.0
    %7294 = vmatpush1.msra.mxu0 0.0
    %7295 = vmatprep.subr.mxu0 0.0
    %7296 = vmatpush1.msra.mxu0 0.0
    %7297 = vmatprep.subr.mxu0 0.0
    %7298 = vmatpush1.msra.mxu0 0.0
    %7299 = vmatprep.subr.mxu0 0.0
    %7300 = vmatpush1.msra.mxu0 0.0
    %7301 = vmatprep.subr.mxu0 0.0
    %7302 = vmatpush1.msra.mxu0 0.0
    %7303 = vmatprep.subr.mxu0 0.0
    %7304 = vmatpush1.msra.mxu0 0.0
    %7305 = vmatprep.subr.mxu0 0.0
    %7306 = vmatpush1.msra.mxu0 0.0
    %7307 = vmatprep.subr.mxu0 0.0
    %7308 = vmatpush1.msra.mxu0 0.0
    %7309 = vmatprep.subr.mxu0 0.0
    %7310 = vmatpush1.msra.mxu0 0.0
    %7311 = vmatprep.subr.mxu0 0.0
    %7312 = vmatpush1.msra.mxu0 0.0
    %7313 = vmatprep.subr.mxu0 0.0
    %7314 = vmatpush1.msra.mxu0 0.0
    %7315 = vmatprep.subr.mxu0 0.0
    %7316 = vmatpush1.msra.mxu0 0.0
    %7317 = vmatprep.subr.mxu0 0.0
    %7318 = vmatpush1.msra.mxu0 0.0
    %7319 = vmatprep.subr.mxu0 0.0
    %7320 = vmatpush1.msra.mxu0 0.0
    %7321 = vmatprep.subr.mxu0 0.0
    %7322 = vmatpush1.msra.mxu0 0.0
    %7323 = vmatprep.subr.mxu0 0.0
    %7324 = vmatpush1.msra.mxu0 0.0
    %7325 = vmatprep.subr.mxu0 0.0
    %7326 = vmatpush1.msra.mxu0 0.0
    %7327 = vmatprep.subr.mxu0 0.0
    %7328 = vmatpush1.msra.mxu0 0.0
    %7329 = vmatprep.subr.mxu0 0.0
    %7330 = vmatpush1.msra.mxu0 0.0
    %7331 = vmatprep.subr.mxu0 0.0
    %7332 = vmatpush1.msra.mxu0 0.0
    %7333 = vmatprep.subr.mxu0 0.0
    %7334 = vmatpush1.msra.mxu0 0.0
    %7335 = vmatprep.subr.mxu0 0.0
    %7336 = vmatpush1.msra.mxu0 0.0
    %7337 = vmatprep.subr.mxu0 0.0
    %7338 = vmatpush1.msra.mxu0 0.0
    %7339 = vmatprep.mubr.f32.mxu0 0.0
    %v7340 = vand.u32 %v4767, 4294901760
    %7341 = vmatmul.mubr.f32.gmra.mrb[0].mxu0 %v7340
    %v7342 = vpop.f32.mrb[0].mxu0
    %v7343 = vadd.f32 %v6920, %v7342
    %v7344 = vpop.f32.mrb[0].mxu0
    %v7345 = vadd.f32 %v6922, %v7344
    %7346 = vmatprep.mubr.f32.mxu0 0.0
    %v7347 = vand.u32 %v4770, 4294901760
    %7348 = vmatmul.mubr.f32.gmra.mrb[0].mxu0 %v7347
    %v7349 = vpop.f32.mrb[0].mxu0
    %v7350 = vadd.f32 %v6931, %v7349
    %v7351 = vpop.f32.mrb[0].mxu0
    %v7352 = vadd.f32 %v6933, %v7351
    %7353 = vmatprep.mubr.f32.mxu0 0.0
    %v7354 = vand.u32 %v4773, 4294901760
    %7355 = vmatmul.mubr.f32.gmra.mrb[0].mxu0 %v7354
    %v7356 = vpop.f32.mrb[0].mxu0
    %v7357 = vadd.f32 %v6942, %v7356
    %v7358 = vpop.f32.mrb[0].mxu0
    %v7359 = vadd.f32 %v6944, %v7358
    %7360 = vmatprep.mubr.f32.mxu0 0.0
    %v7361 = vand.u32 %v4776, 4294901760
    %7362 = vmatmul.mubr.f32.gmra.mrb[0].mxu0 %v7361
    %v7363 = vpop.f32.mrb[0].mxu0
    %v7364 = vadd.f32 %v6953, %v7363
    %v7365 = vpop.f32.mrb[0].mxu0
    %v7366 = vadd.f32 %v6955, %v7365
    %7367 = vmatprep.mubr.f32.mxu0 0.0
    %v7368 = vand.u32 %v4779, 4294901760
    %7369 = vmatmul.mubr.f32.gmra.mrb[0].mxu0 %v7368
    %v7370 = vpop.f32.mrb[0].mxu0
    %v7371 = vadd.f32 %v6964, %v7370
    %v7372 = vpop.f32.mrb[0].mxu0
    %v7373 = vadd.f32 %v6966, %v7372
    %7374 = vmatprep.mubr.f32.mxu0 0.0
    %v7375 = vand.u32 %v4782, 4294901760
    %7376 = vmatmul.mubr.f32.gmra.mrb[0].mxu0 %v7375
    %v7377 = vpop.f32.mrb[0].mxu0
    %v7378 = vadd.f32 %v6975, %v7377
    %v7379 = vpop.f32.mrb[0].mxu0
    %v7380 = vadd.f32 %v6977, %v7379
    %7381 = vmatprep.mubr.f32.mxu0 0.0
    %v7382 = vand.u32 %v4785, 4294901760
    %7383 = vmatmul.mubr.f32.gmra.mrb[0].mxu0 %v7382
    %v7384 = vpop.f32.mrb[0].mxu0
    %v7385 = vadd.f32 %v6986, %v7384
    %v7386 = vpop.f32.mrb[0].mxu0
    %v7387 = vadd.f32 %v6988, %v7386
    %7388 = vmatprep.mubr.f32.mxu0 0.0
    %v7389 = vand.u32 %v4788, 4294901760
    %7390 = vmatmul.mubr.f32.gmra.mrb[0].mxu0 %v7389
    %v7391 = vpop.f32.mrb[0].mxu0
    %v7392 = vadd.f32 %v6997, %v7391
    %v7393 = vpop.f32.mrb[0].mxu0
    %v7394 = vadd.f32 %v6999, %v7393
    %7395 = vmatprep.mubr.f32.mxu0 0.0
    %v7396 = vand.u32 %v4791, 4294901760
    %7397 = vmatmul.mubr.f32.gmra.mrb[0].mxu0 %v7396
    %v7398 = vpop.f32.mrb[0].mxu0
    %v7399 = vadd.f32 %v7008, %v7398
    %v7400 = vpop.f32.mrb[0].mxu0
    %v7401 = vadd.f32 %v7010, %v7400
    %7402 = vmatprep.mubr.f32.mxu0 0.0
    %v7403 = vand.u32 %v4794, 4294901760
    %7404 = vmatmul.mubr.f32.gmra.mrb[0].mxu0 %v7403
    %v7405 = vpop.f32.mrb[0].mxu0
    %v7406 = vadd.f32 %v7019, %v7405
    %v7407 = vpop.f32.mrb[0].mxu0
    %v7408 = vadd.f32 %v7021, %v7407
    %7409 = vmatprep.mubr.f32.mxu0 0.0
    %v7410 = vand.u32 %v4797, 4294901760
    %7411 = vmatmul.mubr.f32.gmra.mrb[0].mxu0 %v7410
    %v7412 = vpop.f32.mrb[0].mxu0
    %v7413 = vadd.f32 %v7030, %v7412
    %v7414 = vpop.f32.mrb[0].mxu0
    %v7415 = vadd.f32 %v7032, %v7414
    %7416 = vmatprep.mubr.f32.mxu0 0.0
    %v7417 = vand.u32 %v4800, 4294901760
    %7418 = vmatmul.mubr.f32.gmra.mrb[0].mxu0 %v7417
    %v7419 = vpop.f32.mrb[0].mxu0
    %v7420 = vadd.f32 %v7041, %v7419
    %v7421 = vpop.f32.mrb[0].mxu0
    %v7422 = vadd.f32 %v7043, %v7421
    %7423 = vmatprep.mubr.f32.mxu0 0.0
    %v7424 = vand.u32 %v4803, 4294901760
    %7425 = vmatmul.mubr.f32.gmra.mrb[0].mxu0 %v7424
    %v7426 = vpop.f32.mrb[0].mxu0
    %v7427 = vadd.f32 %v7052, %v7426
    %v7428 = vpop.f32.mrb[0].mxu0
    %v7429 = vadd.f32 %v7054, %v7428
    %7430 = vmatprep.mubr.f32.mxu0 0.0
    %v7431 = vand.u32 %v4806, 4294901760
    %7432 = vmatmul.mubr.f32.gmra.mrb[0].mxu0 %v7431
    %v7433 = vpop.f32.mrb[0].mxu0
    %v7434 = vadd.f32 %v7063, %v7433
    %v7435 = vpop.f32.mrb[0].mxu0
    %v7436 = vadd.f32 %v7065, %v7435
    %7437 = vmatprep.mubr.f32.mxu0 0.0
    %v7438 = vand.u32 %v4809, 4294901760
    %7439 = vmatmul.mubr.f32.gmra.mrb[0].mxu0 %v7438
    %v7440 = vpop.f32.mrb[0].mxu0
    %v7441 = vadd.f32 %v7074, %v7440
    %v7442 = vpop.f32.mrb[0].mxu0
    %v7443 = vadd.f32 %v7076, %v7442
    %7444 = vmatprep.mubr.f32.mxu0 0.0
    %v7445 = vand.u32 %v4812, 4294901760
    %7446 = vmatmul.mubr.f32.gmra.mrb[0].mxu0 %v7445
    %v7447 = vpop.f32.mrb[0].mxu0
    %v7448 = vadd.f32 %v7085, %v7447
    %v7449 = vpop.f32.mrb[0].mxu0
    %v7450 = vadd.f32 %v7087, %v7449
    %7451 = vmatprep.mubr.f32.mxu0 0.0
    %v7452 = vand.u32 %v4815, 4294901760
    %7453 = vmatmul.mubr.f32.gmra.mrb[0].mxu0 %v7452
    %v7454 = vpop.f32.mrb[0].mxu0
    %v7455 = vadd.f32 %v7096, %v7454
    %v7456 = vpop.f32.mrb[0].mxu0
    %v7457 = vadd.f32 %v7098, %v7456
    %7458 = vmatprep.mubr.f32.mxu0 0.0
    %v7459 = vand.u32 %v4818, 4294901760
    %7460 = vmatmul.mubr.f32.gmra.mrb[0].mxu0 %v7459
    %v7461 = vpop.f32.mrb[0].mxu0
    %v7462 = vadd.f32 %v7107, %v7461
    %v7463 = vpop.f32.mrb[0].mxu0
    %v7464 = vadd.f32 %v7109, %v7463
    %7465 = vmatprep.mubr.f32.mxu0 0.0
    %v7466 = vand.u32 %v4821, 4294901760
    %7467 = vmatmul.mubr.f32.gmra.mrb[0].mxu0 %v7466
    %v7468 = vpop.f32.mrb[0].mxu0
    %v7469 = vadd.f32 %v7118, %v7468
    %v7470 = vpop.f32.mrb[0].mxu0
    %v7471 = vadd.f32 %v7120, %v7470
    %7472 = vmatprep.mubr.f32.mxu0 0.0
    %v7473 = vand.u32 %v4824, 4294901760
    %7474 = vmatmul.mubr.f32.gmra.mrb[0].mxu0 %v7473
    %v7475 = vpop.f32.mrb[0].mxu0
    %v7476 = vadd.f32 %v7129, %v7475
    %v7477 = vpop.f32.mrb[0].mxu0
    %v7478 = vadd.f32 %v7131, %v7477
    %7479 = vmatprep.mubr.f32.mxu0 0.0
    %v7480 = vand.u32 %v4827, 4294901760
    %7481 = vmatmul.mubr.f32.gmra.mrb[0].mxu0 %v7480
    %v7482 = vpop.f32.mrb[0].mxu0
    %v7483 = vadd.f32 %v7140, %v7482
    %v7484 = vpop.f32.mrb[0].mxu0
    %v7485 = vadd.f32 %v7142, %v7484
    %7486 = vmatprep.mubr.f32.mxu0 0.0
    %v7487 = vand.u32 %v4830, 4294901760
    %7488 = vmatmul.mubr.f32.gmra.mrb[0].mxu0 %v7487
    %v7489 = vpop.f32.mrb[0].mxu0
    %v7490 = vadd.f32 %v7151, %v7489
    %v7491 = vpop.f32.mrb[0].mxu0
    %v7492 = vadd.f32 %v7153, %v7491
    %7493 = vmatprep.mubr.f32.mxu0 0.0
    %v7494 = vand.u32 %v4833, 4294901760
    %7495 = vmatmul.mubr.f32.gmra.mrb[0].mxu0 %v7494
    %v7496 = vpop.f32.mrb[0].mxu0
    %v7497 = vadd.f32 %v7162, %v7496
    %v7498 = vpop.f32.mrb[0].mxu0
    %v7499 = vadd.f32 %v7164, %v7498
    %7500 = vmatprep.mubr.f32.mxu0 0.0
    %v7501 = vand.u32 %v4836, 4294901760
    %7502 = vmatmul.mubr.f32.gmra.mrb[0].mxu0 %v7501
    %v7503 = vpop.f32.mrb[0].mxu0
    %v7504 = vadd.f32 %v7173, %v7503
    %v7505 = vpop.f32.mrb[0].mxu0
    %v7506 = vadd.f32 %v7175, %v7505
    %7507 = vmatprep.mubr.f32.mxu0 0.0
    %v7508 = vand.u32 %v4839, 4294901760
    %7509 = vmatmul.mubr.f32.gmra.mrb[0].mxu0 %v7508
    %v7510 = vpop.f32.mrb[0].mxu0
    %v7511 = vadd.f32 %v7184, %v7510
    %v7512 = vpop.f32.mrb[0].mxu0
    %v7513 = vadd.f32 %v7186, %v7512
    %7514 = vmatprep.mubr.f32.mxu0 0.0
    %v7515 = vand.u32 %v4842, 4294901760
    %7516 = vmatmul.mubr.f32.gmra.mrb[0].mxu0 %v7515
    %v7517 = vpop.f32.mrb[0].mxu0
    %v7518 = vadd.f32 %v7195, %v7517
    %v7519 = vpop.f32.mrb[0].mxu0
    %v7520 = vadd.f32 %v7197, %v7519
    %7521 = vmatprep.mubr.f32.mxu0 0.0
    %v7522 = vand.u32 %v4845, 4294901760
    %7523 = vmatmul.mubr.f32.gmra.mrb[0].mxu0 %v7522
    %v7524 = vpop.f32.mrb[0].mxu0
    %v7525 = vadd.f32 %v7206, %v7524
    %v7526 = vpop.f32.mrb[0].mxu0
    %v7527 = vadd.f32 %v7208, %v7526
    %7528 = vmatprep.mubr.f32.mxu0 0.0
    %v7529 = vand.u32 %v4848, 4294901760
    %7530 = vmatmul.mubr.f32.gmra.mrb[0].mxu0 %v7529
    %v7531 = vpop.f32.mrb[0].mxu0
    %v7532 = vadd.f32 %v7217, %v7531
    %v7533 = vpop.f32.mrb[0].mxu0
    %v7534 = vadd.f32 %v7219, %v7533
    %7535 = vmatprep.mubr.f32.mxu0 0.0
    %v7536 = vand.u32 %v4851, 4294901760
    %7537 = vmatmul.mubr.f32.gmra.mrb[0].mxu0 %v7536
    %v7538 = vpop.f32.mrb[0].mxu0
    %v7539 = vadd.f32 %v7228, %v7538
    %v7540 = vpop.f32.mrb[0].mxu0
    %v7541 = vadd.f32 %v7230, %v7540
    %7542 = vmatprep.mubr.f32.mxu0 0.0
    %v7543 = vand.u32 %v4854, 4294901760
    %7544 = vmatmul.mubr.f32.gmra.mrb[0].mxu0 %v7543
    %v7545 = vpop.f32.mrb[0].mxu0
    %v7546 = vadd.f32 %v7239, %v7545
    %v7547 = vpop.f32.mrb[0].mxu0
    %v7548 = vadd.f32 %v7241, %v7547
    %7549 = vmatprep.mubr.f32.mxu0 0.0
    %v7550 = vand.u32 %v4857, 4294901760
    %7551 = vmatmul.mubr.f32.gmra.mrb[0].mxu0 %v7550
    %v7552 = vpop.f32.mrb[0].mxu0
    %v7553 = vadd.f32 %v7250, %v7552
    %v7554 = vpop.f32.mrb[0].mxu0
    %v7555 = vadd.f32 %v7252, %v7554
    %7556 = vmatprep.mubr.f32.mxu0 0.0
    %v7557 = vand.u32 %v4860, 4294901760
    %7558 = vmatmul.mubr.f32.gmra.mrb[0].mxu0 %v7557
    %v7559 = vpop.f32.mrb[0].mxu0
    %v7560 = vadd.f32 %v7261, %v7559
    %v7561 = vpop.f32.mrb[0].mxu0
    %v7562 = vadd.f32 %v7263, %v7561
    %7563 = vdwg.mxu0
    %v7564 = vand.u32 %v221, 4294901760
    %v7565 = vsub.f32 %v221, %v7564
    %7566 = vmatprep.subr.mxu0 %v7565
    %v7567 = vand.u32 %v219, 4294901760
    %v7568 = vsub.f32 %v219, %v7567
    %7569 = vmatpush1.msra.mxu0 %v7568
    %7570 = vmatprep.subr.mxu0 0.0
    %7571 = vmatpush1.msra.mxu0 0.0
    %7572 = vmatprep.subr.mxu0 0.0
    %7573 = vmatpush1.msra.mxu0 0.0
    %7574 = vmatprep.subr.mxu0 0.0
    %7575 = vmatpush1.msra.mxu0 0.0
    %7576 = vmatprep.subr.mxu0 0.0
    %7577 = vmatpush1.msra.mxu0 0.0
    %7578 = vmatprep.subr.mxu0 0.0
    %7579 = vmatpush1.msra.mxu0 0.0
    %7580 = vmatprep.subr.mxu0 0.0
    %7581 = vmatpush1.msra.mxu0 0.0
    %7582 = vmatprep.subr.mxu0 0.0
    %7583 = vmatpush1.msra.mxu0 0.0
    %7584 = vmatprep.subr.mxu0 0.0
    %7585 = vmatpush1.msra.mxu0 0.0
    %7586 = vmatprep.subr.mxu0 0.0
    %7587 = vmatpush1.msra.mxu0 0.0
    %7588 = vmatprep.subr.mxu0 0.0
    %7589 = vmatpush1.msra.mxu0 0.0
    %7590 = vmatprep.subr.mxu0 0.0
    %7591 = vmatpush1.msra.mxu0 0.0
    %7592 = vmatprep.subr.mxu0 0.0
    %7593 = vmatpush1.msra.mxu0 0.0
    %7594 = vmatprep.subr.mxu0 0.0
    %7595 = vmatpush1.msra.mxu0 0.0
    %7596 = vmatprep.subr.mxu0 0.0
    %7597 = vmatpush1.msra.mxu0 0.0
    %7598 = vmatprep.subr.mxu0 0.0
    %7599 = vmatpush1.msra.mxu0 0.0
    %7600 = vmatprep.subr.mxu0 0.0
    %7601 = vmatpush1.msra.mxu0 0.0
    %7602 = vmatprep.subr.mxu0 0.0
    %7603 = vmatpush1.msra.mxu0 0.0
    %7604 = vmatprep.subr.mxu0 0.0
    %7605 = vmatpush1.msra.mxu0 0.0
    %7606 = vmatprep.subr.mxu0 0.0
    %7607 = vmatpush1.msra.mxu0 0.0
    %7608 = vmatprep.subr.mxu0 0.0
    %7609 = vmatpush1.msra.mxu0 0.0
    %7610 = vmatprep.subr.mxu0 0.0
    %7611 = vmatpush1.msra.mxu0 0.0
    %7612 = vmatprep.subr.mxu0 0.0
    %7613 = vmatpush1.msra.mxu0 0.0
    %7614 = vmatprep.subr.mxu0 0.0
    %7615 = vmatpush1.msra.mxu0 0.0
    %7616 = vmatprep.subr.mxu0 0.0
    %7617 = vmatpush1.msra.mxu0 0.0
    %7618 = vmatprep.subr.mxu0 0.0
    %7619 = vmatpush1.msra.mxu0 0.0
    %7620 = vmatprep.subr.mxu0 0.0
    %7621 = vmatpush1.msra.mxu0 0.0
    %7622 = vmatprep.subr.mxu0 0.0
    %7623 = vmatpush1.msra.mxu0 0.0
    %7624 = vmatprep.subr.mxu0 0.0
    %7625 = vmatpush1.msra.mxu0 0.0
    %7626 = vmatprep.subr.mxu0 0.0
    %7627 = vmatpush1.msra.mxu0 0.0
    %7628 = vmatprep.subr.mxu0 0.0
    %7629 = vmatpush1.msra.mxu0 0.0
    %7630 = vmatprep.subr.mxu0 0.0
    %7631 = vmatpush1.msra.mxu0 0.0
    %7632 = vmatprep.mubr.f32.mxu0 0.0
    %v7633 = vand.u32 %v4767, 4294901760
    %v7634 = vsub.f32 %v4767, %v7633
    %7635 = vmatmul.mubr.f32.gmra.mrb[0].mxu0 %v7634
    %v7636 = vpop.f32.mrb[0].mxu0
    %v7637 = vadd.f32 %v7343, %v7636
    %v7638 = vpop.f32.mrb[0].mxu0
    %v7639 = vadd.f32 %v7345, %v7638
    %7640 = vmatprep.mubr.f32.mxu0 0.0
    %v7641 = vand.u32 %v4770, 4294901760
    %v7642 = vsub.f32 %v4770, %v7641
    %7643 = vmatmul.mubr.f32.gmra.mrb[0].mxu0 %v7642
    %v7644 = vpop.f32.mrb[0].mxu0
    %v7645 = vadd.f32 %v7350, %v7644
    %v7646 = vpop.f32.mrb[0].mxu0
    %v7647 = vadd.f32 %v7352, %v7646
    %7648 = vmatprep.mubr.f32.mxu0 0.0
    %v7649 = vand.u32 %v4773, 4294901760
    %v7650 = vsub.f32 %v4773, %v7649
    %7651 = vmatmul.mubr.f32.gmra.mrb[0].mxu0 %v7650
    %v7652 = vpop.f32.mrb[0].mxu0
    %v7653 = vadd.f32 %v7357, %v7652
    %v7654 = vpop.f32.mrb[0].mxu0
    %v7655 = vadd.f32 %v7359, %v7654
    %7656 = vmatprep.mubr.f32.mxu0 0.0
    %v7657 = vand.u32 %v4776, 4294901760
    %v7658 = vsub.f32 %v4776, %v7657
    %7659 = vmatmul.mubr.f32.gmra.mrb[0].mxu0 %v7658
    %v7660 = vpop.f32.mrb[0].mxu0
    %v7661 = vadd.f32 %v7364, %v7660
    %v7662 = vpop.f32.mrb[0].mxu0
    %v7663 = vadd.f32 %v7366, %v7662
    %7664 = vmatprep.mubr.f32.mxu0 0.0
    %v7665 = vand.u32 %v4779, 4294901760
    %v7666 = vsub.f32 %v4779, %v7665
    %7667 = vmatmul.mubr.f32.gmra.mrb[0].mxu0 %v7666
    %v7668 = vpop.f32.mrb[0].mxu0
    %v7669 = vadd.f32 %v7371, %v7668
    %v7670 = vpop.f32.mrb[0].mxu0
    %v7671 = vadd.f32 %v7373, %v7670
    %7672 = vmatprep.mubr.f32.mxu0 0.0
    %v7673 = vand.u32 %v4782, 4294901760
    %v7674 = vsub.f32 %v4782, %v7673
    %7675 = vmatmul.mubr.f32.gmra.mrb[0].mxu0 %v7674
    %v7676 = vpop.f32.mrb[0].mxu0
    %v7677 = vadd.f32 %v7378, %v7676
    %v7678 = vpop.f32.mrb[0].mxu0
    %v7679 = vadd.f32 %v7380, %v7678
    %7680 = vmatprep.mubr.f32.mxu0 0.0
    %v7681 = vand.u32 %v4785, 4294901760
    %v7682 = vsub.f32 %v4785, %v7681
    %7683 = vmatmul.mubr.f32.gmra.mrb[0].mxu0 %v7682
    %v7684 = vpop.f32.mrb[0].mxu0
    %v7685 = vadd.f32 %v7385, %v7684
    %v7686 = vpop.f32.mrb[0].mxu0
    %v7687 = vadd.f32 %v7387, %v7686
    %7688 = vmatprep.mubr.f32.mxu0 0.0
    %v7689 = vand.u32 %v4788, 4294901760
    %v7690 = vsub.f32 %v4788, %v7689
    %7691 = vmatmul.mubr.f32.gmra.mrb[0].mxu0 %v7690
    %v7692 = vpop.f32.mrb[0].mxu0
    %v7693 = vadd.f32 %v7392, %v7692
    %v7694 = vpop.f32.mrb[0].mxu0
    %v7695 = vadd.f32 %v7394, %v7694
    %7696 = vmatprep.mubr.f32.mxu0 0.0
    %v7697 = vand.u32 %v4791, 4294901760
    %v7698 = vsub.f32 %v4791, %v7697
    %7699 = vmatmul.mubr.f32.gmra.mrb[0].mxu0 %v7698
    %v7700 = vpop.f32.mrb[0].mxu0
    %v7701 = vadd.f32 %v7399, %v7700
    %v7702 = vpop.f32.mrb[0].mxu0
    %v7703 = vadd.f32 %v7401, %v7702
    %7704 = vmatprep.mubr.f32.mxu0 0.0
    %v7705 = vand.u32 %v4794, 4294901760
    %v7706 = vsub.f32 %v4794, %v7705
    %7707 = vmatmul.mubr.f32.gmra.mrb[0].mxu0 %v7706
    %v7708 = vpop.f32.mrb[0].mxu0
    %v7709 = vadd.f32 %v7406, %v7708
    %v7710 = vpop.f32.mrb[0].mxu0
    %v7711 = vadd.f32 %v7408, %v7710
    %7712 = vmatprep.mubr.f32.mxu0 0.0
    %v7713 = vand.u32 %v4797, 4294901760
    %v7714 = vsub.f32 %v4797, %v7713
    %7715 = vmatmul.mubr.f32.gmra.mrb[0].mxu0 %v7714
    %v7716 = vpop.f32.mrb[0].mxu0
    %v7717 = vadd.f32 %v7413, %v7716
    %v7718 = vpop.f32.mrb[0].mxu0
    %v7719 = vadd.f32 %v7415, %v7718
    %7720 = vmatprep.mubr.f32.mxu0 0.0
    %v7721 = vand.u32 %v4800, 4294901760
    %v7722 = vsub.f32 %v4800, %v7721
    %7723 = vmatmul.mubr.f32.gmra.mrb[0].mxu0 %v7722
    %v7724 = vpop.f32.mrb[0].mxu0
    %v7725 = vadd.f32 %v7420, %v7724
    %v7726 = vpop.f32.mrb[0].mxu0
    %v7727 = vadd.f32 %v7422, %v7726
    %7728 = vmatprep.mubr.f32.mxu0 0.0
    %v7729 = vand.u32 %v4803, 4294901760
    %v7730 = vsub.f32 %v4803, %v7729
    %7731 = vmatmul.mubr.f32.gmra.mrb[0].mxu0 %v7730
    %v7732 = vpop.f32.mrb[0].mxu0
    %v7733 = vadd.f32 %v7427, %v7732
    %v7734 = vpop.f32.mrb[0].mxu0
    %v7735 = vadd.f32 %v7429, %v7734
    %7736 = vmatprep.mubr.f32.mxu0 0.0
    %v7737 = vand.u32 %v4806, 4294901760
    %v7738 = vsub.f32 %v4806, %v7737
    %7739 = vmatmul.mubr.f32.gmra.mrb[0].mxu0 %v7738
    %v7740 = vpop.f32.mrb[0].mxu0
    %v7741 = vadd.f32 %v7434, %v7740
    %v7742 = vpop.f32.mrb[0].mxu0
    %v7743 = vadd.f32 %v7436, %v7742
    %7744 = vmatprep.mubr.f32.mxu0 0.0
    %v7745 = vand.u32 %v4809, 4294901760
    %v7746 = vsub.f32 %v4809, %v7745
    %7747 = vmatmul.mubr.f32.gmra.mrb[0].mxu0 %v7746
    %v7748 = vpop.f32.mrb[0].mxu0
    %v7749 = vadd.f32 %v7441, %v7748
    %v7750 = vpop.f32.mrb[0].mxu0
    %v7751 = vadd.f32 %v7443, %v7750
    %7752 = vmatprep.mubr.f32.mxu0 0.0
    %v7753 = vand.u32 %v4812, 4294901760
    %v7754 = vsub.f32 %v4812, %v7753
    %7755 = vmatmul.mubr.f32.gmra.mrb[0].mxu0 %v7754
    %v7756 = vpop.f32.mrb[0].mxu0
    %v7757 = vadd.f32 %v7448, %v7756
    %v7758 = vpop.f32.mrb[0].mxu0
    %v7759 = vadd.f32 %v7450, %v7758
    %7760 = vmatprep.mubr.f32.mxu0 0.0
    %v7761 = vand.u32 %v4815, 4294901760
    %v7762 = vsub.f32 %v4815, %v7761
    %7763 = vmatmul.mubr.f32.gmra.mrb[0].mxu0 %v7762
    %v7764 = vpop.f32.mrb[0].mxu0
    %v7765 = vadd.f32 %v7455, %v7764
    %v7766 = vpop.f32.mrb[0].mxu0
    %v7767 = vadd.f32 %v7457, %v7766
    %7768 = vmatprep.mubr.f32.mxu0 0.0
    %v7769 = vand.u32 %v4818, 4294901760
    %v7770 = vsub.f32 %v4818, %v7769
    %7771 = vmatmul.mubr.f32.gmra.mrb[0].mxu0 %v7770
    %v7772 = vpop.f32.mrb[0].mxu0
    %v7773 = vadd.f32 %v7462, %v7772
    %v7774 = vpop.f32.mrb[0].mxu0
    %v7775 = vadd.f32 %v7464, %v7774
    %7776 = vmatprep.mubr.f32.mxu0 0.0
    %v7777 = vand.u32 %v4821, 4294901760
    %v7778 = vsub.f32 %v4821, %v7777
    %7779 = vmatmul.mubr.f32.gmra.mrb[0].mxu0 %v7778
    %v7780 = vpop.f32.mrb[0].mxu0
    %v7781 = vadd.f32 %v7469, %v7780
    %v7782 = vpop.f32.mrb[0].mxu0
    %v7783 = vadd.f32 %v7471, %v7782
    %7784 = vmatprep.mubr.f32.mxu0 0.0
    %v7785 = vand.u32 %v4824, 4294901760
    %v7786 = vsub.f32 %v4824, %v7785
    %7787 = vmatmul.mubr.f32.gmra.mrb[0].mxu0 %v7786
    %v7788 = vpop.f32.mrb[0].mxu0
    %v7789 = vadd.f32 %v7476, %v7788
    %v7790 = vpop.f32.mrb[0].mxu0
    %v7791 = vadd.f32 %v7478, %v7790
    %7792 = vmatprep.mubr.f32.mxu0 0.0
    %v7793 = vand.u32 %v4827, 4294901760
    %v7794 = vsub.f32 %v4827, %v7793
    %7795 = vmatmul.mubr.f32.gmra.mrb[0].mxu0 %v7794
    %v7796 = vpop.f32.mrb[0].mxu0
    %v7797 = vadd.f32 %v7483, %v7796
    %v7798 = vpop.f32.mrb[0].mxu0
    %v7799 = vadd.f32 %v7485, %v7798
    %7800 = vmatprep.mubr.f32.mxu0 0.0
    %v7801 = vand.u32 %v4830, 4294901760
    %v7802 = vsub.f32 %v4830, %v7801
    %7803 = vmatmul.mubr.f32.gmra.mrb[0].mxu0 %v7802
    %v7804 = vpop.f32.mrb[0].mxu0
    %v7805 = vadd.f32 %v7490, %v7804
    %v7806 = vpop.f32.mrb[0].mxu0
    %v7807 = vadd.f32 %v7492, %v7806
    %7808 = vmatprep.mubr.f32.mxu0 0.0
    %v7809 = vand.u32 %v4833, 4294901760
    %v7810 = vsub.f32 %v4833, %v7809
    %7811 = vmatmul.mubr.f32.gmra.mrb[0].mxu0 %v7810
    %v7812 = vpop.f32.mrb[0].mxu0
    %v7813 = vadd.f32 %v7497, %v7812
    %v7814 = vpop.f32.mrb[0].mxu0
    %v7815 = vadd.f32 %v7499, %v7814
    %7816 = vmatprep.mubr.f32.mxu0 0.0
    %v7817 = vand.u32 %v4836, 4294901760
    %v7818 = vsub.f32 %v4836, %v7817
    %7819 = vmatmul.mubr.f32.gmra.mrb[0].mxu0 %v7818
    %v7820 = vpop.f32.mrb[0].mxu0
    %v7821 = vadd.f32 %v7504, %v7820
    %v7822 = vpop.f32.mrb[0].mxu0
    %v7823 = vadd.f32 %v7506, %v7822
    %7824 = vmatprep.mubr.f32.mxu0 0.0
    %v7825 = vand.u32 %v4839, 4294901760
    %v7826 = vsub.f32 %v4839, %v7825
    %7827 = vmatmul.mubr.f32.gmra.mrb[0].mxu0 %v7826
    %v7828 = vpop.f32.mrb[0].mxu0
    %v7829 = vadd.f32 %v7511, %v7828
    %v7830 = vpop.f32.mrb[0].mxu0
    %v7831 = vadd.f32 %v7513, %v7830
    %7832 = vmatprep.mubr.f32.mxu0 0.0
    %v7833 = vand.u32 %v4842, 4294901760
    %v7834 = vsub.f32 %v4842, %v7833
    %7835 = vmatmul.mubr.f32.gmra.mrb[0].mxu0 %v7834
    %v7836 = vpop.f32.mrb[0].mxu0
    %v7837 = vadd.f32 %v7518, %v7836
    %v7838 = vpop.f32.mrb[0].mxu0
    %v7839 = vadd.f32 %v7520, %v7838
    %7840 = vmatprep.mubr.f32.mxu0 0.0
    %v7841 = vand.u32 %v4845, 4294901760
    %v7842 = vsub.f32 %v4845, %v7841
    %7843 = vmatmul.mubr.f32.gmra.mrb[0].mxu0 %v7842
    %v7844 = vpop.f32.mrb[0].mxu0
    %v7845 = vadd.f32 %v7525, %v7844
    %v7846 = vpop.f32.mrb[0].mxu0
    %v7847 = vadd.f32 %v7527, %v7846
    %7848 = vmatprep.mubr.f32.mxu0 0.0
    %v7849 = vand.u32 %v4848, 4294901760
    %v7850 = vsub.f32 %v4848, %v7849
    %7851 = vmatmul.mubr.f32.gmra.mrb[0].mxu0 %v7850
    %v7852 = vpop.f32.mrb[0].mxu0
    %v7853 = vadd.f32 %v7532, %v7852
    %v7854 = vpop.f32.mrb[0].mxu0
    %v7855 = vadd.f32 %v7534, %v7854
    %7856 = vmatprep.mubr.f32.mxu0 0.0
    %v7857 = vand.u32 %v4851, 4294901760
    %v7858 = vsub.f32 %v4851, %v7857
    %7859 = vmatmul.mubr.f32.gmra.mrb[0].mxu0 %v7858
    %v7860 = vpop.f32.mrb[0].mxu0
    %v7861 = vadd.f32 %v7539, %v7860
    %v7862 = vpop.f32.mrb[0].mxu0
    %v7863 = vadd.f32 %v7541, %v7862
    %7864 = vmatprep.mubr.f32.mxu0 0.0
    %v7865 = vand.u32 %v4854, 4294901760
    %v7866 = vsub.f32 %v4854, %v7865
    %7867 = vmatmul.mubr.f32.gmra.mrb[0].mxu0 %v7866
    %v7868 = vpop.f32.mrb[0].mxu0
    %v7869 = vadd.f32 %v7546, %v7868
    %v7870 = vpop.f32.mrb[0].mxu0
    %v7871 = vadd.f32 %v7548, %v7870
    %7872 = vmatprep.mubr.f32.mxu0 0.0
    %v7873 = vand.u32 %v4857, 4294901760
    %v7874 = vsub.f32 %v4857, %v7873
    %7875 = vmatmul.mubr.f32.gmra.mrb[0].mxu0 %v7874
    %v7876 = vpop.f32.mrb[0].mxu0
    %v7877 = vadd.f32 %v7553, %v7876
    %v7878 = vpop.f32.mrb[0].mxu0
    %v7879 = vadd.f32 %v7555, %v7878
    %7880 = vmatprep.mubr.f32.mxu0 0.0
    %v7881 = vand.u32 %v4860, 4294901760
    %v7882 = vsub.f32 %v4860, %v7881
    %7883 = vmatmul.mubr.f32.gmra.mrb[0].mxu0 %v7882
    %v7884 = vpop.f32.mrb[0].mxu0
    %v7885 = vadd.f32 %v7560, %v7884
    %v7886 = vpop.f32.mrb[0].mxu0
    %v7887 = vadd.f32 %v7562, %v7886
    %7888 = vdwg.mxu0
    %v7889 = vand.u32 %v221, 4294901760
    %7890 = vmatprep.subr.mxu0 %v7889
    %v7891 = vand.u32 %v219, 4294901760
    %7892 = vmatpush1.msra.mxu0 %v7891
    %7893 = vmatprep.subr.mxu0 0.0
    %7894 = vmatpush1.msra.mxu0 0.0
    %7895 = vmatprep.subr.mxu0 0.0
    %7896 = vmatpush1.msra.mxu0 0.0
    %7897 = vmatprep.subr.mxu0 0.0
    %7898 = vmatpush1.msra.mxu0 0.0
    %7899 = vmatprep.subr.mxu0 0.0
    %7900 = vmatpush1.msra.mxu0 0.0
    %7901 = vmatprep.subr.mxu0 0.0
    %7902 = vmatpush1.msra.mxu0 0.0
    %7903 = vmatprep.subr.mxu0 0.0
    %7904 = vmatpush1.msra.mxu0 0.0
    %7905 = vmatprep.subr.mxu0 0.0
    %7906 = vmatpush1.msra.mxu0 0.0
    %7907 = vmatprep.subr.mxu0 0.0
    %7908 = vmatpush1.msra.mxu0 0.0
    %7909 = vmatprep.subr.mxu0 0.0
    %7910 = vmatpush1.msra.mxu0 0.0
    %7911 = vmatprep.subr.mxu0 0.0
    %7912 = vmatpush1.msra.mxu0 0.0
    %7913 = vmatprep.subr.mxu0 0.0
    %7914 = vmatpush1.msra.mxu0 0.0
    %7915 = vmatprep.subr.mxu0 0.0
    %7916 = vmatpush1.msra.mxu0 0.0
    %7917 = vmatprep.subr.mxu0 0.0
    %7918 = vmatpush1.msra.mxu0 0.0
    %7919 = vmatprep.subr.mxu0 0.0
    %7920 = vmatpush1.msra.mxu0 0.0
    %7921 = vmatprep.subr.mxu0 0.0
    %7922 = vmatpush1.msra.mxu0 0.0
    %7923 = vmatprep.subr.mxu0 0.0
    %7924 = vmatpush1.msra.mxu0 0.0
    %7925 = vmatprep.subr.mxu0 0.0
    %7926 = vmatpush1.msra.mxu0 0.0
    %7927 = vmatprep.subr.mxu0 0.0
    %7928 = vmatpush1.msra.mxu0 0.0
    %7929 = vmatprep.subr.mxu0 0.0
    %7930 = vmatpush1.msra.mxu0 0.0
    %7931 = vmatprep.subr.mxu0 0.0
    %7932 = vmatpush1.msra.mxu0 0.0
    %7933 = vmatprep.subr.mxu0 0.0
    %7934 = vmatpush1.msra.mxu0 0.0
    %7935 = vmatprep.subr.mxu0 0.0
    %7936 = vmatpush1.msra.mxu0 0.0
    %7937 = vmatprep.subr.mxu0 0.0
    %7938 = vmatpush1.msra.mxu0 0.0
    %7939 = vmatprep.subr.mxu0 0.0
    %7940 = vmatpush1.msra.mxu0 0.0
    %7941 = vmatprep.subr.mxu0 0.0
    %7942 = vmatpush1.msra.mxu0 0.0
    %7943 = vmatprep.subr.mxu0 0.0
    %7944 = vmatpush1.msra.mxu0 0.0
    %7945 = vmatprep.subr.mxu0 0.0
    %7946 = vmatpush1.msra.mxu0 0.0
    %7947 = vmatprep.subr.mxu0 0.0
    %7948 = vmatpush1.msra.mxu0 0.0
    %7949 = vmatprep.subr.mxu0 0.0
    %7950 = vmatpush1.msra.mxu0 0.0
    %7951 = vmatprep.subr.mxu0 0.0
    %7952 = vmatpush1.msra.mxu0 0.0
    %7953 = vmatprep.subr.mxu0 0.0
    %7954 = vmatpush1.msra.mxu0 0.0
    %7955 = vmatprep.mubr.f32.mxu0 0.0
    %v7956 = vand.u32 %v4767, 4294901760
    %v7957 = vsub.f32 %v4767, %v7956
    %v7958 = vand.u32 %v7957, 4294901760
    %7959 = vmatmul.mubr.f32.gmra.mrb[0].mxu0 %v7958
    %v7960 = vpop.f32.mrb[0].mxu0
    %v7961 = vadd.f32 %v7637, %v7960
    %v7962 = vpop.f32.mrb[0].mxu0
    %v7963 = vadd.f32 %v7639, %v7962
    %7964 = vmatprep.mubr.f32.mxu0 0.0
    %v7965 = vand.u32 %v4770, 4294901760
    %v7966 = vsub.f32 %v4770, %v7965
    %v7967 = vand.u32 %v7966, 4294901760
    %7968 = vmatmul.mubr.f32.gmra.mrb[0].mxu0 %v7967
    %v7969 = vpop.f32.mrb[0].mxu0
    %v7970 = vadd.f32 %v7645, %v7969
    %v7971 = vpop.f32.mrb[0].mxu0
    %v7972 = vadd.f32 %v7647, %v7971
    %7973 = vmatprep.mubr.f32.mxu0 0.0
    %v7974 = vand.u32 %v4773, 4294901760
    %v7975 = vsub.f32 %v4773, %v7974
    %v7976 = vand.u32 %v7975, 4294901760
    %7977 = vmatmul.mubr.f32.gmra.mrb[0].mxu0 %v7976
    %v7978 = vpop.f32.mrb[0].mxu0
    %v7979 = vadd.f32 %v7653, %v7978
    %v7980 = vpop.f32.mrb[0].mxu0
    %v7981 = vadd.f32 %v7655, %v7980
    %7982 = vmatprep.mubr.f32.mxu0 0.0
    %v7983 = vand.u32 %v4776, 4294901760
    %v7984 = vsub.f32 %v4776, %v7983
    %v7985 = vand.u32 %v7984, 4294901760
    %7986 = vmatmul.mubr.f32.gmra.mrb[0].mxu0 %v7985
    %v7987 = vpop.f32.mrb[0].mxu0
    %v7988 = vadd.f32 %v7661, %v7987
    %v7989 = vpop.f32.mrb[0].mxu0
    %v7990 = vadd.f32 %v7663, %v7989
    %7991 = vmatprep.mubr.f32.mxu0 0.0
    %v7992 = vand.u32 %v4779, 4294901760
    %v7993 = vsub.f32 %v4779, %v7992
    %v7994 = vand.u32 %v7993, 4294901760
    %7995 = vmatmul.mubr.f32.gmra.mrb[0].mxu0 %v7994
    %v7996 = vpop.f32.mrb[0].mxu0
    %v7997 = vadd.f32 %v7669, %v7996
    %v7998 = vpop.f32.mrb[0].mxu0
    %v7999 = vadd.f32 %v7671, %v7998
    %8000 = vmatprep.mubr.f32.mxu0 0.0
    %v8001 = vand.u32 %v4782, 4294901760
    %v8002 = vsub.f32 %v4782, %v8001
    %v8003 = vand.u32 %v8002, 4294901760
    %8004 = vmatmul.mubr.f32.gmra.mrb[0].mxu0 %v8003
    %v8005 = vpop.f32.mrb[0].mxu0
    %v8006 = vadd.f32 %v7677, %v8005
    %v8007 = vpop.f32.mrb[0].mxu0
    %v8008 = vadd.f32 %v7679, %v8007
    %8009 = vmatprep.mubr.f32.mxu0 0.0
    %v8010 = vand.u32 %v4785, 4294901760
    %v8011 = vsub.f32 %v4785, %v8010
    %v8012 = vand.u32 %v8011, 4294901760
    %8013 = vmatmul.mubr.f32.gmra.mrb[0].mxu0 %v8012
    %v8014 = vpop.f32.mrb[0].mxu0
    %v8015 = vadd.f32 %v7685, %v8014
    %v8016 = vpop.f32.mrb[0].mxu0
    %v8017 = vadd.f32 %v7687, %v8016
    %8018 = vmatprep.mubr.f32.mxu0 0.0
    %v8019 = vand.u32 %v4788, 4294901760
    %v8020 = vsub.f32 %v4788, %v8019
    %v8021 = vand.u32 %v8020, 4294901760
    %8022 = vmatmul.mubr.f32.gmra.mrb[0].mxu0 %v8021
    %v8023 = vpop.f32.mrb[0].mxu0
    %v8024 = vadd.f32 %v7693, %v8023
    %v8025 = vpop.f32.mrb[0].mxu0
    %v8026 = vadd.f32 %v7695, %v8025
    %8027 = vmatprep.mubr.f32.mxu0 0.0
    %v8028 = vand.u32 %v4791, 4294901760
    %v8029 = vsub.f32 %v4791, %v8028
    %v8030 = vand.u32 %v8029, 4294901760
    %8031 = vmatmul.mubr.f32.gmra.mrb[0].mxu0 %v8030
    %v8032 = vpop.f32.mrb[0].mxu0
    %v8033 = vadd.f32 %v7701, %v8032
    %v8034 = vpop.f32.mrb[0].mxu0
    %v8035 = vadd.f32 %v7703, %v8034
    %8036 = vmatprep.mubr.f32.mxu0 0.0
    %v8037 = vand.u32 %v4794, 4294901760
    %v8038 = vsub.f32 %v4794, %v8037
    %v8039 = vand.u32 %v8038, 4294901760
    %8040 = vmatmul.mubr.f32.gmra.mrb[0].mxu0 %v8039
    %v8041 = vpop.f32.mrb[0].mxu0
    %v8042 = vadd.f32 %v7709, %v8041
    %v8043 = vpop.f32.mrb[0].mxu0
    %v8044 = vadd.f32 %v7711, %v8043
    %8045 = vmatprep.mubr.f32.mxu0 0.0
    %v8046 = vand.u32 %v4797, 4294901760
    %v8047 = vsub.f32 %v4797, %v8046
    %v8048 = vand.u32 %v8047, 4294901760
    %8049 = vmatmul.mubr.f32.gmra.mrb[0].mxu0 %v8048
    %v8050 = vpop.f32.mrb[0].mxu0
    %v8051 = vadd.f32 %v7717, %v8050
    %v8052 = vpop.f32.mrb[0].mxu0
    %v8053 = vadd.f32 %v7719, %v8052
    %8054 = vmatprep.mubr.f32.mxu0 0.0
    %v8055 = vand.u32 %v4800, 4294901760
    %v8056 = vsub.f32 %v4800, %v8055
    %v8057 = vand.u32 %v8056, 4294901760
    %8058 = vmatmul.mubr.f32.gmra.mrb[0].mxu0 %v8057
    %v8059 = vpop.f32.mrb[0].mxu0
    %v8060 = vadd.f32 %v7725, %v8059
    %v8061 = vpop.f32.mrb[0].mxu0
    %v8062 = vadd.f32 %v7727, %v8061
    %8063 = vmatprep.mubr.f32.mxu0 0.0
    %v8064 = vand.u32 %v4803, 4294901760
    %v8065 = vsub.f32 %v4803, %v8064
    %v8066 = vand.u32 %v8065, 4294901760
    %8067 = vmatmul.mubr.f32.gmra.mrb[0].mxu0 %v8066
    %v8068 = vpop.f32.mrb[0].mxu0
    %v8069 = vadd.f32 %v7733, %v8068
    %v8070 = vpop.f32.mrb[0].mxu0
    %v8071 = vadd.f32 %v7735, %v8070
    %8072 = vmatprep.mubr.f32.mxu0 0.0
    %v8073 = vand.u32 %v4806, 4294901760
    %v8074 = vsub.f32 %v4806, %v8073
    %v8075 = vand.u32 %v8074, 4294901760
    %8076 = vmatmul.mubr.f32.gmra.mrb[0].mxu0 %v8075
    %v8077 = vpop.f32.mrb[0].mxu0
    %v8078 = vadd.f32 %v7741, %v8077
    %v8079 = vpop.f32.mrb[0].mxu0
    %v8080 = vadd.f32 %v7743, %v8079
    %8081 = vmatprep.mubr.f32.mxu0 0.0
    %v8082 = vand.u32 %v4809, 4294901760
    %v8083 = vsub.f32 %v4809, %v8082
    %v8084 = vand.u32 %v8083, 4294901760
    %8085 = vmatmul.mubr.f32.gmra.mrb[0].mxu0 %v8084
    %v8086 = vpop.f32.mrb[0].mxu0
    %v8087 = vadd.f32 %v7749, %v8086
    %v8088 = vpop.f32.mrb[0].mxu0
    %v8089 = vadd.f32 %v7751, %v8088
    %8090 = vmatprep.mubr.f32.mxu0 0.0
    %v8091 = vand.u32 %v4812, 4294901760
    %v8092 = vsub.f32 %v4812, %v8091
    %v8093 = vand.u32 %v8092, 4294901760
    %8094 = vmatmul.mubr.f32.gmra.mrb[0].mxu0 %v8093
    %v8095 = vpop.f32.mrb[0].mxu0
    %v8096 = vadd.f32 %v7757, %v8095
    %v8097 = vpop.f32.mrb[0].mxu0
    %v8098 = vadd.f32 %v7759, %v8097
    %8099 = vmatprep.mubr.f32.mxu0 0.0
    %v8100 = vand.u32 %v4815, 4294901760
    %v8101 = vsub.f32 %v4815, %v8100
    %v8102 = vand.u32 %v8101, 4294901760
    %8103 = vmatmul.mubr.f32.gmra.mrb[0].mxu0 %v8102
    %v8104 = vpop.f32.mrb[0].mxu0
    %v8105 = vadd.f32 %v7765, %v8104
    %v8106 = vpop.f32.mrb[0].mxu0
    %v8107 = vadd.f32 %v7767, %v8106
    %8108 = vmatprep.mubr.f32.mxu0 0.0
    %v8109 = vand.u32 %v4818, 4294901760
    %v8110 = vsub.f32 %v4818, %v8109
    %v8111 = vand.u32 %v8110, 4294901760
    %8112 = vmatmul.mubr.f32.gmra.mrb[0].mxu0 %v8111
    %v8113 = vpop.f32.mrb[0].mxu0
    %v8114 = vadd.f32 %v7773, %v8113
    %v8115 = vpop.f32.mrb[0].mxu0
    %v8116 = vadd.f32 %v7775, %v8115
    %8117 = vmatprep.mubr.f32.mxu0 0.0
    %v8118 = vand.u32 %v4821, 4294901760
    %v8119 = vsub.f32 %v4821, %v8118
    %v8120 = vand.u32 %v8119, 4294901760
    %8121 = vmatmul.mubr.f32.gmra.mrb[0].mxu0 %v8120
    %v8122 = vpop.f32.mrb[0].mxu0
    %v8123 = vadd.f32 %v7781, %v8122
    %v8124 = vpop.f32.mrb[0].mxu0
    %v8125 = vadd.f32 %v7783, %v8124
    %8126 = vmatprep.mubr.f32.mxu0 0.0
    %v8127 = vand.u32 %v4824, 4294901760
    %v8128 = vsub.f32 %v4824, %v8127
    %v8129 = vand.u32 %v8128, 4294901760
    %8130 = vmatmul.mubr.f32.gmra.mrb[0].mxu0 %v8129
    %v8131 = vpop.f32.mrb[0].mxu0
    %v8132 = vadd.f32 %v7789, %v8131
    %v8133 = vpop.f32.mrb[0].mxu0
    %v8134 = vadd.f32 %v7791, %v8133
    %8135 = vmatprep.mubr.f32.mxu0 0.0
    %v8136 = vand.u32 %v4827, 4294901760
    %v8137 = vsub.f32 %v4827, %v8136
    %v8138 = vand.u32 %v8137, 4294901760
    %8139 = vmatmul.mubr.f32.gmra.mrb[0].mxu0 %v8138
    %v8140 = vpop.f32.mrb[0].mxu0
    %v8141 = vadd.f32 %v7797, %v8140
    %v8142 = vpop.f32.mrb[0].mxu0
    %v8143 = vadd.f32 %v7799, %v8142
    %8144 = vmatprep.mubr.f32.mxu0 0.0
    %v8145 = vand.u32 %v4830, 4294901760
    %v8146 = vsub.f32 %v4830, %v8145
    %v8147 = vand.u32 %v8146, 4294901760
    %8148 = vmatmul.mubr.f32.gmra.mrb[0].mxu0 %v8147
    %v8149 = vpop.f32.mrb[0].mxu0
    %v8150 = vadd.f32 %v7805, %v8149
    %v8151 = vpop.f32.mrb[0].mxu0
    %v8152 = vadd.f32 %v7807, %v8151
    %8153 = vmatprep.mubr.f32.mxu0 0.0
    %v8154 = vand.u32 %v4833, 4294901760
    %v8155 = vsub.f32 %v4833, %v8154
    %v8156 = vand.u32 %v8155, 4294901760
    %8157 = vmatmul.mubr.f32.gmra.mrb[0].mxu0 %v8156
    %v8158 = vpop.f32.mrb[0].mxu0
    %v8159 = vadd.f32 %v7813, %v8158
    %v8160 = vpop.f32.mrb[0].mxu0
    %v8161 = vadd.f32 %v7815, %v8160
    %8162 = vmatprep.mubr.f32.mxu0 0.0
    %v8163 = vand.u32 %v4836, 4294901760
    %v8164 = vsub.f32 %v4836, %v8163
    %v8165 = vand.u32 %v8164, 4294901760
    %8166 = vmatmul.mubr.f32.gmra.mrb[0].mxu0 %v8165
    %v8167 = vpop.f32.mrb[0].mxu0
    %v8168 = vadd.f32 %v7821, %v8167
    %v8169 = vpop.f32.mrb[0].mxu0
    %v8170 = vadd.f32 %v7823, %v8169
    %8171 = vmatprep.mubr.f32.mxu0 0.0
    %v8172 = vand.u32 %v4839, 4294901760
    %v8173 = vsub.f32 %v4839, %v8172
    %v8174 = vand.u32 %v8173, 4294901760
    %8175 = vmatmul.mubr.f32.gmra.mrb[0].mxu0 %v8174
    %v8176 = vpop.f32.mrb[0].mxu0
    %v8177 = vadd.f32 %v7829, %v8176
    %v8178 = vpop.f32.mrb[0].mxu0
    %v8179 = vadd.f32 %v7831, %v8178
    %8180 = vmatprep.mubr.f32.mxu0 0.0
    %v8181 = vand.u32 %v4842, 4294901760
    %v8182 = vsub.f32 %v4842, %v8181
    %v8183 = vand.u32 %v8182, 4294901760
    %8184 = vmatmul.mubr.f32.gmra.mrb[0].mxu0 %v8183
    %v8185 = vpop.f32.mrb[0].mxu0
    %v8186 = vadd.f32 %v7837, %v8185
    %v8187 = vpop.f32.mrb[0].mxu0
    %v8188 = vadd.f32 %v7839, %v8187
    %8189 = vmatprep.mubr.f32.mxu0 0.0
    %v8190 = vand.u32 %v4845, 4294901760
    %v8191 = vsub.f32 %v4845, %v8190
    %v8192 = vand.u32 %v8191, 4294901760
    %8193 = vmatmul.mubr.f32.gmra.mrb[0].mxu0 %v8192
    %v8194 = vpop.f32.mrb[0].mxu0
    %v8195 = vadd.f32 %v7845, %v8194
    %v8196 = vpop.f32.mrb[0].mxu0
    %v8197 = vadd.f32 %v7847, %v8196
    %8198 = vmatprep.mubr.f32.mxu0 0.0
    %v8199 = vand.u32 %v4848, 4294901760
    %v8200 = vsub.f32 %v4848, %v8199
    %v8201 = vand.u32 %v8200, 4294901760
    %8202 = vmatmul.mubr.f32.gmra.mrb[0].mxu0 %v8201
    %v8203 = vpop.f32.mrb[0].mxu0
    %v8204 = vadd.f32 %v7853, %v8203
    %v8205 = vpop.f32.mrb[0].mxu0
    %v8206 = vadd.f32 %v7855, %v8205
    %8207 = vmatprep.mubr.f32.mxu0 0.0
    %v8208 = vand.u32 %v4851, 4294901760
    %v8209 = vsub.f32 %v4851, %v8208
    %v8210 = vand.u32 %v8209, 4294901760
    %8211 = vmatmul.mubr.f32.gmra.mrb[0].mxu0 %v8210
    %v8212 = vpop.f32.mrb[0].mxu0
    %v8213 = vadd.f32 %v7861, %v8212
    %v8214 = vpop.f32.mrb[0].mxu0
    %v8215 = vadd.f32 %v7863, %v8214
    %8216 = vmatprep.mubr.f32.mxu0 0.0
    %v8217 = vand.u32 %v4854, 4294901760
    %v8218 = vsub.f32 %v4854, %v8217
    %v8219 = vand.u32 %v8218, 4294901760
    %8220 = vmatmul.mubr.f32.gmra.mrb[0].mxu0 %v8219
    %v8221 = vpop.f32.mrb[0].mxu0
    %v8222 = vadd.f32 %v7869, %v8221
    %v8223 = vpop.f32.mrb[0].mxu0
    %v8224 = vadd.f32 %v7871, %v8223
    %8225 = vmatprep.mubr.f32.mxu0 0.0
    %v8226 = vand.u32 %v4857, 4294901760
    %v8227 = vsub.f32 %v4857, %v8226
    %v8228 = vand.u32 %v8227, 4294901760
    %8229 = vmatmul.mubr.f32.gmra.mrb[0].mxu0 %v8228
    %v8230 = vpop.f32.mrb[0].mxu0
    %v8231 = vadd.f32 %v7877, %v8230
    %v8232 = vpop.f32.mrb[0].mxu0
    %v8233 = vadd.f32 %v7879, %v8232
    %8234 = vmatprep.mubr.f32.mxu0 0.0
    %v8235 = vand.u32 %v4860, 4294901760
    %v8236 = vsub.f32 %v4860, %v8235
    %v8237 = vand.u32 %v8236, 4294901760
    %8238 = vmatmul.mubr.f32.gmra.mrb[0].mxu0 %v8237
    %v8239 = vpop.f32.mrb[0].mxu0
    %v8240 = vadd.f32 %v7885, %v8239
    %v8241 = vpop.f32.mrb[0].mxu0
    %v8242 = vadd.f32 %v7887, %v8241
    %8243 = vdwg.mxu0
    %v8244 = vand.u32 %v221, 4294901760
    %v8245 = vsub.f32 %v221, %v8244
    %v8246 = vand.u32 %v8245, 4294901760
    %8247 = vmatprep.subr.mxu0 %v8246
    %v8248 = vand.u32 %v219, 4294901760
    %v8249 = vsub.f32 %v219, %v8248
    %v8250 = vand.u32 %v8249, 4294901760
    %8251 = vmatpush1.msra.mxu0 %v8250
    %8252 = vmatprep.subr.mxu0 0.0
    %8253 = vmatpush1.msra.mxu0 0.0
    %8254 = vmatprep.subr.mxu0 0.0
    %8255 = vmatpush1.msra.mxu0 0.0
    %8256 = vmatprep.subr.mxu0 0.0
    %8257 = vmatpush1.msra.mxu0 0.0
    %8258 = vmatprep.subr.mxu0 0.0
    %8259 = vmatpush1.msra.mxu0 0.0
    %8260 = vmatprep.subr.mxu0 0.0
    %8261 = vmatpush1.msra.mxu0 0.0
    %8262 = vmatprep.subr.mxu0 0.0
    %8263 = vmatpush1.msra.mxu0 0.0
    %8264 = vmatprep.subr.mxu0 0.0
    %8265 = vmatpush1.msra.mxu0 0.0
    %8266 = vmatprep.subr.mxu0 0.0
    %8267 = vmatpush1.msra.mxu0 0.0
    %8268 = vmatprep.subr.mxu0 0.0
    %8269 = vmatpush1.msra.mxu0 0.0
    %8270 = vmatprep.subr.mxu0 0.0
    %8271 = vmatpush1.msra.mxu0 0.0
    %8272 = vmatprep.subr.mxu0 0.0
    %8273 = vmatpush1.msra.mxu0 0.0
    %8274 = vmatprep.subr.mxu0 0.0
    %8275 = vmatpush1.msra.mxu0 0.0
    %8276 = vmatprep.subr.mxu0 0.0
    %8277 = vmatpush1.msra.mxu0 0.0
    %8278 = vmatprep.subr.mxu0 0.0
    %8279 = vmatpush1.msra.mxu0 0.0
    %8280 = vmatprep.subr.mxu0 0.0
    %8281 = vmatpush1.msra.mxu0 0.0
    %8282 = vmatprep.subr.mxu0 0.0
    %8283 = vmatpush1.msra.mxu0 0.0
    %8284 = vmatprep.subr.mxu0 0.0
    %8285 = vmatpush1.msra.mxu0 0.0
    %8286 = vmatprep.subr.mxu0 0.0
    %8287 = vmatpush1.msra.mxu0 0.0
    %8288 = vmatprep.subr.mxu0 0.0
    %8289 = vmatpush1.msra.mxu0 0.0
    %8290 = vmatprep.subr.mxu0 0.0
    %8291 = vmatpush1.msra.mxu0 0.0
    %8292 = vmatprep.subr.mxu0 0.0
    %8293 = vmatpush1.msra.mxu0 0.0
    %8294 = vmatprep.subr.mxu0 0.0
    %8295 = vmatpush1.msra.mxu0 0.0
    %8296 = vmatprep.subr.mxu0 0.0
    %8297 = vmatpush1.msra.mxu0 0.0
    %8298 = vmatprep.subr.mxu0 0.0
    %8299 = vmatpush1.msra.mxu0 0.0
    %8300 = vmatprep.subr.mxu0 0.0
    %8301 = vmatpush1.msra.mxu0 0.0
    %8302 = vmatprep.subr.mxu0 0.0
    %8303 = vmatpush1.msra.mxu0 0.0
    %8304 = vmatprep.subr.mxu0 0.0
    %8305 = vmatpush1.msra.mxu0 0.0
    %8306 = vmatprep.subr.mxu0 0.0
    %8307 = vmatpush1.msra.mxu0 0.0
    %8308 = vmatprep.subr.mxu0 0.0
    %8309 = vmatpush1.msra.mxu0 0.0
    %8310 = vmatprep.subr.mxu0 0.0
    %8311 = vmatpush1.msra.mxu0 0.0
    %8312 = vmatprep.subr.mxu0 0.0
    %8313 = vmatpush1.msra.mxu0 0.0
    %8314 = vmatprep.mubr.f32.mxu0 0.0
    %v8315 = vand.u32 %v4767, 4294901760
    %8316 = vmatmul.mubr.f32.gmra.mrb[0].mxu0 %v8315
    %v8317 = vpop.f32.mrb[0].mxu0
    %v8318 = vadd.f32 %v7961, %v8317
    %v8319 = vpop.f32.mrb[0].mxu0
    %v8320 = vadd.f32 %v7963, %v8319
    %8321 = vmatprep.mubr.f32.mxu0 0.0
    %v8322 = vand.u32 %v4770, 4294901760
    %8323 = vmatmul.mubr.f32.gmra.mrb[0].mxu0 %v8322
    %v8324 = vpop.f32.mrb[0].mxu0
    %v8325 = vadd.f32 %v7970, %v8324
    %v8326 = vpop.f32.mrb[0].mxu0
    %v8327 = vadd.f32 %v7972, %v8326
    %8328 = vmatprep.mubr.f32.mxu0 0.0
    %v8329 = vand.u32 %v4773, 4294901760
    %8330 = vmatmul.mubr.f32.gmra.mrb[0].mxu0 %v8329
    %v8331 = vpop.f32.mrb[0].mxu0
    %v8332 = vadd.f32 %v7979, %v8331
    %v8333 = vpop.f32.mrb[0].mxu0
    %v8334 = vadd.f32 %v7981, %v8333
    %8335 = vmatprep.mubr.f32.mxu0 0.0
    %v8336 = vand.u32 %v4776, 4294901760
    %8337 = vmatmul.mubr.f32.gmra.mrb[0].mxu0 %v8336
    %v8338 = vpop.f32.mrb[0].mxu0
    %v8339 = vadd.f32 %v7988, %v8338
    %v8340 = vpop.f32.mrb[0].mxu0
    %v8341 = vadd.f32 %v7990, %v8340
    %8342 = vmatprep.mubr.f32.mxu0 0.0
    %v8343 = vand.u32 %v4779, 4294901760
    %8344 = vmatmul.mubr.f32.gmra.mrb[0].mxu0 %v8343
    %v8345 = vpop.f32.mrb[0].mxu0
    %v8346 = vadd.f32 %v7997, %v8345
    %v8347 = vpop.f32.mrb[0].mxu0
    %v8348 = vadd.f32 %v7999, %v8347
    %8349 = vmatprep.mubr.f32.mxu0 0.0
    %v8350 = vand.u32 %v4782, 4294901760
    %8351 = vmatmul.mubr.f32.gmra.mrb[0].mxu0 %v8350
    %v8352 = vpop.f32.mrb[0].mxu0
    %v8353 = vadd.f32 %v8006, %v8352
    %v8354 = vpop.f32.mrb[0].mxu0
    %v8355 = vadd.f32 %v8008, %v8354
    %8356 = vmatprep.mubr.f32.mxu0 0.0
    %v8357 = vand.u32 %v4785, 4294901760
    %8358 = vmatmul.mubr.f32.gmra.mrb[0].mxu0 %v8357
    %v8359 = vpop.f32.mrb[0].mxu0
    %v8360 = vadd.f32 %v8015, %v8359
    %v8361 = vpop.f32.mrb[0].mxu0
    %v8362 = vadd.f32 %v8017, %v8361
    %8363 = vmatprep.mubr.f32.mxu0 0.0
    %v8364 = vand.u32 %v4788, 4294901760
    %8365 = vmatmul.mubr.f32.gmra.mrb[0].mxu0 %v8364
    %v8366 = vpop.f32.mrb[0].mxu0
    %v8367 = vadd.f32 %v8024, %v8366
    %v8368 = vpop.f32.mrb[0].mxu0
    %v8369 = vadd.f32 %v8026, %v8368
    %8370 = vmatprep.mubr.f32.mxu0 0.0
    %v8371 = vand.u32 %v4791, 4294901760
    %8372 = vmatmul.mubr.f32.gmra.mrb[0].mxu0 %v8371
    %v8373 = vpop.f32.mrb[0].mxu0
    %v8374 = vadd.f32 %v8033, %v8373
    %v8375 = vpop.f32.mrb[0].mxu0
    %v8376 = vadd.f32 %v8035, %v8375
    %8377 = vmatprep.mubr.f32.mxu0 0.0
    %v8378 = vand.u32 %v4794, 4294901760
    %8379 = vmatmul.mubr.f32.gmra.mrb[0].mxu0 %v8378
    %v8380 = vpop.f32.mrb[0].mxu0
    %v8381 = vadd.f32 %v8042, %v8380
    %v8382 = vpop.f32.mrb[0].mxu0
    %v8383 = vadd.f32 %v8044, %v8382
    %8384 = vmatprep.mubr.f32.mxu0 0.0
    %v8385 = vand.u32 %v4797, 4294901760
    %8386 = vmatmul.mubr.f32.gmra.mrb[0].mxu0 %v8385
    %v8387 = vpop.f32.mrb[0].mxu0
    %v8388 = vadd.f32 %v8051, %v8387
    %v8389 = vpop.f32.mrb[0].mxu0
    %v8390 = vadd.f32 %v8053, %v8389
    %8391 = vmatprep.mubr.f32.mxu0 0.0
    %v8392 = vand.u32 %v4800, 4294901760
    %8393 = vmatmul.mubr.f32.gmra.mrb[0].mxu0 %v8392
    %v8394 = vpop.f32.mrb[0].mxu0
    %v8395 = vadd.f32 %v8060, %v8394
    %v8396 = vpop.f32.mrb[0].mxu0
    %v8397 = vadd.f32 %v8062, %v8396
    %8398 = vmatprep.mubr.f32.mxu0 0.0
    %v8399 = vand.u32 %v4803, 4294901760
    %8400 = vmatmul.mubr.f32.gmra.mrb[0].mxu0 %v8399
    %v8401 = vpop.f32.mrb[0].mxu0
    %v8402 = vadd.f32 %v8069, %v8401
    %v8403 = vpop.f32.mrb[0].mxu0
    %v8404 = vadd.f32 %v8071, %v8403
    %8405 = vmatprep.mubr.f32.mxu0 0.0
    %v8406 = vand.u32 %v4806, 4294901760
    %8407 = vmatmul.mubr.f32.gmra.mrb[0].mxu0 %v8406
    %v8408 = vpop.f32.mrb[0].mxu0
    %v8409 = vadd.f32 %v8078, %v8408
    %v8410 = vpop.f32.mrb[0].mxu0
    %v8411 = vadd.f32 %v8080, %v8410
    %8412 = vmatprep.mubr.f32.mxu0 0.0
    %v8413 = vand.u32 %v4809, 4294901760
    %8414 = vmatmul.mubr.f32.gmra.mrb[0].mxu0 %v8413
    %v8415 = vpop.f32.mrb[0].mxu0
    %v8416 = vadd.f32 %v8087, %v8415
    %v8417 = vpop.f32.mrb[0].mxu0
    %v8418 = vadd.f32 %v8089, %v8417
    %8419 = vmatprep.mubr.f32.mxu0 0.0
    %v8420 = vand.u32 %v4812, 4294901760
    %8421 = vmatmul.mubr.f32.gmra.mrb[0].mxu0 %v8420
    %v8422 = vpop.f32.mrb[0].mxu0
    %v8423 = vadd.f32 %v8096, %v8422
    %v8424 = vpop.f32.mrb[0].mxu0
    %v8425 = vadd.f32 %v8098, %v8424
    %8426 = vmatprep.mubr.f32.mxu0 0.0
    %v8427 = vand.u32 %v4815, 4294901760
    %8428 = vmatmul.mubr.f32.gmra.mrb[0].mxu0 %v8427
    %v8429 = vpop.f32.mrb[0].mxu0
    %v8430 = vadd.f32 %v8105, %v8429
    %v8431 = vpop.f32.mrb[0].mxu0
    %v8432 = vadd.f32 %v8107, %v8431
    %8433 = vmatprep.mubr.f32.mxu0 0.0
    %v8434 = vand.u32 %v4818, 4294901760
    %8435 = vmatmul.mubr.f32.gmra.mrb[0].mxu0 %v8434
    %v8436 = vpop.f32.mrb[0].mxu0
    %v8437 = vadd.f32 %v8114, %v8436
    %v8438 = vpop.f32.mrb[0].mxu0
    %v8439 = vadd.f32 %v8116, %v8438
    %8440 = vmatprep.mubr.f32.mxu0 0.0
    %v8441 = vand.u32 %v4821, 4294901760
    %8442 = vmatmul.mubr.f32.gmra.mrb[0].mxu0 %v8441
    %v8443 = vpop.f32.mrb[0].mxu0
    %v8444 = vadd.f32 %v8123, %v8443
    %v8445 = vpop.f32.mrb[0].mxu0
    %v8446 = vadd.f32 %v8125, %v8445
    %8447 = vmatprep.mubr.f32.mxu0 0.0
    %v8448 = vand.u32 %v4824, 4294901760
    %8449 = vmatmul.mubr.f32.gmra.mrb[0].mxu0 %v8448
    %v8450 = vpop.f32.mrb[0].mxu0
    %v8451 = vadd.f32 %v8132, %v8450
    %v8452 = vpop.f32.mrb[0].mxu0
    %v8453 = vadd.f32 %v8134, %v8452
    %8454 = vmatprep.mubr.f32.mxu0 0.0
    %v8455 = vand.u32 %v4827, 4294901760
    %8456 = vmatmul.mubr.f32.gmra.mrb[0].mxu0 %v8455
    %v8457 = vpop.f32.mrb[0].mxu0
    %v8458 = vadd.f32 %v8141, %v8457
    %v8459 = vpop.f32.mrb[0].mxu0
    %v8460 = vadd.f32 %v8143, %v8459
    %8461 = vmatprep.mubr.f32.mxu0 0.0
    %v8462 = vand.u32 %v4830, 4294901760
    %8463 = vmatmul.mubr.f32.gmra.mrb[0].mxu0 %v8462
    %v8464 = vpop.f32.mrb[0].mxu0
    %v8465 = vadd.f32 %v8150, %v8464
    %v8466 = vpop.f32.mrb[0].mxu0
    %v8467 = vadd.f32 %v8152, %v8466
    %8468 = vmatprep.mubr.f32.mxu0 0.0
    %v8469 = vand.u32 %v4833, 4294901760
    %8470 = vmatmul.mubr.f32.gmra.mrb[0].mxu0 %v8469
    %v8471 = vpop.f32.mrb[0].mxu0
    %v8472 = vadd.f32 %v8159, %v8471
    %v8473 = vpop.f32.mrb[0].mxu0
    %v8474 = vadd.f32 %v8161, %v8473
    %8475 = vmatprep.mubr.f32.mxu0 0.0
    %v8476 = vand.u32 %v4836, 4294901760
    %8477 = vmatmul.mubr.f32.gmra.mrb[0].mxu0 %v8476
    %v8478 = vpop.f32.mrb[0].mxu0
    %v8479 = vadd.f32 %v8168, %v8478
    %v8480 = vpop.f32.mrb[0].mxu0
    %v8481 = vadd.f32 %v8170, %v8480
    %8482 = vmatprep.mubr.f32.mxu0 0.0
    %v8483 = vand.u32 %v4839, 4294901760
    %8484 = vmatmul.mubr.f32.gmra.mrb[0].mxu0 %v8483
    %v8485 = vpop.f32.mrb[0].mxu0
    %v8486 = vadd.f32 %v8177, %v8485
    %v8487 = vpop.f32.mrb[0].mxu0
    %v8488 = vadd.f32 %v8179, %v8487
    %8489 = vmatprep.mubr.f32.mxu0 0.0
    %v8490 = vand.u32 %v4842, 4294901760
    %8491 = vmatmul.mubr.f32.gmra.mrb[0].mxu0 %v8490
    %v8492 = vpop.f32.mrb[0].mxu0
    %v8493 = vadd.f32 %v8186, %v8492
    %v8494 = vpop.f32.mrb[0].mxu0
    %v8495 = vadd.f32 %v8188, %v8494
    %8496 = vmatprep.mubr.f32.mxu0 0.0
    %v8497 = vand.u32 %v4845, 4294901760
    %8498 = vmatmul.mubr.f32.gmra.mrb[0].mxu0 %v8497
    %v8499 = vpop.f32.mrb[0].mxu0
    %v8500 = vadd.f32 %v8195, %v8499
    %v8501 = vpop.f32.mrb[0].mxu0
    %v8502 = vadd.f32 %v8197, %v8501
    %8503 = vmatprep.mubr.f32.mxu0 0.0
    %v8504 = vand.u32 %v4848, 4294901760
    %8505 = vmatmul.mubr.f32.gmra.mrb[0].mxu0 %v8504
    %v8506 = vpop.f32.mrb[0].mxu0
    %v8507 = vadd.f32 %v8204, %v8506
    %v8508 = vpop.f32.mrb[0].mxu0
    %v8509 = vadd.f32 %v8206, %v8508
    %8510 = vmatprep.mubr.f32.mxu0 0.0
    %v8511 = vand.u32 %v4851, 4294901760
    %8512 = vmatmul.mubr.f32.gmra.mrb[0].mxu0 %v8511
    %v8513 = vpop.f32.mrb[0].mxu0
    %v8514 = vadd.f32 %v8213, %v8513
    %v8515 = vpop.f32.mrb[0].mxu0
    %v8516 = vadd.f32 %v8215, %v8515
    %8517 = vmatprep.mubr.f32.mxu0 0.0
    %v8518 = vand.u32 %v4854, 4294901760
    %8519 = vmatmul.mubr.f32.gmra.mrb[0].mxu0 %v8518
    %v8520 = vpop.f32.mrb[0].mxu0
    %v8521 = vadd.f32 %v8222, %v8520
    %v8522 = vpop.f32.mrb[0].mxu0
    %v8523 = vadd.f32 %v8224, %v8522
    %8524 = vmatprep.mubr.f32.mxu0 0.0
    %v8525 = vand.u32 %v4857, 4294901760
    %8526 = vmatmul.mubr.f32.gmra.mrb[0].mxu0 %v8525
    %v8527 = vpop.f32.mrb[0].mxu0
    %v8528 = vadd.f32 %v8231, %v8527
    %v8529 = vpop.f32.mrb[0].mxu0
    %v8530 = vadd.f32 %v8233, %v8529
    %8531 = vmatprep.mubr.f32.mxu0 0.0
    %v8532 = vand.u32 %v4860, 4294901760
    %8533 = vmatmul.mubr.f32.gmra.mrb[0].mxu0 %v8532
    %v8534 = vpop.f32.mrb[0].mxu0
    %v8535 = vadd.f32 %v8240, %v8534
    %v8536 = vpop.f32.mrb[0].mxu0
    %v8537 = vadd.f32 %v8242, %v8536
    %8538 = vdwg.mxu0
    %v8539 = vand.u32 %v221, 4294901760
    %8540 = vmatprep.subr.mxu0 %v8539
    %v8541 = vand.u32 %v219, 4294901760
    %8542 = vmatpush1.msra.mxu0 %v8541
    %8543 = vmatprep.subr.mxu0 0.0
    %8544 = vmatpush1.msra.mxu0 0.0
    %8545 = vmatprep.subr.mxu0 0.0
    %8546 = vmatpush1.msra.mxu0 0.0
    %8547 = vmatprep.subr.mxu0 0.0
    %8548 = vmatpush1.msra.mxu0 0.0
    %8549 = vmatprep.subr.mxu0 0.0
    %8550 = vmatpush1.msra.mxu0 0.0
    %8551 = vmatprep.subr.mxu0 0.0
    %8552 = vmatpush1.msra.mxu0 0.0
    %8553 = vmatprep.subr.mxu0 0.0
    %8554 = vmatpush1.msra.mxu0 0.0
    %8555 = vmatprep.subr.mxu0 0.0
    %8556 = vmatpush1.msra.mxu0 0.0
    %8557 = vmatprep.subr.mxu0 0.0
    %8558 = vmatpush1.msra.mxu0 0.0
    %8559 = vmatprep.subr.mxu0 0.0
    %8560 = vmatpush1.msra.mxu0 0.0
    %8561 = vmatprep.subr.mxu0 0.0
    %8562 = vmatpush1.msra.mxu0 0.0
    %8563 = vmatprep.subr.mxu0 0.0
    %8564 = vmatpush1.msra.mxu0 0.0
    %8565 = vmatprep.subr.mxu0 0.0
    %8566 = vmatpush1.msra.mxu0 0.0
    %8567 = vmatprep.subr.mxu0 0.0
    %8568 = vmatpush1.msra.mxu0 0.0
    %8569 = vmatprep.subr.mxu0 0.0
    %8570 = vmatpush1.msra.mxu0 0.0
    %8571 = vmatprep.subr.mxu0 0.0
    %8572 = vmatpush1.msra.mxu0 0.0
    %8573 = vmatprep.subr.mxu0 0.0
    %8574 = vmatpush1.msra.mxu0 0.0
    %8575 = vmatprep.subr.mxu0 0.0
    %8576 = vmatpush1.msra.mxu0 0.0
    %8577 = vmatprep.subr.mxu0 0.0
    %8578 = vmatpush1.msra.mxu0 0.0
    %8579 = vmatprep.subr.mxu0 0.0
    %8580 = vmatpush1.msra.mxu0 0.0
    %8581 = vmatprep.subr.mxu0 0.0
    %8582 = vmatpush1.msra.mxu0 0.0
    %8583 = vmatprep.subr.mxu0 0.0
    %8584 = vmatpush1.msra.mxu0 0.0
    %8585 = vmatprep.subr.mxu0 0.0
    %8586 = vmatpush1.msra.mxu0 0.0
    %8587 = vmatprep.subr.mxu0 0.0
    %8588 = vmatpush1.msra.mxu0 0.0
    %8589 = vmatprep.subr.mxu0 0.0
    %8590 = vmatpush1.msra.mxu0 0.0
    %8591 = vmatprep.subr.mxu0 0.0
    %8592 = vmatpush1.msra.mxu0 0.0
    %8593 = vmatprep.subr.mxu0 0.0
    %8594 = vmatpush1.msra.mxu0 0.0
    %8595 = vmatprep.subr.mxu0 0.0
    %8596 = vmatpush1.msra.mxu0 0.0
    %8597 = vmatprep.subr.mxu0 0.0
    %8598 = vmatpush1.msra.mxu0 0.0
    %8599 = vmatprep.subr.mxu0 0.0
    %8600 = vmatpush1.msra.mxu0 0.0
    %8601 = vmatprep.subr.mxu0 0.0
    %8602 = vmatpush1.msra.mxu0 0.0
    %8603 = vmatprep.subr.mxu0 0.0
    %8604 = vmatpush1.msra.mxu0 0.0
    %8605 = vmatprep.mubr.f32.mxu0 0.0
    %v8606 = vand.u32 %v4767, 4294901760
    %8607 = vmatmul.mubr.f32.gmra.mrb[0].mxu0 %v8606
    %v8608 = vpop.f32.mrb[0].mxu0
    %v8609 = vadd.f32 %v8318, %v8608
    %v8610 = vpop.f32.mrb[0].mxu0
    %v8611 = vadd.f32 %v8320, %v8610
    %8612 = vmatprep.mubr.f32.mxu0 0.0
    %v8613 = vand.u32 %v4770, 4294901760
    %8614 = vmatmul.mubr.f32.gmra.mrb[0].mxu0 %v8613
    %v8615 = vpop.f32.mrb[0].mxu0
    %v8616 = vadd.f32 %v8325, %v8615
    %v8617 = vpop.f32.mrb[0].mxu0
    %v8618 = vadd.f32 %v8327, %v8617
    %8619 = vmatprep.mubr.f32.mxu0 0.0
    %v8620 = vand.u32 %v4773, 4294901760
    %8621 = vmatmul.mubr.f32.gmra.mrb[0].mxu0 %v8620
    %v8622 = vpop.f32.mrb[0].mxu0
    %v8623 = vadd.f32 %v8332, %v8622
    %v8624 = vpop.f32.mrb[0].mxu0
    %v8625 = vadd.f32 %v8334, %v8624
    %8626 = vmatprep.mubr.f32.mxu0 0.0
    %v8627 = vand.u32 %v4776, 4294901760
    %8628 = vmatmul.mubr.f32.gmra.mrb[0].mxu0 %v8627
    %v8629 = vpop.f32.mrb[0].mxu0
    %v8630 = vadd.f32 %v8339, %v8629
    %v8631 = vpop.f32.mrb[0].mxu0
    %v8632 = vadd.f32 %v8341, %v8631
    %8633 = vmatprep.mubr.f32.mxu0 0.0
    %v8634 = vand.u32 %v4779, 4294901760
    %8635 = vmatmul.mubr.f32.gmra.mrb[0].mxu0 %v8634
    %v8636 = vpop.f32.mrb[0].mxu0
    %v8637 = vadd.f32 %v8346, %v8636
    %v8638 = vpop.f32.mrb[0].mxu0
    %v8639 = vadd.f32 %v8348, %v8638
    %8640 = vmatprep.mubr.f32.mxu0 0.0
    %v8641 = vand.u32 %v4782, 4294901760
    %8642 = vmatmul.mubr.f32.gmra.mrb[0].mxu0 %v8641
    %v8643 = vpop.f32.mrb[0].mxu0
    %v8644 = vadd.f32 %v8353, %v8643
    %v8645 = vpop.f32.mrb[0].mxu0
    %v8646 = vadd.f32 %v8355, %v8645
    %8647 = vmatprep.mubr.f32.mxu0 0.0
    %v8648 = vand.u32 %v4785, 4294901760
    %8649 = vmatmul.mubr.f32.gmra.mrb[0].mxu0 %v8648
    %v8650 = vpop.f32.mrb[0].mxu0
    %v8651 = vadd.f32 %v8360, %v8650
    %v8652 = vpop.f32.mrb[0].mxu0
    %v8653 = vadd.f32 %v8362, %v8652
    %8654 = vmatprep.mubr.f32.mxu0 0.0
    %v8655 = vand.u32 %v4788, 4294901760
    %8656 = vmatmul.mubr.f32.gmra.mrb[0].mxu0 %v8655
    %v8657 = vpop.f32.mrb[0].mxu0
    %v8658 = vadd.f32 %v8367, %v8657
    %v8659 = vpop.f32.mrb[0].mxu0
    %v8660 = vadd.f32 %v8369, %v8659
    %8661 = vmatprep.mubr.f32.mxu0 0.0
    %v8662 = vand.u32 %v4791, 4294901760
    %8663 = vmatmul.mubr.f32.gmra.mrb[0].mxu0 %v8662
    %v8664 = vpop.f32.mrb[0].mxu0
    %v8665 = vadd.f32 %v8374, %v8664
    %v8666 = vpop.f32.mrb[0].mxu0
    %v8667 = vadd.f32 %v8376, %v8666
    %8668 = vmatprep.mubr.f32.mxu0 0.0
    %v8669 = vand.u32 %v4794, 4294901760
    %8670 = vmatmul.mubr.f32.gmra.mrb[0].mxu0 %v8669
    %v8671 = vpop.f32.mrb[0].mxu0
    %v8672 = vadd.f32 %v8381, %v8671
    %v8673 = vpop.f32.mrb[0].mxu0
    %v8674 = vadd.f32 %v8383, %v8673
    %8675 = vmatprep.mubr.f32.mxu0 0.0
    %v8676 = vand.u32 %v4797, 4294901760
    %8677 = vmatmul.mubr.f32.gmra.mrb[0].mxu0 %v8676
    %v8678 = vpop.f32.mrb[0].mxu0
    %v8679 = vadd.f32 %v8388, %v8678
    %v8680 = vpop.f32.mrb[0].mxu0
    %v8681 = vadd.f32 %v8390, %v8680
    %8682 = vmatprep.mubr.f32.mxu0 0.0
    %v8683 = vand.u32 %v4800, 4294901760
    %8684 = vmatmul.mubr.f32.gmra.mrb[0].mxu0 %v8683
    %v8685 = vpop.f32.mrb[0].mxu0
    %v8686 = vadd.f32 %v8395, %v8685
    %v8687 = vpop.f32.mrb[0].mxu0
    %v8688 = vadd.f32 %v8397, %v8687
    %8689 = vmatprep.mubr.f32.mxu0 0.0
    %v8690 = vand.u32 %v4803, 4294901760
    %8691 = vmatmul.mubr.f32.gmra.mrb[0].mxu0 %v8690
    %v8692 = vpop.f32.mrb[0].mxu0
    %v8693 = vadd.f32 %v8402, %v8692
    %v8694 = vpop.f32.mrb[0].mxu0
    %v8695 = vadd.f32 %v8404, %v8694
    %8696 = vmatprep.mubr.f32.mxu0 0.0
    %v8697 = vand.u32 %v4806, 4294901760
    %8698 = vmatmul.mubr.f32.gmra.mrb[0].mxu0 %v8697
    %v8699 = vpop.f32.mrb[0].mxu0
    %v8700 = vadd.f32 %v8409, %v8699
    %v8701 = vpop.f32.mrb[0].mxu0
    %v8702 = vadd.f32 %v8411, %v8701
    %8703 = vmatprep.mubr.f32.mxu0 0.0
    %v8704 = vand.u32 %v4809, 4294901760
    %8705 = vmatmul.mubr.f32.gmra.mrb[0].mxu0 %v8704
    %v8706 = vpop.f32.mrb[0].mxu0
    %v8707 = vadd.f32 %v8416, %v8706
    %v8708 = vpop.f32.mrb[0].mxu0
    %v8709 = vadd.f32 %v8418, %v8708
    %8710 = vmatprep.mubr.f32.mxu0 0.0
    %v8711 = vand.u32 %v4812, 4294901760
    %8712 = vmatmul.mubr.f32.gmra.mrb[0].mxu0 %v8711
    %v8713 = vpop.f32.mrb[0].mxu0
    %v8714 = vadd.f32 %v8423, %v8713
    %v8715 = vpop.f32.mrb[0].mxu0
    %v8716 = vadd.f32 %v8425, %v8715
    %8717 = vmatprep.mubr.f32.mxu0 0.0
    %v8718 = vand.u32 %v4815, 4294901760
    %8719 = vmatmul.mubr.f32.gmra.mrb[0].mxu0 %v8718
    %v8720 = vpop.f32.mrb[0].mxu0
    %v8721 = vadd.f32 %v8430, %v8720
    %v8722 = vpop.f32.mrb[0].mxu0
    %v8723 = vadd.f32 %v8432, %v8722
    %8724 = vmatprep.mubr.f32.mxu0 0.0
    %v8725 = vand.u32 %v4818, 4294901760
    %8726 = vmatmul.mubr.f32.gmra.mrb[0].mxu0 %v8725
    %v8727 = vpop.f32.mrb[0].mxu0
    %v8728 = vadd.f32 %v8437, %v8727
    %v8729 = vpop.f32.mrb[0].mxu0
    %v8730 = vadd.f32 %v8439, %v8729
    %8731 = vmatprep.mubr.f32.mxu0 0.0
    %v8732 = vand.u32 %v4821, 4294901760
    %8733 = vmatmul.mubr.f32.gmra.mrb[0].mxu0 %v8732
    %v8734 = vpop.f32.mrb[0].mxu0
    %v8735 = vadd.f32 %v8444, %v8734
    %v8736 = vpop.f32.mrb[0].mxu0
    %v8737 = vadd.f32 %v8446, %v8736
    %8738 = vmatprep.mubr.f32.mxu0 0.0
    %v8739 = vand.u32 %v4824, 4294901760
    %8740 = vmatmul.mubr.f32.gmra.mrb[0].mxu0 %v8739
    %v8741 = vpop.f32.mrb[0].mxu0
    %v8742 = vadd.f32 %v8451, %v8741
    %v8743 = vpop.f32.mrb[0].mxu0
    %v8744 = vadd.f32 %v8453, %v8743
    %8745 = vmatprep.mubr.f32.mxu0 0.0
    %v8746 = vand.u32 %v4827, 4294901760
    %8747 = vmatmul.mubr.f32.gmra.mrb[0].mxu0 %v8746
    %v8748 = vpop.f32.mrb[0].mxu0
    %v8749 = vadd.f32 %v8458, %v8748
    %v8750 = vpop.f32.mrb[0].mxu0
    %v8751 = vadd.f32 %v8460, %v8750
    %8752 = vmatprep.mubr.f32.mxu0 0.0
    %v8753 = vand.u32 %v4830, 4294901760
    %8754 = vmatmul.mubr.f32.gmra.mrb[0].mxu0 %v8753
    %v8755 = vpop.f32.mrb[0].mxu0
    %v8756 = vadd.f32 %v8465, %v8755
    %v8757 = vpop.f32.mrb[0].mxu0
    %v8758 = vadd.f32 %v8467, %v8757
    %8759 = vmatprep.mubr.f32.mxu0 0.0
    %v8760 = vand.u32 %v4833, 4294901760
    %8761 = vmatmul.mubr.f32.gmra.mrb[0].mxu0 %v8760
    %v8762 = vpop.f32.mrb[0].mxu0
    %v8763 = vadd.f32 %v8472, %v8762
    %v8764 = vpop.f32.mrb[0].mxu0
    %v8765 = vadd.f32 %v8474, %v8764
    %8766 = vmatprep.mubr.f32.mxu0 0.0
    %v8767 = vand.u32 %v4836, 4294901760
    %8768 = vmatmul.mubr.f32.gmra.mrb[0].mxu0 %v8767
    %v8769 = vpop.f32.mrb[0].mxu0
    %v8770 = vadd.f32 %v8479, %v8769
    %v8771 = vpop.f32.mrb[0].mxu0
    %v8772 = vadd.f32 %v8481, %v8771
    %8773 = vmatprep.mubr.f32.mxu0 0.0
    %v8774 = vand.u32 %v4839, 4294901760
    %8775 = vmatmul.mubr.f32.gmra.mrb[0].mxu0 %v8774
    %v8776 = vpop.f32.mrb[0].mxu0
    %v8777 = vadd.f32 %v8486, %v8776
    %v8778 = vpop.f32.mrb[0].mxu0
    %v8779 = vadd.f32 %v8488, %v8778
    %8780 = vmatprep.mubr.f32.mxu0 0.0
    %v8781 = vand.u32 %v4842, 4294901760
    %8782 = vmatmul.mubr.f32.gmra.mrb[0].mxu0 %v8781
    %v8783 = vpop.f32.mrb[0].mxu0
    %v8784 = vadd.f32 %v8493, %v8783
    %v8785 = vpop.f32.mrb[0].mxu0
    %v8786 = vadd.f32 %v8495, %v8785
    %8787 = vmatprep.mubr.f32.mxu0 0.0
    %v8788 = vand.u32 %v4845, 4294901760
    %8789 = vmatmul.mubr.f32.gmra.mrb[0].mxu0 %v8788
    %v8790 = vpop.f32.mrb[0].mxu0
    %v8791 = vadd.f32 %v8500, %v8790
    %v8792 = vpop.f32.mrb[0].mxu0
    %v8793 = vadd.f32 %v8502, %v8792
    %8794 = vmatprep.mubr.f32.mxu0 0.0
    %v8795 = vand.u32 %v4848, 4294901760
    %8796 = vmatmul.mubr.f32.gmra.mrb[0].mxu0 %v8795
    %v8797 = vpop.f32.mrb[0].mxu0
    %v8798 = vadd.f32 %v8507, %v8797
    %v8799 = vpop.f32.mrb[0].mxu0
    %v8800 = vadd.f32 %v8509, %v8799
    %8801 = vmatprep.mubr.f32.mxu0 0.0
    %v8802 = vand.u32 %v4851, 4294901760
    %8803 = vmatmul.mubr.f32.gmra.mrb[0].mxu0 %v8802
    %v8804 = vpop.f32.mrb[0].mxu0
    %v8805 = vadd.f32 %v8514, %v8804
    %v8806 = vpop.f32.mrb[0].mxu0
    %v8807 = vadd.f32 %v8516, %v8806
    %8808 = vmatprep.mubr.f32.mxu0 0.0
    %v8809 = vand.u32 %v4854, 4294901760
    %8810 = vmatmul.mubr.f32.gmra.mrb[0].mxu0 %v8809
    %v8811 = vpop.f32.mrb[0].mxu0
    %v8812 = vadd.f32 %v8521, %v8811
    %v8813 = vpop.f32.mrb[0].mxu0
    %v8814 = vadd.f32 %v8523, %v8813
    %8815 = vmatprep.mubr.f32.mxu0 0.0
    %v8816 = vand.u32 %v4857, 4294901760
    %8817 = vmatmul.mubr.f32.gmra.mrb[0].mxu0 %v8816
    %v8818 = vpop.f32.mrb[0].mxu0
    %v8819 = vadd.f32 %v8528, %v8818
    %v8820 = vpop.f32.mrb[0].mxu0
    %v8821 = vadd.f32 %v8530, %v8820
    %8822 = vmatprep.mubr.f32.mxu0 0.0
    %v8823 = vand.u32 %v4860, 4294901760
    %8824 = vmatmul.mubr.f32.gmra.mrb[0].mxu0 %v8823
    %v8825 = vpop.f32.mrb[0].mxu0
    %v8826 = vadd.f32 %v8535, %v8825
    %v8827 = vpop.f32.mrb[0].mxu0
    %v8828 = vadd.f32 %v8537, %v8827
    %8829 = vdwg.mxu0
    %v8830 = vmax.f32 %v6625, 0.0
    %v8831 = vmax.f32 %v6627, 0.0
    %v8832 = vmax.f32 %v8609, 0.0
    %v8833 = vmax.f32 %v8611, 0.0
    %v8834 = vmax.f32 %v6632, 0.0
    %v8835 = vmax.f32 %v6634, 0.0
    %v8836 = vmax.f32 %v8616, 0.0
    %v8837 = vmax.f32 %v8618, 0.0
    %v8838 = vmax.f32 %v6639, 0.0
    %v8839 = vmax.f32 %v6641, 0.0
    %v8840 = vmax.f32 %v8623, 0.0
    %v8841 = vmax.f32 %v8625, 0.0
    %v8842 = vmax.f32 %v6646, 0.0
    %v8843 = vmax.f32 %v6648, 0.0
    %v8844 = vmax.f32 %v8630, 0.0
    %v8845 = vmax.f32 %v8632, 0.0
    %v8846 = vmax.f32 %v6653, 0.0
    %v8847 = vmax.f32 %v6655, 0.0
    %v8848 = vmax.f32 %v8637, 0.0
    %v8849 = vmax.f32 %v8639, 0.0
    %v8850 = vmax.f32 %v6660, 0.0
    %v8851 = vmax.f32 %v6662, 0.0
    %v8852 = vmax.f32 %v8644, 0.0
    %v8853 = vmax.f32 %v8646, 0.0
    %v8854 = vmax.f32 %v6667, 0.0
    %v8855 = vmax.f32 %v6669, 0.0
    %v8856 = vmax.f32 %v8651, 0.0
    %v8857 = vmax.f32 %v8653, 0.0
    %v8858 = vmax.f32 %v6674, 0.0
    %v8859 = vmax.f32 %v6676, 0.0
    %v8860 = vmax.f32 %v8658, 0.0
    %v8861 = vmax.f32 %v8660, 0.0
    %v8862 = vmax.f32 %v6681, 0.0
    %v8863 = vmax.f32 %v6683, 0.0
    %v8864 = vmax.f32 %v8665, 0.0
    %v8865 = vmax.f32 %v8667, 0.0
    %v8866 = vmax.f32 %v6688, 0.0
    %v8867 = vmax.f32 %v6690, 0.0
    %v8868 = vmax.f32 %v8672, 0.0
    %v8869 = vmax.f32 %v8674, 0.0
    %v8870 = vmax.f32 %v6695, 0.0
    %v8871 = vmax.f32 %v6697, 0.0
    %v8872 = vmax.f32 %v8679, 0.0
    %v8873 = vmax.f32 %v8681, 0.0
    %v8874 = vmax.f32 %v6702, 0.0
    %v8875 = vmax.f32 %v6704, 0.0
    %v8876 = vmax.f32 %v8686, 0.0
    %v8877 = vmax.f32 %v8688, 0.0
    %v8878 = vmax.f32 %v6709, 0.0
    %v8879 = vmax.f32 %v6711, 0.0
    %v8880 = vmax.f32 %v8693, 0.0
    %v8881 = vmax.f32 %v8695, 0.0
    %v8882 = vmax.f32 %v6716, 0.0
    %v8883 = vmax.f32 %v6718, 0.0
    %v8884 = vmax.f32 %v8700, 0.0
    %v8885 = vmax.f32 %v8702, 0.0
    %v8886 = vmax.f32 %v6723, 0.0
    %v8887 = vmax.f32 %v6725, 0.0
    %v8888 = vmax.f32 %v8707, 0.0
    %v8889 = vmax.f32 %v8709, 0.0
    %v8890 = vmax.f32 %v6730, 0.0
    %v8891 = vmax.f32 %v6732, 0.0
    %v8892 = vmax.f32 %v8714, 0.0
    %v8893 = vmax.f32 %v8716, 0.0
    %v8894 = vmax.f32 %v6737, 0.0
    %v8895 = vmax.f32 %v6739, 0.0
    %v8896 = vmax.f32 %v8721, 0.0
    %v8897 = vmax.f32 %v8723, 0.0
    %v8898 = vmax.f32 %v6744, 0.0
    %v8899 = vmax.f32 %v6746, 0.0
    %v8900 = vmax.f32 %v8728, 0.0
    %v8901 = vmax.f32 %v8730, 0.0
    %v8902 = vmax.f32 %v6751, 0.0
    %v8903 = vmax.f32 %v6753, 0.0
    %v8904 = vmax.f32 %v8735, 0.0
    %v8905 = vmax.f32 %v8737, 0.0
    %v8906 = vmax.f32 %v6758, 0.0
    %v8907 = vmax.f32 %v6760, 0.0
    %v8908 = vmax.f32 %v8742, 0.0
    %v8909 = vmax.f32 %v8744, 0.0
    %v8910 = vmax.f32 %v6765, 0.0
    %v8911 = vmax.f32 %v6767, 0.0
    %v8912 = vmax.f32 %v8749, 0.0
    %v8913 = vmax.f32 %v8751, 0.0
    %v8914 = vmax.f32 %v6772, 0.0
    %v8915 = vmax.f32 %v6774, 0.0
    %v8916 = vmax.f32 %v8756, 0.0
    %v8917 = vmax.f32 %v8758, 0.0
    %v8918 = vmax.f32 %v6779, 0.0
    %v8919 = vmax.f32 %v6781, 0.0
    %v8920 = vmax.f32 %v8763, 0.0
    %v8921 = vmax.f32 %v8765, 0.0
    %v8922 = vmax.f32 %v6786, 0.0
    %v8923 = vmax.f32 %v6788, 0.0
    %v8924 = vmax.f32 %v8770, 0.0
    %v8925 = vmax.f32 %v8772, 0.0
    %v8926 = vmax.f32 %v6793, 0.0
    %v8927 = vmax.f32 %v6795, 0.0
    %v8928 = vmax.f32 %v8777, 0.0
    %v8929 = vmax.f32 %v8779, 0.0
    %v8930 = vmax.f32 %v6800, 0.0
    %v8931 = vmax.f32 %v6802, 0.0
    %v8932 = vmax.f32 %v8784, 0.0
    %v8933 = vmax.f32 %v8786, 0.0
    %v8934 = vmax.f32 %v6807, 0.0
    %v8935 = vmax.f32 %v6809, 0.0
    %v8936 = vmax.f32 %v8791, 0.0
    %v8937 = vmax.f32 %v8793, 0.0
    %v8938 = vmax.f32 %v6814, 0.0
    %v8939 = vmax.f32 %v6816, 0.0
    %v8940 = vmax.f32 %v8798, 0.0
    %v8941 = vmax.f32 %v8800, 0.0
    %v8942 = vmax.f32 %v6821, 0.0
    %v8943 = vmax.f32 %v6823, 0.0
    %v8944 = vmax.f32 %v8805, 0.0
    %v8945 = vmax.f32 %v8807, 0.0
    %v8946 = vmax.f32 %v6828, 0.0
    %v8947 = vmax.f32 %v6830, 0.0
    %v8948 = vmax.f32 %v8812, 0.0
    %v8949 = vmax.f32 %v8814, 0.0
    %v8950 = vmax.f32 %v6835, 0.0
    %v8951 = vmax.f32 %v6837, 0.0
    %v8952 = vmax.f32 %v8819, 0.0
    %v8953 = vmax.f32 %v8821, 0.0
    %v8954 = vmax.f32 %v6842, 0.0
    %v8955 = vmax.f32 %v6844, 0.0
    %v8956 = vmax.f32 %v8826, 0.0
    %v8957 = vmax.f32 %v8828, 0.0
    %v8958 = vmax.f32 %v8830, %v8838
    %v8959 = vmax.f32 %v8831, %v8839
    %v8960 = vmax.f32 %v8832, %v8840
    %v8961 = vmax.f32 %v8833, %v8841
    %v8962 = vmax.f32 %v8958, %v8846
    %v8963 = vmax.f32 %v8959, %v8847
    %v8964 = vmax.f32 %v8960, %v8848
    %v8965 = vmax.f32 %v8961, %v8849
    %v8966 = vmax.f32 %v8962, %v8854
    %v8967 = vmax.f32 %v8963, %v8855
    %v8968 = vmax.f32 %v8964, %v8856
    %v8969 = vmax.f32 %v8965, %v8857
    %v8970 = vmax.f32 %v8966, %v8862
    %v8971 = vmax.f32 %v8967, %v8863
    %v8972 = vmax.f32 %v8968, %v8864
    %v8973 = vmax.f32 %v8969, %v8865
    %v8974 = vmax.f32 %v8970, %v8870
    %v8975 = vmax.f32 %v8971, %v8871
    %v8976 = vmax.f32 %v8972, %v8872
    %v8977 = vmax.f32 %v8973, %v8873
    %v8978 = vmax.f32 %v8974, %v8878
    %v8979 = vmax.f32 %v8975, %v8879
    %v8980 = vmax.f32 %v8976, %v8880
    %v8981 = vmax.f32 %v8977, %v8881
    %v8982 = vmax.f32 %v8978, %v8886
    %v8983 = vmax.f32 %v8979, %v8887
    %v8984 = vmax.f32 %v8980, %v8888
    %v8985 = vmax.f32 %v8981, %v8889
    %v8986 = vrot.slane %v8982, 4
    %v8987 = vmax.f32 %v8982, %v8986
    %v8988 = vrot.slane %v8987, 2
    %v8989 = vmax.f32 %v8987, %v8988
    %v8990 = vrot.slane %v8989, 1
    %v8991 = vmax.f32 %v8989, %v8990
    %v8992 = vrot.slane %v8983, 4
    %v8993 = vmax.f32 %v8983, %v8992
    %v8994 = vrot.slane %v8993, 2
    %v8995 = vmax.f32 %v8993, %v8994
    %v8996 = vrot.slane %v8995, 1
    %v8997 = vmax.f32 %v8995, %v8996
    %v8998 = vrot.slane %v8984, 4
    %v8999 = vmax.f32 %v8984, %v8998
    %v9000 = vrot.slane %v8999, 2
    %v9001 = vmax.f32 %v8999, %v9000
    %v9002 = vrot.slane %v9001, 1
    %v9003 = vmax.f32 %v9001, %v9002
    %v9004 = vrot.slane %v8985, 4
    %v9005 = vmax.f32 %v8985, %v9004
    %v9006 = vrot.slane %v9005, 2
    %v9007 = vmax.f32 %v9005, %v9006
    %v9008 = vrot.slane %v9007, 1
    %v9009 = vmax.f32 %v9007, %v9008
    %v9010 = vmax.f32 %v8834, %v8842
    %v9011 = vmax.f32 %v8835, %v8843
    %v9012 = vmax.f32 %v8836, %v8844
    %v9013 = vmax.f32 %v8837, %v8845
    %v9014 = vmax.f32 %v9010, %v8850
    %v9015 = vmax.f32 %v9011, %v8851
    %v9016 = vmax.f32 %v9012, %v8852
    %v9017 = vmax.f32 %v9013, %v8853
    %v9018 = vmax.f32 %v9014, %v8858
    %v9019 = vmax.f32 %v9015, %v8859
    %v9020 = vmax.f32 %v9016, %v8860
    %v9021 = vmax.f32 %v9017, %v8861
    %v9022 = vmax.f32 %v9018, %v8866
    %v9023 = vmax.f32 %v9019, %v8867
    %v9024 = vmax.f32 %v9020, %v8868
    %v9025 = vmax.f32 %v9021, %v8869
    %v9026 = vmax.f32 %v9022, %v8874
    %v9027 = vmax.f32 %v9023, %v8875
    %v9028 = vmax.f32 %v9024, %v8876
    %v9029 = vmax.f32 %v9025, %v8877
    %v9030 = vmax.f32 %v9026, %v8882
    %v9031 = vmax.f32 %v9027, %v8883
    %v9032 = vmax.f32 %v9028, %v8884
    %v9033 = vmax.f32 %v9029, %v8885
    %v9034 = vmax.f32 %v9030, %v8890
    %v9035 = vmax.f32 %v9031, %v8891
    %v9036 = vmax.f32 %v9032, %v8892
    %v9037 = vmax.f32 %v9033, %v8893
    %v9038 = vrot.slane %v9034, 4
    %v9039 = vmax.f32 %v9034, %v9038
    %v9040 = vrot.slane %v9039, 2
    %v9041 = vmax.f32 %v9039, %v9040
    %v9042 = vrot.slane %v9041, 1
    %v9043 = vmax.f32 %v9041, %v9042
    %v9044 = vrot.slane %v9035, 4
    %v9045 = vmax.f32 %v9035, %v9044
    %v9046 = vrot.slane %v9045, 2
    %v9047 = vmax.f32 %v9045, %v9046
    %v9048 = vrot.slane %v9047, 1
    %v9049 = vmax.f32 %v9047, %v9048
    %v9050 = vrot.slane %v9036, 4
    %v9051 = vmax.f32 %v9036, %v9050
    %v9052 = vrot.slane %v9051, 2
    %v9053 = vmax.f32 %v9051, %v9052
    %v9054 = vrot.slane %v9053, 1
    %v9055 = vmax.f32 %v9053, %v9054
    %v9056 = vrot.slane %v9037, 4
    %v9057 = vmax.f32 %v9037, %v9056
    %v9058 = vrot.slane %v9057, 2
    %v9059 = vmax.f32 %v9057, %v9058
    %v9060 = vrot.slane %v9059, 1
    %v9061 = vmax.f32 %v9059, %v9060
    %v9062 = vmax.f32 %v8894, %v8902
    %v9063 = vmax.f32 %v8895, %v8903
    %v9064 = vmax.f32 %v8896, %v8904
    %v9065 = vmax.f32 %v8897, %v8905
    %v9066 = vmax.f32 %v9062, %v8910
    %v9067 = vmax.f32 %v9063, %v8911
    %v9068 = vmax.f32 %v9064, %v8912
    %v9069 = vmax.f32 %v9065, %v8913
    %v9070 = vmax.f32 %v9066, %v8918
    %v9071 = vmax.f32 %v9067, %v8919
    %v9072 = vmax.f32 %v9068, %v8920
    %v9073 = vmax.f32 %v9069, %v8921
    %v9074 = vmax.f32 %v9070, %v8926
    %v9075 = vmax.f32 %v9071, %v8927
    %v9076 = vmax.f32 %v9072, %v8928
    %v9077 = vmax.f32 %v9073, %v8929
    %v9078 = vmax.f32 %v9074, %v8934
    %v9079 = vmax.f32 %v9075, %v8935
    %v9080 = vmax.f32 %v9076, %v8936
    %v9081 = vmax.f32 %v9077, %v8937
    %v9082 = vmax.f32 %v9078, %v8942
    %v9083 = vmax.f32 %v9079, %v8943
    %v9084 = vmax.f32 %v9080, %v8944
    %v9085 = vmax.f32 %v9081, %v8945
    %v9086 = vmax.f32 %v9082, %v8950
    %v9087 = vmax.f32 %v9083, %v8951
    %v9088 = vmax.f32 %v9084, %v8952
    %v9089 = vmax.f32 %v9085, %v8953
    %v9090 = vrot.slane %v9086, 4
    %v9091 = vmax.f32 %v9086, %v9090
    %v9092 = vrot.slane %v9091, 2
    %v9093 = vmax.f32 %v9091, %v9092
    %v9094 = vrot.slane %v9093, 1
    %v9095 = vmax.f32 %v9093, %v9094
    %v9096 = vrot.slane %v9087, 4
    %v9097 = vmax.f32 %v9087, %v9096
    %v9098 = vrot.slane %v9097, 2
    %v9099 = vmax.f32 %v9097, %v9098
    %v9100 = vrot.slane %v9099, 1
    %v9101 = vmax.f32 %v9099, %v9100
    %v9102 = vrot.slane %v9088, 4
    %v9103 = vmax.f32 %v9088, %v9102
    %v9104 = vrot.slane %v9103, 2
    %v9105 = vmax.f32 %v9103, %v9104
    %v9106 = vrot.slane %v9105, 1
    %v9107 = vmax.f32 %v9105, %v9106
    %v9108 = vrot.slane %v9089, 4
    %v9109 = vmax.f32 %v9089, %v9108
    %v9110 = vrot.slane %v9109, 2
    %v9111 = vmax.f32 %v9109, %v9110
    %v9112 = vrot.slane %v9111, 1
    %v9113 = vmax.f32 %v9111, %v9112
    %v9114 = vmax.f32 %v8898, %v8906
    %v9115 = vmax.f32 %v8899, %v8907
    %v9116 = vmax.f32 %v8900, %v8908
    %v9117 = vmax.f32 %v8901, %v8909
    %v9118 = vmax.f32 %v9114, %v8914
    %v9119 = vmax.f32 %v9115, %v8915
    %v9120 = vmax.f32 %v9116, %v8916
    %v9121 = vmax.f32 %v9117, %v8917
    %v9122 = vmax.f32 %v9118, %v8922
    %v9123 = vmax.f32 %v9119, %v8923
    %v9124 = vmax.f32 %v9120, %v8924
    %v9125 = vmax.f32 %v9121, %v8925
    %v9126 = vmax.f32 %v9122, %v8930
    %v9127 = vmax.f32 %v9123, %v8931
    %v9128 = vmax.f32 %v9124, %v8932
    %v9129 = vmax.f32 %v9125, %v8933
    %v9130 = vmax.f32 %v9126, %v8938
    %v9131 = vmax.f32 %v9127, %v8939
    %v9132 = vmax.f32 %v9128, %v8940
    %v9133 = vmax.f32 %v9129, %v8941
    %v9134 = vmax.f32 %v9130, %v8946
    %v9135 = vmax.f32 %v9131, %v8947
    %v9136 = vmax.f32 %v9132, %v8948
    %v9137 = vmax.f32 %v9133, %v8949
    %v9138 = vmax.f32 %v9134, %v8954
    %v9139 = vmax.f32 %v9135, %v8955
    %v9140 = vmax.f32 %v9136, %v8956
    %v9141 = vmax.f32 %v9137, %v8957
    %v9142 = vrot.slane %v9138, 4
    %v9143 = vmax.f32 %v9138, %v9142
    %v9144 = vrot.slane %v9143, 2
    %v9145 = vmax.f32 %v9143, %v9144
    %v9146 = vrot.slane %v9145, 1
    %v9147 = vmax.f32 %v9145, %v9146
    %v9148 = vrot.slane %v9139, 4
    %v9149 = vmax.f32 %v9139, %v9148
    %v9150 = vrot.slane %v9149, 2
    %v9151 = vmax.f32 %v9149, %v9150
    %v9152 = vrot.slane %v9151, 1
    %v9153 = vmax.f32 %v9151, %v9152
    %v9154 = vrot.slane %v9140, 4
    %v9155 = vmax.f32 %v9140, %v9154
    %v9156 = vrot.slane %v9155, 2
    %v9157 = vmax.f32 %v9155, %v9156
    %v9158 = vrot.slane %v9157, 1
    %v9159 = vmax.f32 %v9157, %v9158
    %v9160 = vrot.slane %v9141, 4
    %v9161 = vmax.f32 %v9141, %v9160
    %v9162 = vrot.slane %v9161, 2
    %v9163 = vmax.f32 %v9161, %v9162
    %v9164 = vrot.slane %v9163, 1
    %v9165 = vmax.f32 %v9163, %v9164
    %v9166 = vmax.f32 %v8991, %v9043
    %v9167 = vmax.f32 %v8997, %v9049
    %v9168 = vmax.f32 %v9003, %v9055
    %v9169 = vmax.f32 %v9009, %v9061
    %v9170 = vmax.f32 %v9095, %v9147
    %v9171 = vmax.f32 %v9101, %v9153
    %v9172 = vmax.f32 %v9107, %v9159
    %v9173 = vmax.f32 %v9113, %v9165
    %v9174 = vmax.f32 %v9166, %v9170
    %v9175 = vmax.f32 %v9167, %v9171
    %v9176 = vmax.f32 %v9168, %v9172
    %v9177 = vmax.f32 %v9169, %v9173
    %v9182 = vcombine.low %v8991, %v8997
    %v9183 = vcombine.low %v9003, %v9009
    %v9185 = vunpack.c.l.s4 1966171168
    %v9186 = vunpack.c.0.s8 %v9185
    %v9187 = vlaneseq
    %v9188 = vshrl.u32 %v9187, 7
    %v9189 = vsub.s32 %v9186, %v9188
    %v9190 = vrot.slane %v9182, %v9189
    %v9192 = vunpack.c.l.s4 1966171168
    %v9193 = vunpack.c.0.s8 %v9192
    %v9194 = vlaneseq
    %v9195 = vshrl.u32 %v9194, 7
    %v9196 = vsub.s32 %v9193, %v9195
    %v9197 = vrot.slane %v9183, %v9196
    %v9198 = vcombine.low %v9190, %v9197
    %v9200 = vunpack.c.l.s4 1966171168
    %v9201 = vunpack.c.0.s8 %v9200
    %v9202 = vlaneseq
    %v9203 = vshrl.u32 %v9202, 7
    %v9204 = vsub.s32 %v9201, %v9203
    %v9205 = vrot.slane %v9198, %v9204
    %s9207 = scalar_lea.vmem [#allocation2], 1
    %9208 = vst.msk [vmem:[%s9207] ss:$2 sm:$0xf] %vm4571, %v9205
    %v9213 = vcombine.low %v9043, %v9049
    %v9214 = vcombine.low %v9055, %v9061
    %v9216 = vunpack.c.l.s4 1966171168
    %v9217 = vunpack.c.0.s8 %v9216
    %v9218 = vlaneseq
    %v9219 = vshrl.u32 %v9218, 7
    %v9220 = vsub.s32 %v9217, %v9219
    %v9221 = vrot.slane %v9213, %v9220
    %v9223 = vunpack.c.l.s4 1966171168
    %v9224 = vunpack.c.0.s8 %v9223
    %v9225 = vlaneseq
    %v9226 = vshrl.u32 %v9225, 7
    %v9227 = vsub.s32 %v9224, %v9226
    %v9228 = vrot.slane %v9214, %v9227
    %v9229 = vcombine.low %v9221, %v9228
    %v9231 = vunpack.c.l.s4 1966171168
    %v9232 = vunpack.c.0.s8 %v9231
    %v9233 = vlaneseq
    %v9234 = vshrl.u32 %v9233, 7
    %v9235 = vsub.s32 %v9232, %v9234
    %v9236 = vrot.slane %v9229, %v9235
    %s9238 = scalar_lea.vmem [#allocation2], 9
    %9239 = vst.msk [vmem:[%s9238] ss:$2 sm:$0xf] %vm4571, %v9236
    %v9244 = vcombine.low %v9095, %v9101
    %v9245 = vcombine.low %v9107, %v9113
    %v9247 = vunpack.c.l.s4 1966171168
    %v9248 = vunpack.c.0.s8 %v9247
    %v9249 = vlaneseq
    %v9250 = vshrl.u32 %v9249, 7
    %v9251 = vsub.s32 %v9248, %v9250
    %v9252 = vrot.slane %v9244, %v9251
    %v9254 = vunpack.c.l.s4 1966171168
    %v9255 = vunpack.c.0.s8 %v9254
    %v9256 = vlaneseq
    %v9257 = vshrl.u32 %v9256, 7
    %v9258 = vsub.s32 %v9255, %v9257
    %v9259 = vrot.slane %v9245, %v9258
    %v9260 = vcombine.low %v9252, %v9259
    %v9262 = vunpack.c.l.s4 1966171168
    %v9263 = vunpack.c.0.s8 %v9262
    %v9264 = vlaneseq
    %v9265 = vshrl.u32 %v9264, 7
    %v9266 = vsub.s32 %v9263, %v9265
    %v9267 = vrot.slane %v9260, %v9266
    %s9269 = scalar_lea.vmem [#allocation2], 17
    %9270 = vst.msk [vmem:[%s9269] ss:$2 sm:$0xf] %vm4571, %v9267
    %v9275 = vcombine.low %v9147, %v9153
    %v9276 = vcombine.low %v9159, %v9165
    %v9278 = vunpack.c.l.s4 1966171168
    %v9279 = vunpack.c.0.s8 %v9278
    %v9280 = vlaneseq
    %v9281 = vshrl.u32 %v9280, 7
    %v9282 = vsub.s32 %v9279, %v9281
    %v9283 = vrot.slane %v9275, %v9282
    %v9285 = vunpack.c.l.s4 1966171168
    %v9286 = vunpack.c.0.s8 %v9285
    %v9287 = vlaneseq
    %v9288 = vshrl.u32 %v9287, 7
    %v9289 = vsub.s32 %v9286, %v9288
    %v9290 = vrot.slane %v9276, %v9289
    %v9291 = vcombine.low %v9283, %v9290
    %v9293 = vunpack.c.l.s4 1966171168
    %v9294 = vunpack.c.0.s8 %v9293
    %v9295 = vlaneseq
    %v9296 = vshrl.u32 %v9295, 7
    %v9297 = vsub.s32 %v9294, %v9296
    %v9298 = vrot.slane %v9291, %v9297
    %s9300 = scalar_lea.vmem [#allocation2], 25
    %9301 = vst.msk [vmem:[%s9300] ss:$2 sm:$0xf] %vm4571, %v9298
    %v9306 = vcombine.low %v9174, %v9175
    %v9307 = vcombine.low %v9176, %v9177
    %v9309 = vunpack.c.l.s4 1966171168
    %v9310 = vunpack.c.0.s8 %v9309
    %v9311 = vlaneseq
    %v9312 = vshrl.u32 %v9311, 7
    %v9313 = vsub.s32 %v9310, %v9312
    %v9314 = vrot.slane %v9306, %v9313
    %v9316 = vunpack.c.l.s4 1966171168
    %v9317 = vunpack.c.0.s8 %v9316
    %v9318 = vlaneseq
    %v9319 = vshrl.u32 %v9318, 7
    %v9320 = vsub.s32 %v9317, %v9319
    %v9321 = vrot.slane %v9307, %v9320
    %v9322 = vcombine.low %v9314, %v9321
    %v9324 = vunpack.c.l.s4 1966171168
    %v9325 = vunpack.c.0.s8 %v9324
    %v9326 = vlaneseq
    %v9327 = vshrl.u32 %v9326, 7
    %v9328 = vsub.s32 %v9325, %v9327
    %v9329 = vrot.slane %v9322, %v9328
    %s9331 = scalar_lea.vmem [#allocation2], 33
    %9332 = vst.msk [vmem:[%s9331] ss:$2 sm:$0xf] %vm4571, %v9329
    %v9333 = vld [vmem:[#allocation2] sm:$0xff]
    %v9334 = vld [vmem:[#allocation2 + $0x8] sm:$0xff]
    %v9335 = vld [vmem:[#allocation2 + $0x10] sm:$0xff]
    %v9336 = vld [vmem:[#allocation2 + $0x18] sm:$0xff]
    %v9337 = vld [vmem:[#allocation2 + $0x20] sm:$0xff]
    %v9338 = vld [vmem:[%s3] sm:$0xff]
    %v9339 = vld [vmem:[%s3 + $0x8] sm:$0xff]
    %v9340 = vld [vmem:[%s3 + $0x10] sm:$0xff]
    %v9341 = vld [vmem:[%s3 + $0x18] sm:$0xff]
    %v9342 = vld [vmem:[%s3 + $0x20] sm:$0xff]
    %v9343 = vlaneseq
    %v9344 = vand.u32 %v9343, 127
    %v9350 = vlaneseq
    %v9351 = vshrl.u32 %v9350, 7
    %v9352 = vsub.s32 0, %v9351
    %v9353 = vrot.slane %v9338, %v9352
    %v9354 = vlaneseq
    %v9355 = vshrl.u32 %v9354, 7
    %v9356 = vsub.s32 2, %v9355
    %v9357 = vrot.slane %v9338, %v9356
    %v9358 = vlaneseq
    %v9359 = vshrl.u32 %v9358, 7
    %v9360 = vsub.s32 4, %v9359
    %v9361 = vrot.slane %v9338, %v9360
    %v9362 = vlaneseq
    %v9363 = vshrl.u32 %v9362, 7
    %v9364 = vsub.s32 6, %v9363
    %v9365 = vrot.slane %v9338, %v9364
    %v9366 = vlaneseq
    %v9367 = vshrl.u32 %v9366, 7
    %v9368 = vsub.s32 0, %v9367
    %v9369 = vrot.slane %v9339, %v9368
    %v9370 = vlaneseq
    %v9371 = vshrl.u32 %v9370, 7
    %v9372 = vsub.s32 2, %v9371
    %v9373 = vrot.slane %v9339, %v9372
    %v9374 = vlaneseq
    %v9375 = vshrl.u32 %v9374, 7
    %v9376 = vsub.s32 4, %v9375
    %v9377 = vrot.slane %v9339, %v9376
    %v9378 = vlaneseq
    %v9379 = vshrl.u32 %v9378, 7
    %v9380 = vsub.s32 6, %v9379
    %v9381 = vrot.slane %v9339, %v9380
    %v9382 = vlaneseq
    %v9383 = vshrl.u32 %v9382, 7
    %v9384 = vsub.s32 0, %v9383
    %v9385 = vrot.slane %v9340, %v9384
    %v9386 = vlaneseq
    %v9387 = vshrl.u32 %v9386, 7
    %v9388 = vsub.s32 2, %v9387
    %v9389 = vrot.slane %v9340, %v9388
    %v9390 = vlaneseq
    %v9391 = vshrl.u32 %v9390, 7
    %v9392 = vsub.s32 4, %v9391
    %v9393 = vrot.slane %v9340, %v9392
    %v9394 = vlaneseq
    %v9395 = vshrl.u32 %v9394, 7
    %v9396 = vsub.s32 6, %v9395
    %v9397 = vrot.slane %v9340, %v9396
    %v9398 = vlaneseq
    %v9399 = vshrl.u32 %v9398, 7
    %v9400 = vsub.s32 0, %v9399
    %v9401 = vrot.slane %v9341, %v9400
    %v9402 = vlaneseq
    %v9403 = vshrl.u32 %v9402, 7
    %v9404 = vsub.s32 2, %v9403
    %v9405 = vrot.slane %v9341, %v9404
    %v9406 = vlaneseq
    %v9407 = vshrl.u32 %v9406, 7
    %v9408 = vsub.s32 4, %v9407
    %v9409 = vrot.slane %v9341, %v9408
    %v9410 = vlaneseq
    %v9411 = vshrl.u32 %v9410, 7
    %v9412 = vsub.s32 6, %v9411
    %v9413 = vrot.slane %v9341, %v9412
    %v9414 = vlaneseq
    %v9415 = vshrl.u32 %v9414, 7
    %v9416 = vsub.s32 0, %v9415
    %v9417 = vrot.slane %v9342, %v9416
    %v9418 = vlaneseq
    %v9419 = vshrl.u32 %v9418, 7
    %v9420 = vsub.s32 2, %v9419
    %v9421 = vrot.slane %v9342, %v9420
    %v9422 = vlaneseq
    %v9423 = vshrl.u32 %v9422, 7
    %v9424 = vsub.s32 4, %v9423
    %v9425 = vrot.slane %v9342, %v9424
    %v9426 = vlaneseq
    %v9427 = vshrl.u32 %v9426, 7
    %v9428 = vsub.s32 6, %v9427
    %v9429 = vrot.slane %v9342, %v9428
    %v9450 = vlaneseq
    %v9451 = vshrl.u32 %v9450, 7
    %v9452 = vsub.s32 0, %v9451
    %v9453 = vrot.slane %v9353, %v9452
    %v9454 = vlaneseq
    %v9455 = vshrl.u32 %v9454, 7
    %v9456 = vsub.s32 0, %v9455
    %v9457 = vrot.slane %v9357, %v9456
    %v9458 = vlaneseq
    %v9459 = vshrl.u32 %v9458, 7
    %v9460 = vsub.s32 0, %v9459
    %v9461 = vrot.slane %v9361, %v9460
    %v9462 = vlaneseq
    %v9463 = vshrl.u32 %v9462, 7
    %v9464 = vsub.s32 0, %v9463
    %v9465 = vrot.slane %v9365, %v9464
    %v9466 = vlaneseq
    %v9467 = vshrl.u32 %v9466, 7
    %v9468 = vsub.s32 0, %v9467
    %v9469 = vrot.slane %v9369, %v9468
    %v9470 = vlaneseq
    %v9471 = vshrl.u32 %v9470, 7
    %v9472 = vsub.s32 0, %v9471
    %v9473 = vrot.slane %v9373, %v9472
    %v9474 = vlaneseq
    %v9475 = vshrl.u32 %v9474, 7
    %v9476 = vsub.s32 0, %v9475
    %v9477 = vrot.slane %v9377, %v9476
    %v9478 = vlaneseq
    %v9479 = vshrl.u32 %v9478, 7
    %v9480 = vsub.s32 0, %v9479
    %v9481 = vrot.slane %v9381, %v9480
    %v9482 = vlaneseq
    %v9483 = vshrl.u32 %v9482, 7
    %v9484 = vsub.s32 0, %v9483
    %v9485 = vrot.slane %v9385, %v9484
    %v9486 = vlaneseq
    %v9487 = vshrl.u32 %v9486, 7
    %v9488 = vsub.s32 0, %v9487
    %v9489 = vrot.slane %v9389, %v9488
    %v9490 = vlaneseq
    %v9491 = vshrl.u32 %v9490, 7
    %v9492 = vsub.s32 0, %v9491
    %v9493 = vrot.slane %v9393, %v9492
    %v9494 = vlaneseq
    %v9495 = vshrl.u32 %v9494, 7
    %v9496 = vsub.s32 0, %v9495
    %v9497 = vrot.slane %v9397, %v9496
    %v9498 = vlaneseq
    %v9499 = vshrl.u32 %v9498, 7
    %v9500 = vsub.s32 0, %v9499
    %v9501 = vrot.slane %v9401, %v9500
    %v9502 = vlaneseq
    %v9503 = vshrl.u32 %v9502, 7
    %v9504 = vsub.s32 0, %v9503
    %v9505 = vrot.slane %v9405, %v9504
    %v9506 = vlaneseq
    %v9507 = vshrl.u32 %v9506, 7
    %v9508 = vsub.s32 0, %v9507
    %v9509 = vrot.slane %v9409, %v9508
    %v9510 = vlaneseq
    %v9511 = vshrl.u32 %v9510, 7
    %v9512 = vsub.s32 0, %v9511
    %v9513 = vrot.slane %v9413, %v9512
    %v9514 = vlaneseq
    %v9515 = vshrl.u32 %v9514, 7
    %v9516 = vsub.s32 0, %v9515
    %v9517 = vrot.slane %v9417, %v9516
    %v9518 = vlaneseq
    %v9519 = vshrl.u32 %v9518, 7
    %v9520 = vsub.s32 0, %v9519
    %v9521 = vrot.slane %v9421, %v9520
    %v9522 = vlaneseq
    %v9523 = vshrl.u32 %v9522, 7
    %v9524 = vsub.s32 0, %v9523
    %v9525 = vrot.slane %v9425, %v9524
    %v9526 = vlaneseq
    %v9527 = vshrl.u32 %v9526, 7
    %v9528 = vsub.s32 0, %v9527
    %v9529 = vrot.slane %v9429, %v9528
    %v9550 = vcombine.low %v9453, %v9457
    %v9551 = vcombine.low %v9461, %v9465
    %v9553 = vunpack.c.l.s4 1983009808
    %v9554 = vunpack.c.0.s8 %v9553
    %v9555 = vlaneseq
    %v9556 = vshrl.u32 %v9555, 7
    %v9557 = vsub.s32 %v9554, %v9556
    %v9558 = vrot.slane %v9550, %v9557
    %v9560 = vunpack.c.l.s4 1983009808
    %v9561 = vunpack.c.0.s8 %v9560
    %v9562 = vlaneseq
    %v9563 = vshrl.u32 %v9562, 7
    %v9564 = vsub.s32 %v9561, %v9563
    %v9565 = vrot.slane %v9551, %v9564
    %v9566 = vcombine.low %v9558, %v9565
    %v9567 = vcombine.low %v9469, %v9473
    %v9568 = vcombine.low %v9477, %v9481
    %v9570 = vunpack.c.l.s4 1983009808
    %v9571 = vunpack.c.0.s8 %v9570
    %v9572 = vlaneseq
    %v9573 = vshrl.u32 %v9572, 7
    %v9574 = vsub.s32 %v9571, %v9573
    %v9575 = vrot.slane %v9567, %v9574
    %v9577 = vunpack.c.l.s4 1983009808
    %v9578 = vunpack.c.0.s8 %v9577
    %v9579 = vlaneseq
    %v9580 = vshrl.u32 %v9579, 7
    %v9581 = vsub.s32 %v9578, %v9580
    %v9582 = vrot.slane %v9568, %v9581
    %v9583 = vcombine.low %v9575, %v9582
    %v9584 = vcombine.low %v9485, %v9489
    %v9585 = vcombine.low %v9493, %v9497
    %v9587 = vunpack.c.l.s4 1983009808
    %v9588 = vunpack.c.0.s8 %v9587
    %v9589 = vlaneseq
    %v9590 = vshrl.u32 %v9589, 7
    %v9591 = vsub.s32 %v9588, %v9590
    %v9592 = vrot.slane %v9584, %v9591
    %v9594 = vunpack.c.l.s4 1983009808
    %v9595 = vunpack.c.0.s8 %v9594
    %v9596 = vlaneseq
    %v9597 = vshrl.u32 %v9596, 7
    %v9598 = vsub.s32 %v9595, %v9597
    %v9599 = vrot.slane %v9585, %v9598
    %v9600 = vcombine.low %v9592, %v9599
    %v9601 = vcombine.low %v9501, %v9505
    %v9602 = vcombine.low %v9509, %v9513
    %v9604 = vunpack.c.l.s4 1983009808
    %v9605 = vunpack.c.0.s8 %v9604
    %v9606 = vlaneseq
    %v9607 = vshrl.u32 %v9606, 7
    %v9608 = vsub.s32 %v9605, %v9607
    %v9609 = vrot.slane %v9601, %v9608
    %v9611 = vunpack.c.l.s4 1983009808
    %v9612 = vunpack.c.0.s8 %v9611
    %v9613 = vlaneseq
    %v9614 = vshrl.u32 %v9613, 7
    %v9615 = vsub.s32 %v9612, %v9614
    %v9616 = vrot.slane %v9602, %v9615
    %v9617 = vcombine.low %v9609, %v9616
    %v9618 = vcombine.low %v9517, %v9521
    %v9619 = vcombine.low %v9525, %v9529
    %v9621 = vunpack.c.l.s4 1983009808
    %v9622 = vunpack.c.0.s8 %v9621
    %v9623 = vlaneseq
    %v9624 = vshrl.u32 %v9623, 7
    %v9625 = vsub.s32 %v9622, %v9624
    %v9626 = vrot.slane %v9618, %v9625
    %v9628 = vunpack.c.l.s4 1983009808
    %v9629 = vunpack.c.0.s8 %v9628
    %v9630 = vlaneseq
    %v9631 = vshrl.u32 %v9630, 7
    %v9632 = vsub.s32 %v9629, %v9631
    %v9633 = vrot.slane %v9619, %v9632
    %v9634 = vcombine.low %v9626, %v9633
    %v9640 = vmul.f32 %v9333, %v9566
    %v9641 = vmul.f32 %v9334, %v9583
    %v9642 = vmul.f32 %v9335, %v9600
    %v9643 = vmul.f32 %v9336, %v9617
    %v9644 = vmul.f32 %v9337, %v9634
    %v9650 = vcombine.high %v9640, %v9640
    %v9652 = vunpack.c.l.s4 1983009808
    %v9653 = vunpack.c.0.s8 %v9652
    %v9654 = vlaneseq
    %v9655 = vshrl.u32 %v9654, 7
    %v9656 = vsub.s32 %v9653, %v9655
    %v9657 = vrot.slane %v9640, %v9656
    %v9659 = vunpack.c.l.s4 1983009808
    %v9660 = vunpack.c.0.s8 %v9659
    %v9661 = vlaneseq
    %v9662 = vshrl.u32 %v9661, 7
    %v9663 = vsub.s32 %v9660, %v9662
    %v9664 = vrot.slane %v9650, %v9663
    %v9665 = vcombine.high %v9657, %v9657
    %v9666 = vcombine.high %v9664, %v9664
    %v9667 = vcombine.high %v9641, %v9641
    %v9669 = vunpack.c.l.s4 1983009808
    %v9670 = vunpack.c.0.s8 %v9669
    %v9671 = vlaneseq
    %v9672 = vshrl.u32 %v9671, 7
    %v9673 = vsub.s32 %v9670, %v9672
    %v9674 = vrot.slane %v9641, %v9673
    %v9676 = vunpack.c.l.s4 1983009808
    %v9677 = vunpack.c.0.s8 %v9676
    %v9678 = vlaneseq
    %v9679 = vshrl.u32 %v9678, 7
    %v9680 = vsub.s32 %v9677, %v9679
    %v9681 = vrot.slane %v9667, %v9680
    %v9682 = vcombine.high %v9674, %v9674
    %v9683 = vcombine.high %v9681, %v9681
    %v9684 = vcombine.high %v9642, %v9642
    %v9686 = vunpack.c.l.s4 1983009808
    %v9687 = vunpack.c.0.s8 %v9686
    %v9688 = vlaneseq
    %v9689 = vshrl.u32 %v9688, 7
    %v9690 = vsub.s32 %v9687, %v9689
    %v9691 = vrot.slane %v9642, %v9690
    %v9693 = vunpack.c.l.s4 1983009808
    %v9694 = vunpack.c.0.s8 %v9693
    %v9695 = vlaneseq
    %v9696 = vshrl.u32 %v9695, 7
    %v9697 = vsub.s32 %v9694, %v9696
    %v9698 = vrot.slane %v9684, %v9697
    %v9699 = vcombine.high %v9691, %v9691
    %v9700 = vcombine.high %v9698, %v9698
    %v9701 = vcombine.high %v9643, %v9643
    %v9703 = vunpack.c.l.s4 1983009808
    %v9704 = vunpack.c.0.s8 %v9703
    %v9705 = vlaneseq
    %v9706 = vshrl.u32 %v9705, 7
    %v9707 = vsub.s32 %v9704, %v9706
    %v9708 = vrot.slane %v9643, %v9707
    %v9710 = vunpack.c.l.s4 1983009808
    %v9711 = vunpack.c.0.s8 %v9710
    %v9712 = vlaneseq
    %v9713 = vshrl.u32 %v9712, 7
    %v9714 = vsub.s32 %v9711, %v9713
    %v9715 = vrot.slane %v9701, %v9714
    %v9716 = vcombine.high %v9708, %v9708
    %v9717 = vcombine.high %v9715, %v9715
    %v9718 = vcombine.high %v9644, %v9644
    %v9720 = vunpack.c.l.s4 1983009808
    %v9721 = vunpack.c.0.s8 %v9720
    %v9722 = vlaneseq
    %v9723 = vshrl.u32 %v9722, 7
    %v9724 = vsub.s32 %v9721, %v9723
    %v9725 = vrot.slane %v9644, %v9724
    %v9727 = vunpack.c.l.s4 1983009808
    %v9728 = vunpack.c.0.s8 %v9727
    %v9729 = vlaneseq
    %v9730 = vshrl.u32 %v9729, 7
    %v9731 = vsub.s32 %v9728, %v9730
    %v9732 = vrot.slane %v9718, %v9731
    %v9733 = vcombine.high %v9725, %v9725
    %v9734 = vcombine.high %v9732, %v9732
    %vm9755 = vcmask 1041408
    %v9756 = vsel %vm9755, %v9657, 0.0
    %v9757 = vsel %vm9755, %v9665, 0.0
    %v9758 = vadd.f32 %v9756, %v9757
    %v9759 = vsel %vm9755, %v9664, 0.0
    %v9760 = vadd.f32 %v9758, %v9759
    %v9761 = vsel %vm9755, %v9666, 0.0
    %v9762 = vadd.f32 %v9760, %v9761
    %v9763 = vsel %vm9755, %v9674, 0.0
    %v9764 = vadd.f32 %v9762, %v9763
    %v9765 = vsel %vm9755, %v9682, 0.0
    %v9766 = vadd.f32 %v9764, %v9765
    %v9767 = vsel %vm9755, %v9681, 0.0
    %v9768 = vadd.f32 %v9766, %v9767
    %v9769 = vsel %vm9755, %v9683, 0.0
    %v9770 = vadd.f32 %v9768, %v9769
    %v9771 = vsel %vm9755, %v9691, 0.0
    %v9772 = vadd.f32 %v9770, %v9771
    %v9773 = vsel %vm9755, %v9699, 0.0
    %v9774 = vadd.f32 %v9772, %v9773
    %v9775 = vsel %vm9755, %v9698, 0.0
    %v9776 = vadd.f32 %v9774, %v9775
    %v9777 = vsel %vm9755, %v9700, 0.0
    %v9778 = vadd.f32 %v9776, %v9777
    %v9779 = vsel %vm9755, %v9708, 0.0
    %v9780 = vadd.f32 %v9778, %v9779
    %v9781 = vsel %vm9755, %v9716, 0.0
    %v9782 = vadd.f32 %v9780, %v9781
    %v9783 = vsel %vm9755, %v9715, 0.0
    %v9784 = vadd.f32 %v9782, %v9783
    %v9785 = vsel %vm9755, %v9717, 0.0
    %v9786 = vadd.f32 %v9784, %v9785
    %v9787 = vsel %vm9755, %v9725, 0.0
    %v9788 = vadd.f32 %v9786, %v9787
    %v9789 = vsel %vm9755, %v9733, 0.0
    %v9790 = vadd.f32 %v9788, %v9789
    %v9791 = vsel %vm9755, %v9732, 0.0
    %v9792 = vadd.f32 %v9790, %v9791
    %v9793 = vsel %vm9755, %v9734, 0.0
    %v9794 = vadd.f32 %v9792, %v9793
    %9795 = vadd.xlane.f32.xlu0 %v9794
    %v9796 = vpop.xlane.xlu0 %9795
    %vm9797 = vcmp.eq.s32.totalorder %v9344, 0
    %v9798 = vsel %vm9797, %v9796, 0.0
    %v9799 = vlaneseq
    %v9800 = vshrl.u32 %v9799, 7
    %v9801 = vsub.s32 1, %v9800
    %v9802 = vrot.slane %v9338, %v9801
    %v9803 = vlaneseq
    %v9804 = vshrl.u32 %v9803, 7
    %v9805 = vsub.s32 3, %v9804
    %v9806 = vrot.slane %v9338, %v9805
    %v9807 = vlaneseq
    %v9808 = vshrl.u32 %v9807, 7
    %v9809 = vsub.s32 5, %v9808
    %v9810 = vrot.slane %v9338, %v9809
    %v9811 = vlaneseq
    %v9812 = vshrl.u32 %v9811, 7
    %v9813 = vsub.s32 7, %v9812
    %v9814 = vrot.slane %v9338, %v9813
    %v9815 = vlaneseq
    %v9816 = vshrl.u32 %v9815, 7
    %v9817 = vsub.s32 1, %v9816
    %v9818 = vrot.slane %v9339, %v9817
    %v9819 = vlaneseq
    %v9820 = vshrl.u32 %v9819, 7
    %v9821 = vsub.s32 3, %v9820
    %v9822 = vrot.slane %v9339, %v9821
    %v9823 = vlaneseq
    %v9824 = vshrl.u32 %v9823, 7
    %v9825 = vsub.s32 5, %v9824
    %v9826 = vrot.slane %v9339, %v9825
    %v9827 = vlaneseq
    %v9828 = vshrl.u32 %v9827, 7
    %v9829 = vsub.s32 7, %v9828
    %v9830 = vrot.slane %v9339, %v9829
    %v9831 = vlaneseq
    %v9832 = vshrl.u32 %v9831, 7
    %v9833 = vsub.s32 1, %v9832
    %v9834 = vrot.slane %v9340, %v9833
    %v9835 = vlaneseq
    %v9836 = vshrl.u32 %v9835, 7
    %v9837 = vsub.s32 3, %v9836
    %v9838 = vrot.slane %v9340, %v9837
    %v9839 = vlaneseq
    %v9840 = vshrl.u32 %v9839, 7
    %v9841 = vsub.s32 5, %v9840
    %v9842 = vrot.slane %v9340, %v9841
    %v9843 = vlaneseq
    %v9844 = vshrl.u32 %v9843, 7
    %v9845 = vsub.s32 7, %v9844
    %v9846 = vrot.slane %v9340, %v9845
    %v9847 = vlaneseq
    %v9848 = vshrl.u32 %v9847, 7
    %v9849 = vsub.s32 1, %v9848
    %v9850 = vrot.slane %v9341, %v9849
    %v9851 = vlaneseq
    %v9852 = vshrl.u32 %v9851, 7
    %v9853 = vsub.s32 3, %v9852
    %v9854 = vrot.slane %v9341, %v9853
    %v9855 = vlaneseq
    %v9856 = vshrl.u32 %v9855, 7
    %v9857 = vsub.s32 5, %v9856
    %v9858 = vrot.slane %v9341, %v9857
    %v9859 = vlaneseq
    %v9860 = vshrl.u32 %v9859, 7
    %v9861 = vsub.s32 7, %v9860
    %v9862 = vrot.slane %v9341, %v9861
    %v9863 = vlaneseq
    %v9864 = vshrl.u32 %v9863, 7
    %v9865 = vsub.s32 1, %v9864
    %v9866 = vrot.slane %v9342, %v9865
    %v9867 = vlaneseq
    %v9868 = vshrl.u32 %v9867, 7
    %v9869 = vsub.s32 3, %v9868
    %v9870 = vrot.slane %v9342, %v9869
    %v9871 = vlaneseq
    %v9872 = vshrl.u32 %v9871, 7
    %v9873 = vsub.s32 5, %v9872
    %v9874 = vrot.slane %v9342, %v9873
    %v9875 = vlaneseq
    %v9876 = vshrl.u32 %v9875, 7
    %v9877 = vsub.s32 7, %v9876
    %v9878 = vrot.slane %v9342, %v9877
    %v9899 = vlaneseq
    %v9900 = vshrl.u32 %v9899, 7
    %v9901 = vsub.s32 1, %v9900
    %v9902 = vrot.slane %v9802, %v9901
    %v9903 = vlaneseq
    %v9904 = vshrl.u32 %v9903, 7
    %v9905 = vsub.s32 1, %v9904
    %v9906 = vrot.slane %v9806, %v9905
    %v9907 = vlaneseq
    %v9908 = vshrl.u32 %v9907, 7
    %v9909 = vsub.s32 1, %v9908
    %v9910 = vrot.slane %v9810, %v9909
    %v9911 = vlaneseq
    %v9912 = vshrl.u32 %v9911, 7
    %v9913 = vsub.s32 1, %v9912
    %v9914 = vrot.slane %v9814, %v9913
    %v9915 = vlaneseq
    %v9916 = vshrl.u32 %v9915, 7
    %v9917 = vsub.s32 1, %v9916
    %v9918 = vrot.slane %v9818, %v9917
    %v9919 = vlaneseq
    %v9920 = vshrl.u32 %v9919, 7
    %v9921 = vsub.s32 1, %v9920
    %v9922 = vrot.slane %v9822, %v9921
    %v9923 = vlaneseq
    %v9924 = vshrl.u32 %v9923, 7
    %v9925 = vsub.s32 1, %v9924
    %v9926 = vrot.slane %v9826, %v9925
    %v9927 = vlaneseq
    %v9928 = vshrl.u32 %v9927, 7
    %v9929 = vsub.s32 1, %v9928
    %v9930 = vrot.slane %v9830, %v9929
    %v9931 = vlaneseq
    %v9932 = vshrl.u32 %v9931, 7
    %v9933 = vsub.s32 1, %v9932
    %v9934 = vrot.slane %v9834, %v9933
    %v9935 = vlaneseq
    %v9936 = vshrl.u32 %v9935, 7
    %v9937 = vsub.s32 1, %v9936
    %v9938 = vrot.slane %v9838, %v9937
    %v9939 = vlaneseq
    %v9940 = vshrl.u32 %v9939, 7
    %v9941 = vsub.s32 1, %v9940
    %v9942 = vrot.slane %v9842, %v9941
    %v9943 = vlaneseq
    %v9944 = vshrl.u32 %v9943, 7
    %v9945 = vsub.s32 1, %v9944
    %v9946 = vrot.slane %v9846, %v9945
    %v9947 = vlaneseq
    %v9948 = vshrl.u32 %v9947, 7
    %v9949 = vsub.s32 1, %v9948
    %v9950 = vrot.slane %v9850, %v9949
    %v9951 = vlaneseq
    %v9952 = vshrl.u32 %v9951, 7
    %v9953 = vsub.s32 1, %v9952
    %v9954 = vrot.slane %v9854, %v9953
    %v9955 = vlaneseq
    %v9956 = vshrl.u32 %v9955, 7
    %v9957 = vsub.s32 1, %v9956
    %v9958 = vrot.slane %v9858, %v9957
    %v9959 = vlaneseq
    %v9960 = vshrl.u32 %v9959, 7
    %v9961 = vsub.s32 1, %v9960
    %v9962 = vrot.slane %v9862, %v9961
    %v9963 = vlaneseq
    %v9964 = vshrl.u32 %v9963, 7
    %v9965 = vsub.s32 1, %v9964
    %v9966 = vrot.slane %v9866, %v9965
    %v9967 = vlaneseq
    %v9968 = vshrl.u32 %v9967, 7
    %v9969 = vsub.s32 1, %v9968
    %v9970 = vrot.slane %v9870, %v9969
    %v9971 = vlaneseq
    %v9972 = vshrl.u32 %v9971, 7
    %v9973 = vsub.s32 1, %v9972
    %v9974 = vrot.slane %v9874, %v9973
    %v9975 = vlaneseq
    %v9976 = vshrl.u32 %v9975, 7
    %v9977 = vsub.s32 1, %v9976
    %v9978 = vrot.slane %v9878, %v9977
    %v9999 = vcombine.low %v9902, %v9906
    %v10000 = vcombine.low %v9910, %v9914
    %v10002 = vunpack.c.l.s4 1983009808
    %v10003 = vunpack.c.0.s8 %v10002
    %v10004 = vlaneseq
    %v10005 = vshrl.u32 %v10004, 7
    %v10006 = vsub.s32 %v10003, %v10005
    %v10007 = vrot.slane %v9999, %v10006
    %v10009 = vunpack.c.l.s4 1983009808
    %v10010 = vunpack.c.0.s8 %v10009
    %v10011 = vlaneseq
    %v10012 = vshrl.u32 %v10011, 7
    %v10013 = vsub.s32 %v10010, %v10012
    %v10014 = vrot.slane %v10000, %v10013
    %v10015 = vcombine.low %v10007, %v10014
    %v10016 = vcombine.low %v9918, %v9922
    %v10017 = vcombine.low %v9926, %v9930
    %v10019 = vunpack.c.l.s4 1983009808
    %v10020 = vunpack.c.0.s8 %v10019
    %v10021 = vlaneseq
    %v10022 = vshrl.u32 %v10021, 7
    %v10023 = vsub.s32 %v10020, %v10022
    %v10024 = vrot.slane %v10016, %v10023
    %v10026 = vunpack.c.l.s4 1983009808
    %v10027 = vunpack.c.0.s8 %v10026
    %v10028 = vlaneseq
    %v10029 = vshrl.u32 %v10028, 7
    %v10030 = vsub.s32 %v10027, %v10029
    %v10031 = vrot.slane %v10017, %v10030
    %v10032 = vcombine.low %v10024, %v10031
    %v10033 = vcombine.low %v9934, %v9938
    %v10034 = vcombine.low %v9942, %v9946
    %v10036 = vunpack.c.l.s4 1983009808
    %v10037 = vunpack.c.0.s8 %v10036
    %v10038 = vlaneseq
    %v10039 = vshrl.u32 %v10038, 7
    %v10040 = vsub.s32 %v10037, %v10039
    %v10041 = vrot.slane %v10033, %v10040
    %v10043 = vunpack.c.l.s4 1983009808
    %v10044 = vunpack.c.0.s8 %v10043
    %v10045 = vlaneseq
    %v10046 = vshrl.u32 %v10045, 7
    %v10047 = vsub.s32 %v10044, %v10046
    %v10048 = vrot.slane %v10034, %v10047
    %v10049 = vcombine.low %v10041, %v10048
    %v10050 = vcombine.low %v9950, %v9954
    %v10051 = vcombine.low %v9958, %v9962
    %v10053 = vunpack.c.l.s4 1983009808
    %v10054 = vunpack.c.0.s8 %v10053
    %v10055 = vlaneseq
    %v10056 = vshrl.u32 %v10055, 7
    %v10057 = vsub.s32 %v10054, %v10056
    %v10058 = vrot.slane %v10050, %v10057
    %v10060 = vunpack.c.l.s4 1983009808
    %v10061 = vunpack.c.0.s8 %v10060
    %v10062 = vlaneseq
    %v10063 = vshrl.u32 %v10062, 7
    %v10064 = vsub.s32 %v10061, %v10063
    %v10065 = vrot.slane %v10051, %v10064
    %v10066 = vcombine.low %v10058, %v10065
    %v10067 = vcombine.low %v9966, %v9970
    %v10068 = vcombine.low %v9974, %v9978
    %v10070 = vunpack.c.l.s4 1983009808
    %v10071 = vunpack.c.0.s8 %v10070
    %v10072 = vlaneseq
    %v10073 = vshrl.u32 %v10072, 7
    %v10074 = vsub.s32 %v10071, %v10073
    %v10075 = vrot.slane %v10067, %v10074
    %v10077 = vunpack.c.l.s4 1983009808
    %v10078 = vunpack.c.0.s8 %v10077
    %v10079 = vlaneseq
    %v10080 = vshrl.u32 %v10079, 7
    %v10081 = vsub.s32 %v10078, %v10080
    %v10082 = vrot.slane %v10068, %v10081
    %v10083 = vcombine.low %v10075, %v10082
    %v10089 = vmul.f32 %v9333, %v10015
    %v10090 = vmul.f32 %v9334, %v10032
    %v10091 = vmul.f32 %v9335, %v10049
    %v10092 = vmul.f32 %v9336, %v10066
    %v10093 = vmul.f32 %v9337, %v10083
    %v10099 = vcombine.high %v10089, %v10089
    %v10101 = vunpack.c.l.s4 1983009808
    %v10102 = vunpack.c.0.s8 %v10101
    %v10103 = vlaneseq
    %v10104 = vshrl.u32 %v10103, 7
    %v10105 = vsub.s32 %v10102, %v10104
    %v10106 = vrot.slane %v10089, %v10105
    %v10108 = vunpack.c.l.s4 1983009808
    %v10109 = vunpack.c.0.s8 %v10108
    %v10110 = vlaneseq
    %v10111 = vshrl.u32 %v10110, 7
    %v10112 = vsub.s32 %v10109, %v10111
    %v10113 = vrot.slane %v10099, %v10112
    %v10114 = vcombine.high %v10106, %v10106
    %v10115 = vcombine.high %v10113, %v10113
    %v10116 = vcombine.high %v10090, %v10090
    %v10118 = vunpack.c.l.s4 1983009808
    %v10119 = vunpack.c.0.s8 %v10118
    %v10120 = vlaneseq
    %v10121 = vshrl.u32 %v10120, 7
    %v10122 = vsub.s32 %v10119, %v10121
    %v10123 = vrot.slane %v10090, %v10122
    %v10125 = vunpack.c.l.s4 1983009808
    %v10126 = vunpack.c.0.s8 %v10125
    %v10127 = vlaneseq
    %v10128 = vshrl.u32 %v10127, 7
    %v10129 = vsub.s32 %v10126, %v10128
    %v10130 = vrot.slane %v10116, %v10129
    %v10131 = vcombine.high %v10123, %v10123
    %v10132 = vcombine.high %v10130, %v10130
    %v10133 = vcombine.high %v10091, %v10091
    %v10135 = vunpack.c.l.s4 1983009808
    %v10136 = vunpack.c.0.s8 %v10135
    %v10137 = vlaneseq
    %v10138 = vshrl.u32 %v10137, 7
    %v10139 = vsub.s32 %v10136, %v10138
    %v10140 = vrot.slane %v10091, %v10139
    %v10142 = vunpack.c.l.s4 1983009808
    %v10143 = vunpack.c.0.s8 %v10142
    %v10144 = vlaneseq
    %v10145 = vshrl.u32 %v10144, 7
    %v10146 = vsub.s32 %v10143, %v10145
    %v10147 = vrot.slane %v10133, %v10146
    %v10148 = vcombine.high %v10140, %v10140
    %v10149 = vcombine.high %v10147, %v10147
    %v10150 = vcombine.high %v10092, %v10092
    %v10152 = vunpack.c.l.s4 1983009808
    %v10153 = vunpack.c.0.s8 %v10152
    %v10154 = vlaneseq
    %v10155 = vshrl.u32 %v10154, 7
    %v10156 = vsub.s32 %v10153, %v10155
    %v10157 = vrot.slane %v10092, %v10156
    %v10159 = vunpack.c.l.s4 1983009808
    %v10160 = vunpack.c.0.s8 %v10159
    %v10161 = vlaneseq
    %v10162 = vshrl.u32 %v10161, 7
    %v10163 = vsub.s32 %v10160, %v10162
    %v10164 = vrot.slane %v10150, %v10163
    %v10165 = vcombine.high %v10157, %v10157
    %v10166 = vcombine.high %v10164, %v10164
    %v10167 = vcombine.high %v10093, %v10093
    %v10169 = vunpack.c.l.s4 1983009808
    %v10170 = vunpack.c.0.s8 %v10169
    %v10171 = vlaneseq
    %v10172 = vshrl.u32 %v10171, 7
    %v10173 = vsub.s32 %v10170, %v10172
    %v10174 = vrot.slane %v10093, %v10173
    %v10176 = vunpack.c.l.s4 1983009808
    %v10177 = vunpack.c.0.s8 %v10176
    %v10178 = vlaneseq
    %v10179 = vshrl.u32 %v10178, 7
    %v10180 = vsub.s32 %v10177, %v10179
    %v10181 = vrot.slane %v10167, %v10180
    %v10182 = vcombine.high %v10174, %v10174
    %v10183 = vcombine.high %v10181, %v10181
    %v10204 = vsel %vm9755, %v10106, 0.0
    %v10205 = vsel %vm9755, %v10114, 0.0
    %v10206 = vadd.f32 %v10204, %v10205
    %v10207 = vsel %vm9755, %v10113, 0.0
    %v10208 = vadd.f32 %v10206, %v10207
    %v10209 = vsel %vm9755, %v10115, 0.0
    %v10210 = vadd.f32 %v10208, %v10209
    %v10211 = vsel %vm9755, %v10123, 0.0
    %v10212 = vadd.f32 %v10210, %v10211
    %v10213 = vsel %vm9755, %v10131, 0.0
    %v10214 = vadd.f32 %v10212, %v10213
    %v10215 = vsel %vm9755, %v10130, 0.0
    %v10216 = vadd.f32 %v10214, %v10215
    %v10217 = vsel %vm9755, %v10132, 0.0
    %v10218 = vadd.f32 %v10216, %v10217
    %v10219 = vsel %vm9755, %v10140, 0.0
    %v10220 = vadd.f32 %v10218, %v10219
    %v10221 = vsel %vm9755, %v10148, 0.0
    %v10222 = vadd.f32 %v10220, %v10221
    %v10223 = vsel %vm9755, %v10147, 0.0
    %v10224 = vadd.f32 %v10222, %v10223
    %v10225 = vsel %vm9755, %v10149, 0.0
    %v10226 = vadd.f32 %v10224, %v10225
    %v10227 = vsel %vm9755, %v10157, 0.0
    %v10228 = vadd.f32 %v10226, %v10227
    %v10229 = vsel %vm9755, %v10165, 0.0
    %v10230 = vadd.f32 %v10228, %v10229
    %v10231 = vsel %vm9755, %v10164, 0.0
    %v10232 = vadd.f32 %v10230, %v10231
    %v10233 = vsel %vm9755, %v10166, 0.0
    %v10234 = vadd.f32 %v10232, %v10233
    %v10235 = vsel %vm9755, %v10174, 0.0
    %v10236 = vadd.f32 %v10234, %v10235
    %v10237 = vsel %vm9755, %v10182, 0.0
    %v10238 = vadd.f32 %v10236, %v10237
    %v10239 = vsel %vm9755, %v10181, 0.0
    %v10240 = vadd.f32 %v10238, %v10239
    %v10241 = vsel %vm9755, %v10183, 0.0
    %v10242 = vadd.f32 %v10240, %v10241
    %10243 = vadd.xlane.f32.xlu0 %v10242
    %v10244 = vpop.xlane.xlu0 %10243
    %vm10245 = vcmp.eq.s32.totalorder %v9344, 1
    %v10246 = vsel %vm10245, %v10244, %v9798
    %v10247 = vld [vmem:[%s4] sm:$0x1]
    %v10249 = vlaneseq
    %v10250 = vshrl.u32 %v10249, 7
    %v10251 = vsub.s32 0, %v10250
    %v10252 = vrot.slane %v10247, %v10251
    %v10254 = vadd.f32 %v10246, %v10252
    %10255 = vst [vmem:[#allocation3] sm:$0x3] %v10254
    // Predicated region
    $region22: #{spp_net_forward.1} parent=1 // pred_check
      _
    $region23: #{spp_net_forward.1} parent=1 // pred_check_branch
      %10257 = sbr.rel (0) target = $region25
    $region24: #{spp_net_forward.1} parent=1 // pred_region
      %s10259 = ssub.s32 32, 32
      %10260 = vsyncadd [#allocation4], %s10259
      %s10262 = sshll.u32 [#allocation3], 4
      %s10263 = int_to_ptr.vmem [resolvable:$true] %s10262
      %10265 = dma.vmem_to_hbm [thread:$0]  %s10263, 32, %s5, [#allocation4]
    $region25: #{spp_net_forward.1} parent=1 // pred_fallthru
      _
    // Predicated region
    $region26: #{spp_net_forward.1} parent=1 // pred_check
      _
    $region27: #{spp_net_forward.1} parent=1 // pred_check_branch
      %10267 = sbr.rel (0) target = $region29
    $region28: #{spp_net_forward.1} parent=1 // pred_region
      %10268 = dma.done [#allocation4], 32
    $region29: #{spp_net_forward.1} parent=1 // pred_fallthru
      _
    %10269 = vsyncpa [#allocation4], 1

</llo_original>
